<compile_context>
chip_gen: v7x
topology: tpu7x:2x2x1
jax: 0.10.0
libtpu: 0.0.40
codegen_flags: <defaults>
</compile_context>

<pallas_src>
import functools

import numpy as np
import jax
import jax.numpy as jnp
from jax.experimental import pallas as pl
from jax.experimental.pallas import tpu as pltpu

# ---------------- small Swin config (consistent with the module) ----------------
PATCH_SIZE = 4
IN_CHANS = 3
EMBED_DIM = 32
DEPTHS = (2, 2)
NUM_HEADS = (2, 4)
WINDOW_SIZE = 4
MLP_RATIO = 4.0
OUT_INDICES = (0, 1)
LN_EPS = 1e-5
NEG_INF = -1e9  # cross-window mask inside a batched tile (exp() underflows to 0)


# ============================ in-kernel math helpers ============================
def _layernorm(x, g, b):
    mean = jnp.mean(x, axis=-1, keepdims=True)
    xc = x - mean
    var = jnp.mean(xc * xc, axis=-1, keepdims=True)
    return xc * jax.lax.rsqrt(var + LN_EPS) * g + b


def _erf(x):
    # Abramowitz & Stegun 7.1.26 rational approximation (|err| < 1.5e-7).
    # Matches torch.nn.GELU's exact erf far below bf16-matmul noise while
    # avoiding any dependence on a lax.erf Mosaic lowering.
    ax = jnp.abs(x)
    t = 1.0 / (1.0 + 0.3275911 * ax)
    poly = t * (0.254829592 + t * (-0.284496736 + t * (1.421413741
               + t * (-1.453152027 + t * 1.061405429))))
    y = 1.0 - poly * jnp.exp(-(ax * ax))
    return jnp.where(x < 0.0, -y, y)


def _gelu(x):
    return 0.5 * x * (1.0 + _erf(x * 0.7071067811865476))


def _bf16_dot(a, b):
    # bf16 MXU inputs, f32 accumulation (astype on an already-bf16 array is free)
    return jnp.dot(a.astype(jnp.bfloat16), b.astype(jnp.bfloat16),
                   preferred_element_type=jnp.float32)


def _bf16_dot_t(a, b):
    # a @ b.T without materializing the transpose
    return jax.lax.dot_general(a.astype(jnp.bfloat16), b.astype(jnp.bfloat16),
                               (((1,), (1,)), ((), ())),
                               preferred_element_type=jnp.float32)


# ============================== row-tile selection ==============================
def _row_tile(M, cap=1024):
    # Mem-bound kernels (LayerNorm / embed / merge): biggest multiple-of-8 tile
    # up to `cap` rows that still gives >=2 grid steps.
    for tm in (1024, 512, 256, 128, 64, 32, 16, 8):
        if tm <= cap and M % tm == 0 and M // tm >= 2:
            return tm
    return M


def _image_row_tile(M, img_rows, cap=256):
    """Attention row tile = a whole number of images so the (H, tm, tm)
    bias+mask tensor is group-invariant (single resident copy).  Prefer >=2
    grid steps (keeps both v7x TensorCores busy); capped at 256 rows so the
    block kernel stays far under v7x's 64 MiB VMEM."""
    n_img = max(M // img_rows, 1)
    best = 1
    for k in range(1, n_img + 1):
        if n_img % k == 0 and k * img_rows <= cap and n_img // k >= 2:
            best = k
    return best * img_rows


# ================================ Pallas kernels ================================
def _swin_block_kernel(x_ref, n1g_ref, n1b_ref,
                       wqkv_ref, bqkv_ref,
                       bias_ref, wp_ref, bp_ref,
                       n2g_ref, n2b_ref, w1_ref, b1_ref, w2_ref, b2_ref,
                       o_ref, *, num_heads, head_dim):
    """Whole Swin block on a window-aligned (whole-image) row tile of tokens."""
    x = x_ref[...]                                            # (tm, C) f32 shortcut
    C = x.shape[-1]
    # -------- LayerNorm 1 (stays in VMEM) --------
    # NOTE: padded zero tokens see var=0 -> rsqrt(eps); their outputs are
    # discarded after window_reverse, so this is harmless by construction.
    xn = _layernorm(x, n1g_ref[...], n1b_ref[...])
    xn_bf = xn.astype(jnp.bfloat16)                           # cast once, reuse
    # -------- fused QKV: one (tm, C) @ (C, 3C) matmul (scale folded into Wq) ----
    qkv = jnp.dot(xn_bf, wqkv_ref[...],
                  preferred_element_type=jnp.float32) + bqkv_ref[...]
    # -------- multi-head window attention: all windows in this tile handled as
    # one block-diagonal batch (cross-window logits pre-masked to -1e9) --------
    heads = []
    for h in range(num_heads):                                # small static unroll
        qh = qkv[:, h * head_dim:(h + 1) * head_dim]
        kh = qkv[:, C + h * head_dim:C + (h + 1) * head_dim]
        vh = qkv[:, 2 * C + h * head_dim:2 * C + (h + 1) * head_dim]
        s = _bf16_dot_t(qh, kh) + bias_ref[0, h]              # (tm, tm) + bias/mask
        s = s - jnp.max(s, axis=-1, keepdims=True)
        p = jnp.exp(s)
        p = p * pl.reciprocal(jnp.sum(p, axis=-1, keepdims=True), approx=True)
        heads.append(_bf16_dot(p, vh))                        # (tm, D)
    attn = jnp.concatenate(heads, axis=-1)                    # (tm, C)
    # -------- single head projection (tm, C) @ (C, C) + residual 1 --------
    y = x + _bf16_dot(attn, wp_ref[...]) + bp_ref[...]
    # -------- LayerNorm 2 + MLP; hidden activations never leave VMEM --------
    yn = _layernorm(y, n2g_ref[...], n2b_ref[...])
    hdn = _gelu(_bf16_dot(yn, w1_ref[...]) + b1_ref[...])
    o_ref[...] = (y + _bf16_dot(hdn, w2_ref[...]) + b2_ref[...]).astype(o_ref.dtype)


def pallas_swin_block(x_win, blk, bias, num_heads, tm):
    """x_win: (M, C) window-partitioned tokens; bias: (1, H, tm, tm) resident."""
    M, C = x_win.shape
    H = bias.shape[1]
    D = C // num_heads
    hidden = blk["fc1_w"].shape[1]
    kernel = functools.partial(_swin_block_kernel, num_heads=num_heads, head_dim=D)
    row = lambda i: (i, 0)
    c2 = lambda i: (0, 0)
    return pl.pallas_call(
        kernel,
        out_shape=jax.ShapeDtypeStruct((M, C), jnp.float32),
        grid=(M // tm,),
        in_specs=[
            pl.BlockSpec((tm, C), row),                                 # tokens
            pl.BlockSpec((1, C), c2), pl.BlockSpec((1, C), c2),         # LN1 g, b
            pl.BlockSpec((C, 3 * C), c2), pl.BlockSpec((1, 3 * C), c2),  # Wqkv, bqkv
            pl.BlockSpec((1, H, tm, tm), lambda i: (0, 0, 0, 0)),       # bias+mask (resident)
            pl.BlockSpec((C, C), c2), pl.BlockSpec((1, C), c2),         # Wproj, bproj
            pl.BlockSpec((1, C), c2), pl.BlockSpec((1, C), c2),         # LN2 g, b
            pl.BlockSpec((C, hidden), c2), pl.BlockSpec((1, hidden), c2),  # fc1
            pl.BlockSpec((hidden, C), c2), pl.BlockSpec((1, C), c2),       # fc2
        ],
        out_specs=pl.BlockSpec((tm, C), row),
        compiler_params=pltpu.CompilerParams(
            dimension_semantics=("parallel",),
            vmem_limit_bytes=32 * 1024 * 1024),
    )(x_win,
      blk["norm1_g"], blk["norm1_b"],
      blk["wqkv"], blk["bqkv"],
      bias,
      blk["proj_w"], blk["proj_b"],
      blk["norm2_g"], blk["norm2_b"],
      blk["fc1_w"], blk["fc1_b"],
      blk["fc2_w"], blk["fc2_b"])


def _embed_kernel(x_ref, w_ref, b_ref, g_ref, bb_ref, o_ref):
    # patch-embed: unfolded conv (matmul) + bias + patch LayerNorm, fused
    y = _bf16_dot(x_ref[...], w_ref[...]) + b_ref[...]
    o_ref[...] = _layernorm(y, g_ref[...], bb_ref[...]).astype(o_ref.dtype)


def pallas_patch_embed(patches, w, b, g, beta):
    M, K = patches.shape
    N = w.shape[1]
    tm = _row_tile(M)
    return pl.pallas_call(
        _embed_kernel,
        out_shape=jax.ShapeDtypeStruct((M, N), jnp.float32),
        grid=(M // tm,),
        in_specs=[
            pl.BlockSpec((tm, K), lambda i: (i, 0)),
            pl.BlockSpec((K, N), lambda i: (0, 0)),
            pl.BlockSpec((1, N), lambda i: (0, 0)),
            pl.BlockSpec((1, N), lambda i: (0, 0)),
            pl.BlockSpec((1, N), lambda i: (0, 0)),
        ],
        out_specs=pl.BlockSpec((tm, N), lambda i: (i, 0)),
        compiler_params=pltpu.CompilerParams(dimension_semantics=("parallel",)),
    )(patches, w, b, g, beta)


def _merge_kernel(x_ref, g_ref, b_ref, w_ref, o_ref):
    # patch-merging: LayerNorm(4C) + bias-free reduction (4C -> 2C), fused
    xn = _layernorm(x_ref[...], g_ref[...], b_ref[...])
    o_ref[...] = _bf16_dot(xn, w_ref[...]).astype(o_ref.dtype)


def pallas_patch_merging(x, g, b, w):
    M, K = x.shape
    N = w.shape[1]
    tm = _row_tile(M)
    return pl.pallas_call(
        _merge_kernel,
        out_shape=jax.ShapeDtypeStruct((M, N), jnp.float32),
        grid=(M // tm,),
        in_specs=[
            pl.BlockSpec((tm, K), lambda i: (i, 0)),
            pl.BlockSpec((1, K), lambda i: (0, 0)),
            pl.BlockSpec((1, K), lambda i: (0, 0)),
            pl.BlockSpec((K, N), lambda i: (0, 0)),
        ],
        out_specs=pl.BlockSpec((tm, N), lambda i: (i, 0)),
        compiler_params=pltpu.CompilerParams(dimension_semantics=("parallel",)),
    )(x, g, b, w)


def _ln_kernel(x_ref, g_ref, b_ref, o_ref):
    o_ref[...] = _layernorm(x_ref[...], g_ref[...], b_ref[...]).astype(o_ref.dtype)


def pallas_layernorm(x, g, b):
    M, C = x.shape
    tm = _row_tile(M)
    return pl.pallas_call(
        _ln_kernel,
        out_shape=jax.ShapeDtypeStruct((M, C), x.dtype),
        grid=(M // tm,),
        in_specs=[pl.BlockSpec((tm, C), lambda i: (i, 0)),
                  pl.BlockSpec((1, C), lambda i: (0, 0)),
                  pl.BlockSpec((1, C), lambda i: (0, 0))],
        out_specs=pl.BlockSpec((tm, C), lambda i: (i, 0)),
        compiler_params=pltpu.CompilerParams(dimension_semantics=("parallel",)),
    )(x, g, b)


# ================================ JAX glue =====================================
def window_partition(x, ws):
    B, H, W, C = x.shape
    x = x.reshape(B, H // ws, ws, W // ws, ws, C)
    return x.transpose(0, 1, 3, 2, 4, 5).reshape(-1, ws, ws, C)


def window_reverse(windows, ws, H, W):
    B = windows.shape[0] // (H * W // ws // ws)
    x = windows.reshape(B, H // ws, W // ws, ws, ws, -1)
    return x.transpose(0, 1, 3, 2, 4, 5).reshape(B, H, W, -1)


def relative_position_index(ws):
    coords = np.stack(np.meshgrid(np.arange(ws), np.arange(ws), indexing="ij"))
    coords_flatten = coords.reshape(2, -1)
    rel = coords_flatten[:, :, None] - coords_flatten[:, None, :]
    rel = rel.transpose(1, 2, 0).astype(np.int64)
    rel[:, :, 0] += ws - 1
    rel[:, :, 1] += ws - 1
    rel[:, :, 0] *= 2 * ws - 1
    return rel.sum(-1)  # (ws*ws, ws*ws)


def compute_attn_mask(Hp, Wp, ws, shift):
    img_mask = np.zeros((1, Hp, Wp, 1), np.float32)
    slices = (slice(0, -ws), slice(-ws, -shift), slice(-shift, None))
    cnt = 0
    for h in slices:
        for w in slices:
            img_mask[:, h, w, :] = cnt
            cnt += 1
    mw = img_mask.reshape(1, Hp // ws, ws, Wp // ws, ws, 1)
    mw = mw.transpose(0, 1, 3, 2, 4, 5).reshape(-1, ws * ws)
    am = mw[:, None, :] - mw[:, :, None]
    am = np.where(am != 0, -100.0, 0.0).astype(np.float32)
    return jnp.asarray(am)  # (nW, N, N)


def build_tile_bias(rel_bias, shift_mask, G, N, nW):
    """Group-invariant (1, H, tm, tm) bias tensor.

    rel-pos bias (+ per-window shift mask) sits on the window-diagonal blocks,
    NEG_INF everywhere else, so one softmax over the whole (tm, tm) tile equals
    per-window softmax.  Because the tile is a whole number of images
    (G % nW == 0), the tensor is identical for every grid step -> passed with a
    constant index_map so Pallas DMAs it once and keeps it resident in VMEM.
    """
    H = rel_bias.shape[0]
    wb = jnp.broadcast_to(rel_bias[None], (G, H, N, N))       # (G, H, N, N)
    if shift_mask is not None:
        wb = wb + jnp.tile(shift_mask, (G // nW, 1, 1))[:, None, :, :]
    eye = jnp.eye(G, dtype=jnp.float32)
    diag = jnp.einsum("ab,ahij->haibj", eye, wb).reshape(H, G * N, G * N)
    off = jnp.asarray(
        NEG_INF * (1.0 - np.kron(np.eye(G), np.ones((N, N)))), jnp.float32)
    return (diag + off[None])[None]                            # (1, H, tm, tm)


def swin_block(blk, x, H, W, shift, shift_mask, num_heads):
    B, L, C = x.shape
    ws = WINDOW_SIZE
    N = ws * ws
    xs = x.reshape(B, H, W, C)
    pad_r = (ws - W % ws) % ws
    pad_b = (ws - H % ws) % ws
    if pad_r or pad_b:
        xs = jnp.pad(xs, ((0, 0), (0, pad_b), (0, pad_r), (0, 0)))
    Hp, Wp = H + pad_b, W + pad_r
    if shift > 0:
        xs = jnp.roll(xs, (-shift, -shift), axis=(1, 2))
    nW = (Hp // ws) * (Wp // ws)
    M = B * nW * N
    x_win = window_partition(xs, ws).reshape(M, C)

    img_rows = nW * N
    tm = _image_row_tile(M, img_rows)
    G = tm // N                                               # G is a multiple of nW
    bias = build_tile_bias(blk["rel_bias"],
                           shift_mask if shift > 0 else None, G, N, nW)

    # one fused kernel: LN1 + attention + proj + residual + LN2 + MLP + residual
    y_win = pallas_swin_block(x_win, blk, bias, num_heads, tm)

    ys = window_reverse(y_win.reshape(B * nW, ws, ws, C), ws, Hp, Wp)
    if shift > 0:
        ys = jnp.roll(ys, (shift, shift), axis=(1, 2))
    if pad_r or pad_b:
        ys = ys[:, :H, :W, :]
    return ys.reshape(B, L, C)


def patch_merging(p, x, H, W):
    B, L, C = x.shape
    xs = x.reshape(B, H, W, C)
    if H % 2 == 1 or W % 2 == 1:
        xs = jnp.pad(xs, ((0, 0), (0, H % 2), (0, W % 2), (0, 0)))
    x0 = xs[:, 0::2, 0::2, :]
    x1 = xs[:, 1::2, 0::2, :]
    x2 = xs[:, 0::2, 1::2, :]
    x3 = xs[:, 1::2, 1::2, :]
    xc = jnp.concatenate([x0, x1, x2, x3], -1)
    Hh, Wh = xc.shape[1], xc.shape[2]
    xf = xc.reshape(B * Hh * Wh, 4 * C)
    xf = pallas_patch_merging(xf, p["norm_g"], p["norm_b"], p["red_w"])
    return xf.reshape(B, Hh * Wh, 2 * C)


def basic_layer(layer_p, x, H, W, num_heads):
    ws = WINDOW_SIZE
    shift = ws // 2
    Hp = int(np.ceil(H / ws)) * ws
    Wp = int(np.ceil(W / ws)) * ws
    shift_mask = compute_attn_mask(Hp, Wp, ws, shift)
    for j, blk in enumerate(layer_p["blocks"]):
        s = 0 if j % 2 == 0 else shift
        x = swin_block(blk, x, H, W, s, shift_mask, num_heads)
    if "downsample" in layer_p:
        x_down = patch_merging(layer_p["downsample"], x, H, W)
        return x, H, W, x_down, (H + 1) // 2, (W + 1) // 2
    return x, H, W, x, H, W


def swin_forward(params, x):
    """x: NCHW (B, IN_CHANS, H, W) -> list of NCHW feature maps."""
    B = x.shape[0]
    ps = PATCH_SIZE
    H, W = x.shape[2], x.shape[3]
    if W % ps != 0:
        x = jnp.pad(x, ((0, 0), (0, 0), (0, 0), (0, ps - W % ps)))
    if H % ps != 0:
        x = jnp.pad(x, ((0, 0), (0, 0), (0, ps - H % ps), (0, 0)))
    Wh, Ww = x.shape[2] // ps, x.shape[3] // ps
    # Patch embed: strided conv == unfold + fused (matmul + LayerNorm) kernel
    patches = x.reshape(B, IN_CHANS, Wh, ps, Ww, ps)
    patches = patches.transpose(0, 2, 4, 1, 3, 5).reshape(B * Wh * Ww,
                                                          IN_CHANS * ps * ps)
    pe = params["patch_embed"]
    feat = pallas_patch_embed(patches, pe["w_flat"], pe["b"],
                              pe["norm_g"], pe["norm_b"])
    x = feat.reshape(B, Wh * Ww, EMBED_DIM)

    outs = []
    for i in range(len(DEPTHS)):
        x_out, H_, W_, x, Wh, Ww = basic_layer(params["layers"][i], x, Wh, Ww,
                                               NUM_HEADS[i])
        if i in OUT_INDICES:
            # TODO(synk): out-norm could be fused into the last block kernel of
            # the stage to save one HBM round trip; kept separate for clarity.
            on = params["out_norms"][i]
            C_ = EMBED_DIM * 2 ** i
            xo = pallas_layernorm(x_out.reshape(-1, C_), on["g"], on["b"])
            out = xo.reshape(B, H_, W_, C_).transpose(0, 3, 1, 2)
            outs.append(out)
    return outs


# ============================ deterministic params =============================
def trunc_normal(key, shape, std=0.02):
    return std * jax.random.truncated_normal(key, -2.0, 2.0, shape, jnp.float32)


def init_params(key):
    keys = iter(jax.random.split(key, 256))
    nk = lambda: next(keys)
    ws = WINDOW_SIZE
    N = ws * ws
    rel_idx = relative_position_index(ws).reshape(-1)  # numpy (N*N,)
    K = IN_CHANS * PATCH_SIZE * PATCH_SIZE
    w_conv = trunc_normal(nk(), (EMBED_DIM, IN_CHANS, PATCH_SIZE, PATCH_SIZE))
    params = {
        "patch_embed": {
            "w_flat": w_conv.reshape(EMBED_DIM, K).T.astype(jnp.bfloat16),
            "b": jnp.zeros((1, EMBED_DIM), jnp.float32),
            "norm_g": jnp.ones((1, EMBED_DIM), jnp.float32),
            "norm_b": jnp.zeros((1, EMBED_DIM), jnp.float32),
        }
    }
    layers = []
    for i in range(len(DEPTHS)):
        dim = EMBED_DIM * 2 ** i
        heads = NUM_HEADS[i]
        D = dim // heads
        hidden = int(dim * MLP_RATIO)
        scale = float(D) ** -0.5

        blocks = []
        for _ in range(DEPTHS[i]):
            table = trunc_normal(nk(), ((2 * ws - 1) ** 2, heads))
            # precompute rel-pos bias (heads, N, N) once (gather folded into init)
            rel_bias = table[rel_idx].reshape(N, N, heads).transpose(2, 0, 1)
            qkv_w = trunc_normal(nk(), (dim, 3 * dim))
            qkv_b = jnp.zeros((3 * dim,), jnp.float32)
            # fold the softmax scale into the Q columns (first `dim` outputs)
            qkv_w = qkv_w.at[:, :dim].multiply(scale)
            qkv_b = qkv_b.at[:dim].multiply(scale)
            proj_w = trunc_normal(nk(), (dim, dim))
            blocks.append({
                "norm1_g": jnp.ones((1, dim), jnp.float32),
                "norm1_b": jnp.zeros((1, dim), jnp.float32),
                "rel_bias": rel_bias,                                   # (H, N, N) f32
                "wqkv": qkv_w.astype(jnp.bfloat16),                     # (dim, 3*dim)
                "bqkv": qkv_b.reshape(1, 3 * dim),                      # f32
                "proj_w": proj_w.astype(jnp.bfloat16),                  # (dim, dim)
                "proj_b": jnp.zeros((1, dim), jnp.float32),
                "norm2_g": jnp.ones((1, dim), jnp.float32),
                "norm2_b": jnp.zeros((1, dim), jnp.float32),
                "fc1_w": trunc_normal(nk(), (dim, hidden)).astype(jnp.bfloat16),
                "fc1_b": jnp.zeros((1, hidden), jnp.float32),
                "fc2_w": trunc_normal(nk(), (hidden, dim)).astype(jnp.bfloat16),
                "fc2_b": jnp.zeros((1, dim), jnp.float32),
            })
        layer = {"blocks": blocks}
        if i < len(DEPTHS) - 1:
            layer["downsample"] = {
                "norm_g": jnp.ones((1, 4 * dim), jnp.float32),
                "norm_b": jnp.zeros((1, 4 * dim), jnp.float32),
                "red_w": trunc_normal(nk(), (4 * dim, 2 * dim)).astype(jnp.bfloat16),
            }
        layers.append(layer)
    params["layers"] = layers
    params["out_norms"] = {
        i: {"g": jnp.ones((1, EMBED_DIM * 2 ** i), jnp.float32),
            "b": jnp.zeros((1, EMBED_DIM * 2 ** i), jnp.float32)}
        for i in OUT_INDICES
    }
    return params


# ==================================== main =====================================
if __name__ == "__main__":
    key = jax.random.PRNGKey(0)
    pkey, xkey = jax.random.split(key)
    params = init_params(pkey)
    x = jax.random.normal(xkey, (2, IN_CHANS, 32, 32), jnp.float32)

    fwd = jax.jit(swin_forward)
    outs = fwd(params, x)
    outs = jax.block_until_ready(outs)

    assert outs[0].shape == (2, EMBED_DIM, 8, 8)
    assert outs[1].shape == (2, 2 * EMBED_DIM, 4, 4)
    assert all(bool(jnp.isfinite(o).all()) for o in outs)
    print("KERNEL_OK")
</pallas_src>

<mosaic_0001>
module attributes {stable_mosaic.version = 11 : i64} {
  func.func @_embed_kernel(%arg0: i32, %arg1: memref<64x48xf32, #tpu.memory_space<vmem>>, %arg2: memref<48x32xbf16, #tpu.memory_space<vmem>>, %arg3: memref<1x32xf32, #tpu.memory_space<vmem>>, %arg4: memref<1x32xf32, #tpu.memory_space<vmem>>, %arg5: memref<1x32xf32, #tpu.memory_space<vmem>>, %arg6: memref<64x32xf32, #tpu.memory_space<vmem>>) attributes {dimension_semantics = [#tpu.dimension_semantics<parallel>], iteration_bounds = array<i64: 2>, scalar_prefetch = 0 : i64, scratch_operands = 0 : i64, tpu.core_type = #tpu.core_type<tc>, window_params = [{transform_indices = @transform_0, window_bounds = array<i64: 64, 48>}, {pipeline_mode = #tpu.pipeline_mode<synchronous>, transform_indices = @transform_1, window_bounds = array<i64: 48, 32>}, {pipeline_mode = #tpu.pipeline_mode<synchronous>, transform_indices = @transform_2, window_bounds = array<i64: 1, 32>}, {pipeline_mode = #tpu.pipeline_mode<synchronous>, transform_indices = @transform_3, window_bounds = array<i64: 1, 32>}, {pipeline_mode = #tpu.pipeline_mode<synchronous>, transform_indices = @transform_4, window_bounds = array<i64: 1, 32>}, {transform_indices = @transform_5, window_bounds = array<i64: 64, 32>}]} {
    %c0 = arith.constant 0 : index
    %c0_0 = arith.constant 0 : index
    %0 = vector.load %arg1[%c0, %c0_0] : memref<64x48xf32, #tpu.memory_space<vmem>>, vector<64x48xf32>
    %c0_1 = arith.constant 0 : index
    %c0_2 = arith.constant 0 : index
    %1 = vector.load %arg2[%c0_1, %c0_2] : memref<48x32xbf16, #tpu.memory_space<vmem>>, vector<48x32xbf16>
    %2 = arith.truncf %0 : vector<64x48xf32> to vector<64x48xbf16>
    %cst = arith.constant dense<0.000000e+00> : vector<64x32xf32>
    %3 = tpu.matmul %2, %1, %cst {dimension_numbers = #tpu.dot_dimension_numbers<[1], [0], [0], [1], [0, 0, 1, 1], [], []>} : vector<64x48xbf16>, vector<48x32xbf16>, vector<64x32xf32> -> vector<64x32xf32>
    %c0_3 = arith.constant 0 : index
    %c0_4 = arith.constant 0 : index
    %4 = vector.load %arg3[%c0_3, %c0_4] : memref<1x32xf32, #tpu.memory_space<vmem>>, vector<1x32xf32>
    %5 = vector.broadcast %4 : vector<1x32xf32> to vector<64x32xf32>
    %6 = arith.addf %3, %5 : vector<64x32xf32>
    %c0_5 = arith.constant 0 : index
    %c0_6 = arith.constant 0 : index
    %7 = vector.load %arg4[%c0_5, %c0_6] : memref<1x32xf32, #tpu.memory_space<vmem>>, vector<1x32xf32>
    %c0_7 = arith.constant 0 : index
    %c0_8 = arith.constant 0 : index
    %8 = vector.load %arg5[%c0_7, %c0_8] : memref<1x32xf32, #tpu.memory_space<vmem>>, vector<1x32xf32>
    %cst_9 = arith.constant dense<0.000000e+00> : vector<64xf32>
    %9 = vector.multi_reduction <add>, %6, %cst_9 [1] : vector<64x32xf32> to vector<64xf32>
    %10 = vector.shape_cast %9 : vector<64xf32> to vector<64x1xf32>
    %cst_10 = arith.constant 3.200000e+01 : f32
    %11 = vector.broadcast %cst_10 : f32 to vector<64x1xf32>
    %12 = arith.divf %10, %11 : vector<64x1xf32>
    %13 = vector.broadcast %12 : vector<64x1xf32> to vector<64x32xf32>
    %14 = arith.subf %6, %13 : vector<64x32xf32>
    %15 = arith.mulf %14, %14 : vector<64x32xf32>
    %cst_11 = arith.constant dense<0.000000e+00> : vector<64xf32>
    %16 = vector.multi_reduction <add>, %15, %cst_11 [1] : vector<64x32xf32> to vector<64xf32>
    %17 = vector.shape_cast %16 : vector<64xf32> to vector<64x1xf32>
    %cst_12 = arith.constant 3.200000e+01 : f32
    %18 = vector.broadcast %cst_12 : f32 to vector<64x1xf32>
    %19 = arith.divf %17, %18 : vector<64x1xf32>
    %cst_13 = arith.constant 9.99999974E-6 : f32
    %20 = vector.broadcast %cst_13 : f32 to vector<64x1xf32>
    %21 = arith.addf %19, %20 : vector<64x1xf32>
    %22 = math.rsqrt %21 : vector<64x1xf32>
    %23 = vector.broadcast %22 : vector<64x1xf32> to vector<64x32xf32>
    %24 = arith.mulf %14, %23 : vector<64x32xf32>
    %25 = vector.broadcast %7 : vector<1x32xf32> to vector<64x32xf32>
    %26 = arith.mulf %24, %25 : vector<64x32xf32>
    %27 = vector.broadcast %8 : vector<1x32xf32> to vector<64x32xf32>
    %28 = arith.addf %26, %27 : vector<64x32xf32>
    %c0_14 = arith.constant 0 : index
    %c0_15 = arith.constant 0 : index
    %29 = vector.load %arg6[%c0_14, %c0_15] : memref<64x32xf32, #tpu.memory_space<vmem>>, vector<64x32xf32>
    tpu.vector_store %arg6[%c0_14, %c0_15], %28 {strides = array<i32>} : memref<64x32xf32, #tpu.memory_space<vmem>>, vector<64x32xf32>,
    return
  }
  func.func @transform_0(%arg0: i32) -> (i32, i32) {
    %c0_i32 = arith.constant 0 : i32
    %c0_i32_0 = arith.constant 0 : i32
    return %arg0, %c0_i32 : i32, i32
  }
  func.func @transform_1(%arg0: i32) -> (i32, i32) {
    %c0_i32 = arith.constant 0 : i32
    %c0_i32_0 = arith.constant 0 : i32
    %c0_i32_1 = arith.constant 0 : i32
    return %c0_i32, %c0_i32_0 : i32, i32
  }
  func.func @transform_2(%arg0: i32) -> (i32, i32) {
    %c0_i32 = arith.constant 0 : i32
    %c0_i32_0 = arith.constant 0 : i32
    %c0_i32_1 = arith.constant 0 : i32
    return %c0_i32, %c0_i32_0 : i32, i32
  }
  func.func @transform_3(%arg0: i32) -> (i32, i32) {
    %c0_i32 = arith.constant 0 : i32
    %c0_i32_0 = arith.constant 0 : i32
    %c0_i32_1 = arith.constant 0 : i32
    return %c0_i32, %c0_i32_0 : i32, i32
  }
  func.func @transform_4(%arg0: i32) -> (i32, i32) {
    %c0_i32 = arith.constant 0 : i32
    %c0_i32_0 = arith.constant 0 : i32
    %c0_i32_1 = arith.constant 0 : i32
    return %c0_i32, %c0_i32_0 : i32, i32
  }
  func.func @transform_5(%arg0: i32) -> (i32, i32) {
    %c0_i32 = arith.constant 0 : i32
    %c0_i32_0 = arith.constant 0 : i32
    return %arg0, %c0_i32 : i32, i32
  }
}

module attributes {stable_mosaic.version = 11 : i64} {
  func.func @_swin_block_kernel(%arg0: i32, %arg1: memref<64x32xf32, #tpu.memory_space<vmem>>, %arg2: memref<1x32xf32, #tpu.memory_space<vmem>>, %arg3: memref<1x32xf32, #tpu.memory_space<vmem>>, %arg4: memref<32x96xbf16, #tpu.memory_space<vmem>>, %arg5: memref<1x96xf32, #tpu.memory_space<vmem>>, %arg6: memref<1x2x64x64xf32, #tpu.memory_space<vmem>>, %arg7: memref<32x32xbf16, #tpu.memory_space<vmem>>, %arg8: memref<1x32xf32, #tpu.memory_space<vmem>>, %arg9: memref<1x32xf32, #tpu.memory_space<vmem>>, %arg10: memref<1x32xf32, #tpu.memory_space<vmem>>, %arg11: memref<32x128xbf16, #tpu.memory_space<vmem>>, %arg12: memref<1x128xf32, #tpu.memory_space<vmem>>, %arg13: memref<128x32xbf16, #tpu.memory_space<vmem>>, %arg14: memref<1x32xf32, #tpu.memory_space<vmem>>, %arg15: memref<64x32xf32, #tpu.memory_space<vmem>>) attributes {dimension_semantics = [#tpu.dimension_semantics<parallel>], iteration_bounds = array<i64: 2>, scalar_prefetch = 0 : i64, scratch_operands = 0 : i64, tpu.core_type = #tpu.core_type<tc>, window_params = [{transform_indices = @transform_0, window_bounds = array<i64: 64, 32>}, {pipeline_mode = #tpu.pipeline_mode<synchronous>, transform_indices = @transform_1, window_bounds = array<i64: 1, 32>}, {pipeline_mode = #tpu.pipeline_mode<synchronous>, transform_indices = @transform_2, window_bounds = array<i64: 1, 32>}, {pipeline_mode = #tpu.pipeline_mode<synchronous>, transform_indices = @transform_3, window_bounds = array<i64: 32, 96>}, {pipeline_mode = #tpu.pipeline_mode<synchronous>, transform_indices = @transform_4, window_bounds = array<i64: 1, 96>}, {pipeline_mode = #tpu.pipeline_mode<synchronous>, transform_indices = @transform_5, window_bounds = array<i64: 1, 2, 64, 64>}, {pipeline_mode = #tpu.pipeline_mode<synchronous>, transform_indices = @transform_6, window_bounds = array<i64: 32, 32>}, {pipeline_mode = #tpu.pipeline_mode<synchronous>, transform_indices = @transform_7, window_bounds = array<i64: 1, 32>}, {pipeline_mode = #tpu.pipeline_mode<synchronous>, transform_indices = @transform_8, window_bounds = array<i64: 1, 32>}, {pipeline_mode = #tpu.pipeline_mode<synchronous>, transform_indices = @transform_9, window_bounds = array<i64: 1, 32>}, {pipeline_mode = #tpu.pipeline_mode<synchronous>, transform_indices = @transform_10, window_bounds = array<i64: 32, 128>}, {pipeline_mode = #tpu.pipeline_mode<synchronous>, transform_indices = @transform_11, window_bounds = array<i64: 1, 128>}, {pipeline_mode = #tpu.pipeline_mode<synchronous>, transform_indices = @transform_12, window_bounds = array<i64: 128, 32>}, {pipeline_mode = #tpu.pipeline_mode<synchronous>, transform_indices = @transform_13, window_bounds = array<i64: 1, 32>}, {transform_indices = @transform_14, window_bounds = array<i64: 64, 32>}]} {
    %c0 = arith.constant 0 : index
    %c0_0 = arith.constant 0 : index
    %0 = vector.load %arg1[%c0, %c0_0] : memref<64x32xf32, #tpu.memory_space<vmem>>, vector<64x32xf32>
    %c0_1 = arith.constant 0 : index
    %c0_2 = arith.constant 0 : index
    %1 = vector.load %arg2[%c0_1, %c0_2] : memref<1x32xf32, #tpu.memory_space<vmem>>, vector<1x32xf32>
    %c0_3 = arith.constant 0 : index
    %c0_4 = arith.constant 0 : index
    %2 = vector.load %arg3[%c0_3, %c0_4] : memref<1x32xf32, #tpu.memory_space<vmem>>, vector<1x32xf32>
    %cst = arith.constant dense<0.000000e+00> : vector<64xf32>
    %3 = vector.multi_reduction <add>, %0, %cst [1] : vector<64x32xf32> to vector<64xf32>
    %4 = vector.shape_cast %3 : vector<64xf32> to vector<64x1xf32>
    %cst_5 = arith.constant 3.200000e+01 : f32
    %5 = vector.broadcast %cst_5 : f32 to vector<64x1xf32>
    %6 = arith.divf %4, %5 : vector<64x1xf32>
    %7 = vector.broadcast %6 : vector<64x1xf32> to vector<64x32xf32>
    %8 = arith.subf %0, %7 : vector<64x32xf32>
    %9 = arith.mulf %8, %8 : vector<64x32xf32>
    %cst_6 = arith.constant dense<0.000000e+00> : vector<64xf32>
    %10 = vector.multi_reduction <add>, %9, %cst_6 [1] : vector<64x32xf32> to vector<64xf32>
    %11 = vector.shape_cast %10 : vector<64xf32> to vector<64x1xf32>
    %cst_7 = arith.constant 3.200000e+01 : f32
    %12 = vector.broadcast %cst_7 : f32 to vector<64x1xf32>
    %13 = arith.divf %11, %12 : vector<64x1xf32>
    %cst_8 = arith.constant 9.99999974E-6 : f32
    %14 = vector.broadcast %cst_8 : f32 to vector<64x1xf32>
    %15 = arith.addf %13, %14 : vector<64x1xf32>
    %16 = math.rsqrt %15 : vector<64x1xf32>
    %17 = vector.broadcast %16 : vector<64x1xf32> to vector<64x32xf32>
    %18 = arith.mulf %8, %17 : vector<64x32xf32>
    %19 = vector.broadcast %1 : vector<1x32xf32> to vector<64x32xf32>
    %20 = arith.mulf %18, %19 : vector<64x32xf32>
    %21 = vector.broadcast %2 : vector<1x32xf32> to vector<64x32xf32>
    %22 = arith.addf %20, %21 : vector<64x32xf32>
    %23 = arith.truncf %22 : vector<64x32xf32> to vector<64x32xbf16>
    %c0_9 = arith.constant 0 : index
    %c0_10 = arith.constant 0 : index
    %24 = vector.load %arg4[%c0_9, %c0_10] : memref<32x96xbf16, #tpu.memory_space<vmem>>, vector<32x96xbf16>
    %cst_11 = arith.constant dense<0.000000e+00> : vector<64x96xf32>
    %25 = tpu.matmul %23, %24, %cst_11 {dimension_numbers = #tpu.dot_dimension_numbers<[1], [0], [0], [1], [0, 0, 1, 1], [], []>} : vector<64x32xbf16>, vector<32x96xbf16>, vector<64x96xf32> -> vector<64x96xf32>
    %c0_12 = arith.constant 0 : index
    %c0_13 = arith.constant 0 : index
    %26 = vector.load %arg5[%c0_12, %c0_13] : memref<1x96xf32, #tpu.memory_space<vmem>>, vector<1x96xf32>
    %27 = vector.broadcast %26 : vector<1x96xf32> to vector<64x96xf32>
    %28 = arith.addf %25, %27 : vector<64x96xf32>
    %29 = vector.extract_strided_slice %28 {offsets = [0, 0], sizes = [64, 16], strides = [1, 1]} : vector<64x96xf32> to vector<64x16xf32>
    %30 = vector.extract_strided_slice %28 {offsets = [0, 32], sizes = [64, 16], strides = [1, 1]} : vector<64x96xf32> to vector<64x16xf32>
    %31 = vector.extract_strided_slice %28 {offsets = [0, 64], sizes = [64, 16], strides = [1, 1]} : vector<64x96xf32> to vector<64x16xf32>
    %32 = arith.truncf %29 : vector<64x16xf32> to vector<64x16xbf16>
    %33 = arith.truncf %30 : vector<64x16xf32> to vector<64x16xbf16>
    %cst_14 = arith.constant dense<0.000000e+00> : vector<64x64xf32>
    %34 = tpu.matmul %32, %33, %cst_14 {dimension_numbers = #tpu.dot_dimension_numbers<[1], [1], [0], [0], [0, 0, 1, 0], [], []>} : vector<64x16xbf16>, vector<64x16xbf16>, vector<64x64xf32> -> vector<64x64xf32>
    %c0_15 = arith.constant 0 : index
    %c0_16 = arith.constant 0 : index
    %c0_17 = arith.constant 0 : index
    %c0_18 = arith.constant 0 : index
    %35 = vector.load %arg6[%c0_15, %c0_16, %c0_17, %c0_18] : memref<1x2x64x64xf32, #tpu.memory_space<vmem>>, vector<1x1x64x64xf32>
    %36 = vector.shape_cast %35 : vector<1x1x64x64xf32> to vector<64x64xf32>
    %37 = arith.addf %34, %36 : vector<64x64xf32>
    %cst_19 = arith.constant dense<0xFF800000> : vector<64xf32>
    %38 = vector.multi_reduction <maximumf>, %37, %cst_19 [1] : vector<64x64xf32> to vector<64xf32>
    %39 = vector.shape_cast %38 : vector<64xf32> to vector<64x1xf32>
    %40 = vector.broadcast %39 : vector<64x1xf32> to vector<64x64xf32>
    %41 = arith.subf %37, %40 : vector<64x64xf32>
    %42 = math.exp %41 : vector<64x64xf32>
    %cst_20 = arith.constant dense<0.000000e+00> : vector<64xf32>
    %43 = vector.multi_reduction <add>, %42, %cst_20 [1] : vector<64x64xf32> to vector<64xf32>
    %44 = vector.shape_cast %43 : vector<64xf32> to vector<64x1xf32>
    %45 = tpu.reciprocal %44 {approx = true} : vector<64x1xf32> -> vector<64x1xf32>
    %46 = vector.broadcast %45 : vector<64x1xf32> to vector<64x64xf32>
    %47 = arith.mulf %42, %46 : vector<64x64xf32>
    %48 = arith.truncf %47 : vector<64x64xf32> to vector<64x64xbf16>
    %49 = arith.truncf %31 : vector<64x16xf32> to vector<64x16xbf16>
    %cst_21 = arith.constant dense<0.000000e+00> : vector<64x16xf32>
    %50 = tpu.matmul %48, %49, %cst_21 {dimension_numbers = #tpu.dot_dimension_numbers<[1], [0], [0], [1], [0, 0, 1, 1], [], []>} : vector<64x64xbf16>, vector<64x16xbf16>, vector<64x16xf32> -> vector<64x16xf32>
    %51 = vector.extract_strided_slice %28 {offsets = [0, 16], sizes = [64, 16], strides = [1, 1]} : vector<64x96xf32> to vector<64x16xf32>
    %52 = vector.extract_strided_slice %28 {offsets = [0, 48], sizes = [64, 16], strides = [1, 1]} : vector<64x96xf32> to vector<64x16xf32>
    %53 = vector.extract_strided_slice %28 {offsets = [0, 80], sizes = [64, 16], strides = [1, 1]} : vector<64x96xf32> to vector<64x16xf32>
    %54 = arith.truncf %51 : vector<64x16xf32> to vector<64x16xbf16>
    %55 = arith.truncf %52 : vector<64x16xf32> to vector<64x16xbf16>
    %cst_22 = arith.constant dense<0.000000e+00> : vector<64x64xf32>
    %56 = tpu.matmul %54, %55, %cst_22 {dimension_numbers = #tpu.dot_dimension_numbers<[1], [1], [0], [0], [0, 0, 1, 0], [], []>} : vector<64x16xbf16>, vector<64x16xbf16>, vector<64x64xf32> -> vector<64x64xf32>
    %c0_23 = arith.constant 0 : index
    %c1 = arith.constant 1 : index
    %c0_24 = arith.constant 0 : index
    %c0_25 = arith.constant 0 : index
    %57 = vector.load %arg6[%c0_23, %c1, %c0_24, %c0_25] : memref<1x2x64x64xf32, #tpu.memory_space<vmem>>, vector<1x1x64x64xf32>
    %58 = vector.shape_cast %57 : vector<1x1x64x64xf32> to vector<64x64xf32>
    %59 = arith.addf %56, %58 : vector<64x64xf32>
    %cst_26 = arith.constant dense<0xFF800000> : vector<64xf32>
    %60 = vector.multi_reduction <maximumf>, %59, %cst_26 [1] : vector<64x64xf32> to vector<64xf32>
    %61 = vector.shape_cast %60 : vector<64xf32> to vector<64x1xf32>
    %62 = vector.broadcast %61 : vector<64x1xf32> to vector<64x64xf32>
    %63 = arith.subf %59, %62 : vector<64x64xf32>
    %64 = math.exp %63 : vector<64x64xf32>
    %cst_27 = arith.constant dense<0.000000e+00> : vector<64xf32>
    %65 = vector.multi_reduction <add>, %64, %cst_27 [1] : vector<64x64xf32> to vector<64xf32>
    %66 = vector.shape_cast %65 : vector<64xf32> to vector<64x1xf32>
    %67 = tpu.reciprocal %66 {approx = true} : vector<64x1xf32> -> vector<64x1xf32>
    %68 = vector.broadcast %67 : vector<64x1xf32> to vector<64x64xf32>
    %69 = arith.mulf %64, %68 : vector<64x64xf32>
    %70 = arith.truncf %69 : vector<64x64xf32> to vector<64x64xbf16>
    %71 = arith.truncf %53 : vector<64x16xf32> to vector<64x16xbf16>
    %cst_28 = arith.constant dense<0.000000e+00> : vector<64x16xf32>
    %72 = tpu.matmul %70, %71, %cst_28 {dimension_numbers = #tpu.dot_dimension_numbers<[1], [0], [0], [1], [0, 0, 1, 1], [], []>} : vector<64x64xbf16>, vector<64x16xbf16>, vector<64x16xf32> -> vector<64x16xf32>
    %73 = tpu.concatenate %50, %72 in 1 : vector<64x16xf32>, vector<64x16xf32> -> vector<64x32xf32>
    %c0_29 = arith.constant 0 : index
    %c0_30 = arith.constant 0 : index
    %74 = vector.load %arg7[%c0_29, %c0_30] : memref<32x32xbf16, #tpu.memory_space<vmem>>, vector<32x32xbf16>
    %75 = arith.truncf %73 : vector<64x32xf32> to vector<64x32xbf16>
    %cst_31 = arith.constant dense<0.000000e+00> : vector<64x32xf32>
    %76 = tpu.matmul %75, %74, %cst_31 {dimension_numbers = #tpu.dot_dimension_numbers<[1], [0], [0], [1], [0, 0, 1, 1], [], []>} : vector<64x32xbf16>, vector<32x32xbf16>, vector<64x32xf32> -> vector<64x32xf32>
    %77 = arith.addf %0, %76 : vector<64x32xf32>
    %c0_32 = arith.constant 0 : index
    %c0_33 = arith.constant 0 : index
    %78 = vector.load %arg8[%c0_32, %c0_33] : memref<1x32xf32, #tpu.memory_space<vmem>>, vector<1x32xf32>
    %79 = vector.broadcast %78 : vector<1x32xf32> to vector<64x32xf32>
    %80 = arith.addf %77, %79 : vector<64x32xf32>
    %c0_34 = arith.constant 0 : index
    %c0_35 = arith.constant 0 : index
    %81 = vector.load %arg9[%c0_34, %c0_35] : memref<1x32xf32, #tpu.memory_space<vmem>>, vector<1x32xf32>
    %c0_36 = arith.constant 0 : index
    %c0_37 = arith.constant 0 : index
    %82 = vector.load %arg10[%c0_36, %c0_37] : memref<1x32xf32, #tpu.memory_space<vmem>>, vector<1x32xf32>
    %cst_38 = arith.constant dense<0.000000e+00> : vector<64xf32>
    %83 = vector.multi_reduction <add>, %80, %cst_38 [1] : vector<64x32xf32> to vector<64xf32>
    %84 = vector.shape_cast %83 : vector<64xf32> to vector<64x1xf32>
    %cst_39 = arith.constant 3.200000e+01 : f32
    %85 = vector.broadcast %cst_39 : f32 to vector<64x1xf32>
    %86 = arith.divf %84, %85 : vector<64x1xf32>
    %87 = vector.broadcast %86 : vector<64x1xf32> to vector<64x32xf32>
    %88 = arith.subf %80, %87 : vector<64x32xf32>
    %89 = arith.mulf %88, %88 : vector<64x32xf32>
    %cst_40 = arith.constant dense<0.000000e+00> : vector<64xf32>
    %90 = vector.multi_reduction <add>, %89, %cst_40 [1] : vector<64x32xf32> to vector<64xf32>
    %91 = vector.shape_cast %90 : vector<64xf32> to vector<64x1xf32>
    %cst_41 = arith.constant 3.200000e+01 : f32
    %92 = vector.broadcast %cst_41 : f32 to vector<64x1xf32>
    %93 = arith.divf %91, %92 : vector<64x1xf32>
    %cst_42 = arith.constant 9.99999974E-6 : f32
    %94 = vector.broadcast %cst_42 : f32 to vector<64x1xf32>
    %95 = arith.addf %93, %94 : vector<64x1xf32>
    %96 = math.rsqrt %95 : vector<64x1xf32>
    %97 = vector.broadcast %96 : vector<64x1xf32> to vector<64x32xf32>
    %98 = arith.mulf %88, %97 : vector<64x32xf32>
    %99 = vector.broadcast %81 : vector<1x32xf32> to vector<64x32xf32>
    %100 = arith.mulf %98, %99 : vector<64x32xf32>
    %101 = vector.broadcast %82 : vector<1x32xf32> to vector<64x32xf32>
    %102 = arith.addf %100, %101 : vector<64x32xf32>
    %c0_43 = arith.constant 0 : index
    %c0_44 = arith.constant 0 : index
    %103 = vector.load %arg11[%c0_43, %c0_44] : memref<32x128xbf16, #tpu.memory_space<vmem>>, vector<32x128xbf16>
    %104 = arith.truncf %102 : vector<64x32xf32> to vector<64x32xbf16>
    %cst_45 = arith.constant dense<0.000000e+00> : vector<64x128xf32>
    %105 = tpu.matmul %104, %103, %cst_45 {dimension_numbers = #tpu.dot_dimension_numbers<[1], [0], [0], [1], [0, 0, 1, 1], [], []>} : vector<64x32xbf16>, vector<32x128xbf16>, vector<64x128xf32> -> vector<64x128xf32>
    %c0_46 = arith.constant 0 : index
    %c0_47 = arith.constant 0 : index
    %106 = vector.load %arg12[%c0_46, %c0_47] : memref<1x128xf32, #tpu.memory_space<vmem>>, vector<1x128xf32>
    %107 = vector.broadcast %106 : vector<1x128xf32> to vector<64x128xf32>
    %108 = arith.addf %105, %107 : vector<64x128xf32>
    %cst_48 = arith.constant 5.000000e-01 : f32
    %109 = vector.broadcast %cst_48 : f32 to vector<64x128xf32>
    %110 = arith.mulf %109, %108 : vector<64x128xf32>
    %cst_49 = arith.constant 0.707106769 : f32
    %111 = vector.broadcast %cst_49 : f32 to vector<64x128xf32>
    %112 = arith.mulf %108, %111 : vector<64x128xf32>
    %113 = math.absf %112 : vector<64x128xf32>
    %cst_50 = arith.constant 0.327591091 : f32
    %114 = vector.broadcast %cst_50 : f32 to vector<64x128xf32>
    %115 = arith.mulf %114, %113 : vector<64x128xf32>
    %cst_51 = arith.constant 1.000000e+00 : f32
    %116 = vector.broadcast %cst_51 : f32 to vector<64x128xf32>
    %117 = arith.addf %116, %115 : vector<64x128xf32>
    %cst_52 = arith.constant 1.000000e+00 : f32
    %118 = vector.broadcast %cst_52 : f32 to vector<64x128xf32>
    %119 = arith.divf %118, %117 : vector<64x128xf32>
    %cst_53 = arith.constant 1.06140542 : f32
    %120 = vector.broadcast %cst_53 : f32 to vector<64x128xf32>
    %121 = arith.mulf %119, %120 : vector<64x128xf32>
    %cst_54 = arith.constant -1.45315206 : f32
    %122 = vector.broadcast %cst_54 : f32 to vector<64x128xf32>
    %123 = arith.addf %122, %121 : vector<64x128xf32>
    %124 = arith.mulf %119, %123 : vector<64x128xf32>
    %cst_55 = arith.constant 1.42141378 : f32
    %125 = vector.broadcast %cst_55 : f32 to vector<64x128xf32>
    %126 = arith.addf %125, %124 : vector<64x128xf32>
    %127 = arith.mulf %119, %126 : vector<64x128xf32>
    %cst_56 = arith.constant -0.284496725 : f32
    %128 = vector.broadcast %cst_56 : f32 to vector<64x128xf32>
    %129 = arith.addf %128, %127 : vector<64x128xf32>
    %130 = arith.mulf %119, %129 : vector<64x128xf32>
    %cst_57 = arith.constant 0.254829586 : f32
    %131 = vector.broadcast %cst_57 : f32 to vector<64x128xf32>
    %132 = arith.addf %131, %130 : vector<64x128xf32>
    %133 = arith.mulf %119, %132 : vector<64x128xf32>
    %134 = arith.mulf %113, %113 : vector<64x128xf32>
    %cst_58 = arith.constant 0.000000e+00 : f32
    %135 = vector.broadcast %cst_58 : f32 to vector<64x128xf32>
    %136 = arith.subf %135, %134 : vector<64x128xf32>
    %137 = math.exp %136 : vector<64x128xf32>
    %138 = arith.mulf %133, %137 : vector<64x128xf32>
    %cst_59 = arith.constant 1.000000e+00 : f32
    %139 = vector.broadcast %cst_59 : f32 to vector<64x128xf32>
    %140 = arith.subf %139, %138 : vector<64x128xf32>
    %cst_60 = arith.constant 0.000000e+00 : f32
    %141 = vector.broadcast %cst_60 : f32 to vector<64x128xf32>
    %142 = arith.cmpf olt, %112, %141 : vector<64x128xf32>
    %cst_61 = arith.constant 0.000000e+00 : f32
    %143 = vector.broadcast %cst_61 : f32 to vector<64x128xf32>
    %144 = arith.subf %143, %140 : vector<64x128xf32>
    %145 = arith.select %142, %144, %140 : vector<64x128xi1>, vector<64x128xf32>
    %cst_62 = arith.constant 1.000000e+00 : f32
    %146 = vector.broadcast %cst_62 : f32 to vector<64x128xf32>
    %147 = arith.addf %146, %145 : vector<64x128xf32>
    %148 = arith.mulf %110, %147 : vector<64x128xf32>
    %c0_63 = arith.constant 0 : index
    %c0_64 = arith.constant 0 : index
    %149 = vector.load %arg13[%c0_63, %c0_64] : memref<128x32xbf16, #tpu.memory_space<vmem>>, vector<128x32xbf16>
    %150 = arith.truncf %148 : vector<64x128xf32> to vector<64x128xbf16>
    %cst_65 = arith.constant dense<0.000000e+00> : vector<64x32xf32>
    %151 = tpu.matmul %150, %149, %cst_65 {dimension_numbers = #tpu.dot_dimension_numbers<[1], [0], [0], [1], [0, 0, 1, 1], [], []>} : vector<64x128xbf16>, vector<128x32xbf16>, vector<64x32xf32> -> vector<64x32xf32>
    %152 = arith.addf %80, %151 : vector<64x32xf32>
    %c0_66 = arith.constant 0 : index
    %c0_67 = arith.constant 0 : index
    %153 = vector.load %arg14[%c0_66, %c0_67] : memref<1x32xf32, #tpu.memory_space<vmem>>, vector<1x32xf32>
    %154 = vector.broadcast %153 : vector<1x32xf32> to vector<64x32xf32>
    %155 = arith.addf %152, %154 : vector<64x32xf32>
    %c0_68 = arith.constant 0 : index
    %c0_69 = arith.constant 0 : index
    %156 = vector.load %arg15[%c0_68, %c0_69] : memref<64x32xf32, #tpu.memory_space<vmem>>, vector<64x32xf32>
    tpu.vector_store %arg15[%c0_68, %c0_69], %155 {strides = array<i32>} : memref<64x32xf32, #tpu.memory_space<vmem>>, vector<64x32xf32>,
    return
  }
  func.func @transform_0(%arg0: i32) -> (i32, i32) {
    %c0_i32 = arith.constant 0 : i32
    %c0_i32_0 = arith.constant 0 : i32
    return %arg0, %c0_i32 : i32, i32
  }
  func.func @transform_1(%arg0: i32) -> (i32, i32) {
    %c0_i32 = arith.constant 0 : i32
    %c0_i32_0 = arith.constant 0 : i32
    %c0_i32_1 = arith.constant 0 : i32
    return %c0_i32, %c0_i32_0 : i32, i32
  }
  func.func @transform_2(%arg0: i32) -> (i32, i32) {
    %c0_i32 = arith.constant 0 : i32
    %c0_i32_0 = arith.constant 0 : i32
    %c0_i32_1 = arith.constant 0 : i32
    return %c0_i32, %c0_i32_0 : i32, i32
  }
  func.func @transform_3(%arg0: i32) -> (i32, i32) {
    %c0_i32 = arith.constant 0 : i32
    %c0_i32_0 = arith.constant 0 : i32
    %c0_i32_1 = arith.constant 0 : i32
    return %c0_i32, %c0_i32_0 : i32, i32
  }
  func.func @transform_4(%arg0: i32) -> (i32, i32) {
    %c0_i32 = arith.constant 0 : i32
    %c0_i32_0 = arith.constant 0 : i32
    %c0_i32_1 = arith.constant 0 : i32
    return %c0_i32, %c0_i32_0 : i32, i32
  }
  func.func @transform_5(%arg0: i32) -> (i32, i32, i32, i32) {
    %c0_i32 = arith.constant 0 : i32
    %c0_i32_0 = arith.constant 0 : i32
    %c0_i32_1 = arith.constant 0 : i32
    %c0_i32_2 = arith.constant 0 : i32
    %c0_i32_3 = arith.constant 0 : i32
    return %c0_i32, %c0_i32_0, %c0_i32_1, %c0_i32_2 : i32, i32, i32, i32
  }
  func.func @transform_6(%arg0: i32) -> (i32, i32) {
    %c0_i32 = arith.constant 0 : i32
    %c0_i32_0 = arith.constant 0 : i32
    %c0_i32_1 = arith.constant 0 : i32
    return %c0_i32, %c0_i32_0 : i32, i32
  }
  func.func @transform_7(%arg0: i32) -> (i32, i32) {
    %c0_i32 = arith.constant 0 : i32
    %c0_i32_0 = arith.constant 0 : i32
    %c0_i32_1 = arith.constant 0 : i32
    return %c0_i32, %c0_i32_0 : i32, i32
  }
  func.func @transform_8(%arg0: i32) -> (i32, i32) {
    %c0_i32 = arith.constant 0 : i32
    %c0_i32_0 = arith.constant 0 : i32
    %c0_i32_1 = arith.constant 0 : i32
    return %c0_i32, %c0_i32_0 : i32, i32
  }
  func.func @transform_9(%arg0: i32) -> (i32, i32) {
    %c0_i32 = arith.constant 0 : i32
    %c0_i32_0 = arith.constant 0 : i32
    %c0_i32_1 = arith.constant 0 : i32
    return %c0_i32, %c0_i32_0 : i32, i32
  }
  func.func @transform_10(%arg0: i32) -> (i32, i32) {
    %c0_i32 = arith.constant 0 : i32
    %c0_i32_0 = arith.constant 0 : i32
    %c0_i32_1 = arith.constant 0 : i32
    return %c0_i32, %c0_i32_0 : i32, i32
  }
  func.func @transform_11(%arg0: i32) -> (i32, i32) {
    %c0_i32 = arith.constant 0 : i32
    %c0_i32_0 = arith.constant 0 : i32
    %c0_i32_1 = arith.constant 0 : i32
    return %c0_i32, %c0_i32_0 : i32, i32
  }
  func.func @transform_12(%arg0: i32) -> (i32, i32) {
    %c0_i32 = arith.constant 0 : i32
    %c0_i32_0 = arith.constant 0 : i32
    %c0_i32_1 = arith.constant 0 : i32
    return %c0_i32, %c0_i32_0 : i32, i32
  }
  func.func @transform_13(%arg0: i32) -> (i32, i32) {
    %c0_i32 = arith.constant 0 : i32
    %c0_i32_0 = arith.constant 0 : i32
    %c0_i32_1 = arith.constant 0 : i32
    return %c0_i32, %c0_i32_0 : i32, i32
  }
  func.func @transform_14(%arg0: i32) -> (i32, i32) {
    %c0_i32 = arith.constant 0 : i32
    %c0_i32_0 = arith.constant 0 : i32
    return %arg0, %c0_i32 : i32, i32
  }
}

module attributes {stable_mosaic.version = 11 : i64} {
  func.func @_ln_kernel(%arg0: i32, %arg1: memref<64x32xf32, #tpu.memory_space<vmem>>, %arg2: memref<1x32xf32, #tpu.memory_space<vmem>>, %arg3: memref<1x32xf32, #tpu.memory_space<vmem>>, %arg4: memref<64x32xf32, #tpu.memory_space<vmem>>) attributes {dimension_semantics = [#tpu.dimension_semantics<parallel>], iteration_bounds = array<i64: 2>, scalar_prefetch = 0 : i64, scratch_operands = 0 : i64, tpu.core_type = #tpu.core_type<tc>, window_params = [{transform_indices = @transform_0, window_bounds = array<i64: 64, 32>}, {pipeline_mode = #tpu.pipeline_mode<synchronous>, transform_indices = @transform_1, window_bounds = array<i64: 1, 32>}, {pipeline_mode = #tpu.pipeline_mode<synchronous>, transform_indices = @transform_2, window_bounds = array<i64: 1, 32>}, {transform_indices = @transform_3, window_bounds = array<i64: 64, 32>}]} {
    %c0 = arith.constant 0 : index
    %c0_0 = arith.constant 0 : index
    %0 = vector.load %arg1[%c0, %c0_0] : memref<64x32xf32, #tpu.memory_space<vmem>>, vector<64x32xf32>
    %c0_1 = arith.constant 0 : index
    %c0_2 = arith.constant 0 : index
    %1 = vector.load %arg2[%c0_1, %c0_2] : memref<1x32xf32, #tpu.memory_space<vmem>>, vector<1x32xf32>
    %c0_3 = arith.constant 0 : index
    %c0_4 = arith.constant 0 : index
    %2 = vector.load %arg3[%c0_3, %c0_4] : memref<1x32xf32, #tpu.memory_space<vmem>>, vector<1x32xf32>
    %cst = arith.constant dense<0.000000e+00> : vector<64xf32>
    %3 = vector.multi_reduction <add>, %0, %cst [1] : vector<64x32xf32> to vector<64xf32>
    %4 = vector.shape_cast %3 : vector<64xf32> to vector<64x1xf32>
    %cst_5 = arith.constant 3.200000e+01 : f32
    %5 = vector.broadcast %cst_5 : f32 to vector<64x1xf32>
    %6 = arith.divf %4, %5 : vector<64x1xf32>
    %7 = vector.broadcast %6 : vector<64x1xf32> to vector<64x32xf32>
    %8 = arith.subf %0, %7 : vector<64x32xf32>
    %9 = arith.mulf %8, %8 : vector<64x32xf32>
    %cst_6 = arith.constant dense<0.000000e+00> : vector<64xf32>
    %10 = vector.multi_reduction <add>, %9, %cst_6 [1] : vector<64x32xf32> to vector<64xf32>
    %11 = vector.shape_cast %10 : vector<64xf32> to vector<64x1xf32>
    %cst_7 = arith.constant 3.200000e+01 : f32
    %12 = vector.broadcast %cst_7 : f32 to vector<64x1xf32>
    %13 = arith.divf %11, %12 : vector<64x1xf32>
    %cst_8 = arith.constant 9.99999974E-6 : f32
    %14 = vector.broadcast %cst_8 : f32 to vector<64x1xf32>
    %15 = arith.addf %13, %14 : vector<64x1xf32>
    %16 = math.rsqrt %15 : vector<64x1xf32>
    %17 = vector.broadcast %16 : vector<64x1xf32> to vector<64x32xf32>
    %18 = arith.mulf %8, %17 : vector<64x32xf32>
    %19 = vector.broadcast %1 : vector<1x32xf32> to vector<64x32xf32>
    %20 = arith.mulf %18, %19 : vector<64x32xf32>
    %21 = vector.broadcast %2 : vector<1x32xf32> to vector<64x32xf32>
    %22 = arith.addf %20, %21 : vector<64x32xf32>
    %c0_9 = arith.constant 0 : index
    %c0_10 = arith.constant 0 : index
    %23 = vector.load %arg4[%c0_9, %c0_10] : memref<64x32xf32, #tpu.memory_space<vmem>>, vector<64x32xf32>
    tpu.vector_store %arg4[%c0_9, %c0_10], %22 {strides = array<i32>} : memref<64x32xf32, #tpu.memory_space<vmem>>, vector<64x32xf32>,
    return
  }
  func.func @transform_0(%arg0: i32) -> (i32, i32) {
    %c0_i32 = arith.constant 0 : i32
    %c0_i32_0 = arith.constant 0 : i32
    return %arg0, %c0_i32 : i32, i32
  }
  func.func @transform_1(%arg0: i32) -> (i32, i32) {
    %c0_i32 = arith.constant 0 : i32
    %c0_i32_0 = arith.constant 0 : i32
    %c0_i32_1 = arith.constant 0 : i32
    return %c0_i32, %c0_i32_0 : i32, i32
  }
  func.func @transform_2(%arg0: i32) -> (i32, i32) {
    %c0_i32 = arith.constant 0 : i32
    %c0_i32_0 = arith.constant 0 : i32
    %c0_i32_1 = arith.constant 0 : i32
    return %c0_i32, %c0_i32_0 : i32, i32
  }
  func.func @transform_3(%arg0: i32) -> (i32, i32) {
    %c0_i32 = arith.constant 0 : i32
    %c0_i32_0 = arith.constant 0 : i32
    return %arg0, %c0_i32 : i32, i32
  }
}

module attributes {stable_mosaic.version = 11 : i64} {
  func.func @_merge_kernel(%arg0: i32, %arg1: memref<16x128xf32, #tpu.memory_space<vmem>>, %arg2: memref<1x128xf32, #tpu.memory_space<vmem>>, %arg3: memref<1x128xf32, #tpu.memory_space<vmem>>, %arg4: memref<128x64xbf16, #tpu.memory_space<vmem>>, %arg5: memref<16x64xf32, #tpu.memory_space<vmem>>) attributes {dimension_semantics = [#tpu.dimension_semantics<parallel>], iteration_bounds = array<i64: 2>, scalar_prefetch = 0 : i64, scratch_operands = 0 : i64, tpu.core_type = #tpu.core_type<tc>, window_params = [{transform_indices = @transform_0, window_bounds = array<i64: 16, 128>}, {pipeline_mode = #tpu.pipeline_mode<synchronous>, transform_indices = @transform_1, window_bounds = array<i64: 1, 128>}, {pipeline_mode = #tpu.pipeline_mode<synchronous>, transform_indices = @transform_2, window_bounds = array<i64: 1, 128>}, {pipeline_mode = #tpu.pipeline_mode<synchronous>, transform_indices = @transform_3, window_bounds = array<i64: 128, 64>}, {transform_indices = @transform_4, window_bounds = array<i64: 16, 64>}]} {
    %c0 = arith.constant 0 : index
    %c0_0 = arith.constant 0 : index
    %0 = vector.load %arg1[%c0, %c0_0] : memref<16x128xf32, #tpu.memory_space<vmem>>, vector<16x128xf32>
    %c0_1 = arith.constant 0 : index
    %c0_2 = arith.constant 0 : index
    %1 = vector.load %arg2[%c0_1, %c0_2] : memref<1x128xf32, #tpu.memory_space<vmem>>, vector<1x128xf32>
    %c0_3 = arith.constant 0 : index
    %c0_4 = arith.constant 0 : index
    %2 = vector.load %arg3[%c0_3, %c0_4] : memref<1x128xf32, #tpu.memory_space<vmem>>, vector<1x128xf32>
    %cst = arith.constant dense<0.000000e+00> : vector<16xf32>
    %3 = vector.multi_reduction <add>, %0, %cst [1] : vector<16x128xf32> to vector<16xf32>
    %4 = vector.shape_cast %3 : vector<16xf32> to vector<16x1xf32>
    %cst_5 = arith.constant 1.280000e+02 : f32
    %5 = vector.broadcast %cst_5 : f32 to vector<16x1xf32>
    %6 = arith.divf %4, %5 : vector<16x1xf32>
    %7 = vector.broadcast %6 : vector<16x1xf32> to vector<16x128xf32>
    %8 = arith.subf %0, %7 : vector<16x128xf32>
    %9 = arith.mulf %8, %8 : vector<16x128xf32>
    %cst_6 = arith.constant dense<0.000000e+00> : vector<16xf32>
    %10 = vector.multi_reduction <add>, %9, %cst_6 [1] : vector<16x128xf32> to vector<16xf32>
    %11 = vector.shape_cast %10 : vector<16xf32> to vector<16x1xf32>
    %cst_7 = arith.constant 1.280000e+02 : f32
    %12 = vector.broadcast %cst_7 : f32 to vector<16x1xf32>
    %13 = arith.divf %11, %12 : vector<16x1xf32>
    %cst_8 = arith.constant 9.99999974E-6 : f32
    %14 = vector.broadcast %cst_8 : f32 to vector<16x1xf32>
    %15 = arith.addf %13, %14 : vector<16x1xf32>
    %16 = math.rsqrt %15 : vector<16x1xf32>
    %17 = vector.broadcast %16 : vector<16x1xf32> to vector<16x128xf32>
    %18 = arith.mulf %8, %17 : vector<16x128xf32>
    %19 = vector.broadcast %1 : vector<1x128xf32> to vector<16x128xf32>
    %20 = arith.mulf %18, %19 : vector<16x128xf32>
    %21 = vector.broadcast %2 : vector<1x128xf32> to vector<16x128xf32>
    %22 = arith.addf %20, %21 : vector<16x128xf32>
    %c0_9 = arith.constant 0 : index
    %c0_10 = arith.constant 0 : index
    %23 = vector.load %arg4[%c0_9, %c0_10] : memref<128x64xbf16, #tpu.memory_space<vmem>>, vector<128x64xbf16>
    %24 = arith.truncf %22 : vector<16x128xf32> to vector<16x128xbf16>
    %cst_11 = arith.constant dense<0.000000e+00> : vector<16x64xf32>
    %25 = tpu.matmul %24, %23, %cst_11 {dimension_numbers = #tpu.dot_dimension_numbers<[1], [0], [0], [1], [0, 0, 1, 1], [], []>} : vector<16x128xbf16>, vector<128x64xbf16>, vector<16x64xf32> -> vector<16x64xf32>
    %c0_12 = arith.constant 0 : index
    %c0_13 = arith.constant 0 : index
    %26 = vector.load %arg5[%c0_12, %c0_13] : memref<16x64xf32, #tpu.memory_space<vmem>>, vector<16x64xf32>
    tpu.vector_store %arg5[%c0_12, %c0_13], %25 {strides = array<i32>} : memref<16x64xf32, #tpu.memory_space<vmem>>, vector<16x64xf32>,
    return
  }
  func.func @transform_0(%arg0: i32) -> (i32, i32) {
    %c0_i32 = arith.constant 0 : i32
    %c0_i32_0 = arith.constant 0 : i32
    return %arg0, %c0_i32 : i32, i32
  }
  func.func @transform_1(%arg0: i32) -> (i32, i32) {
    %c0_i32 = arith.constant 0 : i32
    %c0_i32_0 = arith.constant 0 : i32
    %c0_i32_1 = arith.constant 0 : i32
    return %c0_i32, %c0_i32_0 : i32, i32
  }
  func.func @transform_2(%arg0: i32) -> (i32, i32) {
    %c0_i32 = arith.constant 0 : i32
    %c0_i32_0 = arith.constant 0 : i32
    %c0_i32_1 = arith.constant 0 : i32
    return %c0_i32, %c0_i32_0 : i32, i32
  }
  func.func @transform_3(%arg0: i32) -> (i32, i32) {
    %c0_i32 = arith.constant 0 : i32
    %c0_i32_0 = arith.constant 0 : i32
    %c0_i32_1 = arith.constant 0 : i32
    return %c0_i32, %c0_i32_0 : i32, i32
  }
  func.func @transform_4(%arg0: i32) -> (i32, i32) {
    %c0_i32 = arith.constant 0 : i32
    %c0_i32_0 = arith.constant 0 : i32
    return %arg0, %c0_i32 : i32, i32
  }
}

module attributes {stable_mosaic.version = 11 : i64} {
  func.func @_swin_block_kernel(%arg0: i32, %arg1: memref<16x64xf32, #tpu.memory_space<vmem>>, %arg2: memref<1x64xf32, #tpu.memory_space<vmem>>, %arg3: memref<1x64xf32, #tpu.memory_space<vmem>>, %arg4: memref<64x192xbf16, #tpu.memory_space<vmem>>, %arg5: memref<1x192xf32, #tpu.memory_space<vmem>>, %arg6: memref<1x4x16x16xf32, #tpu.memory_space<vmem>>, %arg7: memref<64x64xbf16, #tpu.memory_space<vmem>>, %arg8: memref<1x64xf32, #tpu.memory_space<vmem>>, %arg9: memref<1x64xf32, #tpu.memory_space<vmem>>, %arg10: memref<1x64xf32, #tpu.memory_space<vmem>>, %arg11: memref<64x256xbf16, #tpu.memory_space<vmem>>, %arg12: memref<1x256xf32, #tpu.memory_space<vmem>>, %arg13: memref<256x64xbf16, #tpu.memory_space<vmem>>, %arg14: memref<1x64xf32, #tpu.memory_space<vmem>>, %arg15: memref<16x64xf32, #tpu.memory_space<vmem>>) attributes {dimension_semantics = [#tpu.dimension_semantics<parallel>], iteration_bounds = array<i64: 2>, scalar_prefetch = 0 : i64, scratch_operands = 0 : i64, tpu.core_type = #tpu.core_type<tc>, window_params = [{transform_indices = @transform_0, window_bounds = array<i64: 16, 64>}, {pipeline_mode = #tpu.pipeline_mode<synchronous>, transform_indices = @transform_1, window_bounds = array<i64: 1, 64>}, {pipeline_mode = #tpu.pipeline_mode<synchronous>, transform_indices = @transform_2, window_bounds = array<i64: 1, 64>}, {pipeline_mode = #tpu.pipeline_mode<synchronous>, transform_indices = @transform_3, window_bounds = array<i64: 64, 192>}, {pipeline_mode = #tpu.pipeline_mode<synchronous>, transform_indices = @transform_4, window_bounds = array<i64: 1, 192>}, {pipeline_mode = #tpu.pipeline_mode<synchronous>, transform_indices = @transform_5, window_bounds = array<i64: 1, 4, 16, 16>}, {pipeline_mode = #tpu.pipeline_mode<synchronous>, transform_indices = @transform_6, window_bounds = array<i64: 64, 64>}, {pipeline_mode = #tpu.pipeline_mode<synchronous>, transform_indices = @transform_7, window_bounds = array<i64: 1, 64>}, {pipeline_mode = #tpu.pipeline_mode<synchronous>, transform_indices = @transform_8, window_bounds = array<i64: 1, 64>}, {pipeline_mode = #tpu.pipeline_mode<synchronous>, transform_indices = @transform_9, window_bounds = array<i64: 1, 64>}, {pipeline_mode = #tpu.pipeline_mode<synchronous>, transform_indices = @transform_10, window_bounds = array<i64: 64, 256>}, {pipeline_mode = #tpu.pipeline_mode<synchronous>, transform_indices = @transform_11, window_bounds = array<i64: 1, 256>}, {pipeline_mode = #tpu.pipeline_mode<synchronous>, transform_indices = @transform_12, window_bounds = array<i64: 256, 64>}, {pipeline_mode = #tpu.pipeline_mode<synchronous>, transform_indices = @transform_13, window_bounds = array<i64: 1, 64>}, {transform_indices = @transform_14, window_bounds = array<i64: 16, 64>}]} {
    %c0 = arith.constant 0 : index
    %c0_0 = arith.constant 0 : index
    %0 = vector.load %arg1[%c0, %c0_0] : memref<16x64xf32, #tpu.memory_space<vmem>>, vector<16x64xf32>
    %c0_1 = arith.constant 0 : index
    %c0_2 = arith.constant 0 : index
    %1 = vector.load %arg2[%c0_1, %c0_2] : memref<1x64xf32, #tpu.memory_space<vmem>>, vector<1x64xf32>
    %c0_3 = arith.constant 0 : index
    %c0_4 = arith.constant 0 : index
    %2 = vector.load %arg3[%c0_3, %c0_4] : memref<1x64xf32, #tpu.memory_space<vmem>>, vector<1x64xf32>
    %cst = arith.constant dense<0.000000e+00> : vector<16xf32>
    %3 = vector.multi_reduction <add>, %0, %cst [1] : vector<16x64xf32> to vector<16xf32>
    %4 = vector.shape_cast %3 : vector<16xf32> to vector<16x1xf32>
    %cst_5 = arith.constant 6.400000e+01 : f32
    %5 = vector.broadcast %cst_5 : f32 to vector<16x1xf32>
    %6 = arith.divf %4, %5 : vector<16x1xf32>
    %7 = vector.broadcast %6 : vector<16x1xf32> to vector<16x64xf32>
    %8 = arith.subf %0, %7 : vector<16x64xf32>
    %9 = arith.mulf %8, %8 : vector<16x64xf32>
    %cst_6 = arith.constant dense<0.000000e+00> : vector<16xf32>
    %10 = vector.multi_reduction <add>, %9, %cst_6 [1] : vector<16x64xf32> to vector<16xf32>
    %11 = vector.shape_cast %10 : vector<16xf32> to vector<16x1xf32>
    %cst_7 = arith.constant 6.400000e+01 : f32
    %12 = vector.broadcast %cst_7 : f32 to vector<16x1xf32>
    %13 = arith.divf %11, %12 : vector<16x1xf32>
    %cst_8 = arith.constant 9.99999974E-6 : f32
    %14 = vector.broadcast %cst_8 : f32 to vector<16x1xf32>
    %15 = arith.addf %13, %14 : vector<16x1xf32>
    %16 = math.rsqrt %15 : vector<16x1xf32>
    %17 = vector.broadcast %16 : vector<16x1xf32> to vector<16x64xf32>
    %18 = arith.mulf %8, %17 : vector<16x64xf32>
    %19 = vector.broadcast %1 : vector<1x64xf32> to vector<16x64xf32>
    %20 = arith.mulf %18, %19 : vector<16x64xf32>
    %21 = vector.broadcast %2 : vector<1x64xf32> to vector<16x64xf32>
    %22 = arith.addf %20, %21 : vector<16x64xf32>
    %23 = arith.truncf %22 : vector<16x64xf32> to vector<16x64xbf16>
    %c0_9 = arith.constant 0 : index
    %c0_10 = arith.constant 0 : index
    %24 = vector.load %arg4[%c0_9, %c0_10] : memref<64x192xbf16, #tpu.memory_space<vmem>>, vector<64x192xbf16>
    %cst_11 = arith.constant dense<0.000000e+00> : vector<16x192xf32>
    %25 = tpu.matmul %23, %24, %cst_11 {dimension_numbers = #tpu.dot_dimension_numbers<[1], [0], [0], [1], [0, 0, 1, 1], [], []>} : vector<16x64xbf16>, vector<64x192xbf16>, vector<16x192xf32> -> vector<16x192xf32>
    %c0_12 = arith.constant 0 : index
    %c0_13 = arith.constant 0 : index
    %26 = vector.load %arg5[%c0_12, %c0_13] : memref<1x192xf32, #tpu.memory_space<vmem>>, vector<1x192xf32>
    %27 = vector.broadcast %26 : vector<1x192xf32> to vector<16x192xf32>
    %28 = arith.addf %25, %27 : vector<16x192xf32>
    %29 = vector.extract_strided_slice %28 {offsets = [0, 0], sizes = [16, 16], strides = [1, 1]} : vector<16x192xf32> to vector<16x16xf32>
    %30 = vector.extract_strided_slice %28 {offsets = [0, 64], sizes = [16, 16], strides = [1, 1]} : vector<16x192xf32> to vector<16x16xf32>
    %31 = vector.extract_strided_slice %28 {offsets = [0, 128], sizes = [16, 16], strides = [1, 1]} : vector<16x192xf32> to vector<16x16xf32>
    %32 = arith.truncf %29 : vector<16x16xf32> to vector<16x16xbf16>
    %33 = arith.truncf %30 : vector<16x16xf32> to vector<16x16xbf16>
    %cst_14 = arith.constant dense<0.000000e+00> : vector<16x16xf32>
    %34 = tpu.matmul %32, %33, %cst_14 {dimension_numbers = #tpu.dot_dimension_numbers<[1], [1], [0], [0], [0, 0, 1, 0], [], []>} : vector<16x16xbf16>, vector<16x16xbf16>, vector<16x16xf32> -> vector<16x16xf32>
    %c0_15 = arith.constant 0 : index
    %c0_16 = arith.constant 0 : index
    %c0_17 = arith.constant 0 : index
    %c0_18 = arith.constant 0 : index
    %35 = vector.load %arg6[%c0_15, %c0_16, %c0_17, %c0_18] : memref<1x4x16x16xf32, #tpu.memory_space<vmem>>, vector<1x1x16x16xf32>
    %36 = vector.shape_cast %35 : vector<1x1x16x16xf32> to vector<16x16xf32>
    %37 = arith.addf %34, %36 : vector<16x16xf32>
    %cst_19 = arith.constant dense<0xFF800000> : vector<16xf32>
    %38 = vector.multi_reduction <maximumf>, %37, %cst_19 [1] : vector<16x16xf32> to vector<16xf32>
    %39 = vector.shape_cast %38 : vector<16xf32> to vector<16x1xf32>
    %40 = vector.broadcast %39 : vector<16x1xf32> to vector<16x16xf32>
    %41 = arith.subf %37, %40 : vector<16x16xf32>
    %42 = math.exp %41 : vector<16x16xf32>
    %cst_20 = arith.constant dense<0.000000e+00> : vector<16xf32>
    %43 = vector.multi_reduction <add>, %42, %cst_20 [1] : vector<16x16xf32> to vector<16xf32>
    %44 = vector.shape_cast %43 : vector<16xf32> to vector<16x1xf32>
    %45 = tpu.reciprocal %44 {approx = true} : vector<16x1xf32> -> vector<16x1xf32>
    %46 = vector.broadcast %45 : vector<16x1xf32> to vector<16x16xf32>
    %47 = arith.mulf %42, %46 : vector<16x16xf32>
    %48 = arith.truncf %47 : vector<16x16xf32> to vector<16x16xbf16>
    %49 = arith.truncf %31 : vector<16x16xf32> to vector<16x16xbf16>
    %cst_21 = arith.constant dense<0.000000e+00> : vector<16x16xf32>
    %50 = tpu.matmul %48, %49, %cst_21 {dimension_numbers = #tpu.dot_dimension_numbers<[1], [0], [0], [1], [0, 0, 1, 1], [], []>} : vector<16x16xbf16>, vector<16x16xbf16>, vector<16x16xf32> -> vector<16x16xf32>
    %51 = vector.extract_strided_slice %28 {offsets = [0, 16], sizes = [16, 16], strides = [1, 1]} : vector<16x192xf32> to vector<16x16xf32>
    %52 = vector.extract_strided_slice %28 {offsets = [0, 80], sizes = [16, 16], strides = [1, 1]} : vector<16x192xf32> to vector<16x16xf32>
    %53 = vector.extract_strided_slice %28 {offsets = [0, 144], sizes = [16, 16], strides = [1, 1]} : vector<16x192xf32> to vector<16x16xf32>
    %54 = arith.truncf %51 : vector<16x16xf32> to vector<16x16xbf16>
    %55 = arith.truncf %52 : vector<16x16xf32> to vector<16x16xbf16>
    %cst_22 = arith.constant dense<0.000000e+00> : vector<16x16xf32>
    %56 = tpu.matmul %54, %55, %cst_22 {dimension_numbers = #tpu.dot_dimension_numbers<[1], [1], [0], [0], [0, 0, 1, 0], [], []>} : vector<16x16xbf16>, vector<16x16xbf16>, vector<16x16xf32> -> vector<16x16xf32>
    %c0_23 = arith.constant 0 : index
    %c1 = arith.constant 1 : index
    %c0_24 = arith.constant 0 : index
    %c0_25 = arith.constant 0 : index
    %57 = vector.load %arg6[%c0_23, %c1, %c0_24, %c0_25] : memref<1x4x16x16xf32, #tpu.memory_space<vmem>>, vector<1x1x16x16xf32>
    %58 = vector.shape_cast %57 : vector<1x1x16x16xf32> to vector<16x16xf32>
    %59 = arith.addf %56, %58 : vector<16x16xf32>
    %cst_26 = arith.constant dense<0xFF800000> : vector<16xf32>
    %60 = vector.multi_reduction <maximumf>, %59, %cst_26 [1] : vector<16x16xf32> to vector<16xf32>
    %61 = vector.shape_cast %60 : vector<16xf32> to vector<16x1xf32>
    %62 = vector.broadcast %61 : vector<16x1xf32> to vector<16x16xf32>
    %63 = arith.subf %59, %62 : vector<16x16xf32>
    %64 = math.exp %63 : vector<16x16xf32>
    %cst_27 = arith.constant dense<0.000000e+00> : vector<16xf32>
    %65 = vector.multi_reduction <add>, %64, %cst_27 [1] : vector<16x16xf32> to vector<16xf32>
    %66 = vector.shape_cast %65 : vector<16xf32> to vector<16x1xf32>
    %67 = tpu.reciprocal %66 {approx = true} : vector<16x1xf32> -> vector<16x1xf32>
    %68 = vector.broadcast %67 : vector<16x1xf32> to vector<16x16xf32>
    %69 = arith.mulf %64, %68 : vector<16x16xf32>
    %70 = arith.truncf %69 : vector<16x16xf32> to vector<16x16xbf16>
    %71 = arith.truncf %53 : vector<16x16xf32> to vector<16x16xbf16>
    %cst_28 = arith.constant dense<0.000000e+00> : vector<16x16xf32>
    %72 = tpu.matmul %70, %71, %cst_28 {dimension_numbers = #tpu.dot_dimension_numbers<[1], [0], [0], [1], [0, 0, 1, 1], [], []>} : vector<16x16xbf16>, vector<16x16xbf16>, vector<16x16xf32> -> vector<16x16xf32>
    %73 = vector.extract_strided_slice %28 {offsets = [0, 32], sizes = [16, 16], strides = [1, 1]} : vector<16x192xf32> to vector<16x16xf32>
    %74 = vector.extract_strided_slice %28 {offsets = [0, 96], sizes = [16, 16], strides = [1, 1]} : vector<16x192xf32> to vector<16x16xf32>
    %75 = vector.extract_strided_slice %28 {offsets = [0, 160], sizes = [16, 16], strides = [1, 1]} : vector<16x192xf32> to vector<16x16xf32>
    %76 = arith.truncf %73 : vector<16x16xf32> to vector<16x16xbf16>
    %77 = arith.truncf %74 : vector<16x16xf32> to vector<16x16xbf16>
    %cst_29 = arith.constant dense<0.000000e+00> : vector<16x16xf32>
    %78 = tpu.matmul %76, %77, %cst_29 {dimension_numbers = #tpu.dot_dimension_numbers<[1], [1], [0], [0], [0, 0, 1, 0], [], []>} : vector<16x16xbf16>, vector<16x16xbf16>, vector<16x16xf32> -> vector<16x16xf32>
    %c0_30 = arith.constant 0 : index
    %c2 = arith.constant 2 : index
    %c0_31 = arith.constant 0 : index
    %c0_32 = arith.constant 0 : index
    %79 = vector.load %arg6[%c0_30, %c2, %c0_31, %c0_32] : memref<1x4x16x16xf32, #tpu.memory_space<vmem>>, vector<1x1x16x16xf32>
    %80 = vector.shape_cast %79 : vector<1x1x16x16xf32> to vector<16x16xf32>
    %81 = arith.addf %78, %80 : vector<16x16xf32>
    %cst_33 = arith.constant dense<0xFF800000> : vector<16xf32>
    %82 = vector.multi_reduction <maximumf>, %81, %cst_33 [1] : vector<16x16xf32> to vector<16xf32>
    %83 = vector.shape_cast %82 : vector<16xf32> to vector<16x1xf32>
    %84 = vector.broadcast %83 : vector<16x1xf32> to vector<16x16xf32>
    %85 = arith.subf %81, %84 : vector<16x16xf32>
    %86 = math.exp %85 : vector<16x16xf32>
    %cst_34 = arith.constant dense<0.000000e+00> : vector<16xf32>
    %87 = vector.multi_reduction <add>, %86, %cst_34 [1] : vector<16x16xf32> to vector<16xf32>
    %88 = vector.shape_cast %87 : vector<16xf32> to vector<16x1xf32>
    %89 = tpu.reciprocal %88 {approx = true} : vector<16x1xf32> -> vector<16x1xf32>
    %90 = vector.broadcast %89 : vector<16x1xf32> to vector<16x16xf32>
    %91 = arith.mulf %86, %90 : vector<16x16xf32>
    %92 = arith.truncf %91 : vector<16x16xf32> to vector<16x16xbf16>
    %93 = arith.truncf %75 : vector<16x16xf32> to vector<16x16xbf16>
    %cst_35 = arith.constant dense<0.000000e+00> : vector<16x16xf32>
    %94 = tpu.matmul %92, %93, %cst_35 {dimension_numbers = #tpu.dot_dimension_numbers<[1], [0], [0], [1], [0, 0, 1, 1], [], []>} : vector<16x16xbf16>, vector<16x16xbf16>, vector<16x16xf32> -> vector<16x16xf32>
    %95 = vector.extract_strided_slice %28 {offsets = [0, 48], sizes = [16, 16], strides = [1, 1]} : vector<16x192xf32> to vector<16x16xf32>
    %96 = vector.extract_strided_slice %28 {offsets = [0, 112], sizes = [16, 16], strides = [1, 1]} : vector<16x192xf32> to vector<16x16xf32>
    %97 = vector.extract_strided_slice %28 {offsets = [0, 176], sizes = [16, 16], strides = [1, 1]} : vector<16x192xf32> to vector<16x16xf32>
    %98 = arith.truncf %95 : vector<16x16xf32> to vector<16x16xbf16>
    %99 = arith.truncf %96 : vector<16x16xf32> to vector<16x16xbf16>
    %cst_36 = arith.constant dense<0.000000e+00> : vector<16x16xf32>
    %100 = tpu.matmul %98, %99, %cst_36 {dimension_numbers = #tpu.dot_dimension_numbers<[1], [1], [0], [0], [0, 0, 1, 0], [], []>} : vector<16x16xbf16>, vector<16x16xbf16>, vector<16x16xf32> -> vector<16x16xf32>
    %c0_37 = arith.constant 0 : index
    %c3 = arith.constant 3 : index
    %c0_38 = arith.constant 0 : index
    %c0_39 = arith.constant 0 : index
    %101 = vector.load %arg6[%c0_37, %c3, %c0_38, %c0_39] : memref<1x4x16x16xf32, #tpu.memory_space<vmem>>, vector<1x1x16x16xf32>
    %102 = vector.shape_cast %101 : vector<1x1x16x16xf32> to vector<16x16xf32>
    %103 = arith.addf %100, %102 : vector<16x16xf32>
    %cst_40 = arith.constant dense<0xFF800000> : vector<16xf32>
    %104 = vector.multi_reduction <maximumf>, %103, %cst_40 [1] : vector<16x16xf32> to vector<16xf32>
    %105 = vector.shape_cast %104 : vector<16xf32> to vector<16x1xf32>
    %106 = vector.broadcast %105 : vector<16x1xf32> to vector<16x16xf32>
    %107 = arith.subf %103, %106 : vector<16x16xf32>
    %108 = math.exp %107 : vector<16x16xf32>
    %cst_41 = arith.constant dense<0.000000e+00> : vector<16xf32>
    %109 = vector.multi_reduction <add>, %108, %cst_41 [1] : vector<16x16xf32> to vector<16xf32>
    %110 = vector.shape_cast %109 : vector<16xf32> to vector<16x1xf32>
    %111 = tpu.reciprocal %110 {approx = true} : vector<16x1xf32> -> vector<16x1xf32>
    %112 = vector.broadcast %111 : vector<16x1xf32> to vector<16x16xf32>
    %113 = arith.mulf %108, %112 : vector<16x16xf32>
    %114 = arith.truncf %113 : vector<16x16xf32> to vector<16x16xbf16>
    %115 = arith.truncf %97 : vector<16x16xf32> to vector<16x16xbf16>
    %cst_42 = arith.constant dense<0.000000e+00> : vector<16x16xf32>
    %116 = tpu.matmul %114, %115, %cst_42 {dimension_numbers = #tpu.dot_dimension_numbers<[1], [0], [0], [1], [0, 0, 1, 1], [], []>} : vector<16x16xbf16>, vector<16x16xbf16>, vector<16x16xf32> -> vector<16x16xf32>
    %117 = tpu.concatenate %50, %72, %94, %116 in 1 : vector<16x16xf32>, vector<16x16xf32>, vector<16x16xf32>, vector<16x16xf32> -> vector<16x64xf32>
    %c0_43 = arith.constant 0 : index
    %c0_44 = arith.constant 0 : index
    %118 = vector.load %arg7[%c0_43, %c0_44] : memref<64x64xbf16, #tpu.memory_space<vmem>>, vector<64x64xbf16>
    %119 = arith.truncf %117 : vector<16x64xf32> to vector<16x64xbf16>
    %cst_45 = arith.constant dense<0.000000e+00> : vector<16x64xf32>
    %120 = tpu.matmul %119, %118, %cst_45 {dimension_numbers = #tpu.dot_dimension_numbers<[1], [0], [0], [1], [0, 0, 1, 1], [], []>} : vector<16x64xbf16>, vector<64x64xbf16>, vector<16x64xf32> -> vector<16x64xf32>
    %121 = arith.addf %0, %120 : vector<16x64xf32>
    %c0_46 = arith.constant 0 : index
    %c0_47 = arith.constant 0 : index
    %122 = vector.load %arg8[%c0_46, %c0_47] : memref<1x64xf32, #tpu.memory_space<vmem>>, vector<1x64xf32>
    %123 = vector.broadcast %122 : vector<1x64xf32> to vector<16x64xf32>
    %124 = arith.addf %121, %123 : vector<16x64xf32>
    %c0_48 = arith.constant 0 : index
    %c0_49 = arith.constant 0 : index
    %125 = vector.load %arg9[%c0_48, %c0_49] : memref<1x64xf32, #tpu.memory_space<vmem>>, vector<1x64xf32>
    %c0_50 = arith.constant 0 : index
    %c0_51 = arith.constant 0 : index
    %126 = vector.load %arg10[%c0_50, %c0_51] : memref<1x64xf32, #tpu.memory_space<vmem>>, vector<1x64xf32>
    %cst_52 = arith.constant dense<0.000000e+00> : vector<16xf32>
    %127 = vector.multi_reduction <add>, %124, %cst_52 [1] : vector<16x64xf32> to vector<16xf32>
    %128 = vector.shape_cast %127 : vector<16xf32> to vector<16x1xf32>
    %cst_53 = arith.constant 6.400000e+01 : f32
    %129 = vector.broadcast %cst_53 : f32 to vector<16x1xf32>
    %130 = arith.divf %128, %129 : vector<16x1xf32>
    %131 = vector.broadcast %130 : vector<16x1xf32> to vector<16x64xf32>
    %132 = arith.subf %124, %131 : vector<16x64xf32>
    %133 = arith.mulf %132, %132 : vector<16x64xf32>
    %cst_54 = arith.constant dense<0.000000e+00> : vector<16xf32>
    %134 = vector.multi_reduction <add>, %133, %cst_54 [1] : vector<16x64xf32> to vector<16xf32>
    %135 = vector.shape_cast %134 : vector<16xf32> to vector<16x1xf32>
    %cst_55 = arith.constant 6.400000e+01 : f32
    %136 = vector.broadcast %cst_55 : f32 to vector<16x1xf32>
    %137 = arith.divf %135, %136 : vector<16x1xf32>
    %cst_56 = arith.constant 9.99999974E-6 : f32
    %138 = vector.broadcast %cst_56 : f32 to vector<16x1xf32>
    %139 = arith.addf %137, %138 : vector<16x1xf32>
    %140 = math.rsqrt %139 : vector<16x1xf32>
    %141 = vector.broadcast %140 : vector<16x1xf32> to vector<16x64xf32>
    %142 = arith.mulf %132, %141 : vector<16x64xf32>
    %143 = vector.broadcast %125 : vector<1x64xf32> to vector<16x64xf32>
    %144 = arith.mulf %142, %143 : vector<16x64xf32>
    %145 = vector.broadcast %126 : vector<1x64xf32> to vector<16x64xf32>
    %146 = arith.addf %144, %145 : vector<16x64xf32>
    %c0_57 = arith.constant 0 : index
    %c0_58 = arith.constant 0 : index
    %147 = vector.load %arg11[%c0_57, %c0_58] : memref<64x256xbf16, #tpu.memory_space<vmem>>, vector<64x256xbf16>
    %148 = arith.truncf %146 : vector<16x64xf32> to vector<16x64xbf16>
    %cst_59 = arith.constant dense<0.000000e+00> : vector<16x256xf32>
    %149 = tpu.matmul %148, %147, %cst_59 {dimension_numbers = #tpu.dot_dimension_numbers<[1], [0], [0], [1], [0, 0, 1, 1], [], []>} : vector<16x64xbf16>, vector<64x256xbf16>, vector<16x256xf32> -> vector<16x256xf32>
    %c0_60 = arith.constant 0 : index
    %c0_61 = arith.constant 0 : index
    %150 = vector.load %arg12[%c0_60, %c0_61] : memref<1x256xf32, #tpu.memory_space<vmem>>, vector<1x256xf32>
    %151 = vector.broadcast %150 : vector<1x256xf32> to vector<16x256xf32>
    %152 = arith.addf %149, %151 : vector<16x256xf32>
    %cst_62 = arith.constant 5.000000e-01 : f32
    %153 = vector.broadcast %cst_62 : f32 to vector<16x256xf32>
    %154 = arith.mulf %153, %152 : vector<16x256xf32>
    %cst_63 = arith.constant 0.707106769 : f32
    %155 = vector.broadcast %cst_63 : f32 to vector<16x256xf32>
    %156 = arith.mulf %152, %155 : vector<16x256xf32>
    %157 = math.absf %156 : vector<16x256xf32>
    %cst_64 = arith.constant 0.327591091 : f32
    %158 = vector.broadcast %cst_64 : f32 to vector<16x256xf32>
    %159 = arith.mulf %158, %157 : vector<16x256xf32>
    %cst_65 = arith.constant 1.000000e+00 : f32
    %160 = vector.broadcast %cst_65 : f32 to vector<16x256xf32>
    %161 = arith.addf %160, %159 : vector<16x256xf32>
    %cst_66 = arith.constant 1.000000e+00 : f32
    %162 = vector.broadcast %cst_66 : f32 to vector<16x256xf32>
    %163 = arith.divf %162, %161 : vector<16x256xf32>
    %cst_67 = arith.constant 1.06140542 : f32
    %164 = vector.broadcast %cst_67 : f32 to vector<16x256xf32>
    %165 = arith.mulf %163, %164 : vector<16x256xf32>
    %cst_68 = arith.constant -1.45315206 : f32
    %166 = vector.broadcast %cst_68 : f32 to vector<16x256xf32>
    %167 = arith.addf %166, %165 : vector<16x256xf32>
    %168 = arith.mulf %163, %167 : vector<16x256xf32>
    %cst_69 = arith.constant 1.42141378 : f32
    %169 = vector.broadcast %cst_69 : f32 to vector<16x256xf32>
    %170 = arith.addf %169, %168 : vector<16x256xf32>
    %171 = arith.mulf %163, %170 : vector<16x256xf32>
    %cst_70 = arith.constant -0.284496725 : f32
    %172 = vector.broadcast %cst_70 : f32 to vector<16x256xf32>
    %173 = arith.addf %172, %171 : vector<16x256xf32>
    %174 = arith.mulf %163, %173 : vector<16x256xf32>
    %cst_71 = arith.constant 0.254829586 : f32
    %175 = vector.broadcast %cst_71 : f32 to vector<16x256xf32>
    %176 = arith.addf %175, %174 : vector<16x256xf32>
    %177 = arith.mulf %163, %176 : vector<16x256xf32>
    %178 = arith.mulf %157, %157 : vector<16x256xf32>
    %cst_72 = arith.constant 0.000000e+00 : f32
    %179 = vector.broadcast %cst_72 : f32 to vector<16x256xf32>
    %180 = arith.subf %179, %178 : vector<16x256xf32>
    %181 = math.exp %180 : vector<16x256xf32>
    %182 = arith.mulf %177, %181 : vector<16x256xf32>
    %cst_73 = arith.constant 1.000000e+00 : f32
    %183 = vector.broadcast %cst_73 : f32 to vector<16x256xf32>
    %184 = arith.subf %183, %182 : vector<16x256xf32>
    %cst_74 = arith.constant 0.000000e+00 : f32
    %185 = vector.broadcast %cst_74 : f32 to vector<16x256xf32>
    %186 = arith.cmpf olt, %156, %185 : vector<16x256xf32>
    %cst_75 = arith.constant 0.000000e+00 : f32
    %187 = vector.broadcast %cst_75 : f32 to vector<16x256xf32>
    %188 = arith.subf %187, %184 : vector<16x256xf32>
    %189 = arith.select %186, %188, %184 : vector<16x256xi1>, vector<16x256xf32>
    %cst_76 = arith.constant 1.000000e+00 : f32
    %190 = vector.broadcast %cst_76 : f32 to vector<16x256xf32>
    %191 = arith.addf %190, %189 : vector<16x256xf32>
    %192 = arith.mulf %154, %191 : vector<16x256xf32>
    %c0_77 = arith.constant 0 : index
    %c0_78 = arith.constant 0 : index
    %193 = vector.load %arg13[%c0_77, %c0_78] : memref<256x64xbf16, #tpu.memory_space<vmem>>, vector<256x64xbf16>
    %194 = arith.truncf %192 : vector<16x256xf32> to vector<16x256xbf16>
    %cst_79 = arith.constant dense<0.000000e+00> : vector<16x64xf32>
    %195 = tpu.matmul %194, %193, %cst_79 {dimension_numbers = #tpu.dot_dimension_numbers<[1], [0], [0], [1], [0, 0, 1, 1], [], []>} : vector<16x256xbf16>, vector<256x64xbf16>, vector<16x64xf32> -> vector<16x64xf32>
    %196 = arith.addf %124, %195 : vector<16x64xf32>
    %c0_80 = arith.constant 0 : index
    %c0_81 = arith.constant 0 : index
    %197 = vector.load %arg14[%c0_80, %c0_81] : memref<1x64xf32, #tpu.memory_space<vmem>>, vector<1x64xf32>
    %198 = vector.broadcast %197 : vector<1x64xf32> to vector<16x64xf32>
    %199 = arith.addf %196, %198 : vector<16x64xf32>
    %c0_82 = arith.constant 0 : index
    %c0_83 = arith.constant 0 : index
    %200 = vector.load %arg15[%c0_82, %c0_83] : memref<16x64xf32, #tpu.memory_space<vmem>>, vector<16x64xf32>
    tpu.vector_store %arg15[%c0_82, %c0_83], %199 {strides = array<i32>} : memref<16x64xf32, #tpu.memory_space<vmem>>, vector<16x64xf32>,
    return
  }
  func.func @transform_0(%arg0: i32) -> (i32, i32) {
    %c0_i32 = arith.constant 0 : i32
    %c0_i32_0 = arith.constant 0 : i32
    return %arg0, %c0_i32 : i32, i32
  }
  func.func @transform_1(%arg0: i32) -> (i32, i32) {
    %c0_i32 = arith.constant 0 : i32
    %c0_i32_0 = arith.constant 0 : i32
    %c0_i32_1 = arith.constant 0 : i32
    return %c0_i32, %c0_i32_0 : i32, i32
  }
  func.func @transform_2(%arg0: i32) -> (i32, i32) {
    %c0_i32 = arith.constant 0 : i32
    %c0_i32_0 = arith.constant 0 : i32
    %c0_i32_1 = arith.constant 0 : i32
    return %c0_i32, %c0_i32_0 : i32, i32
  }
  func.func @transform_3(%arg0: i32) -> (i32, i32) {
    %c0_i32 = arith.constant 0 : i32
    %c0_i32_0 = arith.constant 0 : i32
    %c0_i32_1 = arith.constant 0 : i32
    return %c0_i32, %c0_i32_0 : i32, i32
  }
  func.func @transform_4(%arg0: i32) -> (i32, i32) {
    %c0_i32 = arith.constant 0 : i32
    %c0_i32_0 = arith.constant 0 : i32
    %c0_i32_1 = arith.constant 0 : i32
    return %c0_i32, %c0_i32_0 : i32, i32
  }
  func.func @transform_5(%arg0: i32) -> (i32, i32, i32, i32) {
    %c0_i32 = arith.constant 0 : i32
    %c0_i32_0 = arith.constant 0 : i32
    %c0_i32_1 = arith.constant 0 : i32
    %c0_i32_2 = arith.constant 0 : i32
    %c0_i32_3 = arith.constant 0 : i32
    return %c0_i32, %c0_i32_0, %c0_i32_1, %c0_i32_2 : i32, i32, i32, i32
  }
  func.func @transform_6(%arg0: i32) -> (i32, i32) {
    %c0_i32 = arith.constant 0 : i32
    %c0_i32_0 = arith.constant 0 : i32
    %c0_i32_1 = arith.constant 0 : i32
    return %c0_i32, %c0_i32_0 : i32, i32
  }
  func.func @transform_7(%arg0: i32) -> (i32, i32) {
    %c0_i32 = arith.constant 0 : i32
    %c0_i32_0 = arith.constant 0 : i32
    %c0_i32_1 = arith.constant 0 : i32
    return %c0_i32, %c0_i32_0 : i32, i32
  }
  func.func @transform_8(%arg0: i32) -> (i32, i32) {
    %c0_i32 = arith.constant 0 : i32
    %c0_i32_0 = arith.constant 0 : i32
    %c0_i32_1 = arith.constant 0 : i32
    return %c0_i32, %c0_i32_0 : i32, i32
  }
  func.func @transform_9(%arg0: i32) -> (i32, i32) {
    %c0_i32 = arith.constant 0 : i32
    %c0_i32_0 = arith.constant 0 : i32
    %c0_i32_1 = arith.constant 0 : i32
    return %c0_i32, %c0_i32_0 : i32, i32
  }
  func.func @transform_10(%arg0: i32) -> (i32, i32) {
    %c0_i32 = arith.constant 0 : i32
    %c0_i32_0 = arith.constant 0 : i32
    %c0_i32_1 = arith.constant 0 : i32
    return %c0_i32, %c0_i32_0 : i32, i32
  }
  func.func @transform_11(%arg0: i32) -> (i32, i32) {
    %c0_i32 = arith.constant 0 : i32
    %c0_i32_0 = arith.constant 0 : i32
    %c0_i32_1 = arith.constant 0 : i32
    return %c0_i32, %c0_i32_0 : i32, i32
  }
  func.func @transform_12(%arg0: i32) -> (i32, i32) {
    %c0_i32 = arith.constant 0 : i32
    %c0_i32_0 = arith.constant 0 : i32
    %c0_i32_1 = arith.constant 0 : i32
    return %c0_i32, %c0_i32_0 : i32, i32
  }
  func.func @transform_13(%arg0: i32) -> (i32, i32) {
    %c0_i32 = arith.constant 0 : i32
    %c0_i32_0 = arith.constant 0 : i32
    %c0_i32_1 = arith.constant 0 : i32
    return %c0_i32, %c0_i32_0 : i32, i32
  }
  func.func @transform_14(%arg0: i32) -> (i32, i32) {
    %c0_i32 = arith.constant 0 : i32
    %c0_i32_0 = arith.constant 0 : i32
    return %arg0, %c0_i32 : i32, i32
  }
}

module attributes {stable_mosaic.version = 11 : i64} {
  func.func @_ln_kernel(%arg0: i32, %arg1: memref<16x64xf32, #tpu.memory_space<vmem>>, %arg2: memref<1x64xf32, #tpu.memory_space<vmem>>, %arg3: memref<1x64xf32, #tpu.memory_space<vmem>>, %arg4: memref<16x64xf32, #tpu.memory_space<vmem>>) attributes {dimension_semantics = [#tpu.dimension_semantics<parallel>], iteration_bounds = array<i64: 2>, scalar_prefetch = 0 : i64, scratch_operands = 0 : i64, tpu.core_type = #tpu.core_type<tc>, window_params = [{transform_indices = @transform_0, window_bounds = array<i64: 16, 64>}, {pipeline_mode = #tpu.pipeline_mode<synchronous>, transform_indices = @transform_1, window_bounds = array<i64: 1, 64>}, {pipeline_mode = #tpu.pipeline_mode<synchronous>, transform_indices = @transform_2, window_bounds = array<i64: 1, 64>}, {transform_indices = @transform_3, window_bounds = array<i64: 16, 64>}]} {
    %c0 = arith.constant 0 : index
    %c0_0 = arith.constant 0 : index
    %0 = vector.load %arg1[%c0, %c0_0] : memref<16x64xf32, #tpu.memory_space<vmem>>, vector<16x64xf32>
    %c0_1 = arith.constant 0 : index
    %c0_2 = arith.constant 0 : index
    %1 = vector.load %arg2[%c0_1, %c0_2] : memref<1x64xf32, #tpu.memory_space<vmem>>, vector<1x64xf32>
    %c0_3 = arith.constant 0 : index
    %c0_4 = arith.constant 0 : index
    %2 = vector.load %arg3[%c0_3, %c0_4] : memref<1x64xf32, #tpu.memory_space<vmem>>, vector<1x64xf32>
    %cst = arith.constant dense<0.000000e+00> : vector<16xf32>
    %3 = vector.multi_reduction <add>, %0, %cst [1] : vector<16x64xf32> to vector<16xf32>
    %4 = vector.shape_cast %3 : vector<16xf32> to vector<16x1xf32>
    %cst_5 = arith.constant 6.400000e+01 : f32
    %5 = vector.broadcast %cst_5 : f32 to vector<16x1xf32>
    %6 = arith.divf %4, %5 : vector<16x1xf32>
    %7 = vector.broadcast %6 : vector<16x1xf32> to vector<16x64xf32>
    %8 = arith.subf %0, %7 : vector<16x64xf32>
    %9 = arith.mulf %8, %8 : vector<16x64xf32>
    %cst_6 = arith.constant dense<0.000000e+00> : vector<16xf32>
    %10 = vector.multi_reduction <add>, %9, %cst_6 [1] : vector<16x64xf32> to vector<16xf32>
    %11 = vector.shape_cast %10 : vector<16xf32> to vector<16x1xf32>
    %cst_7 = arith.constant 6.400000e+01 : f32
    %12 = vector.broadcast %cst_7 : f32 to vector<16x1xf32>
    %13 = arith.divf %11, %12 : vector<16x1xf32>
    %cst_8 = arith.constant 9.99999974E-6 : f32
    %14 = vector.broadcast %cst_8 : f32 to vector<16x1xf32>
    %15 = arith.addf %13, %14 : vector<16x1xf32>
    %16 = math.rsqrt %15 : vector<16x1xf32>
    %17 = vector.broadcast %16 : vector<16x1xf32> to vector<16x64xf32>
    %18 = arith.mulf %8, %17 : vector<16x64xf32>
    %19 = vector.broadcast %1 : vector<1x64xf32> to vector<16x64xf32>
    %20 = arith.mulf %18, %19 : vector<16x64xf32>
    %21 = vector.broadcast %2 : vector<1x64xf32> to vector<16x64xf32>
    %22 = arith.addf %20, %21 : vector<16x64xf32>
    %c0_9 = arith.constant 0 : index
    %c0_10 = arith.constant 0 : index
    %23 = vector.load %arg4[%c0_9, %c0_10] : memref<16x64xf32, #tpu.memory_space<vmem>>, vector<16x64xf32>
    tpu.vector_store %arg4[%c0_9, %c0_10], %22 {strides = array<i32>} : memref<16x64xf32, #tpu.memory_space<vmem>>, vector<16x64xf32>,
    return
  }
  func.func @transform_0(%arg0: i32) -> (i32, i32) {
    %c0_i32 = arith.constant 0 : i32
    %c0_i32_0 = arith.constant 0 : i32
    return %arg0, %c0_i32 : i32, i32
  }
  func.func @transform_1(%arg0: i32) -> (i32, i32) {
    %c0_i32 = arith.constant 0 : i32
    %c0_i32_0 = arith.constant 0 : i32
    %c0_i32_1 = arith.constant 0 : i32
    return %c0_i32, %c0_i32_0 : i32, i32
  }
  func.func @transform_2(%arg0: i32) -> (i32, i32) {
    %c0_i32 = arith.constant 0 : i32
    %c0_i32_0 = arith.constant 0 : i32
    %c0_i32_1 = arith.constant 0 : i32
    return %c0_i32, %c0_i32_0 : i32, i32
  }
  func.func @transform_3(%arg0: i32) -> (i32, i32) {
    %c0_i32 = arith.constant 0 : i32
    %c0_i32_0 = arith.constant 0 : i32
    return %arg0, %c0_i32 : i32, i32
  }
}

</mosaic_0001>

<llo_original>
// kernel: swin_forward.8
$region0: #{swin_forward.8}
  #allocation0 [shape = 'u32[]', space=smem, size = 0x4, offset = 0x4, fixed_abs, tag = 'smem constant byte address 0x4 - core index']
  #allocation1 [shape = 'u32[144,128]{1,0:T(1,128)}', space=vmem, size = 0x12000, scoped, tag = 'internal scratch']
  %s0 = inlined_call_operand.vmem [shape: f32[128,48], index: 0, kind: input, shape index: {}]
  %s1 = inlined_call_operand.vmem [shape: bf16[48,32], index: 1, kind: input, shape index: {}]
  %s2 = inlined_call_operand.vmem [shape: f32[1,32], index: 2, kind: input, shape index: {}]
  %s3 = inlined_call_operand.vmem [shape: f32[1,32], index: 3, kind: input, shape index: {}]
  %s4 = inlined_call_operand.vmem [shape: f32[1,32], index: 4, kind: input, shape index: {}]
  %s5 = inlined_call_operand.vmem [shape: f32[128,32], index: 5, kind: output, shape index: {}]
  %s6 = sld [smem:[#allocation0]]
  $region53: #{swin_forward.8} parent=0
    _
  %s8 = ssub.s32 1, %s6
  %s9 = scalar_select 0, %s8, %s6
  loop: start=0, step=1, limit=4
  $region2: #{swin_forward.8} parent=0 // loop_pre_header
    _
  $region3: #{swin_forward.8} parent=0 // loop_header
    %s11 = sphi 0, %s15
    %p12 = scmp.ge.s32.totalorder %s11, 4
    %s21 = sphi 0, %s23
    %s24 = sphi 0, %s21
    %s25 = sphi 0, %s24
    %s41 = sphi 0, %s25
    %s45 = sphi 0, %s45
    %s47 = sphi 0, %s45
    %s48 = sphi 0, %s47
    %s62 = sphi 0, %s48
    %s66 = sphi 0, %s66
    %s68 = sphi 0, %s66
    %s69 = sphi 0, %s68
    %s83 = sphi 0, %s69
    %s87 = sphi 0, %s87
    %s89 = sphi 0, %s87
    %s90 = sphi 0, %s89
    %s104 = sphi 0, %s90
    %s108 = sphi 0, %s108
    %s110 = sphi 0, %s108
    %s111 = sphi 0, %s110
    %s125 = sphi 0, %s111
    %s131 = sphi 0, %s133
    %s134 = sphi 0, %s131
    %s135 = sphi 0, %s134
    %s151 = sphi 0, %s135
  $region4: #{swin_forward.8} parent=0 // loop_header_branch
    %14 = sbr.rel (%p12) target = $region8
  $region5: #{swin_forward.8} parent=0 // loop_body
    %s16 = ssub.s32 %s11, 1
    %s17 = ssub.s32 %s11, 2
    %s18 = sadd.s32 %s11, 1
    %s19 = ssub.s32 %s11, %s18
    %p20 = scmp.eq.s32.totalorder %s19, 0
    %s22 = sadd.s32 %s21, 1
    %s23 = scalar_select %p20, %s21, %s22
    %p26 = pneg %p20
    %p27 = scmp.eq.s32.totalorder %s11, 1
    %p28 = por %p26, %p27
    %p29 = scmp.ne.s32.totalorder %s21, %s24
    %p30 = scmp.eq.s32.totalorder %s11, 0
    %p31 = por %p29, %p30
    %p32 = scmp.ne.s32.totalorder %s21, %s24
    %p33 = scmp.eq.s32.totalorder %s16, 1
    %p34 = por %p32, %p33
    %p35 = scmp.ne.s32.totalorder %s24, %s25
    %p36 = scmp.eq.s32.totalorder %s16, 0
    %p37 = por %p35, %p36
    %p38 = scmp.ne.s32.totalorder %s24, %s25
    %p39 = scmp.eq.s32.totalorder %s17, 1
    %p40 = por %p38, %p39
    %p42 = scmp.ne.s32.totalorder %s25, %s41
    %p43 = scmp.eq.s32.totalorder %s17, 0
    %p44 = por %p42, %p43
    %s46 = sadd.s32 %s45, 1
    %p49 = scmp.eq.s32.totalorder %s11, 1
    %p50 = scmp.ne.s32.totalorder %s45, %s47
    %p51 = scmp.eq.s32.totalorder %s11, 0
    %p52 = por %p50, %p51
    %p53 = scmp.ne.s32.totalorder %s45, %s47
    %p54 = scmp.eq.s32.totalorder %s16, 1
    %p55 = por %p53, %p54
    %p56 = scmp.ne.s32.totalorder %s47, %s48
    %p57 = scmp.eq.s32.totalorder %s16, 0
    %p58 = por %p56, %p57
    %p59 = scmp.ne.s32.totalorder %s47, %s48
    %p60 = scmp.eq.s32.totalorder %s17, 1
    %p61 = por %p59, %p60
    %p63 = scmp.ne.s32.totalorder %s48, %s62
    %p64 = scmp.eq.s32.totalorder %s17, 0
    %p65 = por %p63, %p64
    %s67 = sadd.s32 %s66, 1
    %p70 = scmp.eq.s32.totalorder %s11, 1
    %p71 = scmp.ne.s32.totalorder %s66, %s68
    %p72 = scmp.eq.s32.totalorder %s11, 0
    %p73 = por %p71, %p72
    %p74 = scmp.ne.s32.totalorder %s66, %s68
    %p75 = scmp.eq.s32.totalorder %s16, 1
    %p76 = por %p74, %p75
    %p77 = scmp.ne.s32.totalorder %s68, %s69
    %p78 = scmp.eq.s32.totalorder %s16, 0
    %p79 = por %p77, %p78
    %p80 = scmp.ne.s32.totalorder %s68, %s69
    %p81 = scmp.eq.s32.totalorder %s17, 1
    %p82 = por %p80, %p81
    %p84 = scmp.ne.s32.totalorder %s69, %s83
    %p85 = scmp.eq.s32.totalorder %s17, 0
    %p86 = por %p84, %p85
    %s88 = sadd.s32 %s87, 1
    %p91 = scmp.eq.s32.totalorder %s11, 1
    %p92 = scmp.ne.s32.totalorder %s87, %s89
    %p93 = scmp.eq.s32.totalorder %s11, 0
    %p94 = por %p92, %p93
    %p95 = scmp.ne.s32.totalorder %s87, %s89
    %p96 = scmp.eq.s32.totalorder %s16, 1
    %p97 = por %p95, %p96
    %p98 = scmp.ne.s32.totalorder %s89, %s90
    %p99 = scmp.eq.s32.totalorder %s16, 0
    %p100 = por %p98, %p99
    %p101 = scmp.ne.s32.totalorder %s89, %s90
    %p102 = scmp.eq.s32.totalorder %s17, 1
    %p103 = por %p101, %p102
    %p105 = scmp.ne.s32.totalorder %s90, %s104
    %p106 = scmp.eq.s32.totalorder %s17, 0
    %p107 = por %p105, %p106
    %s109 = sadd.s32 %s108, 1
    %p112 = scmp.eq.s32.totalorder %s11, 1
    %p113 = scmp.ne.s32.totalorder %s108, %s110
    %p114 = scmp.eq.s32.totalorder %s11, 0
    %p115 = por %p113, %p114
    %p116 = scmp.ne.s32.totalorder %s108, %s110
    %p117 = scmp.eq.s32.totalorder %s16, 1
    %p118 = por %p116, %p117
    %p119 = scmp.ne.s32.totalorder %s110, %s111
    %p120 = scmp.eq.s32.totalorder %s16, 0
    %p121 = por %p119, %p120
    %p122 = scmp.ne.s32.totalorder %s110, %s111
    %p123 = scmp.eq.s32.totalorder %s17, 1
    %p124 = por %p122, %p123
    %p126 = scmp.ne.s32.totalorder %s111, %s125
    %p127 = scmp.eq.s32.totalorder %s17, 0
    %p128 = por %p126, %p127
    %s129 = ssub.s32 %s11, %s18
    %p130 = scmp.eq.s32.totalorder %s129, 0
    %s132 = sadd.s32 %s131, 1
    %s133 = scalar_select %p130, %s131, %s132
    %p136 = pneg %p130
    %p137 = scmp.eq.s32.totalorder %s11, 1
    %p138 = por %p136, %p137
    %p139 = scmp.ne.s32.totalorder %s131, %s134
    %p140 = scmp.eq.s32.totalorder %s11, 0
    %p141 = por %p139, %p140
    %p142 = scmp.ne.s32.totalorder %s131, %s134
    %p143 = scmp.eq.s32.totalorder %s16, 1
    %p144 = por %p142, %p143
    %p145 = scmp.ne.s32.totalorder %s134, %s135
    %p146 = scmp.eq.s32.totalorder %s16, 0
    %p147 = por %p145, %p146
    %p148 = scmp.ne.s32.totalorder %s134, %s135
    %p149 = scmp.eq.s32.totalorder %s17, 1
    %p150 = por %p148, %p149
    %p152 = scmp.ne.s32.totalorder %s135, %s151
    %p153 = scmp.eq.s32.totalorder %s17, 0
    %p154 = por %p152, %p153
    %p155 = scmp.le.s32.totalorder 1, %s11
    %p156 = scmp.lt.s32.totalorder %s11, 3
    %p157 = pnand %p155, %p156
    %p158 = pneg %p157
    // Predicated region
    $region9: #{swin_forward.8} parent=5 // pred_check
      _
    $region10: #{swin_forward.8} parent=5 // pred_check_branch
      %160 = sbr.rel (%p157) target = $region12
    $region11: #{swin_forward.8} parent=5 // pred_region
      %s161 = ssub.s32 %s11, 1
      // Predicated region
      $region13: #{swin_forward.8} parent=11 // pred_check
        %p162 = pneg %p58
      $region14: #{swin_forward.8} parent=11 // pred_check_branch
        %164 = sbr.rel (%p162) target = $region16
      $region15: #{swin_forward.8} parent=11 // pred_region
        _
      $region16: #{swin_forward.8} parent=11 // pred_fallthru
        _
      // Predicated region
      $region17: #{swin_forward.8} parent=11 // pred_check
        %p165 = pneg %p79
      $region18: #{swin_forward.8} parent=11 // pred_check_branch
        %167 = sbr.rel (%p165) target = $region20
      $region19: #{swin_forward.8} parent=11 // pred_region
        _
      $region20: #{swin_forward.8} parent=11 // pred_fallthru
        _
      // Predicated region
      $region21: #{swin_forward.8} parent=11 // pred_check
        %p168 = pneg %p100
      $region22: #{swin_forward.8} parent=11 // pred_check_branch
        %170 = sbr.rel (%p168) target = $region24
      $region23: #{swin_forward.8} parent=11 // pred_region
        _
      $region24: #{swin_forward.8} parent=11 // pred_fallthru
        _
      // Predicated region
      $region25: #{swin_forward.8} parent=11 // pred_check
        %p171 = pneg %p121
      $region26: #{swin_forward.8} parent=11 // pred_check_branch
        %173 = sbr.rel (%p171) target = $region28
      $region27: #{swin_forward.8} parent=11 // pred_region
        _
      $region28: #{swin_forward.8} parent=11 // pred_fallthru
        _
    $region12: #{swin_forward.8} parent=5 // pred_fallthru
      _
    %p174 = scmp.lt.s32.totalorder %s11, 2
    // Predicated region
    $region29: #{swin_forward.8} parent=5 // pred_check
      %p175 = pneg %p174
    $region30: #{swin_forward.8} parent=5 // pred_check_branch
      %177 = sbr.rel (%p175) target = $region32
    $region31: #{swin_forward.8} parent=5 // pred_region
      // Predicated region
      $region33: #{swin_forward.8} parent=31 // pred_check
        %p178 = pneg %p31
      $region34: #{swin_forward.8} parent=31 // pred_check_branch
        %180 = sbr.rel (%p178) target = $region36
      $region35: #{swin_forward.8} parent=31 // pred_region
        %s181 = smul.u32 8, %s11
        %p182 = scmp.lt.s32.totalorder %s181, 15
        %s183 = scalar_select %p182, %s181, 15
        %s184 = smul.addr %s183, 8
        %s185 = scalar_lea.vmem %s0, %s184
        %s186 = smul.u32 8, %s11
      $region36: #{swin_forward.8} parent=31 // pred_fallthru
        _
    $region32: #{swin_forward.8} parent=5 // pred_fallthru
      _
    %p187 = scmp.le.s32.totalorder 1, %s11
    %p188 = scmp.lt.s32.totalorder %s11, 3
    %p189 = pnand %p187, %p188
    %p190 = pneg %p189
    // Predicated region
    $region37: #{swin_forward.8} parent=5 // pred_check
      _
    $region38: #{swin_forward.8} parent=5 // pred_check_branch
      %192 = sbr.rel (%p189) target = $region40
    $region39: #{swin_forward.8} parent=5 // pred_region
      %s193 = ssub.s32 %s11, 1
      %s194 = smul.u32 8, %s16
      %p195 = scmp.lt.s32.totalorder %s194, 15
      %s196 = scalar_select %p195, %s194, 15
      %s197 = smul.addr %s196, 8
      %s198 = scalar_lea.vmem %s0, %s197
      %p199 = pneg %p37
      %p200 = pneg %p34
      %p201 = pneg %p58
      %p202 = pneg %p55
      %p203 = pneg %p79
      %p204 = pneg %p76
      %p205 = pneg %p100
      %p206 = pneg %p97
      %p207 = pneg %p121
      %p208 = pneg %p118
      %p209 = pneg %p147
      %p210 = pneg %p144
      %s211 = smul.u32 8, %s16
      %p212 = scmp.lt.s32.totalorder %s211, 15
      %s213 = scalar_select %p212, %s211, 15
      %s214 = smul.addr %s213, 8
      %s215 = scalar_lea.vmem %s5, %s214
      %s216 = smul.u32 8, %s16
      %p217 = scmp.lt.s32.totalorder %s216, 15
      %s218 = scalar_select %p217, %s216, 15
      %s219 = smul.addr %s218, 8
      %s220 = scalar_lea.vmem %s0, %s219
      %s221 = smul.u32 8, %s16
      %s222 = smul.u32 8, %s16
      %p223 = scmp.lt.s32.totalorder %s222, 15
      %s224 = scalar_select %p223, %s222, 15
      %s225 = smul.addr %s224, 8
      %s226 = scalar_lea.vmem %s5, %s225
      %s227 = smul.u32 8, %s16
      %v229 = vld [vmem:[%s220] sm:$0xff]
      %v230 = vld [vmem:[%s220 + $0x8] sm:$0xff]
      %v231 = vld [vmem:[%s220 + $0x10] sm:$0xff]
      %v232 = vld [vmem:[%s220 + $0x18] sm:$0xff]
      %v233 = vld [vmem:[%s220 + $0x20] sm:$0xff]
      %v234 = vld [vmem:[%s220 + $0x28] sm:$0xff]
      %v235 = vld [vmem:[%s220 + $0x30] sm:$0xff]
      %v236 = vld [vmem:[%s220 + $0x38] sm:$0xff]
      %v237 = vld [vmem:[%s1] sm:$0xf]
      %v238 = vld [vmem:[%s1 + $0x4] sm:$0xf]
      %v239 = vld [vmem:[%s1 + $0x8] sm:$0xf]
      %v240 = vld [vmem:[%s1 + $0xc] sm:$0xf]
      %v241 = vld [vmem:[%s1 + $0x10] sm:$0xf]
      %v242 = vld [vmem:[%s1 + $0x14] sm:$0xf]
      %v243 = vpack.c.bf16 %v230, %v229
      %v244 = vpack.c.bf16 %v232, %v231
      %v245 = vpack.c.bf16 %v234, %v233
      %v246 = vpack.c.bf16 %v236, %v235
      %v247 = vld [vmem:[%s2] sm:$0x1]
      %v249 = vlaneseq
      %v250 = vshrl.u32 %v249, 7
      %v251 = vsub.s32 0, %v250
      %v252 = vrot.slane %v247, %v251
      %v260 = vunpack.c.l.b16 %v237
      %v261 = vunpack.c.l.b16 %v238
      %v262 = vunpack.c.l.b16 %v239
      %v263 = vunpack.c.l.b16 %v240
      %v264 = vunpack.c.l.b16 %v241
      %v265 = vunpack.c.l.b16 %v242
      %v266 = vpack.c.b16 %v261, %v260
      %v267 = vpack.c.b16 %v263, %v262
      %v268 = vpack.c.b16 %v265, %v264
      %vm272 = vcmask 392192
      %v274 = vsel %vm272, %v243, 0
      %v277 = vsel %vm272, %v244, 0
      %v280 = vsel %vm272, %v245, 0
      %v283 = vsel %vm272, %v246, 0
      %285 = vmatprep.subr.bf16.mxu0 0
      %286 = vmatpush1.bf16.msra.mxu0 %v266
      %287 = vmatprep.subr.bf16.mxu0 0
      %288 = vmatpush1.bf16.msra.mxu0 %v267
      %289 = vmatprep.subr.bf16.mxu0 0
      %290 = vmatpush1.bf16.msra.mxu0 %v268
      %291 = vmatprep.subr.bf16.mxu0 0
      %292 = vmatpush1.bf16.msra.mxu0 0
      %293 = vmatprep.subr.bf16.mxu0 0
      %294 = vmatpush1.bf16.msra.mxu0 0
      %295 = vmatprep.subr.bf16.mxu0 0
      %296 = vmatpush1.bf16.msra.mxu0 0
      %297 = vmatprep.subr.bf16.mxu0 0
      %298 = vmatpush1.bf16.msra.mxu0 0
      %299 = vmatprep.subr.bf16.mxu0 0
      %300 = vmatpush1.bf16.msra.mxu0 0
      %301 = vmatprep.subr.bf16.mxu0 0
      %302 = vmatpush1.bf16.msra.mxu0 0
      %303 = vmatprep.subr.bf16.mxu0 0
      %304 = vmatpush1.bf16.msra.mxu0 0
      %305 = vmatprep.subr.bf16.mxu0 0
      %306 = vmatpush1.bf16.msra.mxu0 0
      %307 = vmatprep.subr.bf16.mxu0 0
      %308 = vmatpush1.bf16.msra.mxu0 0
      %309 = vmatprep.subr.bf16.mxu0 0
      %310 = vmatpush1.bf16.msra.mxu0 0
      %311 = vmatprep.subr.bf16.mxu0 0
      %312 = vmatpush1.bf16.msra.mxu0 0
      %313 = vmatprep.subr.bf16.mxu0 0
      %314 = vmatpush1.bf16.msra.mxu0 0
      %315 = vmatprep.subr.bf16.mxu0 0
      %316 = vmatpush1.bf16.msra.mxu0 0
      %317 = vmatprep.mubr.bf16.mxu0 0
      %318 = vmatmul.mubr.bf16.gmra.mrb[0].mxu0 %v274
      %v319 = vpop.f32.mrb[0].mxu0
      %v320 = vadd.f32 %v252, %v319
      %v321 = vpop.f32.mrb[0].mxu0
      %v322 = vpop.f32.mrb[0].mxu0
      %v323 = vadd.f32 %v252, %v322
      %v324 = vpop.f32.mrb[0].mxu0
      %325 = vmatprep.mubr.bf16.mxu0 0
      %326 = vmatmul.mubr.bf16.gmra.mrb[0].mxu0 %v277
      %v327 = vpop.f32.mrb[0].mxu0
      %v328 = vadd.f32 %v252, %v327
      %v329 = vpop.f32.mrb[0].mxu0
      %v330 = vpop.f32.mrb[0].mxu0
      %v331 = vadd.f32 %v252, %v330
      %v332 = vpop.f32.mrb[0].mxu0
      %333 = vmatprep.mubr.bf16.mxu0 0
      %334 = vmatmul.mubr.bf16.gmra.mrb[0].mxu0 %v280
      %v335 = vpop.f32.mrb[0].mxu0
      %v336 = vadd.f32 %v252, %v335
      %v337 = vpop.f32.mrb[0].mxu0
      %v338 = vpop.f32.mrb[0].mxu0
      %v339 = vadd.f32 %v252, %v338
      %v340 = vpop.f32.mrb[0].mxu0
      %341 = vmatprep.mubr.bf16.mxu0 0
      %342 = vmatmul.mubr.bf16.gmra.mrb[0].mxu0 %v283
      %v343 = vpop.f32.mrb[0].mxu0
      %v344 = vadd.f32 %v252, %v343
      %v345 = vpop.f32.mrb[0].mxu0
      %v346 = vpop.f32.mrb[0].mxu0
      %v347 = vadd.f32 %v252, %v346
      %v348 = vpop.f32.mrb[0].mxu0
      %349 = vdwg.mxu0
      %v350 = vld [vmem:[%s3] sm:$0x1]
      %v351 = vld [vmem:[%s4] sm:$0x1]
      %vm352 = vcmask 261120
      %v353 = vsel %vm352, %v320, 0.0
      %354 = vadd.xlane.f32.xlu0 %v353
      %v355 = vpop.xlane.xlu0 %354
      %v356 = vsel %vm352, %v323, 0.0
      %357 = vadd.xlane.f32.xlu0 %v356
      %v358 = vpop.xlane.xlu0 %357
      %v359 = vsel %vm352, %v328, 0.0
      %360 = vadd.xlane.f32.xlu0 %v359
      %v361 = vpop.xlane.xlu0 %360
      %v362 = vsel %vm352, %v331, 0.0
      %363 = vadd.xlane.f32.xlu0 %v362
      %v364 = vpop.xlane.xlu0 %363
      %v365 = vsel %vm352, %v336, 0.0
      %366 = vadd.xlane.f32.xlu0 %v365
      %v367 = vpop.xlane.xlu0 %366
      %v368 = vsel %vm352, %v339, 0.0
      %369 = vadd.xlane.f32.xlu0 %v368
      %v370 = vpop.xlane.xlu0 %369
      %v371 = vsel %vm352, %v344, 0.0
      %372 = vadd.xlane.f32.xlu0 %v371
      %v373 = vpop.xlane.xlu0 %372
      %v374 = vsel %vm352, %v347, 0.0
      %375 = vadd.xlane.f32.xlu0 %v374
      %v376 = vpop.xlane.xlu0 %375
      %v377 = vrcp.pop 32.0
      %v378 = vmul.f32 %v355, %v377
      %v379 = vmul.f32 %v358, %v377
      %v380 = vmul.f32 %v361, %v377
      %v381 = vmul.f32 %v364, %v377
      %v382 = vmul.f32 %v367, %v377
      %v383 = vmul.f32 %v370, %v377
      %v384 = vmul.f32 %v373, %v377
      %v385 = vmul.f32 %v376, %v377
      %v386 = vsub.f32 %v320, %v378
      %v387 = vsub.f32 %v323, %v379
      %v388 = vsub.f32 %v328, %v380
      %v389 = vsub.f32 %v331, %v381
      %v390 = vsub.f32 %v336, %v382
      %v391 = vsub.f32 %v339, %v383
      %v392 = vsub.f32 %v344, %v384
      %v393 = vsub.f32 %v347, %v385
      %v394 = vmul.f32 %v386, %v386
      %v395 = vmul.f32 %v387, %v387
      %v396 = vmul.f32 %v388, %v388
      %v397 = vmul.f32 %v389, %v389
      %v398 = vmul.f32 %v390, %v390
      %v399 = vmul.f32 %v391, %v391
      %v400 = vmul.f32 %v392, %v392
      %v401 = vmul.f32 %v393, %v393
      %v402 = vsel %vm352, %v394, 0.0
      %403 = vadd.xlane.f32.xlu0 %v402
      %v404 = vpop.xlane.xlu0 %403
      %v405 = vsel %vm352, %v395, 0.0
      %406 = vadd.xlane.f32.xlu0 %v405
      %v407 = vpop.xlane.xlu0 %406
      %v408 = vsel %vm352, %v396, 0.0
      %409 = vadd.xlane.f32.xlu0 %v408
      %v410 = vpop.xlane.xlu0 %409
      %v411 = vsel %vm352, %v397, 0.0
      %412 = vadd.xlane.f32.xlu0 %v411
      %v413 = vpop.xlane.xlu0 %412
      %v414 = vsel %vm352, %v398, 0.0
      %415 = vadd.xlane.f32.xlu0 %v414
      %v416 = vpop.xlane.xlu0 %415
      %v417 = vsel %vm352, %v399, 0.0
      %418 = vadd.xlane.f32.xlu0 %v417
      %v419 = vpop.xlane.xlu0 %418
      %v420 = vsel %vm352, %v400, 0.0
      %421 = vadd.xlane.f32.xlu0 %v420
      %v422 = vpop.xlane.xlu0 %421
      %v423 = vsel %vm352, %v401, 0.0
      %424 = vadd.xlane.f32.xlu0 %v423
      %v425 = vpop.xlane.xlu0 %424
      %v426 = vmul.f32 %v404, %v377
      %v427 = vmul.f32 %v407, %v377
      %v428 = vmul.f32 %v410, %v377
      %v429 = vmul.f32 %v413, %v377
      %v430 = vmul.f32 %v416, %v377
      %v431 = vmul.f32 %v419, %v377
      %v432 = vmul.f32 %v422, %v377
      %v433 = vmul.f32 %v425, %v377
      %v434 = vadd.f32 %v426, 1e-05
      %v435 = vadd.f32 %v427, 1e-05
      %v436 = vadd.f32 %v428, 1e-05
      %v437 = vadd.f32 %v429, 1e-05
      %v438 = vadd.f32 %v430, 1e-05
      %v439 = vadd.f32 %v431, 1e-05
      %v440 = vadd.f32 %v432, 1e-05
      %v441 = vadd.f32 %v433, 1e-05
      %v442 = vrsqrt.pop %v434
      %v443 = vrsqrt.pop %v435
      %v444 = vrsqrt.pop %v436
      %v445 = vrsqrt.pop %v437
      %v446 = vrsqrt.pop %v438
      %v447 = vrsqrt.pop %v439
      %v448 = vrsqrt.pop %v440
      %v449 = vrsqrt.pop %v441
      %v450 = vmul.f32 %v386, %v442
      %v451 = vmul.f32 %v387, %v443
      %v452 = vmul.f32 %v388, %v444
      %v453 = vmul.f32 %v389, %v445
      %v454 = vmul.f32 %v390, %v446
      %v455 = vmul.f32 %v391, %v447
      %v456 = vmul.f32 %v392, %v448
      %v457 = vmul.f32 %v393, %v449
      %v459 = vlaneseq
      %v460 = vshrl.u32 %v459, 7
      %v461 = vsub.s32 0, %v460
      %v462 = vrot.slane %v350, %v461
      %v464 = vmul.f32 %v450, %v462
      %v465 = vmul.f32 %v451, %v462
      %v466 = vmul.f32 %v452, %v462
      %v467 = vmul.f32 %v453, %v462
      %v468 = vmul.f32 %v454, %v462
      %v469 = vmul.f32 %v455, %v462
      %v470 = vmul.f32 %v456, %v462
      %v471 = vmul.f32 %v457, %v462
      %v473 = vlaneseq
      %v474 = vshrl.u32 %v473, 7
      %v475 = vsub.s32 0, %v474
      %v476 = vrot.slane %v351, %v475
      %v478 = vadd.f32 %v464, %v476
      %v479 = vadd.f32 %v465, %v476
      %v480 = vadd.f32 %v466, %v476
      %v481 = vadd.f32 %v467, %v476
      %v482 = vadd.f32 %v468, %v476
      %v483 = vadd.f32 %v469, %v476
      %v484 = vadd.f32 %v470, %v476
      %v485 = vadd.f32 %v471, %v476
      %486 = vst.msk [vmem:[%s226] sm:$0xff] %vm352, %v478
      %487 = vst.msk [vmem:[%s226 + $0x8] sm:$0xff] %vm352, %v479
      %488 = vst.msk [vmem:[%s226 + $0x10] sm:$0xff] %vm352, %v480
      %489 = vst.msk [vmem:[%s226 + $0x18] sm:$0xff] %vm352, %v481
      %490 = vst.msk [vmem:[%s226 + $0x20] sm:$0xff] %vm352, %v482
      %491 = vst.msk [vmem:[%s226 + $0x28] sm:$0xff] %vm352, %v483
      %492 = vst.msk [vmem:[%s226 + $0x30] sm:$0xff] %vm352, %v484
      %493 = vst.msk [vmem:[%s226 + $0x38] sm:$0xff] %vm352, %v485
      %s494 = smul.u32 8, %s16
      %p495 = scmp.lt.s32.totalorder %s494, 15
      %s496 = scalar_select %p495, %s494, 15
      %s497 = smul.addr %s496, 8
      %s498 = scalar_lea.vmem %s5, %s497
      // Predicated region
      $region41: #{swin_forward.8} parent=39 // pred_check
        %p499 = pneg %p144
      $region42: #{swin_forward.8} parent=39 // pred_check_branch
        %501 = sbr.rel (%p499) target = $region44
      $region43: #{swin_forward.8} parent=39 // pred_region
        %s502 = smul.u32 8, %s16
      $region44: #{swin_forward.8} parent=39 // pred_fallthru
        _
    $region40: #{swin_forward.8} parent=5 // pred_fallthru
      _
    %p503 = scmp.le.s32.totalorder 2, %s11
    // Predicated region
    $region45: #{swin_forward.8} parent=5 // pred_check
      %p504 = pneg %p503
    $region46: #{swin_forward.8} parent=5 // pred_check_branch
      %506 = sbr.rel (%p504) target = $region48
    $region47: #{swin_forward.8} parent=5 // pred_region
      %s507 = ssub.s32 %s11, 2
      // Predicated region
      $region49: #{swin_forward.8} parent=47 // pred_check
        %p508 = pneg %p150
      $region50: #{swin_forward.8} parent=47 // pred_check_branch
        %510 = sbr.rel (%p508) target = $region52
      $region51: #{swin_forward.8} parent=47 // pred_region
        %s511 = smul.u32 8, %s17
        %p512 = scmp.lt.s32.totalorder %s511, 15
        %s513 = scalar_select %p512, %s511, 15
        %s514 = smul.addr %s513, 8
        %s515 = scalar_lea.vmem %s5, %s514
      $region52: #{swin_forward.8} parent=47 // pred_fallthru
        _
    $region48: #{swin_forward.8} parent=5 // pred_fallthru
      _
  $region6: #{swin_forward.8} parent=0 // loop_footer
    %s15 = sadd.s32 1, %s11
  $region7: #{swin_forward.8} parent=0 // loop_footer_branch
    %10 = sbr.rel target = $region3
  $region8: #{swin_forward.8} parent=0 // loop_exit
    _

// kernel: swin_forward.12
$region0: #{swin_forward.12}
  #allocation0 [shape = 'u32[]', space=smem, size = 0x4, offset = 0x4, fixed_abs, tag = 'smem constant byte address 0x4 - core index']
  #allocation1 [shape = 'u32[144,128]{1,0:T(1,128)}', space=vmem, size = 0x12000, scoped, tag = 'internal scratch']
  %s0 = inlined_call_operand.vmem [shape: f32[128,32], index: 0, kind: input, shape index: {}]
  %s1 = inlined_call_operand.vmem [shape: f32[1,32], index: 1, kind: input, shape index: {}]
  %s2 = inlined_call_operand.vmem [shape: f32[1,32], index: 2, kind: input, shape index: {}]
  %s3 = inlined_call_operand.hbm [shape: f32[128,32], index: 3, kind: output, shape index: {}]
  %s4 = sld [smem:[#allocation0]]
  $region45: #{swin_forward.12} parent=0
    _
  %s6 = ssub.s32 1, %s4
  %s7 = scalar_select 0, %s6, %s4
  $region1: #{swin_forward.12} parent=0
    #allocation2 [shape = 'u8[65536]{0}', space=vmem, size = 0x10000, scoped, tag = 'output window, operand 0']
    #allocation3 [shape = 's32[2]{0}', space=sflag, size = 0x8, scoped, tag = 'scoped memory for swin_forward.12']
    %8 = vsyncpa [#allocation3], 0
    %s9 = scalar_lea.sflag [#allocation3], 1
    %10 = vsyncpa %s9, 0
    loop: start=0, step=1, limit=4
    $region2: #{swin_forward.12} parent=1 // loop_pre_header
      _
    $region3: #{swin_forward.12} parent=1 // loop_header
      %s12 = sphi 0, %s16
      %p13 = scmp.ge.s32.totalorder %s12, 4
      %s22 = sphi 0, %s24
      %s25 = sphi 0, %s22
      %s26 = sphi 0, %s25
      %s42 = sphi 0, %s26
      %s46 = sphi 0, %s46
      %s48 = sphi 0, %s46
      %s49 = sphi 0, %s48
      %s63 = sphi 0, %s49
      %s67 = sphi 0, %s67
      %s69 = sphi 0, %s67
      %s70 = sphi 0, %s69
      %s84 = sphi 0, %s70
      %s90 = sphi 0, %s92
      %s93 = sphi 0, %s90
      %s94 = sphi 0, %s93
      %s110 = sphi 0, %s94
    $region4: #{swin_forward.12} parent=1 // loop_header_branch
      %15 = sbr.rel (%p13) target = $region8
    $region5: #{swin_forward.12} parent=1 // loop_body
      %s17 = ssub.s32 %s12, 1
      %s18 = ssub.s32 %s12, 2
      %s19 = sadd.s32 %s12, 1
      %s20 = ssub.s32 %s12, %s19
      %p21 = scmp.eq.s32.totalorder %s20, 0
      %s23 = sadd.s32 %s22, 1
      %s24 = scalar_select %p21, %s22, %s23
      %p27 = pneg %p21
      %p28 = scmp.eq.s32.totalorder %s12, 1
      %p29 = por %p27, %p28
      %p30 = scmp.ne.s32.totalorder %s22, %s25
      %p31 = scmp.eq.s32.totalorder %s12, 0
      %p32 = por %p30, %p31
      %p33 = scmp.ne.s32.totalorder %s22, %s25
      %p34 = scmp.eq.s32.totalorder %s17, 1
      %p35 = por %p33, %p34
      %p36 = scmp.ne.s32.totalorder %s25, %s26
      %p37 = scmp.eq.s32.totalorder %s17, 0
      %p38 = por %p36, %p37
      %p39 = scmp.ne.s32.totalorder %s25, %s26
      %p40 = scmp.eq.s32.totalorder %s18, 1
      %p41 = por %p39, %p40
      %p43 = scmp.ne.s32.totalorder %s26, %s42
      %p44 = scmp.eq.s32.totalorder %s18, 0
      %p45 = por %p43, %p44
      %s47 = sadd.s32 %s46, 1
      %p50 = scmp.eq.s32.totalorder %s12, 1
      %p51 = scmp.ne.s32.totalorder %s46, %s48
      %p52 = scmp.eq.s32.totalorder %s12, 0
      %p53 = por %p51, %p52
      %p54 = scmp.ne.s32.totalorder %s46, %s48
      %p55 = scmp.eq.s32.totalorder %s17, 1
      %p56 = por %p54, %p55
      %p57 = scmp.ne.s32.totalorder %s48, %s49
      %p58 = scmp.eq.s32.totalorder %s17, 0
      %p59 = por %p57, %p58
      %p60 = scmp.ne.s32.totalorder %s48, %s49
      %p61 = scmp.eq.s32.totalorder %s18, 1
      %p62 = por %p60, %p61
      %p64 = scmp.ne.s32.totalorder %s49, %s63
      %p65 = scmp.eq.s32.totalorder %s18, 0
      %p66 = por %p64, %p65
      %s68 = sadd.s32 %s67, 1
      %p71 = scmp.eq.s32.totalorder %s12, 1
      %p72 = scmp.ne.s32.totalorder %s67, %s69
      %p73 = scmp.eq.s32.totalorder %s12, 0
      %p74 = por %p72, %p73
      %p75 = scmp.ne.s32.totalorder %s67, %s69
      %p76 = scmp.eq.s32.totalorder %s17, 1
      %p77 = por %p75, %p76
      %p78 = scmp.ne.s32.totalorder %s69, %s70
      %p79 = scmp.eq.s32.totalorder %s17, 0
      %p80 = por %p78, %p79
      %p81 = scmp.ne.s32.totalorder %s69, %s70
      %p82 = scmp.eq.s32.totalorder %s18, 1
      %p83 = por %p81, %p82
      %p85 = scmp.ne.s32.totalorder %s70, %s84
      %p86 = scmp.eq.s32.totalorder %s18, 0
      %p87 = por %p85, %p86
      %s88 = ssub.s32 %s12, %s19
      %p89 = scmp.eq.s32.totalorder %s88, 0
      %s91 = sadd.s32 %s90, 1
      %s92 = scalar_select %p89, %s90, %s91
      %p95 = pneg %p89
      %p96 = scmp.eq.s32.totalorder %s12, 1
      %p97 = por %p95, %p96
      %p98 = scmp.ne.s32.totalorder %s90, %s93
      %p99 = scmp.eq.s32.totalorder %s12, 0
      %p100 = por %p98, %p99
      %p101 = scmp.ne.s32.totalorder %s90, %s93
      %p102 = scmp.eq.s32.totalorder %s17, 1
      %p103 = por %p101, %p102
      %p104 = scmp.ne.s32.totalorder %s93, %s94
      %p105 = scmp.eq.s32.totalorder %s17, 0
      %p106 = por %p104, %p105
      %p107 = scmp.ne.s32.totalorder %s93, %s94
      %p108 = scmp.eq.s32.totalorder %s18, 1
      %p109 = por %p107, %p108
      %p111 = scmp.ne.s32.totalorder %s94, %s110
      %p112 = scmp.eq.s32.totalorder %s18, 0
      %p113 = por %p111, %p112
      %p114 = scmp.le.s32.totalorder 1, %s12
      %p115 = scmp.lt.s32.totalorder %s12, 3
      %p116 = pnand %p114, %p115
      %p117 = pneg %p116
      // Predicated region
      $region9: #{swin_forward.12} parent=5 // pred_check
        _
      $region10: #{swin_forward.12} parent=5 // pred_check_branch
        %119 = sbr.rel (%p116) target = $region12
      $region11: #{swin_forward.12} parent=5 // pred_region
        %s120 = ssub.s32 %s12, 1
        // Predicated region
        $region13: #{swin_forward.12} parent=11 // pred_check
          %p121 = pneg %p59
        $region14: #{swin_forward.12} parent=11 // pred_check_branch
          %123 = sbr.rel (%p121) target = $region16
        $region15: #{swin_forward.12} parent=11 // pred_region
          _
        $region16: #{swin_forward.12} parent=11 // pred_fallthru
          _
        // Predicated region
        $region17: #{swin_forward.12} parent=11 // pred_check
          %p124 = pneg %p80
        $region18: #{swin_forward.12} parent=11 // pred_check_branch
          %126 = sbr.rel (%p124) target = $region20
        $region19: #{swin_forward.12} parent=11 // pred_region
          _
        $region20: #{swin_forward.12} parent=11 // pred_fallthru
          _
      $region12: #{swin_forward.12} parent=5 // pred_fallthru
        _
      %p127 = scmp.lt.s32.totalorder %s12, 2
      // Predicated region
      $region21: #{swin_forward.12} parent=5 // pred_check
        %p128 = pneg %p127
      $region22: #{swin_forward.12} parent=5 // pred_check_branch
        %130 = sbr.rel (%p128) target = $region24
      $region23: #{swin_forward.12} parent=5 // pred_region
        // Predicated region
        $region25: #{swin_forward.12} parent=23 // pred_check
          %p131 = pneg %p32
        $region26: #{swin_forward.12} parent=23 // pred_check_branch
          %133 = sbr.rel (%p131) target = $region28
        $region27: #{swin_forward.12} parent=23 // pred_region
          %s134 = smul.u32 8, %s12
          %p135 = scmp.lt.s32.totalorder %s134, 15
          %s136 = scalar_select %p135, %s134, 15
          %s137 = smul.addr %s136, 8
          %s138 = scalar_lea.vmem %s0, %s137
          %s139 = smul.u32 8, %s12
        $region28: #{swin_forward.12} parent=23 // pred_fallthru
          _
      $region24: #{swin_forward.12} parent=5 // pred_fallthru
        _
      %p140 = scmp.le.s32.totalorder 1, %s12
      %p141 = scmp.lt.s32.totalorder %s12, 3
      %p142 = pnand %p140, %p141
      %p143 = pneg %p142
      // Predicated region
      $region29: #{swin_forward.12} parent=5 // pred_check
        _
      $region30: #{swin_forward.12} parent=5 // pred_check_branch
        %145 = sbr.rel (%p142) target = $region32
      $region31: #{swin_forward.12} parent=5 // pred_region
        %s146 = ssub.s32 %s12, 1
        %s147 = smul.u32 8, %s17
        %p148 = scmp.lt.s32.totalorder %s147, 15
        %s149 = scalar_select %p148, %s147, 15
        %s150 = smul.addr %s149, 8
        %s151 = scalar_lea.vmem %s0, %s150
        %p152 = pneg %p38
        %p153 = pneg %p35
        %p154 = pneg %p59
        %p155 = pneg %p56
        %p156 = pneg %p80
        %p157 = pneg %p77
        %p158 = pneg %p106
        %p159 = pneg %p103
        %s160 = sand.u32 %s93, 1
        %s161 = scalar_lea.sflag [#allocation3], %s160
        %s162 = sand.u32 %s93, 1
        %s163 = smul.addr %s162, 64
        %s164 = scalar_lea.vmem [#allocation2], %s163
        %s165 = smul.u32 8, %s17
        %p166 = scmp.lt.s32.totalorder %s165, 15
        %s167 = scalar_select %p166, %s165, 15
        %s168 = smul.addr %s167, 8
        %s169 = scalar_lea.vmem %s0, %s168
        %s170 = smul.u32 8, %s17
        %s171 = smul.u32 8, %s17
        %v172 = vld [vmem:[%s169] sm:$0xff]
        %v173 = vld [vmem:[%s169 + $0x8] sm:$0xff]
        %v174 = vld [vmem:[%s169 + $0x10] sm:$0xff]
        %v175 = vld [vmem:[%s169 + $0x18] sm:$0xff]
        %v176 = vld [vmem:[%s169 + $0x20] sm:$0xff]
        %v177 = vld [vmem:[%s169 + $0x28] sm:$0xff]
        %v178 = vld [vmem:[%s169 + $0x30] sm:$0xff]
        %v179 = vld [vmem:[%s169 + $0x38] sm:$0xff]
        %v180 = vld [vmem:[%s1] sm:$0x1]
        %v181 = vld [vmem:[%s2] sm:$0x1]
        %vm182 = vcmask 261120
        %v183 = vsel %vm182, %v172, 0.0
        %184 = vadd.xlane.f32.xlu0 %v183
        %v185 = vpop.xlane.xlu0 %184
        %v186 = vsel %vm182, %v173, 0.0
        %187 = vadd.xlane.f32.xlu0 %v186
        %v188 = vpop.xlane.xlu0 %187
        %v189 = vsel %vm182, %v174, 0.0
        %190 = vadd.xlane.f32.xlu0 %v189
        %v191 = vpop.xlane.xlu0 %190
        %v192 = vsel %vm182, %v175, 0.0
        %193 = vadd.xlane.f32.xlu0 %v192
        %v194 = vpop.xlane.xlu0 %193
        %v195 = vsel %vm182, %v176, 0.0
        %196 = vadd.xlane.f32.xlu0 %v195
        %v197 = vpop.xlane.xlu0 %196
        %v198 = vsel %vm182, %v177, 0.0
        %199 = vadd.xlane.f32.xlu0 %v198
        %v200 = vpop.xlane.xlu0 %199
        %v201 = vsel %vm182, %v178, 0.0
        %202 = vadd.xlane.f32.xlu0 %v201
        %v203 = vpop.xlane.xlu0 %202
        %v204 = vsel %vm182, %v179, 0.0
        %205 = vadd.xlane.f32.xlu0 %v204
        %v206 = vpop.xlane.xlu0 %205
        %v207 = vrcp.pop 32.0
        %v208 = vmul.f32 %v185, %v207
        %v209 = vmul.f32 %v188, %v207
        %v210 = vmul.f32 %v191, %v207
        %v211 = vmul.f32 %v194, %v207
        %v212 = vmul.f32 %v197, %v207
        %v213 = vmul.f32 %v200, %v207
        %v214 = vmul.f32 %v203, %v207
        %v215 = vmul.f32 %v206, %v207
        %v216 = vsub.f32 %v172, %v208
        %v217 = vsub.f32 %v173, %v209
        %v218 = vsub.f32 %v174, %v210
        %v219 = vsub.f32 %v175, %v211
        %v220 = vsub.f32 %v176, %v212
        %v221 = vsub.f32 %v177, %v213
        %v222 = vsub.f32 %v178, %v214
        %v223 = vsub.f32 %v179, %v215
        %v224 = vmul.f32 %v216, %v216
        %v225 = vmul.f32 %v217, %v217
        %v226 = vmul.f32 %v218, %v218
        %v227 = vmul.f32 %v219, %v219
        %v228 = vmul.f32 %v220, %v220
        %v229 = vmul.f32 %v221, %v221
        %v230 = vmul.f32 %v222, %v222
        %v231 = vmul.f32 %v223, %v223
        %v232 = vsel %vm182, %v224, 0.0
        %233 = vadd.xlane.f32.xlu0 %v232
        %v234 = vpop.xlane.xlu0 %233
        %v235 = vsel %vm182, %v225, 0.0
        %236 = vadd.xlane.f32.xlu0 %v235
        %v237 = vpop.xlane.xlu0 %236
        %v238 = vsel %vm182, %v226, 0.0
        %239 = vadd.xlane.f32.xlu0 %v238
        %v240 = vpop.xlane.xlu0 %239
        %v241 = vsel %vm182, %v227, 0.0
        %242 = vadd.xlane.f32.xlu0 %v241
        %v243 = vpop.xlane.xlu0 %242
        %v244 = vsel %vm182, %v228, 0.0
        %245 = vadd.xlane.f32.xlu0 %v244
        %v246 = vpop.xlane.xlu0 %245
        %v247 = vsel %vm182, %v229, 0.0
        %248 = vadd.xlane.f32.xlu0 %v247
        %v249 = vpop.xlane.xlu0 %248
        %v250 = vsel %vm182, %v230, 0.0
        %251 = vadd.xlane.f32.xlu0 %v250
        %v252 = vpop.xlane.xlu0 %251
        %v253 = vsel %vm182, %v231, 0.0
        %254 = vadd.xlane.f32.xlu0 %v253
        %v255 = vpop.xlane.xlu0 %254
        %v256 = vmul.f32 %v234, %v207
        %v257 = vmul.f32 %v237, %v207
        %v258 = vmul.f32 %v240, %v207
        %v259 = vmul.f32 %v243, %v207
        %v260 = vmul.f32 %v246, %v207
        %v261 = vmul.f32 %v249, %v207
        %v262 = vmul.f32 %v252, %v207
        %v263 = vmul.f32 %v255, %v207
        %v264 = vadd.f32 %v256, 1e-05
        %v265 = vadd.f32 %v257, 1e-05
        %v266 = vadd.f32 %v258, 1e-05
        %v267 = vadd.f32 %v259, 1e-05
        %v268 = vadd.f32 %v260, 1e-05
        %v269 = vadd.f32 %v261, 1e-05
        %v270 = vadd.f32 %v262, 1e-05
        %v271 = vadd.f32 %v263, 1e-05
        %v272 = vrsqrt.pop %v264
        %v273 = vrsqrt.pop %v265
        %v274 = vrsqrt.pop %v266
        %v275 = vrsqrt.pop %v267
        %v276 = vrsqrt.pop %v268
        %v277 = vrsqrt.pop %v269
        %v278 = vrsqrt.pop %v270
        %v279 = vrsqrt.pop %v271
        %v280 = vmul.f32 %v216, %v272
        %v281 = vmul.f32 %v217, %v273
        %v282 = vmul.f32 %v218, %v274
        %v283 = vmul.f32 %v219, %v275
        %v284 = vmul.f32 %v220, %v276
        %v285 = vmul.f32 %v221, %v277
        %v286 = vmul.f32 %v222, %v278
        %v287 = vmul.f32 %v223, %v279
        %v289 = vlaneseq
        %v290 = vshrl.u32 %v289, 7
        %v291 = vsub.s32 0, %v290
        %v292 = vrot.slane %v180, %v291
        %v294 = vmul.f32 %v280, %v292
        %v295 = vmul.f32 %v281, %v292
        %v296 = vmul.f32 %v282, %v292
        %v297 = vmul.f32 %v283, %v292
        %v298 = vmul.f32 %v284, %v292
        %v299 = vmul.f32 %v285, %v292
        %v300 = vmul.f32 %v286, %v292
        %v301 = vmul.f32 %v287, %v292
        %v303 = vlaneseq
        %v304 = vshrl.u32 %v303, 7
        %v305 = vsub.s32 0, %v304
        %v306 = vrot.slane %v181, %v305
        %v308 = vadd.f32 %v294, %v306
        %v309 = vadd.f32 %v295, %v306
        %v310 = vadd.f32 %v296, %v306
        %v311 = vadd.f32 %v297, %v306
        %v312 = vadd.f32 %v298, %v306
        %v313 = vadd.f32 %v299, %v306
        %v314 = vadd.f32 %v300, %v306
        %v315 = vadd.f32 %v301, %v306
        %316 = vst.msk [vmem:[%s164] sm:$0xff] %vm182, %v308
        %317 = vst.msk [vmem:[%s164 + $0x8] sm:$0xff] %vm182, %v309
        %318 = vst.msk [vmem:[%s164 + $0x10] sm:$0xff] %vm182, %v310
        %319 = vst.msk [vmem:[%s164 + $0x18] sm:$0xff] %vm182, %v311
        %320 = vst.msk [vmem:[%s164 + $0x20] sm:$0xff] %vm182, %v312
        %321 = vst.msk [vmem:[%s164 + $0x28] sm:$0xff] %vm182, %v313
        %322 = vst.msk [vmem:[%s164 + $0x30] sm:$0xff] %vm182, %v314
        %323 = vst.msk [vmem:[%s164 + $0x38] sm:$0xff] %vm182, %v315
        %s324 = sand.u32 %s93, 1
        %s325 = scalar_lea.sflag [#allocation3], %s324
        %s326 = sand.u32 %s93, 1
        %s327 = smul.addr %s326, 64
        %s328 = scalar_lea.vmem [#allocation2], %s327
        // Predicated region
        $region33: #{swin_forward.12} parent=31 // pred_check
          %p329 = pneg %p103
        $region34: #{swin_forward.12} parent=31 // pred_check_branch
          %331 = sbr.rel (%p329) target = $region36
        $region35: #{swin_forward.12} parent=31 // pred_region
          %s332 = smul.u32 8, %s17
          %s334 = ssub.s32 1024, 1024
          %335 = vsyncadd %s325, %s334
          %s336 = smul.addr %s332, 128
          %s337 = scalar_lea.hbm %s3, %s336
          %s338 = sshll.u32 %s328, 4
          %s339 = int_to_ptr.vmem [resolvable:$true] %s338
          %344 = dma.vmem_to_hbm [thread:$0]  %s339, 1024, %s337, %s325, 128, 128, 8
        $region36: #{swin_forward.12} parent=31 // pred_fallthru
          _
      $region32: #{swin_forward.12} parent=5 // pred_fallthru
        _
      %p345 = scmp.le.s32.totalorder 2, %s12
      // Predicated region
      $region37: #{swin_forward.12} parent=5 // pred_check
        %p346 = pneg %p345
      $region38: #{swin_forward.12} parent=5 // pred_check_branch
        %348 = sbr.rel (%p346) target = $region40
      $region39: #{swin_forward.12} parent=5 // pred_region
        %s349 = ssub.s32 %s12, 2
        // Predicated region
        $region41: #{swin_forward.12} parent=39 // pred_check
          %p350 = pneg %p109
        $region42: #{swin_forward.12} parent=39 // pred_check_branch
          %352 = sbr.rel (%p350) target = $region44
        $region43: #{swin_forward.12} parent=39 // pred_region
          %s353 = sand.u32 %s94, 1
          %s354 = scalar_lea.sflag [#allocation3], %s353
          %s355 = sand.u32 %s94, 1
          %s356 = smul.addr %s355, 64
          %s357 = scalar_lea.vmem [#allocation2], %s356
          %358 = dma.done %s354, 1024
        $region44: #{swin_forward.12} parent=39 // pred_fallthru
          _
      $region40: #{swin_forward.12} parent=5 // pred_fallthru
        _
    $region6: #{swin_forward.12} parent=1 // loop_footer
      %s16 = sadd.s32 1, %s12
    $region7: #{swin_forward.12} parent=1 // loop_footer_branch
      %11 = sbr.rel target = $region3
    $region8: #{swin_forward.12} parent=1 // loop_exit
      _
    %359 = vsyncpa [#allocation3], 1
    %s360 = scalar_lea.sflag [#allocation3], 1
    %361 = vsyncpa %s360, 1

// kernel: swin_forward.11
$region0: #{swin_forward.11}
  #allocation0 [shape = 'u32[]', space=smem, size = 0x4, offset = 0x4, fixed_abs, tag = 'smem constant byte address 0x4 - core index']
  #allocation1 [shape = 'u32[144,128]{1,0:T(1,128)}', space=vmem, size = 0x12000, scoped, tag = 'internal scratch']
  %s0 = inlined_call_operand.vmem [shape: f32[32,128], index: 0, kind: input, shape index: {}]
  %s1 = inlined_call_operand.vmem [shape: f32[1,128], index: 1, kind: input, shape index: {}]
  %s2 = inlined_call_operand.vmem [shape: f32[1,128], index: 2, kind: input, shape index: {}]
  %s3 = inlined_call_operand.vmem [shape: bf16[128,64], index: 3, kind: input, shape index: {}]
  %s4 = inlined_call_operand.vmem [shape: f32[32,64], index: 4, kind: output, shape index: {}]
  %s5 = sld [smem:[#allocation0]]
  $region49: #{swin_forward.11} parent=0
    _
  %s7 = ssub.s32 1, %s5
  %s8 = scalar_select 0, %s7, %s5
  loop: start=0, step=1, limit=4
  $region2: #{swin_forward.11} parent=0 // loop_pre_header
    _
  $region3: #{swin_forward.11} parent=0 // loop_header
    %s10 = sphi 0, %s14
    %p11 = scmp.ge.s32.totalorder %s10, 4
    %s20 = sphi 0, %s22
    %s23 = sphi 0, %s20
    %s24 = sphi 0, %s23
    %s40 = sphi 0, %s24
    %s44 = sphi 0, %s44
    %s46 = sphi 0, %s44
    %s47 = sphi 0, %s46
    %s61 = sphi 0, %s47
    %s65 = sphi 0, %s65
    %s67 = sphi 0, %s65
    %s68 = sphi 0, %s67
    %s82 = sphi 0, %s68
    %s86 = sphi 0, %s86
    %s88 = sphi 0, %s86
    %s89 = sphi 0, %s88
    %s103 = sphi 0, %s89
    %s109 = sphi 0, %s111
    %s112 = sphi 0, %s109
    %s113 = sphi 0, %s112
    %s129 = sphi 0, %s113
  $region4: #{swin_forward.11} parent=0 // loop_header_branch
    %13 = sbr.rel (%p11) target = $region8
  $region5: #{swin_forward.11} parent=0 // loop_body
    %s15 = ssub.s32 %s10, 1
    %s16 = ssub.s32 %s10, 2
    %s17 = sadd.s32 %s10, 1
    %s18 = ssub.s32 %s10, %s17
    %p19 = scmp.eq.s32.totalorder %s18, 0
    %s21 = sadd.s32 %s20, 1
    %s22 = scalar_select %p19, %s20, %s21
    %p25 = pneg %p19
    %p26 = scmp.eq.s32.totalorder %s10, 1
    %p27 = por %p25, %p26
    %p28 = scmp.ne.s32.totalorder %s20, %s23
    %p29 = scmp.eq.s32.totalorder %s10, 0
    %p30 = por %p28, %p29
    %p31 = scmp.ne.s32.totalorder %s20, %s23
    %p32 = scmp.eq.s32.totalorder %s15, 1
    %p33 = por %p31, %p32
    %p34 = scmp.ne.s32.totalorder %s23, %s24
    %p35 = scmp.eq.s32.totalorder %s15, 0
    %p36 = por %p34, %p35
    %p37 = scmp.ne.s32.totalorder %s23, %s24
    %p38 = scmp.eq.s32.totalorder %s16, 1
    %p39 = por %p37, %p38
    %p41 = scmp.ne.s32.totalorder %s24, %s40
    %p42 = scmp.eq.s32.totalorder %s16, 0
    %p43 = por %p41, %p42
    %s45 = sadd.s32 %s44, 1
    %p48 = scmp.eq.s32.totalorder %s10, 1
    %p49 = scmp.ne.s32.totalorder %s44, %s46
    %p50 = scmp.eq.s32.totalorder %s10, 0
    %p51 = por %p49, %p50
    %p52 = scmp.ne.s32.totalorder %s44, %s46
    %p53 = scmp.eq.s32.totalorder %s15, 1
    %p54 = por %p52, %p53
    %p55 = scmp.ne.s32.totalorder %s46, %s47
    %p56 = scmp.eq.s32.totalorder %s15, 0
    %p57 = por %p55, %p56
    %p58 = scmp.ne.s32.totalorder %s46, %s47
    %p59 = scmp.eq.s32.totalorder %s16, 1
    %p60 = por %p58, %p59
    %p62 = scmp.ne.s32.totalorder %s47, %s61
    %p63 = scmp.eq.s32.totalorder %s16, 0
    %p64 = por %p62, %p63
    %s66 = sadd.s32 %s65, 1
    %p69 = scmp.eq.s32.totalorder %s10, 1
    %p70 = scmp.ne.s32.totalorder %s65, %s67
    %p71 = scmp.eq.s32.totalorder %s10, 0
    %p72 = por %p70, %p71
    %p73 = scmp.ne.s32.totalorder %s65, %s67
    %p74 = scmp.eq.s32.totalorder %s15, 1
    %p75 = por %p73, %p74
    %p76 = scmp.ne.s32.totalorder %s67, %s68
    %p77 = scmp.eq.s32.totalorder %s15, 0
    %p78 = por %p76, %p77
    %p79 = scmp.ne.s32.totalorder %s67, %s68
    %p80 = scmp.eq.s32.totalorder %s16, 1
    %p81 = por %p79, %p80
    %p83 = scmp.ne.s32.totalorder %s68, %s82
    %p84 = scmp.eq.s32.totalorder %s16, 0
    %p85 = por %p83, %p84
    %s87 = sadd.s32 %s86, 1
    %p90 = scmp.eq.s32.totalorder %s10, 1
    %p91 = scmp.ne.s32.totalorder %s86, %s88
    %p92 = scmp.eq.s32.totalorder %s10, 0
    %p93 = por %p91, %p92
    %p94 = scmp.ne.s32.totalorder %s86, %s88
    %p95 = scmp.eq.s32.totalorder %s15, 1
    %p96 = por %p94, %p95
    %p97 = scmp.ne.s32.totalorder %s88, %s89
    %p98 = scmp.eq.s32.totalorder %s15, 0
    %p99 = por %p97, %p98
    %p100 = scmp.ne.s32.totalorder %s88, %s89
    %p101 = scmp.eq.s32.totalorder %s16, 1
    %p102 = por %p100, %p101
    %p104 = scmp.ne.s32.totalorder %s89, %s103
    %p105 = scmp.eq.s32.totalorder %s16, 0
    %p106 = por %p104, %p105
    %s107 = ssub.s32 %s10, %s17
    %p108 = scmp.eq.s32.totalorder %s107, 0
    %s110 = sadd.s32 %s109, 1
    %s111 = scalar_select %p108, %s109, %s110
    %p114 = pneg %p108
    %p115 = scmp.eq.s32.totalorder %s10, 1
    %p116 = por %p114, %p115
    %p117 = scmp.ne.s32.totalorder %s109, %s112
    %p118 = scmp.eq.s32.totalorder %s10, 0
    %p119 = por %p117, %p118
    %p120 = scmp.ne.s32.totalorder %s109, %s112
    %p121 = scmp.eq.s32.totalorder %s15, 1
    %p122 = por %p120, %p121
    %p123 = scmp.ne.s32.totalorder %s112, %s113
    %p124 = scmp.eq.s32.totalorder %s15, 0
    %p125 = por %p123, %p124
    %p126 = scmp.ne.s32.totalorder %s112, %s113
    %p127 = scmp.eq.s32.totalorder %s16, 1
    %p128 = por %p126, %p127
    %p130 = scmp.ne.s32.totalorder %s113, %s129
    %p131 = scmp.eq.s32.totalorder %s16, 0
    %p132 = por %p130, %p131
    %p133 = scmp.le.s32.totalorder 1, %s10
    %p134 = scmp.lt.s32.totalorder %s10, 3
    %p135 = pnand %p133, %p134
    %p136 = pneg %p135
    // Predicated region
    $region9: #{swin_forward.11} parent=5 // pred_check
      _
    $region10: #{swin_forward.11} parent=5 // pred_check_branch
      %138 = sbr.rel (%p135) target = $region12
    $region11: #{swin_forward.11} parent=5 // pred_region
      %s139 = ssub.s32 %s10, 1
      // Predicated region
      $region13: #{swin_forward.11} parent=11 // pred_check
        %p140 = pneg %p57
      $region14: #{swin_forward.11} parent=11 // pred_check_branch
        %142 = sbr.rel (%p140) target = $region16
      $region15: #{swin_forward.11} parent=11 // pred_region
        _
      $region16: #{swin_forward.11} parent=11 // pred_fallthru
        _
      // Predicated region
      $region17: #{swin_forward.11} parent=11 // pred_check
        %p143 = pneg %p78
      $region18: #{swin_forward.11} parent=11 // pred_check_branch
        %145 = sbr.rel (%p143) target = $region20
      $region19: #{swin_forward.11} parent=11 // pred_region
        _
      $region20: #{swin_forward.11} parent=11 // pred_fallthru
        _
      // Predicated region
      $region21: #{swin_forward.11} parent=11 // pred_check
        %p146 = pneg %p99
      $region22: #{swin_forward.11} parent=11 // pred_check_branch
        %148 = sbr.rel (%p146) target = $region24
      $region23: #{swin_forward.11} parent=11 // pred_region
        _
      $region24: #{swin_forward.11} parent=11 // pred_fallthru
        _
    $region12: #{swin_forward.11} parent=5 // pred_fallthru
      _
    %p149 = scmp.lt.s32.totalorder %s10, 2
    // Predicated region
    $region25: #{swin_forward.11} parent=5 // pred_check
      %p150 = pneg %p149
    $region26: #{swin_forward.11} parent=5 // pred_check_branch
      %152 = sbr.rel (%p150) target = $region28
    $region27: #{swin_forward.11} parent=5 // pred_region
      // Predicated region
      $region29: #{swin_forward.11} parent=27 // pred_check
        %p153 = pneg %p30
      $region30: #{swin_forward.11} parent=27 // pred_check_branch
        %155 = sbr.rel (%p153) target = $region32
      $region31: #{swin_forward.11} parent=27 // pred_region
        %s156 = smul.u32 2, %s10
        %p157 = scmp.lt.s32.totalorder %s156, 3
        %s158 = scalar_select %p157, %s156, 3
        %s159 = smul.addr %s158, 8
        %s160 = scalar_lea.vmem %s0, %s159
        %s161 = smul.u32 2, %s10
      $region32: #{swin_forward.11} parent=27 // pred_fallthru
        _
    $region28: #{swin_forward.11} parent=5 // pred_fallthru
      _
    %p162 = scmp.le.s32.totalorder 1, %s10
    %p163 = scmp.lt.s32.totalorder %s10, 3
    %p164 = pnand %p162, %p163
    %p165 = pneg %p164
    // Predicated region
    $region33: #{swin_forward.11} parent=5 // pred_check
      _
    $region34: #{swin_forward.11} parent=5 // pred_check_branch
      %167 = sbr.rel (%p164) target = $region36
    $region35: #{swin_forward.11} parent=5 // pred_region
      %s168 = ssub.s32 %s10, 1
      %s169 = smul.u32 2, %s15
      %p170 = scmp.lt.s32.totalorder %s169, 3
      %s171 = scalar_select %p170, %s169, 3
      %s172 = smul.addr %s171, 8
      %s173 = scalar_lea.vmem %s0, %s172
      %p174 = pneg %p36
      %p175 = pneg %p33
      %p176 = pneg %p57
      %p177 = pneg %p54
      %p178 = pneg %p78
      %p179 = pneg %p75
      %p180 = pneg %p99
      %p181 = pneg %p96
      %p182 = pneg %p125
      %p183 = pneg %p122
      %s184 = smul.u32 2, %s15
      %p185 = scmp.lt.s32.totalorder %s184, 3
      %s186 = scalar_select %p185, %s184, 3
      %s187 = smul.addr %s186, 8
      %s188 = scalar_lea.vmem %s4, %s187
      %s189 = smul.u32 2, %s15
      %p190 = scmp.lt.s32.totalorder %s189, 3
      %s191 = scalar_select %p190, %s189, 3
      %s192 = smul.addr %s191, 8
      %s193 = scalar_lea.vmem %s0, %s192
      %s194 = smul.u32 2, %s15
      %s195 = smul.u32 2, %s15
      %p196 = scmp.lt.s32.totalorder %s195, 3
      %s197 = scalar_select %p196, %s195, 3
      %s198 = smul.addr %s197, 8
      %s199 = scalar_lea.vmem %s4, %s198
      %s200 = smul.u32 2, %s15
      %v202 = vld [vmem:[%s193] sm:$0xff]
      %v203 = vld [vmem:[%s193 + $0x8] sm:$0xff]
      %v204 = vld [vmem:[%s1] sm:$0x1]
      %v205 = vld [vmem:[%s2] sm:$0x1]
      %206 = vadd.xlane.f32.xlu0 %v202
      %v207 = vpop.xlane.xlu0 %206
      %208 = vadd.xlane.f32.xlu0 %v203
      %v209 = vpop.xlane.xlu0 %208
      %v210 = vrcp.pop 128.0
      %v211 = vmul.f32 %v207, %v210
      %v212 = vmul.f32 %v209, %v210
      %v213 = vsub.f32 %v202, %v211
      %v214 = vsub.f32 %v203, %v212
      %v215 = vmul.f32 %v213, %v213
      %v216 = vmul.f32 %v214, %v214
      %217 = vadd.xlane.f32.xlu0 %v215
      %v218 = vpop.xlane.xlu0 %217
      %219 = vadd.xlane.f32.xlu0 %v216
      %v220 = vpop.xlane.xlu0 %219
      %v221 = vmul.f32 %v218, %v210
      %v222 = vmul.f32 %v220, %v210
      %v223 = vadd.f32 %v221, 1e-05
      %v224 = vadd.f32 %v222, 1e-05
      %v225 = vrsqrt.pop %v223
      %v226 = vrsqrt.pop %v224
      %v227 = vmul.f32 %v213, %v225
      %v228 = vmul.f32 %v214, %v226
      %v230 = vlaneseq
      %v231 = vshrl.u32 %v230, 7
      %v232 = vsub.s32 0, %v231
      %v233 = vrot.slane %v204, %v232
      %v235 = vmul.f32 %v227, %v233
      %v236 = vmul.f32 %v228, %v233
      %v238 = vlaneseq
      %v239 = vshrl.u32 %v238, 7
      %v240 = vsub.s32 0, %v239
      %v241 = vrot.slane %v205, %v240
      %v243 = vadd.f32 %v235, %v241
      %v244 = vadd.f32 %v236, %v241
      %v245 = vld [vmem:[%s3] sm:$0xf]
      %v246 = vld [vmem:[%s3 + $0x4] sm:$0xf]
      %v247 = vld [vmem:[%s3 + $0x8] sm:$0xf]
      %v248 = vld [vmem:[%s3 + $0xc] sm:$0xf]
      %v249 = vld [vmem:[%s3 + $0x10] sm:$0xf]
      %v250 = vld [vmem:[%s3 + $0x14] sm:$0xf]
      %v251 = vld [vmem:[%s3 + $0x18] sm:$0xf]
      %v252 = vld [vmem:[%s3 + $0x1c] sm:$0xf]
      %v253 = vld [vmem:[%s3 + $0x20] sm:$0xf]
      %v254 = vld [vmem:[%s3 + $0x24] sm:$0xf]
      %v255 = vld [vmem:[%s3 + $0x28] sm:$0xf]
      %v256 = vld [vmem:[%s3 + $0x2c] sm:$0xf]
      %v257 = vld [vmem:[%s3 + $0x30] sm:$0xf]
      %v258 = vld [vmem:[%s3 + $0x34] sm:$0xf]
      %v259 = vld [vmem:[%s3 + $0x38] sm:$0xf]
      %v260 = vld [vmem:[%s3 + $0x3c] sm:$0xf]
      %v261 = vpack.c.bf16 %v244, %v243
      %v278 = vunpack.c.l.b16 %v245
      %v279 = vunpack.c.l.b16 %v246
      %v280 = vunpack.c.l.b16 %v247
      %v281 = vunpack.c.l.b16 %v248
      %v282 = vunpack.c.l.b16 %v249
      %v283 = vunpack.c.l.b16 %v250
      %v284 = vunpack.c.l.b16 %v251
      %v285 = vunpack.c.l.b16 %v252
      %v286 = vunpack.c.l.b16 %v253
      %v287 = vunpack.c.l.b16 %v254
      %v288 = vunpack.c.l.b16 %v255
      %v289 = vunpack.c.l.b16 %v256
      %v290 = vunpack.c.l.b16 %v257
      %v291 = vunpack.c.l.b16 %v258
      %v292 = vunpack.c.l.b16 %v259
      %v293 = vunpack.c.l.b16 %v260
      %v294 = vpack.c.b16 %v279, %v278
      %v295 = vpack.c.b16 %v281, %v280
      %v296 = vpack.c.b16 %v283, %v282
      %v297 = vpack.c.b16 %v285, %v284
      %v298 = vpack.c.b16 %v287, %v286
      %v299 = vpack.c.b16 %v289, %v288
      %v300 = vpack.c.b16 %v291, %v290
      %v301 = vpack.c.b16 %v293, %v292
      %310 = vmatprep.subr.bf16.mxu0 0
      %311 = vmatpush1.bf16.msra.mxu0 %v294
      %312 = vmatprep.subr.bf16.mxu0 0
      %313 = vmatpush1.bf16.msra.mxu0 %v295
      %314 = vmatprep.subr.bf16.mxu0 0
      %315 = vmatpush1.bf16.msra.mxu0 %v296
      %316 = vmatprep.subr.bf16.mxu0 0
      %317 = vmatpush1.bf16.msra.mxu0 %v297
      %318 = vmatprep.subr.bf16.mxu0 0
      %319 = vmatpush1.bf16.msra.mxu0 %v298
      %320 = vmatprep.subr.bf16.mxu0 0
      %321 = vmatpush1.bf16.msra.mxu0 %v299
      %322 = vmatprep.subr.bf16.mxu0 0
      %323 = vmatpush1.bf16.msra.mxu0 %v300
      %324 = vmatprep.subr.bf16.mxu0 0
      %325 = vmatpush1.bf16.msra.mxu0 %v301
      %326 = vmatprep.subr.bf16.mxu0 0
      %327 = vmatpush1.bf16.msra.mxu0 0
      %328 = vmatprep.subr.bf16.mxu0 0
      %329 = vmatpush1.bf16.msra.mxu0 0
      %330 = vmatprep.subr.bf16.mxu0 0
      %331 = vmatpush1.bf16.msra.mxu0 0
      %332 = vmatprep.subr.bf16.mxu0 0
      %333 = vmatpush1.bf16.msra.mxu0 0
      %334 = vmatprep.subr.bf16.mxu0 0
      %335 = vmatpush1.bf16.msra.mxu0 0
      %336 = vmatprep.subr.bf16.mxu0 0
      %337 = vmatpush1.bf16.msra.mxu0 0
      %338 = vmatprep.subr.bf16.mxu0 0
      %339 = vmatpush1.bf16.msra.mxu0 0
      %340 = vmatprep.subr.bf16.mxu0 0
      %341 = vmatpush1.bf16.msra.mxu0 0
      %342 = vmatprep.mubr.bf16.mxu0 0
      %343 = vmatmul.mubr.bf16.gmra.mrb[0].mxu0 %v261
      %v344 = vpop.f32.mrb[0].mxu0
      %v345 = vadd.f32 0.0, %v344
      %v346 = vpop.f32.mrb[0].mxu0
      %v347 = vpop.f32.mrb[0].mxu0
      %v348 = vadd.f32 0.0, %v347
      %v349 = vpop.f32.mrb[0].mxu0
      %350 = vdwg.mxu0
      %vm351 = vcmask 523264
      %352 = vst.msk [vmem:[%s199] sm:$0xff] %vm351, %v345
      %353 = vst.msk [vmem:[%s199 + $0x8] sm:$0xff] %vm351, %v348
      %s354 = smul.u32 2, %s15
      %p355 = scmp.lt.s32.totalorder %s354, 3
      %s356 = scalar_select %p355, %s354, 3
      %s357 = smul.addr %s356, 8
      %s358 = scalar_lea.vmem %s4, %s357
      // Predicated region
      $region37: #{swin_forward.11} parent=35 // pred_check
        %p359 = pneg %p122
      $region38: #{swin_forward.11} parent=35 // pred_check_branch
        %361 = sbr.rel (%p359) target = $region40
      $region39: #{swin_forward.11} parent=35 // pred_region
        %s362 = smul.u32 2, %s15
      $region40: #{swin_forward.11} parent=35 // pred_fallthru
        _
    $region36: #{swin_forward.11} parent=5 // pred_fallthru
      _
    %p363 = scmp.le.s32.totalorder 2, %s10
    // Predicated region
    $region41: #{swin_forward.11} parent=5 // pred_check
      %p364 = pneg %p363
    $region42: #{swin_forward.11} parent=5 // pred_check_branch
      %366 = sbr.rel (%p364) target = $region44
    $region43: #{swin_forward.11} parent=5 // pred_region
      %s367 = ssub.s32 %s10, 2
      // Predicated region
      $region45: #{swin_forward.11} parent=43 // pred_check
        %p368 = pneg %p128
      $region46: #{swin_forward.11} parent=43 // pred_check_branch
        %370 = sbr.rel (%p368) target = $region48
      $region47: #{swin_forward.11} parent=43 // pred_region
        %s371 = smul.u32 2, %s16
        %p372 = scmp.lt.s32.totalorder %s371, 3
        %s373 = scalar_select %p372, %s371, 3
        %s374 = smul.addr %s373, 8
        %s375 = scalar_lea.vmem %s4, %s374
      $region48: #{swin_forward.11} parent=43 // pred_fallthru
        _
    $region44: #{swin_forward.11} parent=5 // pred_fallthru
      _
  $region6: #{swin_forward.11} parent=0 // loop_footer
    %s14 = sadd.s32 1, %s10
  $region7: #{swin_forward.11} parent=0 // loop_footer_branch
    %9 = sbr.rel target = $region3
  $region8: #{swin_forward.11} parent=0 // loop_exit
    _

// kernel: swin_forward.9
$region0: #{swin_forward.9}
  #allocation0 [shape = 'u32[]', space=smem, size = 0x4, offset = 0x4, fixed_abs, tag = 'smem constant byte address 0x4 - core index']
  #allocation1 [shape = 'u32[144,128]{1,0:T(1,128)}', space=vmem, size = 0x12000, scoped, tag = 'internal scratch']
  %s0 = inlined_call_operand.vmem [shape: f32[128,32], index: 0, kind: input, shape index: {}]
  %s1 = inlined_call_operand.vmem [shape: f32[1,32], index: 1, kind: input, shape index: {}]
  %s2 = inlined_call_operand.vmem [shape: f32[1,32], index: 2, kind: input, shape index: {}]
  %s3 = inlined_call_operand.vmem [shape: bf16[32,96], index: 3, kind: input, shape index: {}]
  %s4 = inlined_call_operand.vmem [shape: f32[1,96], index: 4, kind: input, shape index: {}]
  %s5 = inlined_call_operand.vmem [shape: f32[1,2,64,64], index: 5, kind: input, shape index: {}]
  %s6 = inlined_call_operand.vmem [shape: bf16[32,32], index: 6, kind: input, shape index: {}]
  %s7 = inlined_call_operand.vmem [shape: f32[1,32], index: 7, kind: input, shape index: {}]
  %s8 = inlined_call_operand.vmem [shape: f32[1,32], index: 8, kind: input, shape index: {}]
  %s9 = inlined_call_operand.vmem [shape: f32[1,32], index: 9, kind: input, shape index: {}]
  %s10 = inlined_call_operand.vmem [shape: bf16[32,128], index: 10, kind: input, shape index: {}]
  %s11 = inlined_call_operand.vmem [shape: f32[1,128], index: 11, kind: input, shape index: {}]
  %s12 = inlined_call_operand.vmem [shape: bf16[128,32], index: 12, kind: input, shape index: {}]
  %s13 = inlined_call_operand.vmem [shape: f32[1,32], index: 13, kind: input, shape index: {}]
  %s14 = inlined_call_operand.vmem [shape: f32[128,32], index: 14, kind: output, shape index: {}]
  %s15 = sld [smem:[#allocation0]]
  $region89: #{swin_forward.9} parent=0
    _
  %s17 = ssub.s32 1, %s15
  %s18 = scalar_select 0, %s17, %s15
  loop: start=0, step=1, limit=4
  $region2: #{swin_forward.9} parent=0 // loop_pre_header
    _
  $region3: #{swin_forward.9} parent=0 // loop_header
    %s20 = sphi 0, %s24
    %p21 = scmp.ge.s32.totalorder %s20, 4
    %s30 = sphi 0, %s32
    %s33 = sphi 0, %s30
    %s34 = sphi 0, %s33
    %s50 = sphi 0, %s34
    %s54 = sphi 0, %s54
    %s56 = sphi 0, %s54
    %s57 = sphi 0, %s56
    %s71 = sphi 0, %s57
    %s75 = sphi 0, %s75
    %s77 = sphi 0, %s75
    %s78 = sphi 0, %s77
    %s92 = sphi 0, %s78
    %s96 = sphi 0, %s96
    %s98 = sphi 0, %s96
    %s99 = sphi 0, %s98
    %s113 = sphi 0, %s99
    %s117 = sphi 0, %s117
    %s119 = sphi 0, %s117
    %s120 = sphi 0, %s119
    %s134 = sphi 0, %s120
    %s138 = sphi 0, %s138
    %s140 = sphi 0, %s138
    %s141 = sphi 0, %s140
    %s155 = sphi 0, %s141
    %s159 = sphi 0, %s159
    %s161 = sphi 0, %s159
    %s162 = sphi 0, %s161
    %s176 = sphi 0, %s162
    %s180 = sphi 0, %s180
    %s182 = sphi 0, %s180
    %s183 = sphi 0, %s182
    %s197 = sphi 0, %s183
    %s201 = sphi 0, %s201
    %s203 = sphi 0, %s201
    %s204 = sphi 0, %s203
    %s218 = sphi 0, %s204
    %s222 = sphi 0, %s222
    %s224 = sphi 0, %s222
    %s225 = sphi 0, %s224
    %s239 = sphi 0, %s225
    %s243 = sphi 0, %s243
    %s245 = sphi 0, %s243
    %s246 = sphi 0, %s245
    %s260 = sphi 0, %s246
    %s264 = sphi 0, %s264
    %s266 = sphi 0, %s264
    %s267 = sphi 0, %s266
    %s281 = sphi 0, %s267
    %s285 = sphi 0, %s285
    %s287 = sphi 0, %s285
    %s288 = sphi 0, %s287
    %s302 = sphi 0, %s288
    %s306 = sphi 0, %s306
    %s308 = sphi 0, %s306
    %s309 = sphi 0, %s308
    %s323 = sphi 0, %s309
    %s329 = sphi 0, %s331
    %s332 = sphi 0, %s329
    %s333 = sphi 0, %s332
    %s349 = sphi 0, %s333
  $region4: #{swin_forward.9} parent=0 // loop_header_branch
    %23 = sbr.rel (%p21) target = $region8
  $region5: #{swin_forward.9} parent=0 // loop_body
    %s25 = ssub.s32 %s20, 1
    %s26 = ssub.s32 %s20, 2
    %s27 = sadd.s32 %s20, 1
    %s28 = ssub.s32 %s20, %s27
    %p29 = scmp.eq.s32.totalorder %s28, 0
    %s31 = sadd.s32 %s30, 1
    %s32 = scalar_select %p29, %s30, %s31
    %p35 = pneg %p29
    %p36 = scmp.eq.s32.totalorder %s20, 1
    %p37 = por %p35, %p36
    %p38 = scmp.ne.s32.totalorder %s30, %s33
    %p39 = scmp.eq.s32.totalorder %s20, 0
    %p40 = por %p38, %p39
    %p41 = scmp.ne.s32.totalorder %s30, %s33
    %p42 = scmp.eq.s32.totalorder %s25, 1
    %p43 = por %p41, %p42
    %p44 = scmp.ne.s32.totalorder %s33, %s34
    %p45 = scmp.eq.s32.totalorder %s25, 0
    %p46 = por %p44, %p45
    %p47 = scmp.ne.s32.totalorder %s33, %s34
    %p48 = scmp.eq.s32.totalorder %s26, 1
    %p49 = por %p47, %p48
    %p51 = scmp.ne.s32.totalorder %s34, %s50
    %p52 = scmp.eq.s32.totalorder %s26, 0
    %p53 = por %p51, %p52
    %s55 = sadd.s32 %s54, 1
    %p58 = scmp.eq.s32.totalorder %s20, 1
    %p59 = scmp.ne.s32.totalorder %s54, %s56
    %p60 = scmp.eq.s32.totalorder %s20, 0
    %p61 = por %p59, %p60
    %p62 = scmp.ne.s32.totalorder %s54, %s56
    %p63 = scmp.eq.s32.totalorder %s25, 1
    %p64 = por %p62, %p63
    %p65 = scmp.ne.s32.totalorder %s56, %s57
    %p66 = scmp.eq.s32.totalorder %s25, 0
    %p67 = por %p65, %p66
    %p68 = scmp.ne.s32.totalorder %s56, %s57
    %p69 = scmp.eq.s32.totalorder %s26, 1
    %p70 = por %p68, %p69
    %p72 = scmp.ne.s32.totalorder %s57, %s71
    %p73 = scmp.eq.s32.totalorder %s26, 0
    %p74 = por %p72, %p73
    %s76 = sadd.s32 %s75, 1
    %p79 = scmp.eq.s32.totalorder %s20, 1
    %p80 = scmp.ne.s32.totalorder %s75, %s77
    %p81 = scmp.eq.s32.totalorder %s20, 0
    %p82 = por %p80, %p81
    %p83 = scmp.ne.s32.totalorder %s75, %s77
    %p84 = scmp.eq.s32.totalorder %s25, 1
    %p85 = por %p83, %p84
    %p86 = scmp.ne.s32.totalorder %s77, %s78
    %p87 = scmp.eq.s32.totalorder %s25, 0
    %p88 = por %p86, %p87
    %p89 = scmp.ne.s32.totalorder %s77, %s78
    %p90 = scmp.eq.s32.totalorder %s26, 1
    %p91 = por %p89, %p90
    %p93 = scmp.ne.s32.totalorder %s78, %s92
    %p94 = scmp.eq.s32.totalorder %s26, 0
    %p95 = por %p93, %p94
    %s97 = sadd.s32 %s96, 1
    %p100 = scmp.eq.s32.totalorder %s20, 1
    %p101 = scmp.ne.s32.totalorder %s96, %s98
    %p102 = scmp.eq.s32.totalorder %s20, 0
    %p103 = por %p101, %p102
    %p104 = scmp.ne.s32.totalorder %s96, %s98
    %p105 = scmp.eq.s32.totalorder %s25, 1
    %p106 = por %p104, %p105
    %p107 = scmp.ne.s32.totalorder %s98, %s99
    %p108 = scmp.eq.s32.totalorder %s25, 0
    %p109 = por %p107, %p108
    %p110 = scmp.ne.s32.totalorder %s98, %s99
    %p111 = scmp.eq.s32.totalorder %s26, 1
    %p112 = por %p110, %p111
    %p114 = scmp.ne.s32.totalorder %s99, %s113
    %p115 = scmp.eq.s32.totalorder %s26, 0
    %p116 = por %p114, %p115
    %s118 = sadd.s32 %s117, 1
    %p121 = scmp.eq.s32.totalorder %s20, 1
    %p122 = scmp.ne.s32.totalorder %s117, %s119
    %p123 = scmp.eq.s32.totalorder %s20, 0
    %p124 = por %p122, %p123
    %p125 = scmp.ne.s32.totalorder %s117, %s119
    %p126 = scmp.eq.s32.totalorder %s25, 1
    %p127 = por %p125, %p126
    %p128 = scmp.ne.s32.totalorder %s119, %s120
    %p129 = scmp.eq.s32.totalorder %s25, 0
    %p130 = por %p128, %p129
    %p131 = scmp.ne.s32.totalorder %s119, %s120
    %p132 = scmp.eq.s32.totalorder %s26, 1
    %p133 = por %p131, %p132
    %p135 = scmp.ne.s32.totalorder %s120, %s134
    %p136 = scmp.eq.s32.totalorder %s26, 0
    %p137 = por %p135, %p136
    %s139 = sadd.s32 %s138, 1
    %p142 = scmp.eq.s32.totalorder %s20, 1
    %p143 = scmp.ne.s32.totalorder %s138, %s140
    %p144 = scmp.eq.s32.totalorder %s20, 0
    %p145 = por %p143, %p144
    %p146 = scmp.ne.s32.totalorder %s138, %s140
    %p147 = scmp.eq.s32.totalorder %s25, 1
    %p148 = por %p146, %p147
    %p149 = scmp.ne.s32.totalorder %s140, %s141
    %p150 = scmp.eq.s32.totalorder %s25, 0
    %p151 = por %p149, %p150
    %p152 = scmp.ne.s32.totalorder %s140, %s141
    %p153 = scmp.eq.s32.totalorder %s26, 1
    %p154 = por %p152, %p153
    %p156 = scmp.ne.s32.totalorder %s141, %s155
    %p157 = scmp.eq.s32.totalorder %s26, 0
    %p158 = por %p156, %p157
    %s160 = sadd.s32 %s159, 1
    %p163 = scmp.eq.s32.totalorder %s20, 1
    %p164 = scmp.ne.s32.totalorder %s159, %s161
    %p165 = scmp.eq.s32.totalorder %s20, 0
    %p166 = por %p164, %p165
    %p167 = scmp.ne.s32.totalorder %s159, %s161
    %p168 = scmp.eq.s32.totalorder %s25, 1
    %p169 = por %p167, %p168
    %p170 = scmp.ne.s32.totalorder %s161, %s162
    %p171 = scmp.eq.s32.totalorder %s25, 0
    %p172 = por %p170, %p171
    %p173 = scmp.ne.s32.totalorder %s161, %s162
    %p174 = scmp.eq.s32.totalorder %s26, 1
    %p175 = por %p173, %p174
    %p177 = scmp.ne.s32.totalorder %s162, %s176
    %p178 = scmp.eq.s32.totalorder %s26, 0
    %p179 = por %p177, %p178
    %s181 = sadd.s32 %s180, 1
    %p184 = scmp.eq.s32.totalorder %s20, 1
    %p185 = scmp.ne.s32.totalorder %s180, %s182
    %p186 = scmp.eq.s32.totalorder %s20, 0
    %p187 = por %p185, %p186
    %p188 = scmp.ne.s32.totalorder %s180, %s182
    %p189 = scmp.eq.s32.totalorder %s25, 1
    %p190 = por %p188, %p189
    %p191 = scmp.ne.s32.totalorder %s182, %s183
    %p192 = scmp.eq.s32.totalorder %s25, 0
    %p193 = por %p191, %p192
    %p194 = scmp.ne.s32.totalorder %s182, %s183
    %p195 = scmp.eq.s32.totalorder %s26, 1
    %p196 = por %p194, %p195
    %p198 = scmp.ne.s32.totalorder %s183, %s197
    %p199 = scmp.eq.s32.totalorder %s26, 0
    %p200 = por %p198, %p199
    %s202 = sadd.s32 %s201, 1
    %p205 = scmp.eq.s32.totalorder %s20, 1
    %p206 = scmp.ne.s32.totalorder %s201, %s203
    %p207 = scmp.eq.s32.totalorder %s20, 0
    %p208 = por %p206, %p207
    %p209 = scmp.ne.s32.totalorder %s201, %s203
    %p210 = scmp.eq.s32.totalorder %s25, 1
    %p211 = por %p209, %p210
    %p212 = scmp.ne.s32.totalorder %s203, %s204
    %p213 = scmp.eq.s32.totalorder %s25, 0
    %p214 = por %p212, %p213
    %p215 = scmp.ne.s32.totalorder %s203, %s204
    %p216 = scmp.eq.s32.totalorder %s26, 1
    %p217 = por %p215, %p216
    %p219 = scmp.ne.s32.totalorder %s204, %s218
    %p220 = scmp.eq.s32.totalorder %s26, 0
    %p221 = por %p219, %p220
    %s223 = sadd.s32 %s222, 1
    %p226 = scmp.eq.s32.totalorder %s20, 1
    %p227 = scmp.ne.s32.totalorder %s222, %s224
    %p228 = scmp.eq.s32.totalorder %s20, 0
    %p229 = por %p227, %p228
    %p230 = scmp.ne.s32.totalorder %s222, %s224
    %p231 = scmp.eq.s32.totalorder %s25, 1
    %p232 = por %p230, %p231
    %p233 = scmp.ne.s32.totalorder %s224, %s225
    %p234 = scmp.eq.s32.totalorder %s25, 0
    %p235 = por %p233, %p234
    %p236 = scmp.ne.s32.totalorder %s224, %s225
    %p237 = scmp.eq.s32.totalorder %s26, 1
    %p238 = por %p236, %p237
    %p240 = scmp.ne.s32.totalorder %s225, %s239
    %p241 = scmp.eq.s32.totalorder %s26, 0
    %p242 = por %p240, %p241
    %s244 = sadd.s32 %s243, 1
    %p247 = scmp.eq.s32.totalorder %s20, 1
    %p248 = scmp.ne.s32.totalorder %s243, %s245
    %p249 = scmp.eq.s32.totalorder %s20, 0
    %p250 = por %p248, %p249
    %p251 = scmp.ne.s32.totalorder %s243, %s245
    %p252 = scmp.eq.s32.totalorder %s25, 1
    %p253 = por %p251, %p252
    %p254 = scmp.ne.s32.totalorder %s245, %s246
    %p255 = scmp.eq.s32.totalorder %s25, 0
    %p256 = por %p254, %p255
    %p257 = scmp.ne.s32.totalorder %s245, %s246
    %p258 = scmp.eq.s32.totalorder %s26, 1
    %p259 = por %p257, %p258
    %p261 = scmp.ne.s32.totalorder %s246, %s260
    %p262 = scmp.eq.s32.totalorder %s26, 0
    %p263 = por %p261, %p262
    %s265 = sadd.s32 %s264, 1
    %p268 = scmp.eq.s32.totalorder %s20, 1
    %p269 = scmp.ne.s32.totalorder %s264, %s266
    %p270 = scmp.eq.s32.totalorder %s20, 0
    %p271 = por %p269, %p270
    %p272 = scmp.ne.s32.totalorder %s264, %s266
    %p273 = scmp.eq.s32.totalorder %s25, 1
    %p274 = por %p272, %p273
    %p275 = scmp.ne.s32.totalorder %s266, %s267
    %p276 = scmp.eq.s32.totalorder %s25, 0
    %p277 = por %p275, %p276
    %p278 = scmp.ne.s32.totalorder %s266, %s267
    %p279 = scmp.eq.s32.totalorder %s26, 1
    %p280 = por %p278, %p279
    %p282 = scmp.ne.s32.totalorder %s267, %s281
    %p283 = scmp.eq.s32.totalorder %s26, 0
    %p284 = por %p282, %p283
    %s286 = sadd.s32 %s285, 1
    %p289 = scmp.eq.s32.totalorder %s20, 1
    %p290 = scmp.ne.s32.totalorder %s285, %s287
    %p291 = scmp.eq.s32.totalorder %s20, 0
    %p292 = por %p290, %p291
    %p293 = scmp.ne.s32.totalorder %s285, %s287
    %p294 = scmp.eq.s32.totalorder %s25, 1
    %p295 = por %p293, %p294
    %p296 = scmp.ne.s32.totalorder %s287, %s288
    %p297 = scmp.eq.s32.totalorder %s25, 0
    %p298 = por %p296, %p297
    %p299 = scmp.ne.s32.totalorder %s287, %s288
    %p300 = scmp.eq.s32.totalorder %s26, 1
    %p301 = por %p299, %p300
    %p303 = scmp.ne.s32.totalorder %s288, %s302
    %p304 = scmp.eq.s32.totalorder %s26, 0
    %p305 = por %p303, %p304
    %s307 = sadd.s32 %s306, 1
    %p310 = scmp.eq.s32.totalorder %s20, 1
    %p311 = scmp.ne.s32.totalorder %s306, %s308
    %p312 = scmp.eq.s32.totalorder %s20, 0
    %p313 = por %p311, %p312
    %p314 = scmp.ne.s32.totalorder %s306, %s308
    %p315 = scmp.eq.s32.totalorder %s25, 1
    %p316 = por %p314, %p315
    %p317 = scmp.ne.s32.totalorder %s308, %s309
    %p318 = scmp.eq.s32.totalorder %s25, 0
    %p319 = por %p317, %p318
    %p320 = scmp.ne.s32.totalorder %s308, %s309
    %p321 = scmp.eq.s32.totalorder %s26, 1
    %p322 = por %p320, %p321
    %p324 = scmp.ne.s32.totalorder %s309, %s323
    %p325 = scmp.eq.s32.totalorder %s26, 0
    %p326 = por %p324, %p325
    %s327 = ssub.s32 %s20, %s27
    %p328 = scmp.eq.s32.totalorder %s327, 0
    %s330 = sadd.s32 %s329, 1
    %s331 = scalar_select %p328, %s329, %s330
    %p334 = pneg %p328
    %p335 = scmp.eq.s32.totalorder %s20, 1
    %p336 = por %p334, %p335
    %p337 = scmp.ne.s32.totalorder %s329, %s332
    %p338 = scmp.eq.s32.totalorder %s20, 0
    %p339 = por %p337, %p338
    %p340 = scmp.ne.s32.totalorder %s329, %s332
    %p341 = scmp.eq.s32.totalorder %s25, 1
    %p342 = por %p340, %p341
    %p343 = scmp.ne.s32.totalorder %s332, %s333
    %p344 = scmp.eq.s32.totalorder %s25, 0
    %p345 = por %p343, %p344
    %p346 = scmp.ne.s32.totalorder %s332, %s333
    %p347 = scmp.eq.s32.totalorder %s26, 1
    %p348 = por %p346, %p347
    %p350 = scmp.ne.s32.totalorder %s333, %s349
    %p351 = scmp.eq.s32.totalorder %s26, 0
    %p352 = por %p350, %p351
    %p353 = scmp.le.s32.totalorder 1, %s20
    %p354 = scmp.lt.s32.totalorder %s20, 3
    %p355 = pnand %p353, %p354
    %p356 = pneg %p355
    // Predicated region
    $region9: #{swin_forward.9} parent=5 // pred_check
      _
    $region10: #{swin_forward.9} parent=5 // pred_check_branch
      %358 = sbr.rel (%p355) target = $region12
    $region11: #{swin_forward.9} parent=5 // pred_region
      %s359 = ssub.s32 %s20, 1
      // Predicated region
      $region13: #{swin_forward.9} parent=11 // pred_check
        %p360 = pneg %p67
      $region14: #{swin_forward.9} parent=11 // pred_check_branch
        %362 = sbr.rel (%p360) target = $region16
      $region15: #{swin_forward.9} parent=11 // pred_region
        _
      $region16: #{swin_forward.9} parent=11 // pred_fallthru
        _
      // Predicated region
      $region17: #{swin_forward.9} parent=11 // pred_check
        %p363 = pneg %p88
      $region18: #{swin_forward.9} parent=11 // pred_check_branch
        %365 = sbr.rel (%p363) target = $region20
      $region19: #{swin_forward.9} parent=11 // pred_region
        _
      $region20: #{swin_forward.9} parent=11 // pred_fallthru
        _
      // Predicated region
      $region21: #{swin_forward.9} parent=11 // pred_check
        %p366 = pneg %p109
      $region22: #{swin_forward.9} parent=11 // pred_check_branch
        %368 = sbr.rel (%p366) target = $region24
      $region23: #{swin_forward.9} parent=11 // pred_region
        _
      $region24: #{swin_forward.9} parent=11 // pred_fallthru
        _
      // Predicated region
      $region25: #{swin_forward.9} parent=11 // pred_check
        %p369 = pneg %p130
      $region26: #{swin_forward.9} parent=11 // pred_check_branch
        %371 = sbr.rel (%p369) target = $region28
      $region27: #{swin_forward.9} parent=11 // pred_region
        _
      $region28: #{swin_forward.9} parent=11 // pred_fallthru
        _
      // Predicated region
      $region29: #{swin_forward.9} parent=11 // pred_check
        %p372 = pneg %p151
      $region30: #{swin_forward.9} parent=11 // pred_check_branch
        %374 = sbr.rel (%p372) target = $region32
      $region31: #{swin_forward.9} parent=11 // pred_region
        _
      $region32: #{swin_forward.9} parent=11 // pred_fallthru
        _
      // Predicated region
      $region33: #{swin_forward.9} parent=11 // pred_check
        %p375 = pneg %p172
      $region34: #{swin_forward.9} parent=11 // pred_check_branch
        %377 = sbr.rel (%p375) target = $region36
      $region35: #{swin_forward.9} parent=11 // pred_region
        _
      $region36: #{swin_forward.9} parent=11 // pred_fallthru
        _
      // Predicated region
      $region37: #{swin_forward.9} parent=11 // pred_check
        %p378 = pneg %p193
      $region38: #{swin_forward.9} parent=11 // pred_check_branch
        %380 = sbr.rel (%p378) target = $region40
      $region39: #{swin_forward.9} parent=11 // pred_region
        _
      $region40: #{swin_forward.9} parent=11 // pred_fallthru
        _
      // Predicated region
      $region41: #{swin_forward.9} parent=11 // pred_check
        %p381 = pneg %p214
      $region42: #{swin_forward.9} parent=11 // pred_check_branch
        %383 = sbr.rel (%p381) target = $region44
      $region43: #{swin_forward.9} parent=11 // pred_region
        _
      $region44: #{swin_forward.9} parent=11 // pred_fallthru
        _
      // Predicated region
      $region45: #{swin_forward.9} parent=11 // pred_check
        %p384 = pneg %p235
      $region46: #{swin_forward.9} parent=11 // pred_check_branch
        %386 = sbr.rel (%p384) target = $region48
      $region47: #{swin_forward.9} parent=11 // pred_region
        _
      $region48: #{swin_forward.9} parent=11 // pred_fallthru
        _
      // Predicated region
      $region49: #{swin_forward.9} parent=11 // pred_check
        %p387 = pneg %p256
      $region50: #{swin_forward.9} parent=11 // pred_check_branch
        %389 = sbr.rel (%p387) target = $region52
      $region51: #{swin_forward.9} parent=11 // pred_region
        _
      $region52: #{swin_forward.9} parent=11 // pred_fallthru
        _
      // Predicated region
      $region53: #{swin_forward.9} parent=11 // pred_check
        %p390 = pneg %p277
      $region54: #{swin_forward.9} parent=11 // pred_check_branch
        %392 = sbr.rel (%p390) target = $region56
      $region55: #{swin_forward.9} parent=11 // pred_region
        _
      $region56: #{swin_forward.9} parent=11 // pred_fallthru
        _
      // Predicated region
      $region57: #{swin_forward.9} parent=11 // pred_check
        %p393 = pneg %p298
      $region58: #{swin_forward.9} parent=11 // pred_check_branch
        %395 = sbr.rel (%p393) target = $region60
      $region59: #{swin_forward.9} parent=11 // pred_region
        _
      $region60: #{swin_forward.9} parent=11 // pred_fallthru
        _
      // Predicated region
      $region61: #{swin_forward.9} parent=11 // pred_check
        %p396 = pneg %p319
      $region62: #{swin_forward.9} parent=11 // pred_check_branch
        %398 = sbr.rel (%p396) target = $region64
      $region63: #{swin_forward.9} parent=11 // pred_region
        _
      $region64: #{swin_forward.9} parent=11 // pred_fallthru
        _
    $region12: #{swin_forward.9} parent=5 // pred_fallthru
      _
    %p399 = scmp.lt.s32.totalorder %s20, 2
    // Predicated region
    $region65: #{swin_forward.9} parent=5 // pred_check
      %p400 = pneg %p399
    $region66: #{swin_forward.9} parent=5 // pred_check_branch
      %402 = sbr.rel (%p400) target = $region68
    $region67: #{swin_forward.9} parent=5 // pred_region
      // Predicated region
      $region69: #{swin_forward.9} parent=67 // pred_check
        %p403 = pneg %p40
      $region70: #{swin_forward.9} parent=67 // pred_check_branch
        %405 = sbr.rel (%p403) target = $region72
      $region71: #{swin_forward.9} parent=67 // pred_region
        %s406 = smul.u32 8, %s20
        %p407 = scmp.lt.s32.totalorder %s406, 15
        %s408 = scalar_select %p407, %s406, 15
        %s409 = smul.addr %s408, 8
        %s410 = scalar_lea.vmem %s0, %s409
        %s411 = smul.u32 8, %s20
      $region72: #{swin_forward.9} parent=67 // pred_fallthru
        _
    $region68: #{swin_forward.9} parent=5 // pred_fallthru
      _
    %p412 = scmp.le.s32.totalorder 1, %s20
    %p413 = scmp.lt.s32.totalorder %s20, 3
    %p414 = pnand %p412, %p413
    %p415 = pneg %p414
    // Predicated region
    $region73: #{swin_forward.9} parent=5 // pred_check
      _
    $region74: #{swin_forward.9} parent=5 // pred_check_branch
      %417 = sbr.rel (%p414) target = $region76
    $region75: #{swin_forward.9} parent=5 // pred_region
      %s418 = ssub.s32 %s20, 1
      %s419 = smul.u32 8, %s25
      %p420 = scmp.lt.s32.totalorder %s419, 15
      %s421 = scalar_select %p420, %s419, 15
      %s422 = smul.addr %s421, 8
      %s423 = scalar_lea.vmem %s0, %s422
      %p424 = pneg %p46
      %p425 = pneg %p43
      %p426 = pneg %p67
      %p427 = pneg %p64
      %p428 = pneg %p88
      %p429 = pneg %p85
      %p430 = pneg %p109
      %p431 = pneg %p106
      %p432 = pneg %p130
      %p433 = pneg %p127
      %p434 = pneg %p151
      %p435 = pneg %p148
      %p436 = pneg %p172
      %p437 = pneg %p169
      %p438 = pneg %p193
      %p439 = pneg %p190
      %p440 = pneg %p214
      %p441 = pneg %p211
      %p442 = pneg %p235
      %p443 = pneg %p232
      %p444 = pneg %p256
      %p445 = pneg %p253
      %p446 = pneg %p277
      %p447 = pneg %p274
      %p448 = pneg %p298
      %p449 = pneg %p295
      %p450 = pneg %p319
      %p451 = pneg %p316
      %p452 = pneg %p345
      %p453 = pneg %p342
      %s454 = smul.u32 8, %s25
      %p455 = scmp.lt.s32.totalorder %s454, 15
      %s456 = scalar_select %p455, %s454, 15
      %s457 = smul.addr %s456, 8
      %s458 = scalar_lea.vmem %s14, %s457
      %s459 = smul.u32 8, %s25
      %p460 = scmp.lt.s32.totalorder %s459, 15
      %s461 = scalar_select %p460, %s459, 15
      %s462 = smul.addr %s461, 8
      %s463 = scalar_lea.vmem %s0, %s462
      %s464 = smul.u32 8, %s25
      %s465 = smul.u32 8, %s25
      %p466 = scmp.lt.s32.totalorder %s465, 15
      %s467 = scalar_select %p466, %s465, 15
      %s468 = smul.addr %s467, 8
      %s469 = scalar_lea.vmem %s14, %s468
      %s470 = smul.u32 8, %s25
      %v472 = vld [vmem:[%s463] sm:$0xff]
      %v473 = vld [vmem:[%s463 + $0x8] sm:$0xff]
      %v474 = vld [vmem:[%s463 + $0x10] sm:$0xff]
      %v475 = vld [vmem:[%s463 + $0x18] sm:$0xff]
      %v476 = vld [vmem:[%s463 + $0x20] sm:$0xff]
      %v477 = vld [vmem:[%s463 + $0x28] sm:$0xff]
      %v478 = vld [vmem:[%s463 + $0x30] sm:$0xff]
      %v479 = vld [vmem:[%s463 + $0x38] sm:$0xff]
      %v480 = vld [vmem:[%s1] sm:$0x1]
      %v481 = vld [vmem:[%s2] sm:$0x1]
      %vm482 = vcmask 261120
      %v483 = vsel %vm482, %v472, 0.0
      %484 = vadd.xlane.f32.xlu0 %v483
      %v485 = vpop.xlane.xlu0 %484
      %v486 = vsel %vm482, %v473, 0.0
      %487 = vadd.xlane.f32.xlu0 %v486
      %v488 = vpop.xlane.xlu0 %487
      %v489 = vsel %vm482, %v474, 0.0
      %490 = vadd.xlane.f32.xlu0 %v489
      %v491 = vpop.xlane.xlu0 %490
      %v492 = vsel %vm482, %v475, 0.0
      %493 = vadd.xlane.f32.xlu0 %v492
      %v494 = vpop.xlane.xlu0 %493
      %v495 = vsel %vm482, %v476, 0.0
      %496 = vadd.xlane.f32.xlu0 %v495
      %v497 = vpop.xlane.xlu0 %496
      %v498 = vsel %vm482, %v477, 0.0
      %499 = vadd.xlane.f32.xlu0 %v498
      %v500 = vpop.xlane.xlu0 %499
      %v501 = vsel %vm482, %v478, 0.0
      %502 = vadd.xlane.f32.xlu0 %v501
      %v503 = vpop.xlane.xlu0 %502
      %v504 = vsel %vm482, %v479, 0.0
      %505 = vadd.xlane.f32.xlu0 %v504
      %v506 = vpop.xlane.xlu0 %505
      %v507 = vrcp.pop 32.0
      %v508 = vmul.f32 %v485, %v507
      %v509 = vmul.f32 %v488, %v507
      %v510 = vmul.f32 %v491, %v507
      %v511 = vmul.f32 %v494, %v507
      %v512 = vmul.f32 %v497, %v507
      %v513 = vmul.f32 %v500, %v507
      %v514 = vmul.f32 %v503, %v507
      %v515 = vmul.f32 %v506, %v507
      %v516 = vsub.f32 %v472, %v508
      %v517 = vsub.f32 %v473, %v509
      %v518 = vsub.f32 %v474, %v510
      %v519 = vsub.f32 %v475, %v511
      %v520 = vsub.f32 %v476, %v512
      %v521 = vsub.f32 %v477, %v513
      %v522 = vsub.f32 %v478, %v514
      %v523 = vsub.f32 %v479, %v515
      %v524 = vmul.f32 %v516, %v516
      %v525 = vmul.f32 %v517, %v517
      %v526 = vmul.f32 %v518, %v518
      %v527 = vmul.f32 %v519, %v519
      %v528 = vmul.f32 %v520, %v520
      %v529 = vmul.f32 %v521, %v521
      %v530 = vmul.f32 %v522, %v522
      %v531 = vmul.f32 %v523, %v523
      %v532 = vsel %vm482, %v524, 0.0
      %533 = vadd.xlane.f32.xlu0 %v532
      %v534 = vpop.xlane.xlu0 %533
      %v535 = vsel %vm482, %v525, 0.0
      %536 = vadd.xlane.f32.xlu0 %v535
      %v537 = vpop.xlane.xlu0 %536
      %v538 = vsel %vm482, %v526, 0.0
      %539 = vadd.xlane.f32.xlu0 %v538
      %v540 = vpop.xlane.xlu0 %539
      %v541 = vsel %vm482, %v527, 0.0
      %542 = vadd.xlane.f32.xlu0 %v541
      %v543 = vpop.xlane.xlu0 %542
      %v544 = vsel %vm482, %v528, 0.0
      %545 = vadd.xlane.f32.xlu0 %v544
      %v546 = vpop.xlane.xlu0 %545
      %v547 = vsel %vm482, %v529, 0.0
      %548 = vadd.xlane.f32.xlu0 %v547
      %v549 = vpop.xlane.xlu0 %548
      %v550 = vsel %vm482, %v530, 0.0
      %551 = vadd.xlane.f32.xlu0 %v550
      %v552 = vpop.xlane.xlu0 %551
      %v553 = vsel %vm482, %v531, 0.0
      %554 = vadd.xlane.f32.xlu0 %v553
      %v555 = vpop.xlane.xlu0 %554
      %v556 = vmul.f32 %v534, %v507
      %v557 = vmul.f32 %v537, %v507
      %v558 = vmul.f32 %v540, %v507
      %v559 = vmul.f32 %v543, %v507
      %v560 = vmul.f32 %v546, %v507
      %v561 = vmul.f32 %v549, %v507
      %v562 = vmul.f32 %v552, %v507
      %v563 = vmul.f32 %v555, %v507
      %v564 = vadd.f32 %v556, 1e-05
      %v565 = vadd.f32 %v557, 1e-05
      %v566 = vadd.f32 %v558, 1e-05
      %v567 = vadd.f32 %v559, 1e-05
      %v568 = vadd.f32 %v560, 1e-05
      %v569 = vadd.f32 %v561, 1e-05
      %v570 = vadd.f32 %v562, 1e-05
      %v571 = vadd.f32 %v563, 1e-05
      %v572 = vrsqrt.pop %v564
      %v573 = vrsqrt.pop %v565
      %v574 = vrsqrt.pop %v566
      %v575 = vrsqrt.pop %v567
      %v576 = vrsqrt.pop %v568
      %v577 = vrsqrt.pop %v569
      %v578 = vrsqrt.pop %v570
      %v579 = vrsqrt.pop %v571
      %v580 = vmul.f32 %v516, %v572
      %v581 = vmul.f32 %v517, %v573
      %v582 = vmul.f32 %v518, %v574
      %v583 = vmul.f32 %v519, %v575
      %v584 = vmul.f32 %v520, %v576
      %v585 = vmul.f32 %v521, %v577
      %v586 = vmul.f32 %v522, %v578
      %v587 = vmul.f32 %v523, %v579
      %v589 = vlaneseq
      %v590 = vshrl.u32 %v589, 7
      %v591 = vsub.s32 0, %v590
      %v592 = vrot.slane %v480, %v591
      %v594 = vmul.f32 %v580, %v592
      %v595 = vmul.f32 %v581, %v592
      %v596 = vmul.f32 %v582, %v592
      %v597 = vmul.f32 %v583, %v592
      %v598 = vmul.f32 %v584, %v592
      %v599 = vmul.f32 %v585, %v592
      %v600 = vmul.f32 %v586, %v592
      %v601 = vmul.f32 %v587, %v592
      %v603 = vlaneseq
      %v604 = vshrl.u32 %v603, 7
      %v605 = vsub.s32 0, %v604
      %v606 = vrot.slane %v481, %v605
      %v608 = vadd.f32 %v594, %v606
      %v609 = vadd.f32 %v595, %v606
      %v610 = vadd.f32 %v596, %v606
      %v611 = vadd.f32 %v597, %v606
      %v612 = vadd.f32 %v598, %v606
      %v613 = vadd.f32 %v599, %v606
      %v614 = vadd.f32 %v600, %v606
      %v615 = vadd.f32 %v601, %v606
      %v616 = vpack.c.bf16 %v609, %v608
      %v617 = vpack.c.bf16 %v611, %v610
      %v618 = vpack.c.bf16 %v613, %v612
      %v619 = vpack.c.bf16 %v615, %v614
      %v620 = vld [vmem:[%s3] sm:$0xf]
      %v621 = vld [vmem:[%s3 + $0x4] sm:$0xf]
      %v622 = vld [vmem:[%s3 + $0x8] sm:$0xf]
      %v623 = vld [vmem:[%s3 + $0xc] sm:$0xf]
      %v624 = vld [vmem:[%s4] sm:$0x1]
      %v626 = vlaneseq
      %v627 = vshrl.u32 %v626, 7
      %v628 = vsub.s32 0, %v627
      %v629 = vrot.slane %v624, %v628
      %v635 = vunpack.c.l.b16 %v620
      %v636 = vunpack.c.l.b16 %v621
      %v637 = vunpack.c.l.b16 %v622
      %v638 = vunpack.c.l.b16 %v623
      %v639 = vpack.c.b16 %v636, %v635
      %v640 = vpack.c.b16 %v638, %v637
      %v644 = vsel %vm482, %v616, 0
      %v647 = vsel %vm482, %v617, 0
      %v650 = vsel %vm482, %v618, 0
      %v653 = vsel %vm482, %v619, 0
      %655 = vmatprep.subr.bf16.mxu0 0
      %656 = vmatpush1.bf16.msra.mxu0 %v639
      %657 = vmatprep.subr.bf16.mxu0 0
      %658 = vmatpush1.bf16.msra.mxu0 %v640
      %659 = vmatprep.subr.bf16.mxu0 0
      %660 = vmatpush1.bf16.msra.mxu0 0
      %661 = vmatprep.subr.bf16.mxu0 0
      %662 = vmatpush1.bf16.msra.mxu0 0
      %663 = vmatprep.subr.bf16.mxu0 0
      %664 = vmatpush1.bf16.msra.mxu0 0
      %665 = vmatprep.subr.bf16.mxu0 0
      %666 = vmatpush1.bf16.msra.mxu0 0
      %667 = vmatprep.subr.bf16.mxu0 0
      %668 = vmatpush1.bf16.msra.mxu0 0
      %669 = vmatprep.subr.bf16.mxu0 0
      %670 = vmatpush1.bf16.msra.mxu0 0
      %671 = vmatprep.subr.bf16.mxu0 0
      %672 = vmatpush1.bf16.msra.mxu0 0
      %673 = vmatprep.subr.bf16.mxu0 0
      %674 = vmatpush1.bf16.msra.mxu0 0
      %675 = vmatprep.subr.bf16.mxu0 0
      %676 = vmatpush1.bf16.msra.mxu0 0
      %677 = vmatprep.subr.bf16.mxu0 0
      %678 = vmatpush1.bf16.msra.mxu0 0
      %679 = vmatprep.subr.bf16.mxu0 0
      %680 = vmatpush1.bf16.msra.mxu0 0
      %681 = vmatprep.subr.bf16.mxu0 0
      %682 = vmatpush1.bf16.msra.mxu0 0
      %683 = vmatprep.subr.bf16.mxu0 0
      %684 = vmatpush1.bf16.msra.mxu0 0
      %685 = vmatprep.subr.bf16.mxu0 0
      %686 = vmatpush1.bf16.msra.mxu0 0
      %687 = vmatprep.mubr.bf16.mxu0 0
      %688 = vmatmul.mubr.bf16.gmra.mrb[0].mxu0 %v644
      %v689 = vpop.f32.mrb[0].mxu0
      %v690 = vadd.f32 %v629, %v689
      %v691 = vpop.f32.mrb[0].mxu0
      %v692 = vpop.f32.mrb[0].mxu0
      %v693 = vadd.f32 %v629, %v692
      %v694 = vpop.f32.mrb[0].mxu0
      %695 = vmatprep.mubr.bf16.mxu0 0
      %696 = vmatmul.mubr.bf16.gmra.mrb[0].mxu0 %v647
      %v697 = vpop.f32.mrb[0].mxu0
      %v698 = vadd.f32 %v629, %v697
      %v699 = vpop.f32.mrb[0].mxu0
      %v700 = vpop.f32.mrb[0].mxu0
      %v701 = vadd.f32 %v629, %v700
      %v702 = vpop.f32.mrb[0].mxu0
      %703 = vmatprep.mubr.bf16.mxu0 0
      %704 = vmatmul.mubr.bf16.gmra.mrb[0].mxu0 %v650
      %v705 = vpop.f32.mrb[0].mxu0
      %v706 = vadd.f32 %v629, %v705
      %v707 = vpop.f32.mrb[0].mxu0
      %v708 = vpop.f32.mrb[0].mxu0
      %v709 = vadd.f32 %v629, %v708
      %v710 = vpop.f32.mrb[0].mxu0
      %711 = vmatprep.mubr.bf16.mxu0 0
      %712 = vmatmul.mubr.bf16.gmra.mrb[0].mxu0 %v653
      %v713 = vpop.f32.mrb[0].mxu0
      %v714 = vadd.f32 %v629, %v713
      %v715 = vpop.f32.mrb[0].mxu0
      %v716 = vpop.f32.mrb[0].mxu0
      %v717 = vadd.f32 %v629, %v716
      %v718 = vpop.f32.mrb[0].mxu0
      %719 = vdwg.mxu0
      %v720 = vpack.c.bf16 %v693, %v690
      %v721 = vpack.c.bf16 %v701, %v698
      %v722 = vpack.c.bf16 %v709, %v706
      %v723 = vpack.c.bf16 %v717, %v714
      %v724 = vld [vmem:[%s5] sm:$0xff]
      %v725 = vld [vmem:[%s5 + $0x8] sm:$0xff]
      %v726 = vld [vmem:[%s5 + $0x10] sm:$0xff]
      %v727 = vld [vmem:[%s5 + $0x18] sm:$0xff]
      %v728 = vld [vmem:[%s5 + $0x20] sm:$0xff]
      %v729 = vld [vmem:[%s5 + $0x28] sm:$0xff]
      %v730 = vld [vmem:[%s5 + $0x30] sm:$0xff]
      %v731 = vld [vmem:[%s5 + $0x38] sm:$0xff]
      %736 = vrot.lane.b32.xlu0 %v720, 96
      %v737 = vpop.permute.xlu0 %736
      %738 = vrot.lane.b32.xlu0 %v721, 96
      %v739 = vpop.permute.xlu0 %738
      %740 = vrot.lane.b32.xlu0 %v722, 96
      %v741 = vpop.permute.xlu0 %740
      %742 = vrot.lane.b32.xlu0 %v723, 96
      %v743 = vpop.permute.xlu0 %742
      %vm744 = vcmask 130048
      %v746 = vsel %vm744, %v720, 0
      %v749 = vsel %vm744, %v721, 0
      %v752 = vsel %vm744, %v722, 0
      %v755 = vsel %vm744, %v723, 0
      %v758 = vsel %vm744, %v737, 0
      %v761 = vsel %vm744, %v739, 0
      %v764 = vsel %vm744, %v741, 0
      %v767 = vsel %vm744, %v743, 0
      %769 = vmatprep.subr.bf16.mxu0 0
      %770 = vmatpush1.bf16.xpose.msra.mxu0 %v758
      %771 = vmatprep.subr.bf16.mxu0 0
      %772 = vmatpush1.bf16.xpose.msra.mxu0 %v761
      %773 = vmatprep.subr.bf16.mxu0 0
      %774 = vmatpush1.bf16.xpose.msra.mxu0 %v764
      %775 = vmatprep.subr.bf16.mxu0 0
      %776 = vmatpush1.bf16.xpose.msra.mxu0 %v767
      %777 = vmatprep.subr.bf16.mxu0 0
      %778 = vmatpush1.bf16.xpose.msra.mxu0 0
      %779 = vmatprep.subr.bf16.mxu0 0
      %780 = vmatpush1.bf16.xpose.msra.mxu0 0
      %781 = vmatprep.subr.bf16.mxu0 0
      %782 = vmatpush1.bf16.xpose.msra.mxu0 0
      %783 = vmatprep.subr.bf16.mxu0 0
      %784 = vmatpush1.bf16.xpose.msra.mxu0 0
      %785 = vmatprep.subr.bf16.mxu0 0
      %786 = vmatpush1.bf16.xpose.msra.mxu0 0
      %787 = vmatprep.subr.bf16.mxu0 0
      %788 = vmatpush1.bf16.xpose.msra.mxu0 0
      %789 = vmatprep.subr.bf16.mxu0 0
      %790 = vmatpush1.bf16.xpose.msra.mxu0 0
      %791 = vmatprep.subr.bf16.mxu0 0
      %792 = vmatpush1.bf16.xpose.msra.mxu0 0
      %793 = vmatprep.subr.bf16.mxu0 0
      %794 = vmatpush1.bf16.xpose.msra.mxu0 0
      %795 = vmatprep.subr.bf16.mxu0 0
      %796 = vmatpush1.bf16.xpose.msra.mxu0 0
      %797 = vmatprep.subr.bf16.mxu0 0
      %798 = vmatpush1.bf16.xpose.msra.mxu0 0
      %799 = vmatprep.subr.bf16.mxu0 0
      %800 = vmatpush1.bf16.xpose.msra.mxu0 0
      %801 = vmatprep.mubr.bf16.mxu0 0
      %802 = vmatmul.mubr.bf16.gmra.mrb[0].mxu0 %v746
      %v803 = vpop.f32.mrb[0].mxu0
      %v804 = vadd.f32 %v724, %v803
      %v805 = vpop.f32.mrb[0].mxu0
      %v806 = vpop.f32.mrb[0].mxu0
      %v807 = vadd.f32 %v725, %v806
      %v808 = vpop.f32.mrb[0].mxu0
      %809 = vmatprep.mubr.bf16.mxu0 0
      %810 = vmatmul.mubr.bf16.gmra.mrb[0].mxu0 %v749
      %v811 = vpop.f32.mrb[0].mxu0
      %v812 = vadd.f32 %v726, %v811
      %v813 = vpop.f32.mrb[0].mxu0
      %v814 = vpop.f32.mrb[0].mxu0
      %v815 = vadd.f32 %v727, %v814
      %v816 = vpop.f32.mrb[0].mxu0
      %817 = vmatprep.mubr.bf16.mxu0 0
      %818 = vmatmul.mubr.bf16.gmra.mrb[0].mxu0 %v752
      %v819 = vpop.f32.mrb[0].mxu0
      %v820 = vadd.f32 %v728, %v819
      %v821 = vpop.f32.mrb[0].mxu0
      %v822 = vpop.f32.mrb[0].mxu0
      %v823 = vadd.f32 %v729, %v822
      %v824 = vpop.f32.mrb[0].mxu0
      %825 = vmatprep.mubr.bf16.mxu0 0
      %826 = vmatmul.mubr.bf16.gmra.mrb[0].mxu0 %v755
      %v827 = vpop.f32.mrb[0].mxu0
      %v828 = vadd.f32 %v730, %v827
      %v829 = vpop.f32.mrb[0].mxu0
      %v830 = vpop.f32.mrb[0].mxu0
      %v831 = vadd.f32 %v731, %v830
      %v832 = vpop.f32.mrb[0].mxu0
      %833 = vdwg.mxu0
      %vm834 = vcmask 523264
      %v835 = vsel %vm834, %v804, -inf
      %836 = vmax.xlane.f32.xlu0 %v835
      %v837 = vpop.xlane.xlu0 %836
      %v838 = vsel %vm834, %v807, -inf
      %839 = vmax.xlane.f32.xlu0 %v838
      %v840 = vpop.xlane.xlu0 %839
      %v841 = vsel %vm834, %v812, -inf
      %842 = vmax.xlane.f32.xlu0 %v841
      %v843 = vpop.xlane.xlu0 %842
      %v844 = vsel %vm834, %v815, -inf
      %845 = vmax.xlane.f32.xlu0 %v844
      %v846 = vpop.xlane.xlu0 %845
      %v847 = vsel %vm834, %v820, -inf
      %848 = vmax.xlane.f32.xlu0 %v847
      %v849 = vpop.xlane.xlu0 %848
      %v850 = vsel %vm834, %v823, -inf
      %851 = vmax.xlane.f32.xlu0 %v850
      %v852 = vpop.xlane.xlu0 %851
      %v853 = vsel %vm834, %v828, -inf
      %854 = vmax.xlane.f32.xlu0 %v853
      %v855 = vpop.xlane.xlu0 %854
      %v856 = vsel %vm834, %v831, -inf
      %857 = vmax.xlane.f32.xlu0 %v856
      %v858 = vpop.xlane.xlu0 %857
      %v859 = vsub.f32 %v804, %v837
      %v860 = vsub.f32 %v807, %v840
      %v861 = vsub.f32 %v812, %v843
      %v862 = vsub.f32 %v815, %v846
      %v863 = vsub.f32 %v820, %v849
      %v864 = vsub.f32 %v823, %v852
      %v865 = vsub.f32 %v828, %v855
      %v866 = vsub.f32 %v831, %v858
      %v867 = vmul.f32 %v859, 1.442695
      %v868 = vpow.pop %v867
      %v869 = vmul.f32 %v860, 1.442695
      %v870 = vpow.pop %v869
      %v871 = vmul.f32 %v861, 1.442695
      %v872 = vpow.pop %v871
      %v873 = vmul.f32 %v862, 1.442695
      %v874 = vpow.pop %v873
      %v875 = vmul.f32 %v863, 1.442695
      %v876 = vpow.pop %v875
      %v877 = vmul.f32 %v864, 1.442695
      %v878 = vpow.pop %v877
      %v879 = vmul.f32 %v865, 1.442695
      %v880 = vpow.pop %v879
      %v881 = vmul.f32 %v866, 1.442695
      %v882 = vpow.pop %v881
      %v883 = vsel %vm834, %v868, 0.0
      %884 = vadd.xlane.f32.xlu0 %v883
      %v885 = vpop.xlane.xlu0 %884
      %v886 = vsel %vm834, %v870, 0.0
      %887 = vadd.xlane.f32.xlu0 %v886
      %v888 = vpop.xlane.xlu0 %887
      %v889 = vsel %vm834, %v872, 0.0
      %890 = vadd.xlane.f32.xlu0 %v889
      %v891 = vpop.xlane.xlu0 %890
      %v892 = vsel %vm834, %v874, 0.0
      %893 = vadd.xlane.f32.xlu0 %v892
      %v894 = vpop.xlane.xlu0 %893
      %v895 = vsel %vm834, %v876, 0.0
      %896 = vadd.xlane.f32.xlu0 %v895
      %v897 = vpop.xlane.xlu0 %896
      %v898 = vsel %vm834, %v878, 0.0
      %899 = vadd.xlane.f32.xlu0 %v898
      %v900 = vpop.xlane.xlu0 %899
      %v901 = vsel %vm834, %v880, 0.0
      %902 = vadd.xlane.f32.xlu0 %v901
      %v903 = vpop.xlane.xlu0 %902
      %v904 = vsel %vm834, %v882, 0.0
      %905 = vadd.xlane.f32.xlu0 %v904
      %v906 = vpop.xlane.xlu0 %905
      %v907 = vrcp.pop %v885
      %v908 = vrcp.pop %v888
      %v909 = vrcp.pop %v891
      %v910 = vrcp.pop %v894
      %v911 = vrcp.pop %v897
      %v912 = vrcp.pop %v900
      %v913 = vrcp.pop %v903
      %v914 = vrcp.pop %v906
      %v915 = vmul.f32 %v868, %v907
      %v916 = vmul.f32 %v870, %v908
      %v917 = vmul.f32 %v872, %v909
      %v918 = vmul.f32 %v874, %v910
      %v919 = vmul.f32 %v876, %v911
      %v920 = vmul.f32 %v878, %v912
      %v921 = vmul.f32 %v880, %v913
      %v922 = vmul.f32 %v882, %v914
      %v923 = vpack.c.bf16 %v916, %v915
      %v924 = vpack.c.bf16 %v918, %v917
      %v925 = vpack.c.bf16 %v920, %v919
      %v926 = vpack.c.bf16 %v922, %v921
      %927 = vrot.lane.b32.xlu0 %v720, 64
      %v928 = vpop.permute.xlu0 %927
      %929 = vrot.lane.b32.xlu0 %v721, 64
      %v930 = vpop.permute.xlu0 %929
      %931 = vrot.lane.b32.xlu0 %v722, 64
      %v932 = vpop.permute.xlu0 %931
      %933 = vrot.lane.b32.xlu0 %v723, 64
      %v934 = vpop.permute.xlu0 %933
      %v940 = vsel %vm834, %v923, 0
      %v943 = vsel %vm834, %v924, 0
      %v946 = vsel %vm834, %v925, 0
      %v949 = vsel %vm834, %v926, 0
      %951 = vmatprep.subr.bf16.mxu0 0
      %952 = vmatpush1.bf16.msra.mxu0 %v928
      %953 = vmatprep.subr.bf16.mxu0 0
      %954 = vmatpush1.bf16.msra.mxu0 %v930
      %955 = vmatprep.subr.bf16.mxu0 0
      %956 = vmatpush1.bf16.msra.mxu0 %v932
      %957 = vmatprep.subr.bf16.mxu0 0
      %958 = vmatpush1.bf16.msra.mxu0 %v934
      %959 = vmatprep.subr.bf16.mxu0 0
      %960 = vmatpush1.bf16.msra.mxu0 0
      %961 = vmatprep.subr.bf16.mxu0 0
      %962 = vmatpush1.bf16.msra.mxu0 0
      %963 = vmatprep.subr.bf16.mxu0 0
      %964 = vmatpush1.bf16.msra.mxu0 0
      %965 = vmatprep.subr.bf16.mxu0 0
      %966 = vmatpush1.bf16.msra.mxu0 0
      %967 = vmatprep.subr.bf16.mxu0 0
      %968 = vmatpush1.bf16.msra.mxu0 0
      %969 = vmatprep.subr.bf16.mxu0 0
      %970 = vmatpush1.bf16.msra.mxu0 0
      %971 = vmatprep.subr.bf16.mxu0 0
      %972 = vmatpush1.bf16.msra.mxu0 0
      %973 = vmatprep.subr.bf16.mxu0 0
      %974 = vmatpush1.bf16.msra.mxu0 0
      %975 = vmatprep.subr.bf16.mxu0 0
      %976 = vmatpush1.bf16.msra.mxu0 0
      %977 = vmatprep.subr.bf16.mxu0 0
      %978 = vmatpush1.bf16.msra.mxu0 0
      %979 = vmatprep.subr.bf16.mxu0 0
      %980 = vmatpush1.bf16.msra.mxu0 0
      %981 = vmatprep.subr.bf16.mxu0 0
      %982 = vmatpush1.bf16.msra.mxu0 0
      %983 = vmatprep.mubr.bf16.mxu0 0
      %984 = vmatmul.mubr.bf16.gmra.mrb[0].mxu0 %v940
      %v985 = vpop.f32.mrb[0].mxu0
      %v986 = vadd.f32 0.0, %v985
      %v987 = vpop.f32.mrb[0].mxu0
      %v988 = vpop.f32.mrb[0].mxu0
      %v989 = vadd.f32 0.0, %v988
      %v990 = vpop.f32.mrb[0].mxu0
      %991 = vmatprep.mubr.bf16.mxu0 0
      %992 = vmatmul.mubr.bf16.gmra.mrb[0].mxu0 %v943
      %v993 = vpop.f32.mrb[0].mxu0
      %v994 = vadd.f32 0.0, %v993
      %v995 = vpop.f32.mrb[0].mxu0
      %v996 = vpop.f32.mrb[0].mxu0
      %v997 = vadd.f32 0.0, %v996
      %v998 = vpop.f32.mrb[0].mxu0
      %999 = vmatprep.mubr.bf16.mxu0 0
      %1000 = vmatmul.mubr.bf16.gmra.mrb[0].mxu0 %v946
      %v1001 = vpop.f32.mrb[0].mxu0
      %v1002 = vadd.f32 0.0, %v1001
      %v1003 = vpop.f32.mrb[0].mxu0
      %v1004 = vpop.f32.mrb[0].mxu0
      %v1005 = vadd.f32 0.0, %v1004
      %v1006 = vpop.f32.mrb[0].mxu0
      %1007 = vmatprep.mubr.bf16.mxu0 0
      %1008 = vmatmul.mubr.bf16.gmra.mrb[0].mxu0 %v949
      %v1009 = vpop.f32.mrb[0].mxu0
      %v1010 = vadd.f32 0.0, %v1009
      %v1011 = vpop.f32.mrb[0].mxu0
      %v1012 = vpop.f32.mrb[0].mxu0
      %v1013 = vadd.f32 0.0, %v1012
      %v1014 = vpop.f32.mrb[0].mxu0
      %1015 = vdwg.mxu0
      %s1016 = scalar_lea.vmem %s5, 64
      %v1017 = vld [vmem:[%s1016] sm:$0xff]
      %v1018 = vld [vmem:[%s1016 + $0x8] sm:$0xff]
      %v1019 = vld [vmem:[%s1016 + $0x10] sm:$0xff]
      %v1020 = vld [vmem:[%s1016 + $0x18] sm:$0xff]
      %v1021 = vld [vmem:[%s1016 + $0x20] sm:$0xff]
      %v1022 = vld [vmem:[%s1016 + $0x28] sm:$0xff]
      %v1023 = vld [vmem:[%s1016 + $0x30] sm:$0xff]
      %v1024 = vld [vmem:[%s1016 + $0x38] sm:$0xff]
      %1025 = vrot.lane.b32.xlu0 %v720, 112
      %v1026 = vpop.permute.xlu0 %1025
      %1027 = vrot.lane.b32.xlu0 %v721, 112
      %v1028 = vpop.permute.xlu0 %1027
      %1029 = vrot.lane.b32.xlu0 %v722, 112
      %v1030 = vpop.permute.xlu0 %1029
      %1031 = vrot.lane.b32.xlu0 %v723, 112
      %v1032 = vpop.permute.xlu0 %1031
      %1033 = vrot.lane.b32.xlu0 %v720, 80
      %v1034 = vpop.permute.xlu0 %1033
      %1035 = vrot.lane.b32.xlu0 %v721, 80
      %v1036 = vpop.permute.xlu0 %1035
      %1037 = vrot.lane.b32.xlu0 %v722, 80
      %v1038 = vpop.permute.xlu0 %1037
      %1039 = vrot.lane.b32.xlu0 %v723, 80
      %v1040 = vpop.permute.xlu0 %1039
      %v1042 = vsel %vm744, %v1026, 0
      %v1045 = vsel %vm744, %v1028, 0
      %v1048 = vsel %vm744, %v1030, 0
      %v1051 = vsel %vm744, %v1032, 0
      %v1054 = vsel %vm744, %v1034, 0
      %v1057 = vsel %vm744, %v1036, 0
      %v1060 = vsel %vm744, %v1038, 0
      %v1063 = vsel %vm744, %v1040, 0
      %1065 = vmatprep.subr.bf16.mxu0 0
      %1066 = vmatpush1.bf16.xpose.msra.mxu0 %v1054
      %1067 = vmatprep.subr.bf16.mxu0 0
      %1068 = vmatpush1.bf16.xpose.msra.mxu0 %v1057
      %1069 = vmatprep.subr.bf16.mxu0 0
      %1070 = vmatpush1.bf16.xpose.msra.mxu0 %v1060
      %1071 = vmatprep.subr.bf16.mxu0 0
      %1072 = vmatpush1.bf16.xpose.msra.mxu0 %v1063
      %1073 = vmatprep.subr.bf16.mxu0 0
      %1074 = vmatpush1.bf16.xpose.msra.mxu0 0
      %1075 = vmatprep.subr.bf16.mxu0 0
      %1076 = vmatpush1.bf16.xpose.msra.mxu0 0
      %1077 = vmatprep.subr.bf16.mxu0 0
      %1078 = vmatpush1.bf16.xpose.msra.mxu0 0
      %1079 = vmatprep.subr.bf16.mxu0 0
      %1080 = vmatpush1.bf16.xpose.msra.mxu0 0
      %1081 = vmatprep.subr.bf16.mxu0 0
      %1082 = vmatpush1.bf16.xpose.msra.mxu0 0
      %1083 = vmatprep.subr.bf16.mxu0 0
      %1084 = vmatpush1.bf16.xpose.msra.mxu0 0
      %1085 = vmatprep.subr.bf16.mxu0 0
      %1086 = vmatpush1.bf16.xpose.msra.mxu0 0
      %1087 = vmatprep.subr.bf16.mxu0 0
      %1088 = vmatpush1.bf16.xpose.msra.mxu0 0
      %1089 = vmatprep.subr.bf16.mxu0 0
      %1090 = vmatpush1.bf16.xpose.msra.mxu0 0
      %1091 = vmatprep.subr.bf16.mxu0 0
      %1092 = vmatpush1.bf16.xpose.msra.mxu0 0
      %1093 = vmatprep.subr.bf16.mxu0 0
      %1094 = vmatpush1.bf16.xpose.msra.mxu0 0
      %1095 = vmatprep.subr.bf16.mxu0 0
      %1096 = vmatpush1.bf16.xpose.msra.mxu0 0
      %1097 = vmatprep.mubr.bf16.mxu0 0
      %1098 = vmatmul.mubr.bf16.gmra.mrb[0].mxu0 %v1042
      %v1099 = vpop.f32.mrb[0].mxu0
      %v1100 = vadd.f32 %v1017, %v1099
      %v1101 = vpop.f32.mrb[0].mxu0
      %v1102 = vpop.f32.mrb[0].mxu0
      %v1103 = vadd.f32 %v1018, %v1102
      %v1104 = vpop.f32.mrb[0].mxu0
      %1105 = vmatprep.mubr.bf16.mxu0 0
      %1106 = vmatmul.mubr.bf16.gmra.mrb[0].mxu0 %v1045
      %v1107 = vpop.f32.mrb[0].mxu0
      %v1108 = vadd.f32 %v1019, %v1107
      %v1109 = vpop.f32.mrb[0].mxu0
      %v1110 = vpop.f32.mrb[0].mxu0
      %v1111 = vadd.f32 %v1020, %v1110
      %v1112 = vpop.f32.mrb[0].mxu0
      %1113 = vmatprep.mubr.bf16.mxu0 0
      %1114 = vmatmul.mubr.bf16.gmra.mrb[0].mxu0 %v1048
      %v1115 = vpop.f32.mrb[0].mxu0
      %v1116 = vadd.f32 %v1021, %v1115
      %v1117 = vpop.f32.mrb[0].mxu0
      %v1118 = vpop.f32.mrb[0].mxu0
      %v1119 = vadd.f32 %v1022, %v1118
      %v1120 = vpop.f32.mrb[0].mxu0
      %1121 = vmatprep.mubr.bf16.mxu0 0
      %1122 = vmatmul.mubr.bf16.gmra.mrb[0].mxu0 %v1051
      %v1123 = vpop.f32.mrb[0].mxu0
      %v1124 = vadd.f32 %v1023, %v1123
      %v1125 = vpop.f32.mrb[0].mxu0
      %v1126 = vpop.f32.mrb[0].mxu0
      %v1127 = vadd.f32 %v1024, %v1126
      %v1128 = vpop.f32.mrb[0].mxu0
      %1129 = vdwg.mxu0
      %v1130 = vsel %vm834, %v1100, -inf
      %1131 = vmax.xlane.f32.xlu0 %v1130
      %v1132 = vpop.xlane.xlu0 %1131
      %v1133 = vsel %vm834, %v1103, -inf
      %1134 = vmax.xlane.f32.xlu0 %v1133
      %v1135 = vpop.xlane.xlu0 %1134
      %v1136 = vsel %vm834, %v1108, -inf
      %1137 = vmax.xlane.f32.xlu0 %v1136
      %v1138 = vpop.xlane.xlu0 %1137
      %v1139 = vsel %vm834, %v1111, -inf
      %1140 = vmax.xlane.f32.xlu0 %v1139
      %v1141 = vpop.xlane.xlu0 %1140
      %v1142 = vsel %vm834, %v1116, -inf
      %1143 = vmax.xlane.f32.xlu0 %v1142
      %v1144 = vpop.xlane.xlu0 %1143
      %v1145 = vsel %vm834, %v1119, -inf
      %1146 = vmax.xlane.f32.xlu0 %v1145
      %v1147 = vpop.xlane.xlu0 %1146
      %v1148 = vsel %vm834, %v1124, -inf
      %1149 = vmax.xlane.f32.xlu0 %v1148
      %v1150 = vpop.xlane.xlu0 %1149
      %v1151 = vsel %vm834, %v1127, -inf
      %1152 = vmax.xlane.f32.xlu0 %v1151
      %v1153 = vpop.xlane.xlu0 %1152
      %v1154 = vsub.f32 %v1100, %v1132
      %v1155 = vsub.f32 %v1103, %v1135
      %v1156 = vsub.f32 %v1108, %v1138
      %v1157 = vsub.f32 %v1111, %v1141
      %v1158 = vsub.f32 %v1116, %v1144
      %v1159 = vsub.f32 %v1119, %v1147
      %v1160 = vsub.f32 %v1124, %v1150
      %v1161 = vsub.f32 %v1127, %v1153
      %v1162 = vmul.f32 %v1154, 1.442695
      %v1163 = vpow.pop %v1162
      %v1164 = vmul.f32 %v1155, 1.442695
      %v1165 = vpow.pop %v1164
      %v1166 = vmul.f32 %v1156, 1.442695
      %v1167 = vpow.pop %v1166
      %v1168 = vmul.f32 %v1157, 1.442695
      %v1169 = vpow.pop %v1168
      %v1170 = vmul.f32 %v1158, 1.442695
      %v1171 = vpow.pop %v1170
      %v1172 = vmul.f32 %v1159, 1.442695
      %v1173 = vpow.pop %v1172
      %v1174 = vmul.f32 %v1160, 1.442695
      %v1175 = vpow.pop %v1174
      %v1176 = vmul.f32 %v1161, 1.442695
      %v1177 = vpow.pop %v1176
      %v1178 = vsel %vm834, %v1163, 0.0
      %1179 = vadd.xlane.f32.xlu0 %v1178
      %v1180 = vpop.xlane.xlu0 %1179
      %v1181 = vsel %vm834, %v1165, 0.0
      %1182 = vadd.xlane.f32.xlu0 %v1181
      %v1183 = vpop.xlane.xlu0 %1182
      %v1184 = vsel %vm834, %v1167, 0.0
      %1185 = vadd.xlane.f32.xlu0 %v1184
      %v1186 = vpop.xlane.xlu0 %1185
      %v1187 = vsel %vm834, %v1169, 0.0
      %1188 = vadd.xlane.f32.xlu0 %v1187
      %v1189 = vpop.xlane.xlu0 %1188
      %v1190 = vsel %vm834, %v1171, 0.0
      %1191 = vadd.xlane.f32.xlu0 %v1190
      %v1192 = vpop.xlane.xlu0 %1191
      %v1193 = vsel %vm834, %v1173, 0.0
      %1194 = vadd.xlane.f32.xlu0 %v1193
      %v1195 = vpop.xlane.xlu0 %1194
      %v1196 = vsel %vm834, %v1175, 0.0
      %1197 = vadd.xlane.f32.xlu0 %v1196
      %v1198 = vpop.xlane.xlu0 %1197
      %v1199 = vsel %vm834, %v1177, 0.0
      %1200 = vadd.xlane.f32.xlu0 %v1199
      %v1201 = vpop.xlane.xlu0 %1200
      %v1202 = vrcp.pop %v1180
      %v1203 = vrcp.pop %v1183
      %v1204 = vrcp.pop %v1186
      %v1205 = vrcp.pop %v1189
      %v1206 = vrcp.pop %v1192
      %v1207 = vrcp.pop %v1195
      %v1208 = vrcp.pop %v1198
      %v1209 = vrcp.pop %v1201
      %v1210 = vmul.f32 %v1163, %v1202
      %v1211 = vmul.f32 %v1165, %v1203
      %v1212 = vmul.f32 %v1167, %v1204
      %v1213 = vmul.f32 %v1169, %v1205
      %v1214 = vmul.f32 %v1171, %v1206
      %v1215 = vmul.f32 %v1173, %v1207
      %v1216 = vmul.f32 %v1175, %v1208
      %v1217 = vmul.f32 %v1177, %v1209
      %v1218 = vpack.c.bf16 %v1211, %v1210
      %v1219 = vpack.c.bf16 %v1213, %v1212
      %v1220 = vpack.c.bf16 %v1215, %v1214
      %v1221 = vpack.c.bf16 %v1217, %v1216
      %1222 = vrot.lane.b32.xlu0 %v720, 48
      %v1223 = vpop.permute.xlu0 %1222
      %1224 = vrot.lane.b32.xlu0 %v721, 48
      %v1225 = vpop.permute.xlu0 %1224
      %1226 = vrot.lane.b32.xlu0 %v722, 48
      %v1227 = vpop.permute.xlu0 %1226
      %1228 = vrot.lane.b32.xlu0 %v723, 48
      %v1229 = vpop.permute.xlu0 %1228
      %v1235 = vsel %vm834, %v1218, 0
      %v1238 = vsel %vm834, %v1219, 0
      %v1241 = vsel %vm834, %v1220, 0
      %v1244 = vsel %vm834, %v1221, 0
      %1246 = vmatprep.subr.bf16.mxu0 0
      %1247 = vmatpush1.bf16.msra.mxu0 %v1223
      %1248 = vmatprep.subr.bf16.mxu0 0
      %1249 = vmatpush1.bf16.msra.mxu0 %v1225
      %1250 = vmatprep.subr.bf16.mxu0 0
      %1251 = vmatpush1.bf16.msra.mxu0 %v1227
      %1252 = vmatprep.subr.bf16.mxu0 0
      %1253 = vmatpush1.bf16.msra.mxu0 %v1229
      %1254 = vmatprep.subr.bf16.mxu0 0
      %1255 = vmatpush1.bf16.msra.mxu0 0
      %1256 = vmatprep.subr.bf16.mxu0 0
      %1257 = vmatpush1.bf16.msra.mxu0 0
      %1258 = vmatprep.subr.bf16.mxu0 0
      %1259 = vmatpush1.bf16.msra.mxu0 0
      %1260 = vmatprep.subr.bf16.mxu0 0
      %1261 = vmatpush1.bf16.msra.mxu0 0
      %1262 = vmatprep.subr.bf16.mxu0 0
      %1263 = vmatpush1.bf16.msra.mxu0 0
      %1264 = vmatprep.subr.bf16.mxu0 0
      %1265 = vmatpush1.bf16.msra.mxu0 0
      %1266 = vmatprep.subr.bf16.mxu0 0
      %1267 = vmatpush1.bf16.msra.mxu0 0
      %1268 = vmatprep.subr.bf16.mxu0 0
      %1269 = vmatpush1.bf16.msra.mxu0 0
      %1270 = vmatprep.subr.bf16.mxu0 0
      %1271 = vmatpush1.bf16.msra.mxu0 0
      %1272 = vmatprep.subr.bf16.mxu0 0
      %1273 = vmatpush1.bf16.msra.mxu0 0
      %1274 = vmatprep.subr.bf16.mxu0 0
      %1275 = vmatpush1.bf16.msra.mxu0 0
      %1276 = vmatprep.subr.bf16.mxu0 0
      %1277 = vmatpush1.bf16.msra.mxu0 0
      %1278 = vmatprep.mubr.bf16.mxu0 0
      %1279 = vmatmul.mubr.bf16.gmra.mrb[0].mxu0 %v1235
      %v1280 = vpop.f32.mrb[0].mxu0
      %v1281 = vadd.f32 0.0, %v1280
      %v1282 = vpop.f32.mrb[0].mxu0
      %v1283 = vpop.f32.mrb[0].mxu0
      %v1284 = vadd.f32 0.0, %v1283
      %v1285 = vpop.f32.mrb[0].mxu0
      %1286 = vmatprep.mubr.bf16.mxu0 0
      %1287 = vmatmul.mubr.bf16.gmra.mrb[0].mxu0 %v1238
      %v1288 = vpop.f32.mrb[0].mxu0
      %v1289 = vadd.f32 0.0, %v1288
      %v1290 = vpop.f32.mrb[0].mxu0
      %v1291 = vpop.f32.mrb[0].mxu0
      %v1292 = vadd.f32 0.0, %v1291
      %v1293 = vpop.f32.mrb[0].mxu0
      %1294 = vmatprep.mubr.bf16.mxu0 0
      %1295 = vmatmul.mubr.bf16.gmra.mrb[0].mxu0 %v1241
      %v1296 = vpop.f32.mrb[0].mxu0
      %v1297 = vadd.f32 0.0, %v1296
      %v1298 = vpop.f32.mrb[0].mxu0
      %v1299 = vpop.f32.mrb[0].mxu0
      %v1300 = vadd.f32 0.0, %v1299
      %v1301 = vpop.f32.mrb[0].mxu0
      %1302 = vmatprep.mubr.bf16.mxu0 0
      %1303 = vmatmul.mubr.bf16.gmra.mrb[0].mxu0 %v1244
      %v1304 = vpop.f32.mrb[0].mxu0
      %v1305 = vadd.f32 0.0, %v1304
      %v1306 = vpop.f32.mrb[0].mxu0
      %v1307 = vpop.f32.mrb[0].mxu0
      %v1308 = vadd.f32 0.0, %v1307
      %v1309 = vpop.f32.mrb[0].mxu0
      %1310 = vdwg.mxu0
      %1319 = vrot.lane.b32.xlu0 %v1281, 16
      %v1320 = vpop.permute.xlu0 %1319
      %1321 = vrot.lane.b32.xlu0 %v1284, 16
      %v1322 = vpop.permute.xlu0 %1321
      %1323 = vrot.lane.b32.xlu0 %v1289, 16
      %v1324 = vpop.permute.xlu0 %1323
      %1325 = vrot.lane.b32.xlu0 %v1292, 16
      %v1326 = vpop.permute.xlu0 %1325
      %1327 = vrot.lane.b32.xlu0 %v1297, 16
      %v1328 = vpop.permute.xlu0 %1327
      %1329 = vrot.lane.b32.xlu0 %v1300, 16
      %v1330 = vpop.permute.xlu0 %1329
      %1331 = vrot.lane.b32.xlu0 %v1305, 16
      %v1332 = vpop.permute.xlu0 %1331
      %1333 = vrot.lane.b32.xlu0 %v1308, 16
      %v1334 = vpop.permute.xlu0 %1333
      %v1343 = vsel %vm744, %v986, %v1320
      %v1344 = vsel %vm744, %v989, %v1322
      %v1345 = vsel %vm744, %v994, %v1324
      %v1346 = vsel %vm744, %v997, %v1326
      %v1347 = vsel %vm744, %v1002, %v1328
      %v1348 = vsel %vm744, %v1005, %v1330
      %v1349 = vsel %vm744, %v1010, %v1332
      %v1350 = vsel %vm744, %v1013, %v1334
      %v1351 = vld [vmem:[%s6] sm:$0xf]
      %v1352 = vld [vmem:[%s6 + $0x4] sm:$0xf]
      %v1353 = vld [vmem:[%s6 + $0x8] sm:$0xf]
      %v1354 = vld [vmem:[%s6 + $0xc] sm:$0xf]
      %v1355 = vpack.c.bf16 %v1344, %v1343
      %v1356 = vpack.c.bf16 %v1346, %v1345
      %v1357 = vpack.c.bf16 %v1348, %v1347
      %v1358 = vpack.c.bf16 %v1350, %v1349
      %v1363 = vunpack.c.l.b16 %v1351
      %v1364 = vunpack.c.l.b16 %v1352
      %v1365 = vunpack.c.l.b16 %v1353
      %v1366 = vunpack.c.l.b16 %v1354
      %v1367 = vpack.c.b16 %v1364, %v1363
      %v1368 = vpack.c.b16 %v1366, %v1365
      %v1372 = vsel %vm482, %v1355, 0
      %v1375 = vsel %vm482, %v1356, 0
      %v1378 = vsel %vm482, %v1357, 0
      %v1381 = vsel %vm482, %v1358, 0
      %1383 = vmatprep.subr.bf16.mxu0 0
      %1384 = vmatpush1.bf16.msra.mxu0 %v1367
      %1385 = vmatprep.subr.bf16.mxu0 0
      %1386 = vmatpush1.bf16.msra.mxu0 %v1368
      %1387 = vmatprep.subr.bf16.mxu0 0
      %1388 = vmatpush1.bf16.msra.mxu0 0
      %1389 = vmatprep.subr.bf16.mxu0 0
      %1390 = vmatpush1.bf16.msra.mxu0 0
      %1391 = vmatprep.subr.bf16.mxu0 0
      %1392 = vmatpush1.bf16.msra.mxu0 0
      %1393 = vmatprep.subr.bf16.mxu0 0
      %1394 = vmatpush1.bf16.msra.mxu0 0
      %1395 = vmatprep.subr.bf16.mxu0 0
      %1396 = vmatpush1.bf16.msra.mxu0 0
      %1397 = vmatprep.subr.bf16.mxu0 0
      %1398 = vmatpush1.bf16.msra.mxu0 0
      %1399 = vmatprep.subr.bf16.mxu0 0
      %1400 = vmatpush1.bf16.msra.mxu0 0
      %1401 = vmatprep.subr.bf16.mxu0 0
      %1402 = vmatpush1.bf16.msra.mxu0 0
      %1403 = vmatprep.subr.bf16.mxu0 0
      %1404 = vmatpush1.bf16.msra.mxu0 0
      %1405 = vmatprep.subr.bf16.mxu0 0
      %1406 = vmatpush1.bf16.msra.mxu0 0
      %1407 = vmatprep.subr.bf16.mxu0 0
      %1408 = vmatpush1.bf16.msra.mxu0 0
      %1409 = vmatprep.subr.bf16.mxu0 0
      %1410 = vmatpush1.bf16.msra.mxu0 0
      %1411 = vmatprep.subr.bf16.mxu0 0
      %1412 = vmatpush1.bf16.msra.mxu0 0
      %1413 = vmatprep.subr.bf16.mxu0 0
      %1414 = vmatpush1.bf16.msra.mxu0 0
      %1415 = vmatprep.mubr.bf16.mxu0 0
      %1416 = vmatmul.mubr.bf16.gmra.mrb[0].mxu0 %v1372
      %v1417 = vpop.f32.mrb[0].mxu0
      %v1418 = vadd.f32 0.0, %v1417
      %v1419 = vpop.f32.mrb[0].mxu0
      %v1420 = vpop.f32.mrb[0].mxu0
      %v1421 = vadd.f32 0.0, %v1420
      %v1422 = vpop.f32.mrb[0].mxu0
      %1423 = vmatprep.mubr.bf16.mxu0 0
      %1424 = vmatmul.mubr.bf16.gmra.mrb[0].mxu0 %v1375
      %v1425 = vpop.f32.mrb[0].mxu0
      %v1426 = vadd.f32 0.0, %v1425
      %v1427 = vpop.f32.mrb[0].mxu0
      %v1428 = vpop.f32.mrb[0].mxu0
      %v1429 = vadd.f32 0.0, %v1428
      %v1430 = vpop.f32.mrb[0].mxu0
      %1431 = vmatprep.mubr.bf16.mxu0 0
      %1432 = vmatmul.mubr.bf16.gmra.mrb[0].mxu0 %v1378
      %v1433 = vpop.f32.mrb[0].mxu0
      %v1434 = vadd.f32 0.0, %v1433
      %v1435 = vpop.f32.mrb[0].mxu0
      %v1436 = vpop.f32.mrb[0].mxu0
      %v1437 = vadd.f32 0.0, %v1436
      %v1438 = vpop.f32.mrb[0].mxu0
      %1439 = vmatprep.mubr.bf16.mxu0 0
      %1440 = vmatmul.mubr.bf16.gmra.mrb[0].mxu0 %v1381
      %v1441 = vpop.f32.mrb[0].mxu0
      %v1442 = vadd.f32 0.0, %v1441
      %v1443 = vpop.f32.mrb[0].mxu0
      %v1444 = vpop.f32.mrb[0].mxu0
      %v1445 = vadd.f32 0.0, %v1444
      %v1446 = vpop.f32.mrb[0].mxu0
      %1447 = vdwg.mxu0
      %v1448 = vadd.f32 %v472, %v1418
      %v1449 = vadd.f32 %v473, %v1421
      %v1450 = vadd.f32 %v474, %v1426
      %v1451 = vadd.f32 %v475, %v1429
      %v1452 = vadd.f32 %v476, %v1434
      %v1453 = vadd.f32 %v477, %v1437
      %v1454 = vadd.f32 %v478, %v1442
      %v1455 = vadd.f32 %v479, %v1445
      %v1456 = vld [vmem:[%s7] sm:$0x1]
      %v1458 = vlaneseq
      %v1459 = vshrl.u32 %v1458, 7
      %v1460 = vsub.s32 0, %v1459
      %v1461 = vrot.slane %v1456, %v1460
      %v1463 = vadd.f32 %v1448, %v1461
      %v1464 = vadd.f32 %v1449, %v1461
      %v1465 = vadd.f32 %v1450, %v1461
      %v1466 = vadd.f32 %v1451, %v1461
      %v1467 = vadd.f32 %v1452, %v1461
      %v1468 = vadd.f32 %v1453, %v1461
      %v1469 = vadd.f32 %v1454, %v1461
      %v1470 = vadd.f32 %v1455, %v1461
      %v1471 = vld [vmem:[%s8] sm:$0x1]
      %v1472 = vld [vmem:[%s9] sm:$0x1]
      %v1473 = vsel %vm482, %v1463, 0.0
      %1474 = vadd.xlane.f32.xlu0 %v1473
      %v1475 = vpop.xlane.xlu0 %1474
      %v1476 = vsel %vm482, %v1464, 0.0
      %1477 = vadd.xlane.f32.xlu0 %v1476
      %v1478 = vpop.xlane.xlu0 %1477
      %v1479 = vsel %vm482, %v1465, 0.0
      %1480 = vadd.xlane.f32.xlu0 %v1479
      %v1481 = vpop.xlane.xlu0 %1480
      %v1482 = vsel %vm482, %v1466, 0.0
      %1483 = vadd.xlane.f32.xlu0 %v1482
      %v1484 = vpop.xlane.xlu0 %1483
      %v1485 = vsel %vm482, %v1467, 0.0
      %1486 = vadd.xlane.f32.xlu0 %v1485
      %v1487 = vpop.xlane.xlu0 %1486
      %v1488 = vsel %vm482, %v1468, 0.0
      %1489 = vadd.xlane.f32.xlu0 %v1488
      %v1490 = vpop.xlane.xlu0 %1489
      %v1491 = vsel %vm482, %v1469, 0.0
      %1492 = vadd.xlane.f32.xlu0 %v1491
      %v1493 = vpop.xlane.xlu0 %1492
      %v1494 = vsel %vm482, %v1470, 0.0
      %1495 = vadd.xlane.f32.xlu0 %v1494
      %v1496 = vpop.xlane.xlu0 %1495
      %v1497 = vmul.f32 %v1475, %v507
      %v1498 = vmul.f32 %v1478, %v507
      %v1499 = vmul.f32 %v1481, %v507
      %v1500 = vmul.f32 %v1484, %v507
      %v1501 = vmul.f32 %v1487, %v507
      %v1502 = vmul.f32 %v1490, %v507
      %v1503 = vmul.f32 %v1493, %v507
      %v1504 = vmul.f32 %v1496, %v507
      %v1505 = vsub.f32 %v1463, %v1497
      %v1506 = vsub.f32 %v1464, %v1498
      %v1507 = vsub.f32 %v1465, %v1499
      %v1508 = vsub.f32 %v1466, %v1500
      %v1509 = vsub.f32 %v1467, %v1501
      %v1510 = vsub.f32 %v1468, %v1502
      %v1511 = vsub.f32 %v1469, %v1503
      %v1512 = vsub.f32 %v1470, %v1504
      %v1513 = vmul.f32 %v1505, %v1505
      %v1514 = vmul.f32 %v1506, %v1506
      %v1515 = vmul.f32 %v1507, %v1507
      %v1516 = vmul.f32 %v1508, %v1508
      %v1517 = vmul.f32 %v1509, %v1509
      %v1518 = vmul.f32 %v1510, %v1510
      %v1519 = vmul.f32 %v1511, %v1511
      %v1520 = vmul.f32 %v1512, %v1512
      %v1521 = vsel %vm482, %v1513, 0.0
      %1522 = vadd.xlane.f32.xlu0 %v1521
      %v1523 = vpop.xlane.xlu0 %1522
      %v1524 = vsel %vm482, %v1514, 0.0
      %1525 = vadd.xlane.f32.xlu0 %v1524
      %v1526 = vpop.xlane.xlu0 %1525
      %v1527 = vsel %vm482, %v1515, 0.0
      %1528 = vadd.xlane.f32.xlu0 %v1527
      %v1529 = vpop.xlane.xlu0 %1528
      %v1530 = vsel %vm482, %v1516, 0.0
      %1531 = vadd.xlane.f32.xlu0 %v1530
      %v1532 = vpop.xlane.xlu0 %1531
      %v1533 = vsel %vm482, %v1517, 0.0
      %1534 = vadd.xlane.f32.xlu0 %v1533
      %v1535 = vpop.xlane.xlu0 %1534
      %v1536 = vsel %vm482, %v1518, 0.0
      %1537 = vadd.xlane.f32.xlu0 %v1536
      %v1538 = vpop.xlane.xlu0 %1537
      %v1539 = vsel %vm482, %v1519, 0.0
      %1540 = vadd.xlane.f32.xlu0 %v1539
      %v1541 = vpop.xlane.xlu0 %1540
      %v1542 = vsel %vm482, %v1520, 0.0
      %1543 = vadd.xlane.f32.xlu0 %v1542
      %v1544 = vpop.xlane.xlu0 %1543
      %v1545 = vmul.f32 %v1523, %v507
      %v1546 = vmul.f32 %v1526, %v507
      %v1547 = vmul.f32 %v1529, %v507
      %v1548 = vmul.f32 %v1532, %v507
      %v1549 = vmul.f32 %v1535, %v507
      %v1550 = vmul.f32 %v1538, %v507
      %v1551 = vmul.f32 %v1541, %v507
      %v1552 = vmul.f32 %v1544, %v507
      %v1553 = vadd.f32 %v1545, 1e-05
      %v1554 = vadd.f32 %v1546, 1e-05
      %v1555 = vadd.f32 %v1547, 1e-05
      %v1556 = vadd.f32 %v1548, 1e-05
      %v1557 = vadd.f32 %v1549, 1e-05
      %v1558 = vadd.f32 %v1550, 1e-05
      %v1559 = vadd.f32 %v1551, 1e-05
      %v1560 = vadd.f32 %v1552, 1e-05
      %v1561 = vrsqrt.pop %v1553
      %v1562 = vrsqrt.pop %v1554
      %v1563 = vrsqrt.pop %v1555
      %v1564 = vrsqrt.pop %v1556
      %v1565 = vrsqrt.pop %v1557
      %v1566 = vrsqrt.pop %v1558
      %v1567 = vrsqrt.pop %v1559
      %v1568 = vrsqrt.pop %v1560
      %v1569 = vmul.f32 %v1505, %v1561
      %v1570 = vmul.f32 %v1506, %v1562
      %v1571 = vmul.f32 %v1507, %v1563
      %v1572 = vmul.f32 %v1508, %v1564
      %v1573 = vmul.f32 %v1509, %v1565
      %v1574 = vmul.f32 %v1510, %v1566
      %v1575 = vmul.f32 %v1511, %v1567
      %v1576 = vmul.f32 %v1512, %v1568
      %v1578 = vlaneseq
      %v1579 = vshrl.u32 %v1578, 7
      %v1580 = vsub.s32 0, %v1579
      %v1581 = vrot.slane %v1471, %v1580
      %v1583 = vmul.f32 %v1569, %v1581
      %v1584 = vmul.f32 %v1570, %v1581
      %v1585 = vmul.f32 %v1571, %v1581
      %v1586 = vmul.f32 %v1572, %v1581
      %v1587 = vmul.f32 %v1573, %v1581
      %v1588 = vmul.f32 %v1574, %v1581
      %v1589 = vmul.f32 %v1575, %v1581
      %v1590 = vmul.f32 %v1576, %v1581
      %v1592 = vlaneseq
      %v1593 = vshrl.u32 %v1592, 7
      %v1594 = vsub.s32 0, %v1593
      %v1595 = vrot.slane %v1472, %v1594
      %v1597 = vadd.f32 %v1583, %v1595
      %v1598 = vadd.f32 %v1584, %v1595
      %v1599 = vadd.f32 %v1585, %v1595
      %v1600 = vadd.f32 %v1586, %v1595
      %v1601 = vadd.f32 %v1587, %v1595
      %v1602 = vadd.f32 %v1588, %v1595
      %v1603 = vadd.f32 %v1589, %v1595
      %v1604 = vadd.f32 %v1590, %v1595
      %v1605 = vld [vmem:[%s10] sm:$0xf]
      %v1606 = vld [vmem:[%s10 + $0x4] sm:$0xf]
      %v1607 = vld [vmem:[%s10 + $0x8] sm:$0xf]
      %v1608 = vld [vmem:[%s10 + $0xc] sm:$0xf]
      %v1609 = vpack.c.bf16 %v1598, %v1597
      %v1610 = vpack.c.bf16 %v1600, %v1599
      %v1611 = vpack.c.bf16 %v1602, %v1601
      %v1612 = vpack.c.bf16 %v1604, %v1603
      %v1613 = vld [vmem:[%s11] sm:$0x1]
      %v1615 = vlaneseq
      %v1616 = vshrl.u32 %v1615, 7
      %v1617 = vsub.s32 0, %v1616
      %v1618 = vrot.slane %v1613, %v1617
      %v1624 = vunpack.c.l.b16 %v1605
      %v1625 = vunpack.c.l.b16 %v1606
      %v1626 = vunpack.c.l.b16 %v1607
      %v1627 = vunpack.c.l.b16 %v1608
      %v1628 = vpack.c.b16 %v1625, %v1624
      %v1629 = vpack.c.b16 %v1627, %v1626
      %v1633 = vsel %vm482, %v1609, 0
      %v1636 = vsel %vm482, %v1610, 0
      %v1639 = vsel %vm482, %v1611, 0
      %v1642 = vsel %vm482, %v1612, 0
      %1644 = vmatprep.subr.bf16.mxu0 0
      %1645 = vmatpush1.bf16.msra.mxu0 %v1628
      %1646 = vmatprep.subr.bf16.mxu0 0
      %1647 = vmatpush1.bf16.msra.mxu0 %v1629
      %1648 = vmatprep.subr.bf16.mxu0 0
      %1649 = vmatpush1.bf16.msra.mxu0 0
      %1650 = vmatprep.subr.bf16.mxu0 0
      %1651 = vmatpush1.bf16.msra.mxu0 0
      %1652 = vmatprep.subr.bf16.mxu0 0
      %1653 = vmatpush1.bf16.msra.mxu0 0
      %1654 = vmatprep.subr.bf16.mxu0 0
      %1655 = vmatpush1.bf16.msra.mxu0 0
      %1656 = vmatprep.subr.bf16.mxu0 0
      %1657 = vmatpush1.bf16.msra.mxu0 0
      %1658 = vmatprep.subr.bf16.mxu0 0
      %1659 = vmatpush1.bf16.msra.mxu0 0
      %1660 = vmatprep.subr.bf16.mxu0 0
      %1661 = vmatpush1.bf16.msra.mxu0 0
      %1662 = vmatprep.subr.bf16.mxu0 0
      %1663 = vmatpush1.bf16.msra.mxu0 0
      %1664 = vmatprep.subr.bf16.mxu0 0
      %1665 = vmatpush1.bf16.msra.mxu0 0
      %1666 = vmatprep.subr.bf16.mxu0 0
      %1667 = vmatpush1.bf16.msra.mxu0 0
      %1668 = vmatprep.subr.bf16.mxu0 0
      %1669 = vmatpush1.bf16.msra.mxu0 0
      %1670 = vmatprep.subr.bf16.mxu0 0
      %1671 = vmatpush1.bf16.msra.mxu0 0
      %1672 = vmatprep.subr.bf16.mxu0 0
      %1673 = vmatpush1.bf16.msra.mxu0 0
      %1674 = vmatprep.subr.bf16.mxu0 0
      %1675 = vmatpush1.bf16.msra.mxu0 0
      %1676 = vmatprep.mubr.bf16.mxu0 0
      %1677 = vmatmul.mubr.bf16.gmra.mrb[0].mxu0 %v1633
      %v1678 = vpop.f32.mrb[0].mxu0
      %v1679 = vadd.f32 %v1618, %v1678
      %v1680 = vpop.f32.mrb[0].mxu0
      %v1681 = vpop.f32.mrb[0].mxu0
      %v1682 = vadd.f32 %v1618, %v1681
      %v1683 = vpop.f32.mrb[0].mxu0
      %1684 = vmatprep.mubr.bf16.mxu0 0
      %1685 = vmatmul.mubr.bf16.gmra.mrb[0].mxu0 %v1636
      %v1686 = vpop.f32.mrb[0].mxu0
      %v1687 = vadd.f32 %v1618, %v1686
      %v1688 = vpop.f32.mrb[0].mxu0
      %v1689 = vpop.f32.mrb[0].mxu0
      %v1690 = vadd.f32 %v1618, %v1689
      %v1691 = vpop.f32.mrb[0].mxu0
      %1692 = vmatprep.mubr.bf16.mxu0 0
      %1693 = vmatmul.mubr.bf16.gmra.mrb[0].mxu0 %v1639
      %v1694 = vpop.f32.mrb[0].mxu0
      %v1695 = vadd.f32 %v1618, %v1694
      %v1696 = vpop.f32.mrb[0].mxu0
      %v1697 = vpop.f32.mrb[0].mxu0
      %v1698 = vadd.f32 %v1618, %v1697
      %v1699 = vpop.f32.mrb[0].mxu0
      %1700 = vmatprep.mubr.bf16.mxu0 0
      %1701 = vmatmul.mubr.bf16.gmra.mrb[0].mxu0 %v1642
      %v1702 = vpop.f32.mrb[0].mxu0
      %v1703 = vadd.f32 %v1618, %v1702
      %v1704 = vpop.f32.mrb[0].mxu0
      %v1705 = vpop.f32.mrb[0].mxu0
      %v1706 = vadd.f32 %v1618, %v1705
      %v1707 = vpop.f32.mrb[0].mxu0
      %1708 = vdwg.mxu0
      %v1709 = vmul.f32 %v1679, 0.5
      %v1710 = vmul.f32 %v1682, 0.5
      %v1711 = vmul.f32 %v1687, 0.5
      %v1712 = vmul.f32 %v1690, 0.5
      %v1713 = vmul.f32 %v1695, 0.5
      %v1714 = vmul.f32 %v1698, 0.5
      %v1715 = vmul.f32 %v1703, 0.5
      %v1716 = vmul.f32 %v1706, 0.5
      %v1717 = vmul.f32 %v1679, 0.70710677
      %v1718 = vmul.f32 %v1682, 0.70710677
      %v1719 = vmul.f32 %v1687, 0.70710677
      %v1720 = vmul.f32 %v1690, 0.70710677
      %v1721 = vmul.f32 %v1695, 0.70710677
      %v1722 = vmul.f32 %v1698, 0.70710677
      %v1723 = vmul.f32 %v1703, 0.70710677
      %v1724 = vmul.f32 %v1706, 0.70710677
      %v1725 = vand.u32 2147483647, %v1717
      %v1726 = vand.u32 2147483647, %v1718
      %v1727 = vand.u32 2147483647, %v1719
      %v1728 = vand.u32 2147483647, %v1720
      %v1729 = vand.u32 2147483647, %v1721
      %v1730 = vand.u32 2147483647, %v1722
      %v1731 = vand.u32 2147483647, %v1723
      %v1732 = vand.u32 2147483647, %v1724
      %v1733 = vmul.f32 %v1725, 0.3275911
      %v1734 = vmul.f32 %v1726, 0.3275911
      %v1735 = vmul.f32 %v1727, 0.3275911
      %v1736 = vmul.f32 %v1728, 0.3275911
      %v1737 = vmul.f32 %v1729, 0.3275911
      %v1738 = vmul.f32 %v1730, 0.3275911
      %v1739 = vmul.f32 %v1731, 0.3275911
      %v1740 = vmul.f32 %v1732, 0.3275911
      %v1741 = vadd.f32 %v1733, 1.0
      %v1742 = vadd.f32 %v1734, 1.0
      %v1743 = vadd.f32 %v1735, 1.0
      %v1744 = vadd.f32 %v1736, 1.0
      %v1745 = vadd.f32 %v1737, 1.0
      %v1746 = vadd.f32 %v1738, 1.0
      %v1747 = vadd.f32 %v1739, 1.0
      %v1748 = vadd.f32 %v1740, 1.0
      %v1749 = vrcp.pop %v1741
      %v1750 = vmul.f32 1.0, %v1749
      %v1751 = vrcp.pop %v1742
      %v1752 = vmul.f32 1.0, %v1751
      %v1753 = vrcp.pop %v1743
      %v1754 = vmul.f32 1.0, %v1753
      %v1755 = vrcp.pop %v1744
      %v1756 = vmul.f32 1.0, %v1755
      %v1757 = vrcp.pop %v1745
      %v1758 = vmul.f32 1.0, %v1757
      %v1759 = vrcp.pop %v1746
      %v1760 = vmul.f32 1.0, %v1759
      %v1761 = vrcp.pop %v1747
      %v1762 = vmul.f32 1.0, %v1761
      %v1763 = vrcp.pop %v1748
      %v1764 = vmul.f32 1.0, %v1763
      %v1765 = vmul.f32 %v1750, 1.0614054
      %v1766 = vmul.f32 %v1752, 1.0614054
      %v1767 = vmul.f32 %v1754, 1.0614054
      %v1768 = vmul.f32 %v1756, 1.0614054
      %v1769 = vmul.f32 %v1758, 1.0614054
      %v1770 = vmul.f32 %v1760, 1.0614054
      %v1771 = vmul.f32 %v1762, 1.0614054
      %v1772 = vmul.f32 %v1764, 1.0614054
      %v1773 = vadd.f32 %v1765, -1.4531521
      %v1774 = vadd.f32 %v1766, -1.4531521
      %v1775 = vadd.f32 %v1767, -1.4531521
      %v1776 = vadd.f32 %v1768, -1.4531521
      %v1777 = vadd.f32 %v1769, -1.4531521
      %v1778 = vadd.f32 %v1770, -1.4531521
      %v1779 = vadd.f32 %v1771, -1.4531521
      %v1780 = vadd.f32 %v1772, -1.4531521
      %v1781 = vmul.f32 %v1750, %v1773
      %v1782 = vmul.f32 %v1752, %v1774
      %v1783 = vmul.f32 %v1754, %v1775
      %v1784 = vmul.f32 %v1756, %v1776
      %v1785 = vmul.f32 %v1758, %v1777
      %v1786 = vmul.f32 %v1760, %v1778
      %v1787 = vmul.f32 %v1762, %v1779
      %v1788 = vmul.f32 %v1764, %v1780
      %v1789 = vadd.f32 %v1781, 1.4214138
      %v1790 = vadd.f32 %v1782, 1.4214138
      %v1791 = vadd.f32 %v1783, 1.4214138
      %v1792 = vadd.f32 %v1784, 1.4214138
      %v1793 = vadd.f32 %v1785, 1.4214138
      %v1794 = vadd.f32 %v1786, 1.4214138
      %v1795 = vadd.f32 %v1787, 1.4214138
      %v1796 = vadd.f32 %v1788, 1.4214138
      %v1797 = vmul.f32 %v1750, %v1789
      %v1798 = vmul.f32 %v1752, %v1790
      %v1799 = vmul.f32 %v1754, %v1791
      %v1800 = vmul.f32 %v1756, %v1792
      %v1801 = vmul.f32 %v1758, %v1793
      %v1802 = vmul.f32 %v1760, %v1794
      %v1803 = vmul.f32 %v1762, %v1795
      %v1804 = vmul.f32 %v1764, %v1796
      %v1805 = vadd.f32 %v1797, -0.28449672
      %v1806 = vadd.f32 %v1798, -0.28449672
      %v1807 = vadd.f32 %v1799, -0.28449672
      %v1808 = vadd.f32 %v1800, -0.28449672
      %v1809 = vadd.f32 %v1801, -0.28449672
      %v1810 = vadd.f32 %v1802, -0.28449672
      %v1811 = vadd.f32 %v1803, -0.28449672
      %v1812 = vadd.f32 %v1804, -0.28449672
      %v1813 = vmul.f32 %v1750, %v1805
      %v1814 = vmul.f32 %v1752, %v1806
      %v1815 = vmul.f32 %v1754, %v1807
      %v1816 = vmul.f32 %v1756, %v1808
      %v1817 = vmul.f32 %v1758, %v1809
      %v1818 = vmul.f32 %v1760, %v1810
      %v1819 = vmul.f32 %v1762, %v1811
      %v1820 = vmul.f32 %v1764, %v1812
      %v1821 = vadd.f32 %v1813, 0.2548296
      %v1822 = vadd.f32 %v1814, 0.2548296
      %v1823 = vadd.f32 %v1815, 0.2548296
      %v1824 = vadd.f32 %v1816, 0.2548296
      %v1825 = vadd.f32 %v1817, 0.2548296
      %v1826 = vadd.f32 %v1818, 0.2548296
      %v1827 = vadd.f32 %v1819, 0.2548296
      %v1828 = vadd.f32 %v1820, 0.2548296
      %v1829 = vmul.f32 %v1750, %v1821
      %v1830 = vmul.f32 %v1752, %v1822
      %v1831 = vmul.f32 %v1754, %v1823
      %v1832 = vmul.f32 %v1756, %v1824
      %v1833 = vmul.f32 %v1758, %v1825
      %v1834 = vmul.f32 %v1760, %v1826
      %v1835 = vmul.f32 %v1762, %v1827
      %v1836 = vmul.f32 %v1764, %v1828
      %v1837 = vmul.f32 %v1725, %v1725
      %v1838 = vmul.f32 %v1726, %v1726
      %v1839 = vmul.f32 %v1727, %v1727
      %v1840 = vmul.f32 %v1728, %v1728
      %v1841 = vmul.f32 %v1729, %v1729
      %v1842 = vmul.f32 %v1730, %v1730
      %v1843 = vmul.f32 %v1731, %v1731
      %v1844 = vmul.f32 %v1732, %v1732
      %v1845 = vsub.f32 0.0, %v1837
      %v1846 = vsub.f32 0.0, %v1838
      %v1847 = vsub.f32 0.0, %v1839
      %v1848 = vsub.f32 0.0, %v1840
      %v1849 = vsub.f32 0.0, %v1841
      %v1850 = vsub.f32 0.0, %v1842
      %v1851 = vsub.f32 0.0, %v1843
      %v1852 = vsub.f32 0.0, %v1844
      %v1853 = vmul.f32 %v1845, 1.442695
      %v1854 = vpow.pop %v1853
      %v1855 = vmul.f32 %v1846, 1.442695
      %v1856 = vpow.pop %v1855
      %v1857 = vmul.f32 %v1847, 1.442695
      %v1858 = vpow.pop %v1857
      %v1859 = vmul.f32 %v1848, 1.442695
      %v1860 = vpow.pop %v1859
      %v1861 = vmul.f32 %v1849, 1.442695
      %v1862 = vpow.pop %v1861
      %v1863 = vmul.f32 %v1850, 1.442695
      %v1864 = vpow.pop %v1863
      %v1865 = vmul.f32 %v1851, 1.442695
      %v1866 = vpow.pop %v1865
      %v1867 = vmul.f32 %v1852, 1.442695
      %v1868 = vpow.pop %v1867
      %v1869 = vmul.f32 %v1829, %v1854
      %v1870 = vmul.f32 %v1830, %v1856
      %v1871 = vmul.f32 %v1831, %v1858
      %v1872 = vmul.f32 %v1832, %v1860
      %v1873 = vmul.f32 %v1833, %v1862
      %v1874 = vmul.f32 %v1834, %v1864
      %v1875 = vmul.f32 %v1835, %v1866
      %v1876 = vmul.f32 %v1836, %v1868
      %v1877 = vsub.f32 1.0, %v1869
      %v1878 = vsub.f32 1.0, %v1870
      %v1879 = vsub.f32 1.0, %v1871
      %v1880 = vsub.f32 1.0, %v1872
      %v1881 = vsub.f32 1.0, %v1873
      %v1882 = vsub.f32 1.0, %v1874
      %v1883 = vsub.f32 1.0, %v1875
      %v1884 = vsub.f32 1.0, %v1876
      %vm1885 = vcmp.lt.f32.partialorder %v1717, 0.0
      %vm1886 = vcmp.lt.f32.partialorder %v1718, 0.0
      %vm1887 = vcmp.lt.f32.partialorder %v1719, 0.0
      %vm1888 = vcmp.lt.f32.partialorder %v1720, 0.0
      %vm1889 = vcmp.lt.f32.partialorder %v1721, 0.0
      %vm1890 = vcmp.lt.f32.partialorder %v1722, 0.0
      %vm1891 = vcmp.lt.f32.partialorder %v1723, 0.0
      %vm1892 = vcmp.lt.f32.partialorder %v1724, 0.0
      %v1893 = vsub.f32 0.0, %v1877
      %v1894 = vsub.f32 0.0, %v1878
      %v1895 = vsub.f32 0.0, %v1879
      %v1896 = vsub.f32 0.0, %v1880
      %v1897 = vsub.f32 0.0, %v1881
      %v1898 = vsub.f32 0.0, %v1882
      %v1899 = vsub.f32 0.0, %v1883
      %v1900 = vsub.f32 0.0, %v1884
      %v1901 = vsel %vm1885, %v1893, %v1877
      %v1902 = vsel %vm1886, %v1894, %v1878
      %v1903 = vsel %vm1887, %v1895, %v1879
      %v1904 = vsel %vm1888, %v1896, %v1880
      %v1905 = vsel %vm1889, %v1897, %v1881
      %v1906 = vsel %vm1890, %v1898, %v1882
      %v1907 = vsel %vm1891, %v1899, %v1883
      %v1908 = vsel %vm1892, %v1900, %v1884
      %v1909 = vadd.f32 %v1901, 1.0
      %v1910 = vadd.f32 %v1902, 1.0
      %v1911 = vadd.f32 %v1903, 1.0
      %v1912 = vadd.f32 %v1904, 1.0
      %v1913 = vadd.f32 %v1905, 1.0
      %v1914 = vadd.f32 %v1906, 1.0
      %v1915 = vadd.f32 %v1907, 1.0
      %v1916 = vadd.f32 %v1908, 1.0
      %v1917 = vmul.f32 %v1709, %v1909
      %v1918 = vmul.f32 %v1710, %v1910
      %v1919 = vmul.f32 %v1711, %v1911
      %v1920 = vmul.f32 %v1712, %v1912
      %v1921 = vmul.f32 %v1713, %v1913
      %v1922 = vmul.f32 %v1714, %v1914
      %v1923 = vmul.f32 %v1715, %v1915
      %v1924 = vmul.f32 %v1716, %v1916
      %v1925 = vld [vmem:[%s12] sm:$0xf]
      %v1926 = vld [vmem:[%s12 + $0x4] sm:$0xf]
      %v1927 = vld [vmem:[%s12 + $0x8] sm:$0xf]
      %v1928 = vld [vmem:[%s12 + $0xc] sm:$0xf]
      %v1929 = vld [vmem:[%s12 + $0x10] sm:$0xf]
      %v1930 = vld [vmem:[%s12 + $0x14] sm:$0xf]
      %v1931 = vld [vmem:[%s12 + $0x18] sm:$0xf]
      %v1932 = vld [vmem:[%s12 + $0x1c] sm:$0xf]
      %v1933 = vld [vmem:[%s12 + $0x20] sm:$0xf]
      %v1934 = vld [vmem:[%s12 + $0x24] sm:$0xf]
      %v1935 = vld [vmem:[%s12 + $0x28] sm:$0xf]
      %v1936 = vld [vmem:[%s12 + $0x2c] sm:$0xf]
      %v1937 = vld [vmem:[%s12 + $0x30] sm:$0xf]
      %v1938 = vld [vmem:[%s12 + $0x34] sm:$0xf]
      %v1939 = vld [vmem:[%s12 + $0x38] sm:$0xf]
      %v1940 = vld [vmem:[%s12 + $0x3c] sm:$0xf]
      %v1941 = vpack.c.bf16 %v1918, %v1917
      %v1942 = vpack.c.bf16 %v1920, %v1919
      %v1943 = vpack.c.bf16 %v1922, %v1921
      %v1944 = vpack.c.bf16 %v1924, %v1923
      %v1961 = vunpack.c.l.b16 %v1925
      %v1962 = vunpack.c.l.b16 %v1926
      %v1963 = vunpack.c.l.b16 %v1927
      %v1964 = vunpack.c.l.b16 %v1928
      %v1965 = vunpack.c.l.b16 %v1929
      %v1966 = vunpack.c.l.b16 %v1930
      %v1967 = vunpack.c.l.b16 %v1931
      %v1968 = vunpack.c.l.b16 %v1932
      %v1969 = vunpack.c.l.b16 %v1933
      %v1970 = vunpack.c.l.b16 %v1934
      %v1971 = vunpack.c.l.b16 %v1935
      %v1972 = vunpack.c.l.b16 %v1936
      %v1973 = vunpack.c.l.b16 %v1937
      %v1974 = vunpack.c.l.b16 %v1938
      %v1975 = vunpack.c.l.b16 %v1939
      %v1976 = vunpack.c.l.b16 %v1940
      %v1977 = vpack.c.b16 %v1962, %v1961
      %v1978 = vpack.c.b16 %v1964, %v1963
      %v1979 = vpack.c.b16 %v1966, %v1965
      %v1980 = vpack.c.b16 %v1968, %v1967
      %v1981 = vpack.c.b16 %v1970, %v1969
      %v1982 = vpack.c.b16 %v1972, %v1971
      %v1983 = vpack.c.b16 %v1974, %v1973
      %v1984 = vpack.c.b16 %v1976, %v1975
      %1993 = vmatprep.subr.bf16.mxu0 0
      %1994 = vmatpush1.bf16.msra.mxu0 %v1977
      %1995 = vmatprep.subr.bf16.mxu0 0
      %1996 = vmatpush1.bf16.msra.mxu0 %v1978
      %1997 = vmatprep.subr.bf16.mxu0 0
      %1998 = vmatpush1.bf16.msra.mxu0 %v1979
      %1999 = vmatprep.subr.bf16.mxu0 0
      %2000 = vmatpush1.bf16.msra.mxu0 %v1980
      %2001 = vmatprep.subr.bf16.mxu0 0
      %2002 = vmatpush1.bf16.msra.mxu0 %v1981
      %2003 = vmatprep.subr.bf16.mxu0 0
      %2004 = vmatpush1.bf16.msra.mxu0 %v1982
      %2005 = vmatprep.subr.bf16.mxu0 0
      %2006 = vmatpush1.bf16.msra.mxu0 %v1983
      %2007 = vmatprep.subr.bf16.mxu0 0
      %2008 = vmatpush1.bf16.msra.mxu0 %v1984
      %2009 = vmatprep.subr.bf16.mxu0 0
      %2010 = vmatpush1.bf16.msra.mxu0 0
      %2011 = vmatprep.subr.bf16.mxu0 0
      %2012 = vmatpush1.bf16.msra.mxu0 0
      %2013 = vmatprep.subr.bf16.mxu0 0
      %2014 = vmatpush1.bf16.msra.mxu0 0
      %2015 = vmatprep.subr.bf16.mxu0 0
      %2016 = vmatpush1.bf16.msra.mxu0 0
      %2017 = vmatprep.subr.bf16.mxu0 0
      %2018 = vmatpush1.bf16.msra.mxu0 0
      %2019 = vmatprep.subr.bf16.mxu0 0
      %2020 = vmatpush1.bf16.msra.mxu0 0
      %2021 = vmatprep.subr.bf16.mxu0 0
      %2022 = vmatpush1.bf16.msra.mxu0 0
      %2023 = vmatprep.subr.bf16.mxu0 0
      %2024 = vmatpush1.bf16.msra.mxu0 0
      %2025 = vmatprep.mubr.bf16.mxu0 0
      %2026 = vmatmul.mubr.bf16.gmra.mrb[0].mxu0 %v1941
      %v2027 = vpop.f32.mrb[0].mxu0
      %v2028 = vadd.f32 0.0, %v2027
      %v2029 = vpop.f32.mrb[0].mxu0
      %v2030 = vpop.f32.mrb[0].mxu0
      %v2031 = vadd.f32 0.0, %v2030
      %v2032 = vpop.f32.mrb[0].mxu0
      %2033 = vmatprep.mubr.bf16.mxu0 0
      %2034 = vmatmul.mubr.bf16.gmra.mrb[0].mxu0 %v1942
      %v2035 = vpop.f32.mrb[0].mxu0
      %v2036 = vadd.f32 0.0, %v2035
      %v2037 = vpop.f32.mrb[0].mxu0
      %v2038 = vpop.f32.mrb[0].mxu0
      %v2039 = vadd.f32 0.0, %v2038
      %v2040 = vpop.f32.mrb[0].mxu0
      %2041 = vmatprep.mubr.bf16.mxu0 0
      %2042 = vmatmul.mubr.bf16.gmra.mrb[0].mxu0 %v1943
      %v2043 = vpop.f32.mrb[0].mxu0
      %v2044 = vadd.f32 0.0, %v2043
      %v2045 = vpop.f32.mrb[0].mxu0
      %v2046 = vpop.f32.mrb[0].mxu0
      %v2047 = vadd.f32 0.0, %v2046
      %v2048 = vpop.f32.mrb[0].mxu0
      %2049 = vmatprep.mubr.bf16.mxu0 0
      %2050 = vmatmul.mubr.bf16.gmra.mrb[0].mxu0 %v1944
      %v2051 = vpop.f32.mrb[0].mxu0
      %v2052 = vadd.f32 0.0, %v2051
      %v2053 = vpop.f32.mrb[0].mxu0
      %v2054 = vpop.f32.mrb[0].mxu0
      %v2055 = vadd.f32 0.0, %v2054
      %v2056 = vpop.f32.mrb[0].mxu0
      %2057 = vdwg.mxu0
      %v2058 = vadd.f32 %v1463, %v2028
      %v2059 = vadd.f32 %v1464, %v2031
      %v2060 = vadd.f32 %v1465, %v2036
      %v2061 = vadd.f32 %v1466, %v2039
      %v2062 = vadd.f32 %v1467, %v2044
      %v2063 = vadd.f32 %v1468, %v2047
      %v2064 = vadd.f32 %v1469, %v2052
      %v2065 = vadd.f32 %v1470, %v2055
      %v2066 = vld [vmem:[%s13] sm:$0x1]
      %v2068 = vlaneseq
      %v2069 = vshrl.u32 %v2068, 7
      %v2070 = vsub.s32 0, %v2069
      %v2071 = vrot.slane %v2066, %v2070
      %v2073 = vadd.f32 %v2058, %v2071
      %v2074 = vadd.f32 %v2059, %v2071
      %v2075 = vadd.f32 %v2060, %v2071
      %v2076 = vadd.f32 %v2061, %v2071
      %v2077 = vadd.f32 %v2062, %v2071
      %v2078 = vadd.f32 %v2063, %v2071
      %v2079 = vadd.f32 %v2064, %v2071
      %v2080 = vadd.f32 %v2065, %v2071
      %2081 = vst.msk [vmem:[%s469] sm:$0xff] %vm482, %v2073
      %2082 = vst.msk [vmem:[%s469 + $0x8] sm:$0xff] %vm482, %v2074
      %2083 = vst.msk [vmem:[%s469 + $0x10] sm:$0xff] %vm482, %v2075
      %2084 = vst.msk [vmem:[%s469 + $0x18] sm:$0xff] %vm482, %v2076
      %2085 = vst.msk [vmem:[%s469 + $0x20] sm:$0xff] %vm482, %v2077
      %2086 = vst.msk [vmem:[%s469 + $0x28] sm:$0xff] %vm482, %v2078
      %2087 = vst.msk [vmem:[%s469 + $0x30] sm:$0xff] %vm482, %v2079
      %2088 = vst.msk [vmem:[%s469 + $0x38] sm:$0xff] %vm482, %v2080
      %s2089 = smul.u32 8, %s25
      %p2090 = scmp.lt.s32.totalorder %s2089, 15
      %s2091 = scalar_select %p2090, %s2089, 15
      %s2092 = smul.addr %s2091, 8
      %s2093 = scalar_lea.vmem %s14, %s2092
      // Predicated region
      $region77: #{swin_forward.9} parent=75 // pred_check
        %p2094 = pneg %p342
      $region78: #{swin_forward.9} parent=75 // pred_check_branch
        %2096 = sbr.rel (%p2094) target = $region80
      $region79: #{swin_forward.9} parent=75 // pred_region
        %s2097 = smul.u32 8, %s25
      $region80: #{swin_forward.9} parent=75 // pred_fallthru
        _
    $region76: #{swin_forward.9} parent=5 // pred_fallthru
      _
    %p2098 = scmp.le.s32.totalorder 2, %s20
    // Predicated region
    $region81: #{swin_forward.9} parent=5 // pred_check
      %p2099 = pneg %p2098
    $region82: #{swin_forward.9} parent=5 // pred_check_branch
      %2101 = sbr.rel (%p2099) target = $region84
    $region83: #{swin_forward.9} parent=5 // pred_region
      %s2102 = ssub.s32 %s20, 2
      // Predicated region
      $region85: #{swin_forward.9} parent=83 // pred_check
        %p2103 = pneg %p348
      $region86: #{swin_forward.9} parent=83 // pred_check_branch
        %2105 = sbr.rel (%p2103) target = $region88
      $region87: #{swin_forward.9} parent=83 // pred_region
        %s2106 = smul.u32 8, %s26
        %p2107 = scmp.lt.s32.totalorder %s2106, 15
        %s2108 = scalar_select %p2107, %s2106, 15
        %s2109 = smul.addr %s2108, 8
        %s2110 = scalar_lea.vmem %s14, %s2109
      $region88: #{swin_forward.9} parent=83 // pred_fallthru
        _
    $region84: #{swin_forward.9} parent=5 // pred_fallthru
      _
  $region6: #{swin_forward.9} parent=0 // loop_footer
    %s24 = sadd.s32 1, %s20
  $region7: #{swin_forward.9} parent=0 // loop_footer_branch
    %19 = sbr.rel target = $region3
  $region8: #{swin_forward.9} parent=0 // loop_exit
    _

// kernel: swin_forward.15
$region0: #{swin_forward.15}
  #allocation0 [shape = 'u32[]', space=smem, size = 0x4, offset = 0x4, fixed_abs, tag = 'smem constant byte address 0x4 - core index']
  #allocation1 [shape = 'u32[144,128]{1,0:T(1,128)}', space=vmem, size = 0x12000, scoped, tag = 'internal scratch']
  %s0 = inlined_call_operand.vmem [shape: f32[32,64], index: 0, kind: input, shape index: {}]
  %s1 = inlined_call_operand.vmem [shape: f32[1,64], index: 1, kind: input, shape index: {}]
  %s2 = inlined_call_operand.vmem [shape: f32[1,64], index: 2, kind: input, shape index: {}]
  %s3 = inlined_call_operand.hbm [shape: f32[32,64], index: 3, kind: output, shape index: {}]
  %s4 = sld [smem:[#allocation0]]
  $region45: #{swin_forward.15} parent=0
    _
  %s6 = ssub.s32 1, %s4
  %s7 = scalar_select 0, %s6, %s4
  $region1: #{swin_forward.15} parent=0
    #allocation2 [shape = 'u8[16384]{0}', space=vmem, size = 0x4000, scoped, tag = 'output window, operand 0']
    #allocation3 [shape = 's32[2]{0}', space=sflag, size = 0x8, scoped, tag = 'scoped memory for swin_forward.15']
    %8 = vsyncpa [#allocation3], 0
    %s9 = scalar_lea.sflag [#allocation3], 1
    %10 = vsyncpa %s9, 0
    loop: start=0, step=1, limit=4
    $region2: #{swin_forward.15} parent=1 // loop_pre_header
      _
    $region3: #{swin_forward.15} parent=1 // loop_header
      %s12 = sphi 0, %s16
      %p13 = scmp.ge.s32.totalorder %s12, 4
      %s22 = sphi 0, %s24
      %s25 = sphi 0, %s22
      %s26 = sphi 0, %s25
      %s42 = sphi 0, %s26
      %s46 = sphi 0, %s46
      %s48 = sphi 0, %s46
      %s49 = sphi 0, %s48
      %s63 = sphi 0, %s49
      %s67 = sphi 0, %s67
      %s69 = sphi 0, %s67
      %s70 = sphi 0, %s69
      %s84 = sphi 0, %s70
      %s90 = sphi 0, %s92
      %s93 = sphi 0, %s90
      %s94 = sphi 0, %s93
      %s110 = sphi 0, %s94
    $region4: #{swin_forward.15} parent=1 // loop_header_branch
      %15 = sbr.rel (%p13) target = $region8
    $region5: #{swin_forward.15} parent=1 // loop_body
      %s17 = ssub.s32 %s12, 1
      %s18 = ssub.s32 %s12, 2
      %s19 = sadd.s32 %s12, 1
      %s20 = ssub.s32 %s12, %s19
      %p21 = scmp.eq.s32.totalorder %s20, 0
      %s23 = sadd.s32 %s22, 1
      %s24 = scalar_select %p21, %s22, %s23
      %p27 = pneg %p21
      %p28 = scmp.eq.s32.totalorder %s12, 1
      %p29 = por %p27, %p28
      %p30 = scmp.ne.s32.totalorder %s22, %s25
      %p31 = scmp.eq.s32.totalorder %s12, 0
      %p32 = por %p30, %p31
      %p33 = scmp.ne.s32.totalorder %s22, %s25
      %p34 = scmp.eq.s32.totalorder %s17, 1
      %p35 = por %p33, %p34
      %p36 = scmp.ne.s32.totalorder %s25, %s26
      %p37 = scmp.eq.s32.totalorder %s17, 0
      %p38 = por %p36, %p37
      %p39 = scmp.ne.s32.totalorder %s25, %s26
      %p40 = scmp.eq.s32.totalorder %s18, 1
      %p41 = por %p39, %p40
      %p43 = scmp.ne.s32.totalorder %s26, %s42
      %p44 = scmp.eq.s32.totalorder %s18, 0
      %p45 = por %p43, %p44
      %s47 = sadd.s32 %s46, 1
      %p50 = scmp.eq.s32.totalorder %s12, 1
      %p51 = scmp.ne.s32.totalorder %s46, %s48
      %p52 = scmp.eq.s32.totalorder %s12, 0
      %p53 = por %p51, %p52
      %p54 = scmp.ne.s32.totalorder %s46, %s48
      %p55 = scmp.eq.s32.totalorder %s17, 1
      %p56 = por %p54, %p55
      %p57 = scmp.ne.s32.totalorder %s48, %s49
      %p58 = scmp.eq.s32.totalorder %s17, 0
      %p59 = por %p57, %p58
      %p60 = scmp.ne.s32.totalorder %s48, %s49
      %p61 = scmp.eq.s32.totalorder %s18, 1
      %p62 = por %p60, %p61
      %p64 = scmp.ne.s32.totalorder %s49, %s63
      %p65 = scmp.eq.s32.totalorder %s18, 0
      %p66 = por %p64, %p65
      %s68 = sadd.s32 %s67, 1
      %p71 = scmp.eq.s32.totalorder %s12, 1
      %p72 = scmp.ne.s32.totalorder %s67, %s69
      %p73 = scmp.eq.s32.totalorder %s12, 0
      %p74 = por %p72, %p73
      %p75 = scmp.ne.s32.totalorder %s67, %s69
      %p76 = scmp.eq.s32.totalorder %s17, 1
      %p77 = por %p75, %p76
      %p78 = scmp.ne.s32.totalorder %s69, %s70
      %p79 = scmp.eq.s32.totalorder %s17, 0
      %p80 = por %p78, %p79
      %p81 = scmp.ne.s32.totalorder %s69, %s70
      %p82 = scmp.eq.s32.totalorder %s18, 1
      %p83 = por %p81, %p82
      %p85 = scmp.ne.s32.totalorder %s70, %s84
      %p86 = scmp.eq.s32.totalorder %s18, 0
      %p87 = por %p85, %p86
      %s88 = ssub.s32 %s12, %s19
      %p89 = scmp.eq.s32.totalorder %s88, 0
      %s91 = sadd.s32 %s90, 1
      %s92 = scalar_select %p89, %s90, %s91
      %p95 = pneg %p89
      %p96 = scmp.eq.s32.totalorder %s12, 1
      %p97 = por %p95, %p96
      %p98 = scmp.ne.s32.totalorder %s90, %s93
      %p99 = scmp.eq.s32.totalorder %s12, 0
      %p100 = por %p98, %p99
      %p101 = scmp.ne.s32.totalorder %s90, %s93
      %p102 = scmp.eq.s32.totalorder %s17, 1
      %p103 = por %p101, %p102
      %p104 = scmp.ne.s32.totalorder %s93, %s94
      %p105 = scmp.eq.s32.totalorder %s17, 0
      %p106 = por %p104, %p105
      %p107 = scmp.ne.s32.totalorder %s93, %s94
      %p108 = scmp.eq.s32.totalorder %s18, 1
      %p109 = por %p107, %p108
      %p111 = scmp.ne.s32.totalorder %s94, %s110
      %p112 = scmp.eq.s32.totalorder %s18, 0
      %p113 = por %p111, %p112
      %p114 = scmp.le.s32.totalorder 1, %s12
      %p115 = scmp.lt.s32.totalorder %s12, 3
      %p116 = pnand %p114, %p115
      %p117 = pneg %p116
      // Predicated region
      $region9: #{swin_forward.15} parent=5 // pred_check
        _
      $region10: #{swin_forward.15} parent=5 // pred_check_branch
        %119 = sbr.rel (%p116) target = $region12
      $region11: #{swin_forward.15} parent=5 // pred_region
        %s120 = ssub.s32 %s12, 1
        // Predicated region
        $region13: #{swin_forward.15} parent=11 // pred_check
          %p121 = pneg %p59
        $region14: #{swin_forward.15} parent=11 // pred_check_branch
          %123 = sbr.rel (%p121) target = $region16
        $region15: #{swin_forward.15} parent=11 // pred_region
          _
        $region16: #{swin_forward.15} parent=11 // pred_fallthru
          _
        // Predicated region
        $region17: #{swin_forward.15} parent=11 // pred_check
          %p124 = pneg %p80
        $region18: #{swin_forward.15} parent=11 // pred_check_branch
          %126 = sbr.rel (%p124) target = $region20
        $region19: #{swin_forward.15} parent=11 // pred_region
          _
        $region20: #{swin_forward.15} parent=11 // pred_fallthru
          _
      $region12: #{swin_forward.15} parent=5 // pred_fallthru
        _
      %p127 = scmp.lt.s32.totalorder %s12, 2
      // Predicated region
      $region21: #{swin_forward.15} parent=5 // pred_check
        %p128 = pneg %p127
      $region22: #{swin_forward.15} parent=5 // pred_check_branch
        %130 = sbr.rel (%p128) target = $region24
      $region23: #{swin_forward.15} parent=5 // pred_region
        // Predicated region
        $region25: #{swin_forward.15} parent=23 // pred_check
          %p131 = pneg %p32
        $region26: #{swin_forward.15} parent=23 // pred_check_branch
          %133 = sbr.rel (%p131) target = $region28
        $region27: #{swin_forward.15} parent=23 // pred_region
          %s134 = smul.u32 2, %s12
          %p135 = scmp.lt.s32.totalorder %s134, 3
          %s136 = scalar_select %p135, %s134, 3
          %s137 = smul.addr %s136, 8
          %s138 = scalar_lea.vmem %s0, %s137
          %s139 = smul.u32 2, %s12
        $region28: #{swin_forward.15} parent=23 // pred_fallthru
          _
      $region24: #{swin_forward.15} parent=5 // pred_fallthru
        _
      %p140 = scmp.le.s32.totalorder 1, %s12
      %p141 = scmp.lt.s32.totalorder %s12, 3
      %p142 = pnand %p140, %p141
      %p143 = pneg %p142
      // Predicated region
      $region29: #{swin_forward.15} parent=5 // pred_check
        _
      $region30: #{swin_forward.15} parent=5 // pred_check_branch
        %145 = sbr.rel (%p142) target = $region32
      $region31: #{swin_forward.15} parent=5 // pred_region
        %s146 = ssub.s32 %s12, 1
        %s147 = smul.u32 2, %s17
        %p148 = scmp.lt.s32.totalorder %s147, 3
        %s149 = scalar_select %p148, %s147, 3
        %s150 = smul.addr %s149, 8
        %s151 = scalar_lea.vmem %s0, %s150
        %p152 = pneg %p38
        %p153 = pneg %p35
        %p154 = pneg %p59
        %p155 = pneg %p56
        %p156 = pneg %p80
        %p157 = pneg %p77
        %p158 = pneg %p106
        %p159 = pneg %p103
        %s160 = sand.u32 %s93, 1
        %s161 = scalar_lea.sflag [#allocation3], %s160
        %s162 = sand.u32 %s93, 1
        %s163 = smul.addr %s162, 16
        %s164 = scalar_lea.vmem [#allocation2], %s163
        %s165 = smul.u32 2, %s17
        %p166 = scmp.lt.s32.totalorder %s165, 3
        %s167 = scalar_select %p166, %s165, 3
        %s168 = smul.addr %s167, 8
        %s169 = scalar_lea.vmem %s0, %s168
        %s170 = smul.u32 2, %s17
        %s171 = smul.u32 2, %s17
        %v172 = vld [vmem:[%s169] sm:$0xff]
        %v173 = vld [vmem:[%s169 + $0x8] sm:$0xff]
        %v174 = vld [vmem:[%s1] sm:$0x1]
        %v175 = vld [vmem:[%s2] sm:$0x1]
        %vm176 = vcmask 523264
        %v177 = vsel %vm176, %v172, 0.0
        %178 = vadd.xlane.f32.xlu0 %v177
        %v179 = vpop.xlane.xlu0 %178
        %v180 = vsel %vm176, %v173, 0.0
        %181 = vadd.xlane.f32.xlu0 %v180
        %v182 = vpop.xlane.xlu0 %181
        %v183 = vrcp.pop 64.0
        %v184 = vmul.f32 %v179, %v183
        %v185 = vmul.f32 %v182, %v183
        %v186 = vsub.f32 %v172, %v184
        %v187 = vsub.f32 %v173, %v185
        %v188 = vmul.f32 %v186, %v186
        %v189 = vmul.f32 %v187, %v187
        %v190 = vsel %vm176, %v188, 0.0
        %191 = vadd.xlane.f32.xlu0 %v190
        %v192 = vpop.xlane.xlu0 %191
        %v193 = vsel %vm176, %v189, 0.0
        %194 = vadd.xlane.f32.xlu0 %v193
        %v195 = vpop.xlane.xlu0 %194
        %v196 = vmul.f32 %v192, %v183
        %v197 = vmul.f32 %v195, %v183
        %v198 = vadd.f32 %v196, 1e-05
        %v199 = vadd.f32 %v197, 1e-05
        %v200 = vrsqrt.pop %v198
        %v201 = vrsqrt.pop %v199
        %v202 = vmul.f32 %v186, %v200
        %v203 = vmul.f32 %v187, %v201
        %v205 = vlaneseq
        %v206 = vshrl.u32 %v205, 7
        %v207 = vsub.s32 0, %v206
        %v208 = vrot.slane %v174, %v207
        %v210 = vmul.f32 %v202, %v208
        %v211 = vmul.f32 %v203, %v208
        %v213 = vlaneseq
        %v214 = vshrl.u32 %v213, 7
        %v215 = vsub.s32 0, %v214
        %v216 = vrot.slane %v175, %v215
        %v218 = vadd.f32 %v210, %v216
        %v219 = vadd.f32 %v211, %v216
        %220 = vst.msk [vmem:[%s164] sm:$0xff] %vm176, %v218
        %221 = vst.msk [vmem:[%s164 + $0x8] sm:$0xff] %vm176, %v219
        %s222 = sand.u32 %s93, 1
        %s223 = scalar_lea.sflag [#allocation3], %s222
        %s224 = sand.u32 %s93, 1
        %s225 = smul.addr %s224, 16
        %s226 = scalar_lea.vmem [#allocation2], %s225
        // Predicated region
        $region33: #{swin_forward.15} parent=31 // pred_check
          %p227 = pneg %p103
        $region34: #{swin_forward.15} parent=31 // pred_check_branch
          %229 = sbr.rel (%p227) target = $region36
        $region35: #{swin_forward.15} parent=31 // pred_region
          %s230 = smul.u32 2, %s17
          %s232 = ssub.s32 256, 256
          %233 = vsyncadd %s223, %s232
          %s234 = smul.addr %s230, 128
          %s235 = scalar_lea.hbm %s3, %s234
          %s236 = sshll.u32 %s226, 4
          %s237 = int_to_ptr.vmem [resolvable:$true] %s236
          %242 = dma.vmem_to_hbm [thread:$0]  %s237, 256, %s235, %s223, 128, 128, 8
        $region36: #{swin_forward.15} parent=31 // pred_fallthru
          _
      $region32: #{swin_forward.15} parent=5 // pred_fallthru
        _
      %p243 = scmp.le.s32.totalorder 2, %s12
      // Predicated region
      $region37: #{swin_forward.15} parent=5 // pred_check
        %p244 = pneg %p243
      $region38: #{swin_forward.15} parent=5 // pred_check_branch
        %246 = sbr.rel (%p244) target = $region40
      $region39: #{swin_forward.15} parent=5 // pred_region
        %s247 = ssub.s32 %s12, 2
        // Predicated region
        $region41: #{swin_forward.15} parent=39 // pred_check
          %p248 = pneg %p109
        $region42: #{swin_forward.15} parent=39 // pred_check_branch
          %250 = sbr.rel (%p248) target = $region44
        $region43: #{swin_forward.15} parent=39 // pred_region
          %s251 = sand.u32 %s94, 1
          %s252 = scalar_lea.sflag [#allocation3], %s251
          %s253 = sand.u32 %s94, 1
          %s254 = smul.addr %s253, 16
          %s255 = scalar_lea.vmem [#allocation2], %s254
          %256 = dma.done %s252, 256
        $region44: #{swin_forward.15} parent=39 // pred_fallthru
          _
      $region40: #{swin_forward.15} parent=5 // pred_fallthru
        _
    $region6: #{swin_forward.15} parent=1 // loop_footer
      %s16 = sadd.s32 1, %s12
    $region7: #{swin_forward.15} parent=1 // loop_footer_branch
      %11 = sbr.rel target = $region3
    $region8: #{swin_forward.15} parent=1 // loop_exit
      _
    %257 = vsyncpa [#allocation3], 1
    %s258 = scalar_lea.sflag [#allocation3], 1
    %259 = vsyncpa %s258, 1

// kernel: swin_forward.13
$region0: #{swin_forward.13}
  #allocation0 [shape = 'u32[]', space=smem, size = 0x4, offset = 0x4, fixed_abs, tag = 'smem constant byte address 0x4 - core index']
  #allocation1 [shape = 'u32[144,128]{1,0:T(1,128)}', space=vmem, size = 0x12000, scoped, tag = 'internal scratch']
  %s0 = inlined_call_operand.vmem [shape: f32[32,64], index: 0, kind: input, shape index: {}]
  %s1 = inlined_call_operand.vmem [shape: f32[1,64], index: 1, kind: input, shape index: {}]
  %s2 = inlined_call_operand.vmem [shape: f32[1,64], index: 2, kind: input, shape index: {}]
  %s3 = inlined_call_operand.vmem [shape: bf16[64,192], index: 3, kind: input, shape index: {}]
  %s4 = inlined_call_operand.vmem [shape: f32[1,192], index: 4, kind: input, shape index: {}]
  %s5 = inlined_call_operand.vmem [shape: f32[1,4,16,16], index: 5, kind: input, shape index: {}]
  %s6 = inlined_call_operand.vmem [shape: bf16[64,64], index: 6, kind: input, shape index: {}]
  %s7 = inlined_call_operand.vmem [shape: f32[1,64], index: 7, kind: input, shape index: {}]
  %s8 = inlined_call_operand.vmem [shape: f32[1,64], index: 8, kind: input, shape index: {}]
  %s9 = inlined_call_operand.vmem [shape: f32[1,64], index: 9, kind: input, shape index: {}]
  %s10 = inlined_call_operand.vmem [shape: bf16[64,256], index: 10, kind: input, shape index: {}]
  %s11 = inlined_call_operand.vmem [shape: f32[1,256], index: 11, kind: input, shape index: {}]
  %s12 = inlined_call_operand.vmem [shape: bf16[256,64], index: 12, kind: input, shape index: {}]
  %s13 = inlined_call_operand.vmem [shape: f32[1,64], index: 13, kind: input, shape index: {}]
  %s14 = inlined_call_operand.vmem [shape: f32[32,64], index: 14, kind: output, shape index: {}]
  %s15 = sld [smem:[#allocation0]]
  $region89: #{swin_forward.13} parent=0
    _
  %s17 = ssub.s32 1, %s15
  %s18 = scalar_select 0, %s17, %s15
  loop: start=0, step=1, limit=4
  $region2: #{swin_forward.13} parent=0 // loop_pre_header
    _
  $region3: #{swin_forward.13} parent=0 // loop_header
    %s20 = sphi 0, %s24
    %p21 = scmp.ge.s32.totalorder %s20, 4
    %s30 = sphi 0, %s32
    %s33 = sphi 0, %s30
    %s34 = sphi 0, %s33
    %s50 = sphi 0, %s34
    %s54 = sphi 0, %s54
    %s56 = sphi 0, %s54
    %s57 = sphi 0, %s56
    %s71 = sphi 0, %s57
    %s75 = sphi 0, %s75
    %s77 = sphi 0, %s75
    %s78 = sphi 0, %s77
    %s92 = sphi 0, %s78
    %s96 = sphi 0, %s96
    %s98 = sphi 0, %s96
    %s99 = sphi 0, %s98
    %s113 = sphi 0, %s99
    %s117 = sphi 0, %s117
    %s119 = sphi 0, %s117
    %s120 = sphi 0, %s119
    %s134 = sphi 0, %s120
    %s138 = sphi 0, %s138
    %s140 = sphi 0, %s138
    %s141 = sphi 0, %s140
    %s155 = sphi 0, %s141
    %s159 = sphi 0, %s159
    %s161 = sphi 0, %s159
    %s162 = sphi 0, %s161
    %s176 = sphi 0, %s162
    %s180 = sphi 0, %s180
    %s182 = sphi 0, %s180
    %s183 = sphi 0, %s182
    %s197 = sphi 0, %s183
    %s201 = sphi 0, %s201
    %s203 = sphi 0, %s201
    %s204 = sphi 0, %s203
    %s218 = sphi 0, %s204
    %s222 = sphi 0, %s222
    %s224 = sphi 0, %s222
    %s225 = sphi 0, %s224
    %s239 = sphi 0, %s225
    %s243 = sphi 0, %s243
    %s245 = sphi 0, %s243
    %s246 = sphi 0, %s245
    %s260 = sphi 0, %s246
    %s264 = sphi 0, %s264
    %s266 = sphi 0, %s264
    %s267 = sphi 0, %s266
    %s281 = sphi 0, %s267
    %s285 = sphi 0, %s285
    %s287 = sphi 0, %s285
    %s288 = sphi 0, %s287
    %s302 = sphi 0, %s288
    %s306 = sphi 0, %s306
    %s308 = sphi 0, %s306
    %s309 = sphi 0, %s308
    %s323 = sphi 0, %s309
    %s329 = sphi 0, %s331
    %s332 = sphi 0, %s329
    %s333 = sphi 0, %s332
    %s349 = sphi 0, %s333
  $region4: #{swin_forward.13} parent=0 // loop_header_branch
    %23 = sbr.rel (%p21) target = $region8
  $region5: #{swin_forward.13} parent=0 // loop_body
    %s25 = ssub.s32 %s20, 1
    %s26 = ssub.s32 %s20, 2
    %s27 = sadd.s32 %s20, 1
    %s28 = ssub.s32 %s20, %s27
    %p29 = scmp.eq.s32.totalorder %s28, 0
    %s31 = sadd.s32 %s30, 1
    %s32 = scalar_select %p29, %s30, %s31
    %p35 = pneg %p29
    %p36 = scmp.eq.s32.totalorder %s20, 1
    %p37 = por %p35, %p36
    %p38 = scmp.ne.s32.totalorder %s30, %s33
    %p39 = scmp.eq.s32.totalorder %s20, 0
    %p40 = por %p38, %p39
    %p41 = scmp.ne.s32.totalorder %s30, %s33
    %p42 = scmp.eq.s32.totalorder %s25, 1
    %p43 = por %p41, %p42
    %p44 = scmp.ne.s32.totalorder %s33, %s34
    %p45 = scmp.eq.s32.totalorder %s25, 0
    %p46 = por %p44, %p45
    %p47 = scmp.ne.s32.totalorder %s33, %s34
    %p48 = scmp.eq.s32.totalorder %s26, 1
    %p49 = por %p47, %p48
    %p51 = scmp.ne.s32.totalorder %s34, %s50
    %p52 = scmp.eq.s32.totalorder %s26, 0
    %p53 = por %p51, %p52
    %s55 = sadd.s32 %s54, 1
    %p58 = scmp.eq.s32.totalorder %s20, 1
    %p59 = scmp.ne.s32.totalorder %s54, %s56
    %p60 = scmp.eq.s32.totalorder %s20, 0
    %p61 = por %p59, %p60
    %p62 = scmp.ne.s32.totalorder %s54, %s56
    %p63 = scmp.eq.s32.totalorder %s25, 1
    %p64 = por %p62, %p63
    %p65 = scmp.ne.s32.totalorder %s56, %s57
    %p66 = scmp.eq.s32.totalorder %s25, 0
    %p67 = por %p65, %p66
    %p68 = scmp.ne.s32.totalorder %s56, %s57
    %p69 = scmp.eq.s32.totalorder %s26, 1
    %p70 = por %p68, %p69
    %p72 = scmp.ne.s32.totalorder %s57, %s71
    %p73 = scmp.eq.s32.totalorder %s26, 0
    %p74 = por %p72, %p73
    %s76 = sadd.s32 %s75, 1
    %p79 = scmp.eq.s32.totalorder %s20, 1
    %p80 = scmp.ne.s32.totalorder %s75, %s77
    %p81 = scmp.eq.s32.totalorder %s20, 0
    %p82 = por %p80, %p81
    %p83 = scmp.ne.s32.totalorder %s75, %s77
    %p84 = scmp.eq.s32.totalorder %s25, 1
    %p85 = por %p83, %p84
    %p86 = scmp.ne.s32.totalorder %s77, %s78
    %p87 = scmp.eq.s32.totalorder %s25, 0
    %p88 = por %p86, %p87
    %p89 = scmp.ne.s32.totalorder %s77, %s78
    %p90 = scmp.eq.s32.totalorder %s26, 1
    %p91 = por %p89, %p90
    %p93 = scmp.ne.s32.totalorder %s78, %s92
    %p94 = scmp.eq.s32.totalorder %s26, 0
    %p95 = por %p93, %p94
    %s97 = sadd.s32 %s96, 1
    %p100 = scmp.eq.s32.totalorder %s20, 1
    %p101 = scmp.ne.s32.totalorder %s96, %s98
    %p102 = scmp.eq.s32.totalorder %s20, 0
    %p103 = por %p101, %p102
    %p104 = scmp.ne.s32.totalorder %s96, %s98
    %p105 = scmp.eq.s32.totalorder %s25, 1
    %p106 = por %p104, %p105
    %p107 = scmp.ne.s32.totalorder %s98, %s99
    %p108 = scmp.eq.s32.totalorder %s25, 0
    %p109 = por %p107, %p108
    %p110 = scmp.ne.s32.totalorder %s98, %s99
    %p111 = scmp.eq.s32.totalorder %s26, 1
    %p112 = por %p110, %p111
    %p114 = scmp.ne.s32.totalorder %s99, %s113
    %p115 = scmp.eq.s32.totalorder %s26, 0
    %p116 = por %p114, %p115
    %s118 = sadd.s32 %s117, 1
    %p121 = scmp.eq.s32.totalorder %s20, 1
    %p122 = scmp.ne.s32.totalorder %s117, %s119
    %p123 = scmp.eq.s32.totalorder %s20, 0
    %p124 = por %p122, %p123
    %p125 = scmp.ne.s32.totalorder %s117, %s119
    %p126 = scmp.eq.s32.totalorder %s25, 1
    %p127 = por %p125, %p126
    %p128 = scmp.ne.s32.totalorder %s119, %s120
    %p129 = scmp.eq.s32.totalorder %s25, 0
    %p130 = por %p128, %p129
    %p131 = scmp.ne.s32.totalorder %s119, %s120
    %p132 = scmp.eq.s32.totalorder %s26, 1
    %p133 = por %p131, %p132
    %p135 = scmp.ne.s32.totalorder %s120, %s134
    %p136 = scmp.eq.s32.totalorder %s26, 0
    %p137 = por %p135, %p136
    %s139 = sadd.s32 %s138, 1
    %p142 = scmp.eq.s32.totalorder %s20, 1
    %p143 = scmp.ne.s32.totalorder %s138, %s140
    %p144 = scmp.eq.s32.totalorder %s20, 0
    %p145 = por %p143, %p144
    %p146 = scmp.ne.s32.totalorder %s138, %s140
    %p147 = scmp.eq.s32.totalorder %s25, 1
    %p148 = por %p146, %p147
    %p149 = scmp.ne.s32.totalorder %s140, %s141
    %p150 = scmp.eq.s32.totalorder %s25, 0
    %p151 = por %p149, %p150
    %p152 = scmp.ne.s32.totalorder %s140, %s141
    %p153 = scmp.eq.s32.totalorder %s26, 1
    %p154 = por %p152, %p153
    %p156 = scmp.ne.s32.totalorder %s141, %s155
    %p157 = scmp.eq.s32.totalorder %s26, 0
    %p158 = por %p156, %p157
    %s160 = sadd.s32 %s159, 1
    %p163 = scmp.eq.s32.totalorder %s20, 1
    %p164 = scmp.ne.s32.totalorder %s159, %s161
    %p165 = scmp.eq.s32.totalorder %s20, 0
    %p166 = por %p164, %p165
    %p167 = scmp.ne.s32.totalorder %s159, %s161
    %p168 = scmp.eq.s32.totalorder %s25, 1
    %p169 = por %p167, %p168
    %p170 = scmp.ne.s32.totalorder %s161, %s162
    %p171 = scmp.eq.s32.totalorder %s25, 0
    %p172 = por %p170, %p171
    %p173 = scmp.ne.s32.totalorder %s161, %s162
    %p174 = scmp.eq.s32.totalorder %s26, 1
    %p175 = por %p173, %p174
    %p177 = scmp.ne.s32.totalorder %s162, %s176
    %p178 = scmp.eq.s32.totalorder %s26, 0
    %p179 = por %p177, %p178
    %s181 = sadd.s32 %s180, 1
    %p184 = scmp.eq.s32.totalorder %s20, 1
    %p185 = scmp.ne.s32.totalorder %s180, %s182
    %p186 = scmp.eq.s32.totalorder %s20, 0
    %p187 = por %p185, %p186
    %p188 = scmp.ne.s32.totalorder %s180, %s182
    %p189 = scmp.eq.s32.totalorder %s25, 1
    %p190 = por %p188, %p189
    %p191 = scmp.ne.s32.totalorder %s182, %s183
    %p192 = scmp.eq.s32.totalorder %s25, 0
    %p193 = por %p191, %p192
    %p194 = scmp.ne.s32.totalorder %s182, %s183
    %p195 = scmp.eq.s32.totalorder %s26, 1
    %p196 = por %p194, %p195
    %p198 = scmp.ne.s32.totalorder %s183, %s197
    %p199 = scmp.eq.s32.totalorder %s26, 0
    %p200 = por %p198, %p199
    %s202 = sadd.s32 %s201, 1
    %p205 = scmp.eq.s32.totalorder %s20, 1
    %p206 = scmp.ne.s32.totalorder %s201, %s203
    %p207 = scmp.eq.s32.totalorder %s20, 0
    %p208 = por %p206, %p207
    %p209 = scmp.ne.s32.totalorder %s201, %s203
    %p210 = scmp.eq.s32.totalorder %s25, 1
    %p211 = por %p209, %p210
    %p212 = scmp.ne.s32.totalorder %s203, %s204
    %p213 = scmp.eq.s32.totalorder %s25, 0
    %p214 = por %p212, %p213
    %p215 = scmp.ne.s32.totalorder %s203, %s204
    %p216 = scmp.eq.s32.totalorder %s26, 1
    %p217 = por %p215, %p216
    %p219 = scmp.ne.s32.totalorder %s204, %s218
    %p220 = scmp.eq.s32.totalorder %s26, 0
    %p221 = por %p219, %p220
    %s223 = sadd.s32 %s222, 1
    %p226 = scmp.eq.s32.totalorder %s20, 1
    %p227 = scmp.ne.s32.totalorder %s222, %s224
    %p228 = scmp.eq.s32.totalorder %s20, 0
    %p229 = por %p227, %p228
    %p230 = scmp.ne.s32.totalorder %s222, %s224
    %p231 = scmp.eq.s32.totalorder %s25, 1
    %p232 = por %p230, %p231
    %p233 = scmp.ne.s32.totalorder %s224, %s225
    %p234 = scmp.eq.s32.totalorder %s25, 0
    %p235 = por %p233, %p234
    %p236 = scmp.ne.s32.totalorder %s224, %s225
    %p237 = scmp.eq.s32.totalorder %s26, 1
    %p238 = por %p236, %p237
    %p240 = scmp.ne.s32.totalorder %s225, %s239
    %p241 = scmp.eq.s32.totalorder %s26, 0
    %p242 = por %p240, %p241
    %s244 = sadd.s32 %s243, 1
    %p247 = scmp.eq.s32.totalorder %s20, 1
    %p248 = scmp.ne.s32.totalorder %s243, %s245
    %p249 = scmp.eq.s32.totalorder %s20, 0
    %p250 = por %p248, %p249
    %p251 = scmp.ne.s32.totalorder %s243, %s245
    %p252 = scmp.eq.s32.totalorder %s25, 1
    %p253 = por %p251, %p252
    %p254 = scmp.ne.s32.totalorder %s245, %s246
    %p255 = scmp.eq.s32.totalorder %s25, 0
    %p256 = por %p254, %p255
    %p257 = scmp.ne.s32.totalorder %s245, %s246
    %p258 = scmp.eq.s32.totalorder %s26, 1
    %p259 = por %p257, %p258
    %p261 = scmp.ne.s32.totalorder %s246, %s260
    %p262 = scmp.eq.s32.totalorder %s26, 0
    %p263 = por %p261, %p262
    %s265 = sadd.s32 %s264, 1
    %p268 = scmp.eq.s32.totalorder %s20, 1
    %p269 = scmp.ne.s32.totalorder %s264, %s266
    %p270 = scmp.eq.s32.totalorder %s20, 0
    %p271 = por %p269, %p270
    %p272 = scmp.ne.s32.totalorder %s264, %s266
    %p273 = scmp.eq.s32.totalorder %s25, 1
    %p274 = por %p272, %p273
    %p275 = scmp.ne.s32.totalorder %s266, %s267
    %p276 = scmp.eq.s32.totalorder %s25, 0
    %p277 = por %p275, %p276
    %p278 = scmp.ne.s32.totalorder %s266, %s267
    %p279 = scmp.eq.s32.totalorder %s26, 1
    %p280 = por %p278, %p279
    %p282 = scmp.ne.s32.totalorder %s267, %s281
    %p283 = scmp.eq.s32.totalorder %s26, 0
    %p284 = por %p282, %p283
    %s286 = sadd.s32 %s285, 1
    %p289 = scmp.eq.s32.totalorder %s20, 1
    %p290 = scmp.ne.s32.totalorder %s285, %s287
    %p291 = scmp.eq.s32.totalorder %s20, 0
    %p292 = por %p290, %p291
    %p293 = scmp.ne.s32.totalorder %s285, %s287
    %p294 = scmp.eq.s32.totalorder %s25, 1
    %p295 = por %p293, %p294
    %p296 = scmp.ne.s32.totalorder %s287, %s288
    %p297 = scmp.eq.s32.totalorder %s25, 0
    %p298 = por %p296, %p297
    %p299 = scmp.ne.s32.totalorder %s287, %s288
    %p300 = scmp.eq.s32.totalorder %s26, 1
    %p301 = por %p299, %p300
    %p303 = scmp.ne.s32.totalorder %s288, %s302
    %p304 = scmp.eq.s32.totalorder %s26, 0
    %p305 = por %p303, %p304
    %s307 = sadd.s32 %s306, 1
    %p310 = scmp.eq.s32.totalorder %s20, 1
    %p311 = scmp.ne.s32.totalorder %s306, %s308
    %p312 = scmp.eq.s32.totalorder %s20, 0
    %p313 = por %p311, %p312
    %p314 = scmp.ne.s32.totalorder %s306, %s308
    %p315 = scmp.eq.s32.totalorder %s25, 1
    %p316 = por %p314, %p315
    %p317 = scmp.ne.s32.totalorder %s308, %s309
    %p318 = scmp.eq.s32.totalorder %s25, 0
    %p319 = por %p317, %p318
    %p320 = scmp.ne.s32.totalorder %s308, %s309
    %p321 = scmp.eq.s32.totalorder %s26, 1
    %p322 = por %p320, %p321
    %p324 = scmp.ne.s32.totalorder %s309, %s323
    %p325 = scmp.eq.s32.totalorder %s26, 0
    %p326 = por %p324, %p325
    %s327 = ssub.s32 %s20, %s27
    %p328 = scmp.eq.s32.totalorder %s327, 0
    %s330 = sadd.s32 %s329, 1
    %s331 = scalar_select %p328, %s329, %s330
    %p334 = pneg %p328
    %p335 = scmp.eq.s32.totalorder %s20, 1
    %p336 = por %p334, %p335
    %p337 = scmp.ne.s32.totalorder %s329, %s332
    %p338 = scmp.eq.s32.totalorder %s20, 0
    %p339 = por %p337, %p338
    %p340 = scmp.ne.s32.totalorder %s329, %s332
    %p341 = scmp.eq.s32.totalorder %s25, 1
    %p342 = por %p340, %p341
    %p343 = scmp.ne.s32.totalorder %s332, %s333
    %p344 = scmp.eq.s32.totalorder %s25, 0
    %p345 = por %p343, %p344
    %p346 = scmp.ne.s32.totalorder %s332, %s333
    %p347 = scmp.eq.s32.totalorder %s26, 1
    %p348 = por %p346, %p347
    %p350 = scmp.ne.s32.totalorder %s333, %s349
    %p351 = scmp.eq.s32.totalorder %s26, 0
    %p352 = por %p350, %p351
    %p353 = scmp.le.s32.totalorder 1, %s20
    %p354 = scmp.lt.s32.totalorder %s20, 3
    %p355 = pnand %p353, %p354
    %p356 = pneg %p355
    // Predicated region
    $region9: #{swin_forward.13} parent=5 // pred_check
      _
    $region10: #{swin_forward.13} parent=5 // pred_check_branch
      %358 = sbr.rel (%p355) target = $region12
    $region11: #{swin_forward.13} parent=5 // pred_region
      %s359 = ssub.s32 %s20, 1
      // Predicated region
      $region13: #{swin_forward.13} parent=11 // pred_check
        %p360 = pneg %p67
      $region14: #{swin_forward.13} parent=11 // pred_check_branch
        %362 = sbr.rel (%p360) target = $region16
      $region15: #{swin_forward.13} parent=11 // pred_region
        _
      $region16: #{swin_forward.13} parent=11 // pred_fallthru
        _
      // Predicated region
      $region17: #{swin_forward.13} parent=11 // pred_check
        %p363 = pneg %p88
      $region18: #{swin_forward.13} parent=11 // pred_check_branch
        %365 = sbr.rel (%p363) target = $region20
      $region19: #{swin_forward.13} parent=11 // pred_region
        _
      $region20: #{swin_forward.13} parent=11 // pred_fallthru
        _
      // Predicated region
      $region21: #{swin_forward.13} parent=11 // pred_check
        %p366 = pneg %p109
      $region22: #{swin_forward.13} parent=11 // pred_check_branch
        %368 = sbr.rel (%p366) target = $region24
      $region23: #{swin_forward.13} parent=11 // pred_region
        _
      $region24: #{swin_forward.13} parent=11 // pred_fallthru
        _
      // Predicated region
      $region25: #{swin_forward.13} parent=11 // pred_check
        %p369 = pneg %p130
      $region26: #{swin_forward.13} parent=11 // pred_check_branch
        %371 = sbr.rel (%p369) target = $region28
      $region27: #{swin_forward.13} parent=11 // pred_region
        _
      $region28: #{swin_forward.13} parent=11 // pred_fallthru
        _
      // Predicated region
      $region29: #{swin_forward.13} parent=11 // pred_check
        %p372 = pneg %p151
      $region30: #{swin_forward.13} parent=11 // pred_check_branch
        %374 = sbr.rel (%p372) target = $region32
      $region31: #{swin_forward.13} parent=11 // pred_region
        _
      $region32: #{swin_forward.13} parent=11 // pred_fallthru
        _
      // Predicated region
      $region33: #{swin_forward.13} parent=11 // pred_check
        %p375 = pneg %p172
      $region34: #{swin_forward.13} parent=11 // pred_check_branch
        %377 = sbr.rel (%p375) target = $region36
      $region35: #{swin_forward.13} parent=11 // pred_region
        _
      $region36: #{swin_forward.13} parent=11 // pred_fallthru
        _
      // Predicated region
      $region37: #{swin_forward.13} parent=11 // pred_check
        %p378 = pneg %p193
      $region38: #{swin_forward.13} parent=11 // pred_check_branch
        %380 = sbr.rel (%p378) target = $region40
      $region39: #{swin_forward.13} parent=11 // pred_region
        _
      $region40: #{swin_forward.13} parent=11 // pred_fallthru
        _
      // Predicated region
      $region41: #{swin_forward.13} parent=11 // pred_check
        %p381 = pneg %p214
      $region42: #{swin_forward.13} parent=11 // pred_check_branch
        %383 = sbr.rel (%p381) target = $region44
      $region43: #{swin_forward.13} parent=11 // pred_region
        _
      $region44: #{swin_forward.13} parent=11 // pred_fallthru
        _
      // Predicated region
      $region45: #{swin_forward.13} parent=11 // pred_check
        %p384 = pneg %p235
      $region46: #{swin_forward.13} parent=11 // pred_check_branch
        %386 = sbr.rel (%p384) target = $region48
      $region47: #{swin_forward.13} parent=11 // pred_region
        _
      $region48: #{swin_forward.13} parent=11 // pred_fallthru
        _
      // Predicated region
      $region49: #{swin_forward.13} parent=11 // pred_check
        %p387 = pneg %p256
      $region50: #{swin_forward.13} parent=11 // pred_check_branch
        %389 = sbr.rel (%p387) target = $region52
      $region51: #{swin_forward.13} parent=11 // pred_region
        _
      $region52: #{swin_forward.13} parent=11 // pred_fallthru
        _
      // Predicated region
      $region53: #{swin_forward.13} parent=11 // pred_check
        %p390 = pneg %p277
      $region54: #{swin_forward.13} parent=11 // pred_check_branch
        %392 = sbr.rel (%p390) target = $region56
      $region55: #{swin_forward.13} parent=11 // pred_region
        _
      $region56: #{swin_forward.13} parent=11 // pred_fallthru
        _
      // Predicated region
      $region57: #{swin_forward.13} parent=11 // pred_check
        %p393 = pneg %p298
      $region58: #{swin_forward.13} parent=11 // pred_check_branch
        %395 = sbr.rel (%p393) target = $region60
      $region59: #{swin_forward.13} parent=11 // pred_region
        _
      $region60: #{swin_forward.13} parent=11 // pred_fallthru
        _
      // Predicated region
      $region61: #{swin_forward.13} parent=11 // pred_check
        %p396 = pneg %p319
      $region62: #{swin_forward.13} parent=11 // pred_check_branch
        %398 = sbr.rel (%p396) target = $region64
      $region63: #{swin_forward.13} parent=11 // pred_region
        _
      $region64: #{swin_forward.13} parent=11 // pred_fallthru
        _
    $region12: #{swin_forward.13} parent=5 // pred_fallthru
      _
    %p399 = scmp.lt.s32.totalorder %s20, 2
    // Predicated region
    $region65: #{swin_forward.13} parent=5 // pred_check
      %p400 = pneg %p399
    $region66: #{swin_forward.13} parent=5 // pred_check_branch
      %402 = sbr.rel (%p400) target = $region68
    $region67: #{swin_forward.13} parent=5 // pred_region
      // Predicated region
      $region69: #{swin_forward.13} parent=67 // pred_check
        %p403 = pneg %p40
      $region70: #{swin_forward.13} parent=67 // pred_check_branch
        %405 = sbr.rel (%p403) target = $region72
      $region71: #{swin_forward.13} parent=67 // pred_region
        %s406 = smul.u32 2, %s20
        %p407 = scmp.lt.s32.totalorder %s406, 3
        %s408 = scalar_select %p407, %s406, 3
        %s409 = smul.addr %s408, 8
        %s410 = scalar_lea.vmem %s0, %s409
        %s411 = smul.u32 2, %s20
      $region72: #{swin_forward.13} parent=67 // pred_fallthru
        _
    $region68: #{swin_forward.13} parent=5 // pred_fallthru
      _
    %p412 = scmp.le.s32.totalorder 1, %s20
    %p413 = scmp.lt.s32.totalorder %s20, 3
    %p414 = pnand %p412, %p413
    %p415 = pneg %p414
    // Predicated region
    $region73: #{swin_forward.13} parent=5 // pred_check
      _
    $region74: #{swin_forward.13} parent=5 // pred_check_branch
      %417 = sbr.rel (%p414) target = $region76
    $region75: #{swin_forward.13} parent=5 // pred_region
      %s418 = ssub.s32 %s20, 1
      %s419 = smul.u32 2, %s25
      %p420 = scmp.lt.s32.totalorder %s419, 3
      %s421 = scalar_select %p420, %s419, 3
      %s422 = smul.addr %s421, 8
      %s423 = scalar_lea.vmem %s0, %s422
      %p424 = pneg %p46
      %p425 = pneg %p43
      %p426 = pneg %p67
      %p427 = pneg %p64
      %p428 = pneg %p88
      %p429 = pneg %p85
      %p430 = pneg %p109
      %p431 = pneg %p106
      %p432 = pneg %p130
      %p433 = pneg %p127
      %p434 = pneg %p151
      %p435 = pneg %p148
      %p436 = pneg %p172
      %p437 = pneg %p169
      %p438 = pneg %p193
      %p439 = pneg %p190
      %p440 = pneg %p214
      %p441 = pneg %p211
      %p442 = pneg %p235
      %p443 = pneg %p232
      %p444 = pneg %p256
      %p445 = pneg %p253
      %p446 = pneg %p277
      %p447 = pneg %p274
      %p448 = pneg %p298
      %p449 = pneg %p295
      %p450 = pneg %p319
      %p451 = pneg %p316
      %p452 = pneg %p345
      %p453 = pneg %p342
      %s454 = smul.u32 2, %s25
      %p455 = scmp.lt.s32.totalorder %s454, 3
      %s456 = scalar_select %p455, %s454, 3
      %s457 = smul.addr %s456, 8
      %s458 = scalar_lea.vmem %s14, %s457
      %s459 = smul.u32 2, %s25
      %p460 = scmp.lt.s32.totalorder %s459, 3
      %s461 = scalar_select %p460, %s459, 3
      %s462 = smul.addr %s461, 8
      %s463 = scalar_lea.vmem %s0, %s462
      %s464 = smul.u32 2, %s25
      %s465 = smul.u32 2, %s25
      %p466 = scmp.lt.s32.totalorder %s465, 3
      %s467 = scalar_select %p466, %s465, 3
      %s468 = smul.addr %s467, 8
      %s469 = scalar_lea.vmem %s14, %s468
      %s470 = smul.u32 2, %s25
      %v472 = vld [vmem:[%s463] sm:$0xff]
      %v473 = vld [vmem:[%s463 + $0x8] sm:$0xff]
      %v474 = vld [vmem:[%s1] sm:$0x1]
      %v475 = vld [vmem:[%s2] sm:$0x1]
      %vm476 = vcmask 523264
      %v477 = vsel %vm476, %v472, 0.0
      %478 = vadd.xlane.f32.xlu0 %v477
      %v479 = vpop.xlane.xlu0 %478
      %v480 = vsel %vm476, %v473, 0.0
      %481 = vadd.xlane.f32.xlu0 %v480
      %v482 = vpop.xlane.xlu0 %481
      %v483 = vrcp.pop 64.0
      %v484 = vmul.f32 %v479, %v483
      %v485 = vmul.f32 %v482, %v483
      %v486 = vsub.f32 %v472, %v484
      %v487 = vsub.f32 %v473, %v485
      %v488 = vmul.f32 %v486, %v486
      %v489 = vmul.f32 %v487, %v487
      %v490 = vsel %vm476, %v488, 0.0
      %491 = vadd.xlane.f32.xlu0 %v490
      %v492 = vpop.xlane.xlu0 %491
      %v493 = vsel %vm476, %v489, 0.0
      %494 = vadd.xlane.f32.xlu0 %v493
      %v495 = vpop.xlane.xlu0 %494
      %v496 = vmul.f32 %v492, %v483
      %v497 = vmul.f32 %v495, %v483
      %v498 = vadd.f32 %v496, 1e-05
      %v499 = vadd.f32 %v497, 1e-05
      %v500 = vrsqrt.pop %v498
      %v501 = vrsqrt.pop %v499
      %v502 = vmul.f32 %v486, %v500
      %v503 = vmul.f32 %v487, %v501
      %v505 = vlaneseq
      %v506 = vshrl.u32 %v505, 7
      %v507 = vsub.s32 0, %v506
      %v508 = vrot.slane %v474, %v507
      %v510 = vmul.f32 %v502, %v508
      %v511 = vmul.f32 %v503, %v508
      %v513 = vlaneseq
      %v514 = vshrl.u32 %v513, 7
      %v515 = vsub.s32 0, %v514
      %v516 = vrot.slane %v475, %v515
      %v518 = vadd.f32 %v510, %v516
      %v519 = vadd.f32 %v511, %v516
      %v520 = vpack.c.bf16 %v519, %v518
      %v521 = vld [vmem:[%s3] sm:$0xff]
      %v522 = vld [vmem:[%s3 + $0x8] sm:$0xff]
      %v523 = vld [vmem:[%s3 + $0x10] sm:$0xff]
      %v524 = vld [vmem:[%s3 + $0x18] sm:$0xff]
      %v525 = vld [vmem:[%s3 + $0x20] sm:$0xff]
      %v526 = vld [vmem:[%s3 + $0x28] sm:$0xff]
      %v527 = vld [vmem:[%s3 + $0x30] sm:$0xff]
      %v528 = vld [vmem:[%s3 + $0x38] sm:$0xff]
      %v529 = vld [vmem:[%s4] sm:$0x3]
      %v531 = vlaneseq
      %v532 = vshrl.u32 %v531, 7
      %v533 = vsub.s32 0, %v532
      %v534 = vrot.slane %v529, %v533
      %v535 = vlaneseq
      %v536 = vshrl.u32 %v535, 7
      %v537 = vsub.s32 1, %v536
      %v538 = vrot.slane %v529, %v537
      %v549 = vunpack.c.l.b16 %v521
      %v550 = vunpack.c.h.b16 %v521
      %v551 = vunpack.c.l.b16 %v522
      %v552 = vunpack.c.h.b16 %v522
      %v553 = vunpack.c.l.b16 %v523
      %v554 = vunpack.c.h.b16 %v523
      %v555 = vunpack.c.l.b16 %v524
      %v556 = vunpack.c.h.b16 %v524
      %v557 = vunpack.c.l.b16 %v525
      %v558 = vunpack.c.h.b16 %v525
      %v559 = vunpack.c.l.b16 %v526
      %v560 = vunpack.c.h.b16 %v526
      %v561 = vunpack.c.l.b16 %v527
      %v562 = vunpack.c.h.b16 %v527
      %v563 = vunpack.c.l.b16 %v528
      %v564 = vunpack.c.h.b16 %v528
      %v565 = vpack.c.b16 %v551, %v549
      %v566 = vpack.c.b16 %v552, %v550
      %v567 = vpack.c.b16 %v555, %v553
      %v568 = vpack.c.b16 %v556, %v554
      %v569 = vpack.c.b16 %v559, %v557
      %v570 = vpack.c.b16 %v560, %v558
      %v571 = vpack.c.b16 %v563, %v561
      %v572 = vpack.c.b16 %v564, %v562
      %v582 = vsel %vm476, %v520, 0
      %584 = vmatprep.subr.bf16.mxu0 %v566
      %585 = vmatpush1.bf16.msra.mxu0 %v565
      %586 = vmatprep.subr.bf16.mxu0 %v568
      %587 = vmatpush1.bf16.msra.mxu0 %v567
      %588 = vmatprep.subr.bf16.mxu0 %v570
      %589 = vmatpush1.bf16.msra.mxu0 %v569
      %590 = vmatprep.subr.bf16.mxu0 %v572
      %591 = vmatpush1.bf16.msra.mxu0 %v571
      %592 = vmatprep.subr.bf16.mxu0 0
      %593 = vmatpush1.bf16.msra.mxu0 0
      %594 = vmatprep.subr.bf16.mxu0 0
      %595 = vmatpush1.bf16.msra.mxu0 0
      %596 = vmatprep.subr.bf16.mxu0 0
      %597 = vmatpush1.bf16.msra.mxu0 0
      %598 = vmatprep.subr.bf16.mxu0 0
      %599 = vmatpush1.bf16.msra.mxu0 0
      %600 = vmatprep.subr.bf16.mxu0 0
      %601 = vmatpush1.bf16.msra.mxu0 0
      %602 = vmatprep.subr.bf16.mxu0 0
      %603 = vmatpush1.bf16.msra.mxu0 0
      %604 = vmatprep.subr.bf16.mxu0 0
      %605 = vmatpush1.bf16.msra.mxu0 0
      %606 = vmatprep.subr.bf16.mxu0 0
      %607 = vmatpush1.bf16.msra.mxu0 0
      %608 = vmatprep.subr.bf16.mxu0 0
      %609 = vmatpush1.bf16.msra.mxu0 0
      %610 = vmatprep.subr.bf16.mxu0 0
      %611 = vmatpush1.bf16.msra.mxu0 0
      %612 = vmatprep.subr.bf16.mxu0 0
      %613 = vmatpush1.bf16.msra.mxu0 0
      %614 = vmatprep.subr.bf16.mxu0 0
      %615 = vmatpush1.bf16.msra.mxu0 0
      %616 = vmatprep.mubr.bf16.mxu0 0
      %617 = vmatmul.mubr.bf16.gmra.mrb[0].mxu0 %v582
      %v618 = vpop.f32.mrb[0].mxu0
      %v619 = vadd.f32 %v534, %v618
      %v620 = vpop.f32.mrb[0].mxu0
      %v621 = vadd.f32 %v538, %v620
      %v622 = vpop.f32.mrb[0].mxu0
      %v623 = vadd.f32 %v534, %v622
      %v624 = vpop.f32.mrb[0].mxu0
      %v625 = vadd.f32 %v538, %v624
      %626 = vdwg.mxu0
      %v627 = vpack.c.bf16 %v623, %v619
      %v628 = vld [vmem:[%s5] sm:$0xff]
      %v629 = vld [vmem:[%s5 + $0x8] sm:$0xff]
      %631 = vrot.lane.b32.xlu0 %v627, 64
      %v632 = vpop.permute.xlu0 %631
      %vm633 = vcmask 130048
      %v635 = vsel %vm633, %v627, 0
      %v638 = vsel %vm633, %v632, 0
      %640 = vmatprep.subr.bf16.mxu0 0
      %641 = vmatpush1.bf16.xpose.msra.mxu0 %v638
      %642 = vmatprep.subr.bf16.mxu0 0
      %643 = vmatpush1.bf16.xpose.msra.mxu0 0
      %644 = vmatprep.subr.bf16.mxu0 0
      %645 = vmatpush1.bf16.xpose.msra.mxu0 0
      %646 = vmatprep.subr.bf16.mxu0 0
      %647 = vmatpush1.bf16.xpose.msra.mxu0 0
      %648 = vmatprep.subr.bf16.mxu0 0
      %649 = vmatpush1.bf16.xpose.msra.mxu0 0
      %650 = vmatprep.subr.bf16.mxu0 0
      %651 = vmatpush1.bf16.xpose.msra.mxu0 0
      %652 = vmatprep.subr.bf16.mxu0 0
      %653 = vmatpush1.bf16.xpose.msra.mxu0 0
      %654 = vmatprep.subr.bf16.mxu0 0
      %655 = vmatpush1.bf16.xpose.msra.mxu0 0
      %656 = vmatprep.subr.bf16.mxu0 0
      %657 = vmatpush1.bf16.xpose.msra.mxu0 0
      %658 = vmatprep.subr.bf16.mxu0 0
      %659 = vmatpush1.bf16.xpose.msra.mxu0 0
      %660 = vmatprep.subr.bf16.mxu0 0
      %661 = vmatpush1.bf16.xpose.msra.mxu0 0
      %662 = vmatprep.subr.bf16.mxu0 0
      %663 = vmatpush1.bf16.xpose.msra.mxu0 0
      %664 = vmatprep.subr.bf16.mxu0 0
      %665 = vmatpush1.bf16.xpose.msra.mxu0 0
      %666 = vmatprep.subr.bf16.mxu0 0
      %667 = vmatpush1.bf16.xpose.msra.mxu0 0
      %668 = vmatprep.subr.bf16.mxu0 0
      %669 = vmatpush1.bf16.xpose.msra.mxu0 0
      %670 = vmatprep.subr.bf16.mxu0 0
      %671 = vmatpush1.bf16.xpose.msra.mxu0 0
      %672 = vmatprep.mubr.bf16.mxu0 0
      %673 = vmatmul.mubr.bf16.gmra.mrb[0].mxu0 %v635
      %v674 = vpop.f32.mrb[0].mxu0
      %v675 = vadd.f32 %v628, %v674
      %v676 = vpop.f32.mrb[0].mxu0
      %v677 = vpop.f32.mrb[0].mxu0
      %v678 = vadd.f32 %v629, %v677
      %v679 = vpop.f32.mrb[0].mxu0
      %680 = vdwg.mxu0
      %v681 = vsel %vm633, %v675, -inf
      %682 = vmax.xlane.f32.xlu0 %v681
      %v683 = vpop.xlane.xlu0 %682
      %v684 = vsel %vm633, %v678, -inf
      %685 = vmax.xlane.f32.xlu0 %v684
      %v686 = vpop.xlane.xlu0 %685
      %v687 = vsub.f32 %v675, %v683
      %v688 = vsub.f32 %v678, %v686
      %v689 = vmul.f32 %v687, 1.442695
      %v690 = vpow.pop %v689
      %v691 = vmul.f32 %v688, 1.442695
      %v692 = vpow.pop %v691
      %v693 = vsel %vm633, %v690, 0.0
      %694 = vadd.xlane.f32.xlu0 %v693
      %v695 = vpop.xlane.xlu0 %694
      %v696 = vsel %vm633, %v692, 0.0
      %697 = vadd.xlane.f32.xlu0 %v696
      %v698 = vpop.xlane.xlu0 %697
      %v699 = vrcp.pop %v695
      %v700 = vrcp.pop %v698
      %v701 = vmul.f32 %v690, %v699
      %v702 = vmul.f32 %v692, %v700
      %v703 = vpack.c.bf16 %v702, %v701
      %v704 = vpack.c.bf16 %v625, %v621
      %v706 = vsel %vm633, %v703, 0
      %708 = vmatprep.subr.bf16.mxu0 0
      %709 = vmatpush1.bf16.msra.mxu0 %v704
      %710 = vmatprep.subr.bf16.mxu0 0
      %711 = vmatpush1.bf16.msra.mxu0 0
      %712 = vmatprep.subr.bf16.mxu0 0
      %713 = vmatpush1.bf16.msra.mxu0 0
      %714 = vmatprep.subr.bf16.mxu0 0
      %715 = vmatpush1.bf16.msra.mxu0 0
      %716 = vmatprep.subr.bf16.mxu0 0
      %717 = vmatpush1.bf16.msra.mxu0 0
      %718 = vmatprep.subr.bf16.mxu0 0
      %719 = vmatpush1.bf16.msra.mxu0 0
      %720 = vmatprep.subr.bf16.mxu0 0
      %721 = vmatpush1.bf16.msra.mxu0 0
      %722 = vmatprep.subr.bf16.mxu0 0
      %723 = vmatpush1.bf16.msra.mxu0 0
      %724 = vmatprep.subr.bf16.mxu0 0
      %725 = vmatpush1.bf16.msra.mxu0 0
      %726 = vmatprep.subr.bf16.mxu0 0
      %727 = vmatpush1.bf16.msra.mxu0 0
      %728 = vmatprep.subr.bf16.mxu0 0
      %729 = vmatpush1.bf16.msra.mxu0 0
      %730 = vmatprep.subr.bf16.mxu0 0
      %731 = vmatpush1.bf16.msra.mxu0 0
      %732 = vmatprep.subr.bf16.mxu0 0
      %733 = vmatpush1.bf16.msra.mxu0 0
      %734 = vmatprep.subr.bf16.mxu0 0
      %735 = vmatpush1.bf16.msra.mxu0 0
      %736 = vmatprep.subr.bf16.mxu0 0
      %737 = vmatpush1.bf16.msra.mxu0 0
      %738 = vmatprep.subr.bf16.mxu0 0
      %739 = vmatpush1.bf16.msra.mxu0 0
      %740 = vmatprep.mubr.bf16.mxu0 0
      %741 = vmatmul.mubr.bf16.gmra.mrb[0].mxu0 %v706
      %v742 = vpop.f32.mrb[0].mxu0
      %v743 = vadd.f32 0.0, %v742
      %v744 = vpop.f32.mrb[0].mxu0
      %v745 = vpop.f32.mrb[0].mxu0
      %v746 = vadd.f32 0.0, %v745
      %v747 = vpop.f32.mrb[0].mxu0
      %748 = vdwg.mxu0
      %s749 = scalar_lea.vmem %s5, 16
      %v750 = vld [vmem:[%s749] sm:$0xff]
      %v751 = vld [vmem:[%s749 + $0x8] sm:$0xff]
      %752 = vrot.lane.b32.xlu0 %v627, 112
      %v753 = vpop.permute.xlu0 %752
      %754 = vrot.lane.b32.xlu0 %v627, 48
      %v755 = vpop.permute.xlu0 %754
      %v757 = vsel %vm633, %v753, 0
      %v760 = vsel %vm633, %v755, 0
      %762 = vmatprep.subr.bf16.mxu0 0
      %763 = vmatpush1.bf16.xpose.msra.mxu0 %v760
      %764 = vmatprep.subr.bf16.mxu0 0
      %765 = vmatpush1.bf16.xpose.msra.mxu0 0
      %766 = vmatprep.subr.bf16.mxu0 0
      %767 = vmatpush1.bf16.xpose.msra.mxu0 0
      %768 = vmatprep.subr.bf16.mxu0 0
      %769 = vmatpush1.bf16.xpose.msra.mxu0 0
      %770 = vmatprep.subr.bf16.mxu0 0
      %771 = vmatpush1.bf16.xpose.msra.mxu0 0
      %772 = vmatprep.subr.bf16.mxu0 0
      %773 = vmatpush1.bf16.xpose.msra.mxu0 0
      %774 = vmatprep.subr.bf16.mxu0 0
      %775 = vmatpush1.bf16.xpose.msra.mxu0 0
      %776 = vmatprep.subr.bf16.mxu0 0
      %777 = vmatpush1.bf16.xpose.msra.mxu0 0
      %778 = vmatprep.subr.bf16.mxu0 0
      %779 = vmatpush1.bf16.xpose.msra.mxu0 0
      %780 = vmatprep.subr.bf16.mxu0 0
      %781 = vmatpush1.bf16.xpose.msra.mxu0 0
      %782 = vmatprep.subr.bf16.mxu0 0
      %783 = vmatpush1.bf16.xpose.msra.mxu0 0
      %784 = vmatprep.subr.bf16.mxu0 0
      %785 = vmatpush1.bf16.xpose.msra.mxu0 0
      %786 = vmatprep.subr.bf16.mxu0 0
      %787 = vmatpush1.bf16.xpose.msra.mxu0 0
      %788 = vmatprep.subr.bf16.mxu0 0
      %789 = vmatpush1.bf16.xpose.msra.mxu0 0
      %790 = vmatprep.subr.bf16.mxu0 0
      %791 = vmatpush1.bf16.xpose.msra.mxu0 0
      %792 = vmatprep.subr.bf16.mxu0 0
      %793 = vmatpush1.bf16.xpose.msra.mxu0 0
      %794 = vmatprep.mubr.bf16.mxu0 0
      %795 = vmatmul.mubr.bf16.gmra.mrb[0].mxu0 %v757
      %v796 = vpop.f32.mrb[0].mxu0
      %v797 = vadd.f32 %v750, %v796
      %v798 = vpop.f32.mrb[0].mxu0
      %v799 = vpop.f32.mrb[0].mxu0
      %v800 = vadd.f32 %v751, %v799
      %v801 = vpop.f32.mrb[0].mxu0
      %802 = vdwg.mxu0
      %v803 = vsel %vm633, %v797, -inf
      %804 = vmax.xlane.f32.xlu0 %v803
      %v805 = vpop.xlane.xlu0 %804
      %v806 = vsel %vm633, %v800, -inf
      %807 = vmax.xlane.f32.xlu0 %v806
      %v808 = vpop.xlane.xlu0 %807
      %v809 = vsub.f32 %v797, %v805
      %v810 = vsub.f32 %v800, %v808
      %v811 = vmul.f32 %v809, 1.442695
      %v812 = vpow.pop %v811
      %v813 = vmul.f32 %v810, 1.442695
      %v814 = vpow.pop %v813
      %v815 = vsel %vm633, %v812, 0.0
      %816 = vadd.xlane.f32.xlu0 %v815
      %v817 = vpop.xlane.xlu0 %816
      %v818 = vsel %vm633, %v814, 0.0
      %819 = vadd.xlane.f32.xlu0 %v818
      %v820 = vpop.xlane.xlu0 %819
      %v821 = vrcp.pop %v817
      %v822 = vrcp.pop %v820
      %v823 = vmul.f32 %v812, %v821
      %v824 = vmul.f32 %v814, %v822
      %v825 = vpack.c.bf16 %v824, %v823
      %827 = vrot.lane.b32.xlu0 %v704, 112
      %v828 = vpop.permute.xlu0 %827
      %v831 = vsel %vm633, %v825, 0
      %833 = vmatprep.subr.bf16.mxu0 0
      %834 = vmatpush1.bf16.msra.mxu0 %v828
      %835 = vmatprep.subr.bf16.mxu0 0
      %836 = vmatpush1.bf16.msra.mxu0 0
      %837 = vmatprep.subr.bf16.mxu0 0
      %838 = vmatpush1.bf16.msra.mxu0 0
      %839 = vmatprep.subr.bf16.mxu0 0
      %840 = vmatpush1.bf16.msra.mxu0 0
      %841 = vmatprep.subr.bf16.mxu0 0
      %842 = vmatpush1.bf16.msra.mxu0 0
      %843 = vmatprep.subr.bf16.mxu0 0
      %844 = vmatpush1.bf16.msra.mxu0 0
      %845 = vmatprep.subr.bf16.mxu0 0
      %846 = vmatpush1.bf16.msra.mxu0 0
      %847 = vmatprep.subr.bf16.mxu0 0
      %848 = vmatpush1.bf16.msra.mxu0 0
      %849 = vmatprep.subr.bf16.mxu0 0
      %850 = vmatpush1.bf16.msra.mxu0 0
      %851 = vmatprep.subr.bf16.mxu0 0
      %852 = vmatpush1.bf16.msra.mxu0 0
      %853 = vmatprep.subr.bf16.mxu0 0
      %854 = vmatpush1.bf16.msra.mxu0 0
      %855 = vmatprep.subr.bf16.mxu0 0
      %856 = vmatpush1.bf16.msra.mxu0 0
      %857 = vmatprep.subr.bf16.mxu0 0
      %858 = vmatpush1.bf16.msra.mxu0 0
      %859 = vmatprep.subr.bf16.mxu0 0
      %860 = vmatpush1.bf16.msra.mxu0 0
      %861 = vmatprep.subr.bf16.mxu0 0
      %862 = vmatpush1.bf16.msra.mxu0 0
      %863 = vmatprep.subr.bf16.mxu0 0
      %864 = vmatpush1.bf16.msra.mxu0 0
      %865 = vmatprep.mubr.bf16.mxu0 0
      %866 = vmatmul.mubr.bf16.gmra.mrb[0].mxu0 %v831
      %v867 = vpop.f32.mrb[0].mxu0
      %v868 = vadd.f32 0.0, %v867
      %v869 = vpop.f32.mrb[0].mxu0
      %v870 = vpop.f32.mrb[0].mxu0
      %v871 = vadd.f32 0.0, %v870
      %v872 = vpop.f32.mrb[0].mxu0
      %873 = vdwg.mxu0
      %s874 = scalar_lea.vmem %s5, 32
      %v875 = vld [vmem:[%s874] sm:$0xff]
      %v876 = vld [vmem:[%s874 + $0x8] sm:$0xff]
      %877 = vrot.lane.b32.xlu0 %v627, 96
      %v878 = vpop.permute.xlu0 %877
      %879 = vrot.lane.b32.xlu0 %v627, 32
      %v880 = vpop.permute.xlu0 %879
      %v882 = vsel %vm633, %v878, 0
      %v885 = vsel %vm633, %v880, 0
      %887 = vmatprep.subr.bf16.mxu0 0
      %888 = vmatpush1.bf16.xpose.msra.mxu0 %v885
      %889 = vmatprep.subr.bf16.mxu0 0
      %890 = vmatpush1.bf16.xpose.msra.mxu0 0
      %891 = vmatprep.subr.bf16.mxu0 0
      %892 = vmatpush1.bf16.xpose.msra.mxu0 0
      %893 = vmatprep.subr.bf16.mxu0 0
      %894 = vmatpush1.bf16.xpose.msra.mxu0 0
      %895 = vmatprep.subr.bf16.mxu0 0
      %896 = vmatpush1.bf16.xpose.msra.mxu0 0
      %897 = vmatprep.subr.bf16.mxu0 0
      %898 = vmatpush1.bf16.xpose.msra.mxu0 0
      %899 = vmatprep.subr.bf16.mxu0 0
      %900 = vmatpush1.bf16.xpose.msra.mxu0 0
      %901 = vmatprep.subr.bf16.mxu0 0
      %902 = vmatpush1.bf16.xpose.msra.mxu0 0
      %903 = vmatprep.subr.bf16.mxu0 0
      %904 = vmatpush1.bf16.xpose.msra.mxu0 0
      %905 = vmatprep.subr.bf16.mxu0 0
      %906 = vmatpush1.bf16.xpose.msra.mxu0 0
      %907 = vmatprep.subr.bf16.mxu0 0
      %908 = vmatpush1.bf16.xpose.msra.mxu0 0
      %909 = vmatprep.subr.bf16.mxu0 0
      %910 = vmatpush1.bf16.xpose.msra.mxu0 0
      %911 = vmatprep.subr.bf16.mxu0 0
      %912 = vmatpush1.bf16.xpose.msra.mxu0 0
      %913 = vmatprep.subr.bf16.mxu0 0
      %914 = vmatpush1.bf16.xpose.msra.mxu0 0
      %915 = vmatprep.subr.bf16.mxu0 0
      %916 = vmatpush1.bf16.xpose.msra.mxu0 0
      %917 = vmatprep.subr.bf16.mxu0 0
      %918 = vmatpush1.bf16.xpose.msra.mxu0 0
      %919 = vmatprep.mubr.bf16.mxu0 0
      %920 = vmatmul.mubr.bf16.gmra.mrb[0].mxu0 %v882
      %v921 = vpop.f32.mrb[0].mxu0
      %v922 = vadd.f32 %v875, %v921
      %v923 = vpop.f32.mrb[0].mxu0
      %v924 = vpop.f32.mrb[0].mxu0
      %v925 = vadd.f32 %v876, %v924
      %v926 = vpop.f32.mrb[0].mxu0
      %927 = vdwg.mxu0
      %v928 = vsel %vm633, %v922, -inf
      %929 = vmax.xlane.f32.xlu0 %v928
      %v930 = vpop.xlane.xlu0 %929
      %v931 = vsel %vm633, %v925, -inf
      %932 = vmax.xlane.f32.xlu0 %v931
      %v933 = vpop.xlane.xlu0 %932
      %v934 = vsub.f32 %v922, %v930
      %v935 = vsub.f32 %v925, %v933
      %v936 = vmul.f32 %v934, 1.442695
      %v937 = vpow.pop %v936
      %v938 = vmul.f32 %v935, 1.442695
      %v939 = vpow.pop %v938
      %v940 = vsel %vm633, %v937, 0.0
      %941 = vadd.xlane.f32.xlu0 %v940
      %v942 = vpop.xlane.xlu0 %941
      %v943 = vsel %vm633, %v939, 0.0
      %944 = vadd.xlane.f32.xlu0 %v943
      %v945 = vpop.xlane.xlu0 %944
      %v946 = vrcp.pop %v942
      %v947 = vrcp.pop %v945
      %v948 = vmul.f32 %v937, %v946
      %v949 = vmul.f32 %v939, %v947
      %v950 = vpack.c.bf16 %v949, %v948
      %951 = vrot.lane.b32.xlu0 %v704, 96
      %v952 = vpop.permute.xlu0 %951
      %v955 = vsel %vm633, %v950, 0
      %957 = vmatprep.subr.bf16.mxu0 0
      %958 = vmatpush1.bf16.msra.mxu0 %v952
      %959 = vmatprep.subr.bf16.mxu0 0
      %960 = vmatpush1.bf16.msra.mxu0 0
      %961 = vmatprep.subr.bf16.mxu0 0
      %962 = vmatpush1.bf16.msra.mxu0 0
      %963 = vmatprep.subr.bf16.mxu0 0
      %964 = vmatpush1.bf16.msra.mxu0 0
      %965 = vmatprep.subr.bf16.mxu0 0
      %966 = vmatpush1.bf16.msra.mxu0 0
      %967 = vmatprep.subr.bf16.mxu0 0
      %968 = vmatpush1.bf16.msra.mxu0 0
      %969 = vmatprep.subr.bf16.mxu0 0
      %970 = vmatpush1.bf16.msra.mxu0 0
      %971 = vmatprep.subr.bf16.mxu0 0
      %972 = vmatpush1.bf16.msra.mxu0 0
      %973 = vmatprep.subr.bf16.mxu0 0
      %974 = vmatpush1.bf16.msra.mxu0 0
      %975 = vmatprep.subr.bf16.mxu0 0
      %976 = vmatpush1.bf16.msra.mxu0 0
      %977 = vmatprep.subr.bf16.mxu0 0
      %978 = vmatpush1.bf16.msra.mxu0 0
      %979 = vmatprep.subr.bf16.mxu0 0
      %980 = vmatpush1.bf16.msra.mxu0 0
      %981 = vmatprep.subr.bf16.mxu0 0
      %982 = vmatpush1.bf16.msra.mxu0 0
      %983 = vmatprep.subr.bf16.mxu0 0
      %984 = vmatpush1.bf16.msra.mxu0 0
      %985 = vmatprep.subr.bf16.mxu0 0
      %986 = vmatpush1.bf16.msra.mxu0 0
      %987 = vmatprep.subr.bf16.mxu0 0
      %988 = vmatpush1.bf16.msra.mxu0 0
      %989 = vmatprep.mubr.bf16.mxu0 0
      %990 = vmatmul.mubr.bf16.gmra.mrb[0].mxu0 %v955
      %v991 = vpop.f32.mrb[0].mxu0
      %v992 = vadd.f32 0.0, %v991
      %v993 = vpop.f32.mrb[0].mxu0
      %v994 = vpop.f32.mrb[0].mxu0
      %v995 = vadd.f32 0.0, %v994
      %v996 = vpop.f32.mrb[0].mxu0
      %997 = vdwg.mxu0
      %s998 = scalar_lea.vmem %s5, 48
      %v999 = vld [vmem:[%s998] sm:$0xff]
      %v1000 = vld [vmem:[%s998 + $0x8] sm:$0xff]
      %1001 = vrot.lane.b32.xlu0 %v627, 80
      %v1002 = vpop.permute.xlu0 %1001
      %1003 = vrot.lane.b32.xlu0 %v627, 16
      %v1004 = vpop.permute.xlu0 %1003
      %v1006 = vsel %vm633, %v1002, 0
      %v1009 = vsel %vm633, %v1004, 0
      %1011 = vmatprep.subr.bf16.mxu0 0
      %1012 = vmatpush1.bf16.xpose.msra.mxu0 %v1009
      %1013 = vmatprep.subr.bf16.mxu0 0
      %1014 = vmatpush1.bf16.xpose.msra.mxu0 0
      %1015 = vmatprep.subr.bf16.mxu0 0
      %1016 = vmatpush1.bf16.xpose.msra.mxu0 0
      %1017 = vmatprep.subr.bf16.mxu0 0
      %1018 = vmatpush1.bf16.xpose.msra.mxu0 0
      %1019 = vmatprep.subr.bf16.mxu0 0
      %1020 = vmatpush1.bf16.xpose.msra.mxu0 0
      %1021 = vmatprep.subr.bf16.mxu0 0
      %1022 = vmatpush1.bf16.xpose.msra.mxu0 0
      %1023 = vmatprep.subr.bf16.mxu0 0
      %1024 = vmatpush1.bf16.xpose.msra.mxu0 0
      %1025 = vmatprep.subr.bf16.mxu0 0
      %1026 = vmatpush1.bf16.xpose.msra.mxu0 0
      %1027 = vmatprep.subr.bf16.mxu0 0
      %1028 = vmatpush1.bf16.xpose.msra.mxu0 0
      %1029 = vmatprep.subr.bf16.mxu0 0
      %1030 = vmatpush1.bf16.xpose.msra.mxu0 0
      %1031 = vmatprep.subr.bf16.mxu0 0
      %1032 = vmatpush1.bf16.xpose.msra.mxu0 0
      %1033 = vmatprep.subr.bf16.mxu0 0
      %1034 = vmatpush1.bf16.xpose.msra.mxu0 0
      %1035 = vmatprep.subr.bf16.mxu0 0
      %1036 = vmatpush1.bf16.xpose.msra.mxu0 0
      %1037 = vmatprep.subr.bf16.mxu0 0
      %1038 = vmatpush1.bf16.xpose.msra.mxu0 0
      %1039 = vmatprep.subr.bf16.mxu0 0
      %1040 = vmatpush1.bf16.xpose.msra.mxu0 0
      %1041 = vmatprep.subr.bf16.mxu0 0
      %1042 = vmatpush1.bf16.xpose.msra.mxu0 0
      %1043 = vmatprep.mubr.bf16.mxu0 0
      %1044 = vmatmul.mubr.bf16.gmra.mrb[0].mxu0 %v1006
      %v1045 = vpop.f32.mrb[0].mxu0
      %v1046 = vadd.f32 %v999, %v1045
      %v1047 = vpop.f32.mrb[0].mxu0
      %v1048 = vpop.f32.mrb[0].mxu0
      %v1049 = vadd.f32 %v1000, %v1048
      %v1050 = vpop.f32.mrb[0].mxu0
      %1051 = vdwg.mxu0
      %v1052 = vsel %vm633, %v1046, -inf
      %1053 = vmax.xlane.f32.xlu0 %v1052
      %v1054 = vpop.xlane.xlu0 %1053
      %v1055 = vsel %vm633, %v1049, -inf
      %1056 = vmax.xlane.f32.xlu0 %v1055
      %v1057 = vpop.xlane.xlu0 %1056
      %v1058 = vsub.f32 %v1046, %v1054
      %v1059 = vsub.f32 %v1049, %v1057
      %v1060 = vmul.f32 %v1058, 1.442695
      %v1061 = vpow.pop %v1060
      %v1062 = vmul.f32 %v1059, 1.442695
      %v1063 = vpow.pop %v1062
      %v1064 = vsel %vm633, %v1061, 0.0
      %1065 = vadd.xlane.f32.xlu0 %v1064
      %v1066 = vpop.xlane.xlu0 %1065
      %v1067 = vsel %vm633, %v1063, 0.0
      %1068 = vadd.xlane.f32.xlu0 %v1067
      %v1069 = vpop.xlane.xlu0 %1068
      %v1070 = vrcp.pop %v1066
      %v1071 = vrcp.pop %v1069
      %v1072 = vmul.f32 %v1061, %v1070
      %v1073 = vmul.f32 %v1063, %v1071
      %v1074 = vpack.c.bf16 %v1073, %v1072
      %1075 = vrot.lane.b32.xlu0 %v704, 80
      %v1076 = vpop.permute.xlu0 %1075
      %v1079 = vsel %vm633, %v1074, 0
      %1081 = vmatprep.subr.bf16.mxu0 0
      %1082 = vmatpush1.bf16.msra.mxu0 %v1076
      %1083 = vmatprep.subr.bf16.mxu0 0
      %1084 = vmatpush1.bf16.msra.mxu0 0
      %1085 = vmatprep.subr.bf16.mxu0 0
      %1086 = vmatpush1.bf16.msra.mxu0 0
      %1087 = vmatprep.subr.bf16.mxu0 0
      %1088 = vmatpush1.bf16.msra.mxu0 0
      %1089 = vmatprep.subr.bf16.mxu0 0
      %1090 = vmatpush1.bf16.msra.mxu0 0
      %1091 = vmatprep.subr.bf16.mxu0 0
      %1092 = vmatpush1.bf16.msra.mxu0 0
      %1093 = vmatprep.subr.bf16.mxu0 0
      %1094 = vmatpush1.bf16.msra.mxu0 0
      %1095 = vmatprep.subr.bf16.mxu0 0
      %1096 = vmatpush1.bf16.msra.mxu0 0
      %1097 = vmatprep.subr.bf16.mxu0 0
      %1098 = vmatpush1.bf16.msra.mxu0 0
      %1099 = vmatprep.subr.bf16.mxu0 0
      %1100 = vmatpush1.bf16.msra.mxu0 0
      %1101 = vmatprep.subr.bf16.mxu0 0
      %1102 = vmatpush1.bf16.msra.mxu0 0
      %1103 = vmatprep.subr.bf16.mxu0 0
      %1104 = vmatpush1.bf16.msra.mxu0 0
      %1105 = vmatprep.subr.bf16.mxu0 0
      %1106 = vmatpush1.bf16.msra.mxu0 0
      %1107 = vmatprep.subr.bf16.mxu0 0
      %1108 = vmatpush1.bf16.msra.mxu0 0
      %1109 = vmatprep.subr.bf16.mxu0 0
      %1110 = vmatpush1.bf16.msra.mxu0 0
      %1111 = vmatprep.subr.bf16.mxu0 0
      %1112 = vmatpush1.bf16.msra.mxu0 0
      %1113 = vmatprep.mubr.bf16.mxu0 0
      %1114 = vmatmul.mubr.bf16.gmra.mrb[0].mxu0 %v1079
      %v1115 = vpop.f32.mrb[0].mxu0
      %v1116 = vadd.f32 0.0, %v1115
      %v1117 = vpop.f32.mrb[0].mxu0
      %v1118 = vpop.f32.mrb[0].mxu0
      %v1119 = vadd.f32 0.0, %v1118
      %v1120 = vpop.f32.mrb[0].mxu0
      %1121 = vdwg.mxu0
      %1124 = vrot.lane.b32.xlu0 %v868, 16
      %v1125 = vpop.permute.xlu0 %1124
      %1126 = vrot.lane.b32.xlu0 %v871, 16
      %v1127 = vpop.permute.xlu0 %1126
      %1132 = vrot.lane.b32.xlu0 %v992, 32
      %v1133 = vpop.permute.xlu0 %1132
      %1134 = vrot.lane.b32.xlu0 %v995, 32
      %v1135 = vpop.permute.xlu0 %1134
      %1140 = vrot.lane.b32.xlu0 %v1116, 48
      %v1141 = vpop.permute.xlu0 %1140
      %1142 = vrot.lane.b32.xlu0 %v1119, 48
      %v1143 = vpop.permute.xlu0 %1142
      %v1146 = vsel %vm633, %v743, %v1125
      %v1147 = vsel %vm633, %v746, %v1127
      %vm1148 = vcmask 261120
      %v1149 = vsel %vm1148, %v1146, %v1133
      %v1150 = vsel %vm1148, %v1147, %v1135
      %vm1151 = vcmask 392192
      %v1152 = vsel %vm1151, %v1149, %v1141
      %v1153 = vsel %vm1151, %v1150, %v1143
      %v1154 = vld [vmem:[%s6] sm:$0xf]
      %v1155 = vld [vmem:[%s6 + $0x4] sm:$0xf]
      %v1156 = vld [vmem:[%s6 + $0x8] sm:$0xf]
      %v1157 = vld [vmem:[%s6 + $0xc] sm:$0xf]
      %v1158 = vld [vmem:[%s6 + $0x10] sm:$0xf]
      %v1159 = vld [vmem:[%s6 + $0x14] sm:$0xf]
      %v1160 = vld [vmem:[%s6 + $0x18] sm:$0xf]
      %v1161 = vld [vmem:[%s6 + $0x1c] sm:$0xf]
      %v1162 = vpack.c.bf16 %v1153, %v1152
      %v1171 = vunpack.c.l.b16 %v1154
      %v1172 = vunpack.c.l.b16 %v1155
      %v1173 = vunpack.c.l.b16 %v1156
      %v1174 = vunpack.c.l.b16 %v1157
      %v1175 = vunpack.c.l.b16 %v1158
      %v1176 = vunpack.c.l.b16 %v1159
      %v1177 = vunpack.c.l.b16 %v1160
      %v1178 = vunpack.c.l.b16 %v1161
      %v1179 = vpack.c.b16 %v1172, %v1171
      %v1180 = vpack.c.b16 %v1174, %v1173
      %v1181 = vpack.c.b16 %v1176, %v1175
      %v1182 = vpack.c.b16 %v1178, %v1177
      %v1188 = vsel %vm476, %v1162, 0
      %1190 = vmatprep.subr.bf16.mxu0 0
      %1191 = vmatpush1.bf16.msra.mxu0 %v1179
      %1192 = vmatprep.subr.bf16.mxu0 0
      %1193 = vmatpush1.bf16.msra.mxu0 %v1180
      %1194 = vmatprep.subr.bf16.mxu0 0
      %1195 = vmatpush1.bf16.msra.mxu0 %v1181
      %1196 = vmatprep.subr.bf16.mxu0 0
      %1197 = vmatpush1.bf16.msra.mxu0 %v1182
      %1198 = vmatprep.subr.bf16.mxu0 0
      %1199 = vmatpush1.bf16.msra.mxu0 0
      %1200 = vmatprep.subr.bf16.mxu0 0
      %1201 = vmatpush1.bf16.msra.mxu0 0
      %1202 = vmatprep.subr.bf16.mxu0 0
      %1203 = vmatpush1.bf16.msra.mxu0 0
      %1204 = vmatprep.subr.bf16.mxu0 0
      %1205 = vmatpush1.bf16.msra.mxu0 0
      %1206 = vmatprep.subr.bf16.mxu0 0
      %1207 = vmatpush1.bf16.msra.mxu0 0
      %1208 = vmatprep.subr.bf16.mxu0 0
      %1209 = vmatpush1.bf16.msra.mxu0 0
      %1210 = vmatprep.subr.bf16.mxu0 0
      %1211 = vmatpush1.bf16.msra.mxu0 0
      %1212 = vmatprep.subr.bf16.mxu0 0
      %1213 = vmatpush1.bf16.msra.mxu0 0
      %1214 = vmatprep.subr.bf16.mxu0 0
      %1215 = vmatpush1.bf16.msra.mxu0 0
      %1216 = vmatprep.subr.bf16.mxu0 0
      %1217 = vmatpush1.bf16.msra.mxu0 0
      %1218 = vmatprep.subr.bf16.mxu0 0
      %1219 = vmatpush1.bf16.msra.mxu0 0
      %1220 = vmatprep.subr.bf16.mxu0 0
      %1221 = vmatpush1.bf16.msra.mxu0 0
      %1222 = vmatprep.mubr.bf16.mxu0 0
      %1223 = vmatmul.mubr.bf16.gmra.mrb[0].mxu0 %v1188
      %v1224 = vpop.f32.mrb[0].mxu0
      %v1225 = vadd.f32 0.0, %v1224
      %v1226 = vpop.f32.mrb[0].mxu0
      %v1227 = vpop.f32.mrb[0].mxu0
      %v1228 = vadd.f32 0.0, %v1227
      %v1229 = vpop.f32.mrb[0].mxu0
      %1230 = vdwg.mxu0
      %v1231 = vadd.f32 %v472, %v1225
      %v1232 = vadd.f32 %v473, %v1228
      %v1233 = vld [vmem:[%s7] sm:$0x1]
      %v1235 = vlaneseq
      %v1236 = vshrl.u32 %v1235, 7
      %v1237 = vsub.s32 0, %v1236
      %v1238 = vrot.slane %v1233, %v1237
      %v1240 = vadd.f32 %v1231, %v1238
      %v1241 = vadd.f32 %v1232, %v1238
      %v1242 = vld [vmem:[%s8] sm:$0x1]
      %v1243 = vld [vmem:[%s9] sm:$0x1]
      %v1244 = vsel %vm476, %v1240, 0.0
      %1245 = vadd.xlane.f32.xlu0 %v1244
      %v1246 = vpop.xlane.xlu0 %1245
      %v1247 = vsel %vm476, %v1241, 0.0
      %1248 = vadd.xlane.f32.xlu0 %v1247
      %v1249 = vpop.xlane.xlu0 %1248
      %v1250 = vmul.f32 %v1246, %v483
      %v1251 = vmul.f32 %v1249, %v483
      %v1252 = vsub.f32 %v1240, %v1250
      %v1253 = vsub.f32 %v1241, %v1251
      %v1254 = vmul.f32 %v1252, %v1252
      %v1255 = vmul.f32 %v1253, %v1253
      %v1256 = vsel %vm476, %v1254, 0.0
      %1257 = vadd.xlane.f32.xlu0 %v1256
      %v1258 = vpop.xlane.xlu0 %1257
      %v1259 = vsel %vm476, %v1255, 0.0
      %1260 = vadd.xlane.f32.xlu0 %v1259
      %v1261 = vpop.xlane.xlu0 %1260
      %v1262 = vmul.f32 %v1258, %v483
      %v1263 = vmul.f32 %v1261, %v483
      %v1264 = vadd.f32 %v1262, 1e-05
      %v1265 = vadd.f32 %v1263, 1e-05
      %v1266 = vrsqrt.pop %v1264
      %v1267 = vrsqrt.pop %v1265
      %v1268 = vmul.f32 %v1252, %v1266
      %v1269 = vmul.f32 %v1253, %v1267
      %v1271 = vlaneseq
      %v1272 = vshrl.u32 %v1271, 7
      %v1273 = vsub.s32 0, %v1272
      %v1274 = vrot.slane %v1242, %v1273
      %v1276 = vmul.f32 %v1268, %v1274
      %v1277 = vmul.f32 %v1269, %v1274
      %v1279 = vlaneseq
      %v1280 = vshrl.u32 %v1279, 7
      %v1281 = vsub.s32 0, %v1280
      %v1282 = vrot.slane %v1243, %v1281
      %v1284 = vadd.f32 %v1276, %v1282
      %v1285 = vadd.f32 %v1277, %v1282
      %v1286 = vld [vmem:[%s10] sm:$0xff]
      %v1287 = vld [vmem:[%s10 + $0x8] sm:$0xff]
      %v1288 = vld [vmem:[%s10 + $0x10] sm:$0xff]
      %v1289 = vld [vmem:[%s10 + $0x18] sm:$0xff]
      %v1290 = vld [vmem:[%s10 + $0x20] sm:$0xff]
      %v1291 = vld [vmem:[%s10 + $0x28] sm:$0xff]
      %v1292 = vld [vmem:[%s10 + $0x30] sm:$0xff]
      %v1293 = vld [vmem:[%s10 + $0x38] sm:$0xff]
      %v1294 = vpack.c.bf16 %v1285, %v1284
      %v1295 = vld [vmem:[%s11] sm:$0x3]
      %v1297 = vlaneseq
      %v1298 = vshrl.u32 %v1297, 7
      %v1299 = vsub.s32 0, %v1298
      %v1300 = vrot.slane %v1295, %v1299
      %v1301 = vlaneseq
      %v1302 = vshrl.u32 %v1301, 7
      %v1303 = vsub.s32 1, %v1302
      %v1304 = vrot.slane %v1295, %v1303
      %v1315 = vunpack.c.l.b16 %v1286
      %v1316 = vunpack.c.h.b16 %v1286
      %v1317 = vunpack.c.l.b16 %v1287
      %v1318 = vunpack.c.h.b16 %v1287
      %v1319 = vunpack.c.l.b16 %v1288
      %v1320 = vunpack.c.h.b16 %v1288
      %v1321 = vunpack.c.l.b16 %v1289
      %v1322 = vunpack.c.h.b16 %v1289
      %v1323 = vunpack.c.l.b16 %v1290
      %v1324 = vunpack.c.h.b16 %v1290
      %v1325 = vunpack.c.l.b16 %v1291
      %v1326 = vunpack.c.h.b16 %v1291
      %v1327 = vunpack.c.l.b16 %v1292
      %v1328 = vunpack.c.h.b16 %v1292
      %v1329 = vunpack.c.l.b16 %v1293
      %v1330 = vunpack.c.h.b16 %v1293
      %v1331 = vpack.c.b16 %v1317, %v1315
      %v1332 = vpack.c.b16 %v1318, %v1316
      %v1333 = vpack.c.b16 %v1321, %v1319
      %v1334 = vpack.c.b16 %v1322, %v1320
      %v1335 = vpack.c.b16 %v1325, %v1323
      %v1336 = vpack.c.b16 %v1326, %v1324
      %v1337 = vpack.c.b16 %v1329, %v1327
      %v1338 = vpack.c.b16 %v1330, %v1328
      %v1348 = vsel %vm476, %v1294, 0
      %1350 = vmatprep.subr.bf16.mxu0 %v1332
      %1351 = vmatpush1.bf16.msra.mxu0 %v1331
      %1352 = vmatprep.subr.bf16.mxu0 %v1334
      %1353 = vmatpush1.bf16.msra.mxu0 %v1333
      %1354 = vmatprep.subr.bf16.mxu0 %v1336
      %1355 = vmatpush1.bf16.msra.mxu0 %v1335
      %1356 = vmatprep.subr.bf16.mxu0 %v1338
      %1357 = vmatpush1.bf16.msra.mxu0 %v1337
      %1358 = vmatprep.subr.bf16.mxu0 0
      %1359 = vmatpush1.bf16.msra.mxu0 0
      %1360 = vmatprep.subr.bf16.mxu0 0
      %1361 = vmatpush1.bf16.msra.mxu0 0
      %1362 = vmatprep.subr.bf16.mxu0 0
      %1363 = vmatpush1.bf16.msra.mxu0 0
      %1364 = vmatprep.subr.bf16.mxu0 0
      %1365 = vmatpush1.bf16.msra.mxu0 0
      %1366 = vmatprep.subr.bf16.mxu0 0
      %1367 = vmatpush1.bf16.msra.mxu0 0
      %1368 = vmatprep.subr.bf16.mxu0 0
      %1369 = vmatpush1.bf16.msra.mxu0 0
      %1370 = vmatprep.subr.bf16.mxu0 0
      %1371 = vmatpush1.bf16.msra.mxu0 0
      %1372 = vmatprep.subr.bf16.mxu0 0
      %1373 = vmatpush1.bf16.msra.mxu0 0
      %1374 = vmatprep.subr.bf16.mxu0 0
      %1375 = vmatpush1.bf16.msra.mxu0 0
      %1376 = vmatprep.subr.bf16.mxu0 0
      %1377 = vmatpush1.bf16.msra.mxu0 0
      %1378 = vmatprep.subr.bf16.mxu0 0
      %1379 = vmatpush1.bf16.msra.mxu0 0
      %1380 = vmatprep.subr.bf16.mxu0 0
      %1381 = vmatpush1.bf16.msra.mxu0 0
      %1382 = vmatprep.mubr.bf16.mxu0 0
      %1383 = vmatmul.mubr.bf16.gmra.mrb[0].mxu0 %v1348
      %v1384 = vpop.f32.mrb[0].mxu0
      %v1385 = vadd.f32 %v1300, %v1384
      %v1386 = vpop.f32.mrb[0].mxu0
      %v1387 = vadd.f32 %v1304, %v1386
      %v1388 = vpop.f32.mrb[0].mxu0
      %v1389 = vadd.f32 %v1300, %v1388
      %v1390 = vpop.f32.mrb[0].mxu0
      %v1391 = vadd.f32 %v1304, %v1390
      %1392 = vdwg.mxu0
      %v1393 = vmul.f32 %v1385, 0.5
      %v1394 = vmul.f32 %v1387, 0.5
      %v1395 = vmul.f32 %v1389, 0.5
      %v1396 = vmul.f32 %v1391, 0.5
      %v1397 = vmul.f32 %v1385, 0.70710677
      %v1398 = vmul.f32 %v1387, 0.70710677
      %v1399 = vmul.f32 %v1389, 0.70710677
      %v1400 = vmul.f32 %v1391, 0.70710677
      %v1401 = vand.u32 2147483647, %v1397
      %v1402 = vand.u32 2147483647, %v1398
      %v1403 = vand.u32 2147483647, %v1399
      %v1404 = vand.u32 2147483647, %v1400
      %v1405 = vmul.f32 %v1401, 0.3275911
      %v1406 = vmul.f32 %v1402, 0.3275911
      %v1407 = vmul.f32 %v1403, 0.3275911
      %v1408 = vmul.f32 %v1404, 0.3275911
      %v1409 = vadd.f32 %v1405, 1.0
      %v1410 = vadd.f32 %v1406, 1.0
      %v1411 = vadd.f32 %v1407, 1.0
      %v1412 = vadd.f32 %v1408, 1.0
      %v1413 = vrcp.pop %v1409
      %v1414 = vmul.f32 1.0, %v1413
      %v1415 = vrcp.pop %v1410
      %v1416 = vmul.f32 1.0, %v1415
      %v1417 = vrcp.pop %v1411
      %v1418 = vmul.f32 1.0, %v1417
      %v1419 = vrcp.pop %v1412
      %v1420 = vmul.f32 1.0, %v1419
      %v1421 = vmul.f32 %v1414, 1.0614054
      %v1422 = vmul.f32 %v1416, 1.0614054
      %v1423 = vmul.f32 %v1418, 1.0614054
      %v1424 = vmul.f32 %v1420, 1.0614054
      %v1425 = vadd.f32 %v1421, -1.4531521
      %v1426 = vadd.f32 %v1422, -1.4531521
      %v1427 = vadd.f32 %v1423, -1.4531521
      %v1428 = vadd.f32 %v1424, -1.4531521
      %v1429 = vmul.f32 %v1414, %v1425
      %v1430 = vmul.f32 %v1416, %v1426
      %v1431 = vmul.f32 %v1418, %v1427
      %v1432 = vmul.f32 %v1420, %v1428
      %v1433 = vadd.f32 %v1429, 1.4214138
      %v1434 = vadd.f32 %v1430, 1.4214138
      %v1435 = vadd.f32 %v1431, 1.4214138
      %v1436 = vadd.f32 %v1432, 1.4214138
      %v1437 = vmul.f32 %v1414, %v1433
      %v1438 = vmul.f32 %v1416, %v1434
      %v1439 = vmul.f32 %v1418, %v1435
      %v1440 = vmul.f32 %v1420, %v1436
      %v1441 = vadd.f32 %v1437, -0.28449672
      %v1442 = vadd.f32 %v1438, -0.28449672
      %v1443 = vadd.f32 %v1439, -0.28449672
      %v1444 = vadd.f32 %v1440, -0.28449672
      %v1445 = vmul.f32 %v1414, %v1441
      %v1446 = vmul.f32 %v1416, %v1442
      %v1447 = vmul.f32 %v1418, %v1443
      %v1448 = vmul.f32 %v1420, %v1444
      %v1449 = vadd.f32 %v1445, 0.2548296
      %v1450 = vadd.f32 %v1446, 0.2548296
      %v1451 = vadd.f32 %v1447, 0.2548296
      %v1452 = vadd.f32 %v1448, 0.2548296
      %v1453 = vmul.f32 %v1414, %v1449
      %v1454 = vmul.f32 %v1416, %v1450
      %v1455 = vmul.f32 %v1418, %v1451
      %v1456 = vmul.f32 %v1420, %v1452
      %v1457 = vmul.f32 %v1401, %v1401
      %v1458 = vmul.f32 %v1402, %v1402
      %v1459 = vmul.f32 %v1403, %v1403
      %v1460 = vmul.f32 %v1404, %v1404
      %v1461 = vsub.f32 0.0, %v1457
      %v1462 = vsub.f32 0.0, %v1458
      %v1463 = vsub.f32 0.0, %v1459
      %v1464 = vsub.f32 0.0, %v1460
      %v1465 = vmul.f32 %v1461, 1.442695
      %v1466 = vpow.pop %v1465
      %v1467 = vmul.f32 %v1462, 1.442695
      %v1468 = vpow.pop %v1467
      %v1469 = vmul.f32 %v1463, 1.442695
      %v1470 = vpow.pop %v1469
      %v1471 = vmul.f32 %v1464, 1.442695
      %v1472 = vpow.pop %v1471
      %v1473 = vmul.f32 %v1453, %v1466
      %v1474 = vmul.f32 %v1454, %v1468
      %v1475 = vmul.f32 %v1455, %v1470
      %v1476 = vmul.f32 %v1456, %v1472
      %v1477 = vsub.f32 1.0, %v1473
      %v1478 = vsub.f32 1.0, %v1474
      %v1479 = vsub.f32 1.0, %v1475
      %v1480 = vsub.f32 1.0, %v1476
      %vm1481 = vcmp.lt.f32.partialorder %v1397, 0.0
      %vm1482 = vcmp.lt.f32.partialorder %v1398, 0.0
      %vm1483 = vcmp.lt.f32.partialorder %v1399, 0.0
      %vm1484 = vcmp.lt.f32.partialorder %v1400, 0.0
      %v1485 = vsub.f32 0.0, %v1477
      %v1486 = vsub.f32 0.0, %v1478
      %v1487 = vsub.f32 0.0, %v1479
      %v1488 = vsub.f32 0.0, %v1480
      %v1489 = vsel %vm1481, %v1485, %v1477
      %v1490 = vsel %vm1482, %v1486, %v1478
      %v1491 = vsel %vm1483, %v1487, %v1479
      %v1492 = vsel %vm1484, %v1488, %v1480
      %v1493 = vadd.f32 %v1489, 1.0
      %v1494 = vadd.f32 %v1490, 1.0
      %v1495 = vadd.f32 %v1491, 1.0
      %v1496 = vadd.f32 %v1492, 1.0
      %v1497 = vmul.f32 %v1393, %v1493
      %v1498 = vmul.f32 %v1394, %v1494
      %v1499 = vmul.f32 %v1395, %v1495
      %v1500 = vmul.f32 %v1396, %v1496
      %v1501 = vld [vmem:[%s12] sm:$0xf]
      %v1502 = vld [vmem:[%s12 + $0x4] sm:$0xf]
      %v1503 = vld [vmem:[%s12 + $0x8] sm:$0xf]
      %v1504 = vld [vmem:[%s12 + $0xc] sm:$0xf]
      %v1505 = vld [vmem:[%s12 + $0x10] sm:$0xf]
      %v1506 = vld [vmem:[%s12 + $0x14] sm:$0xf]
      %v1507 = vld [vmem:[%s12 + $0x18] sm:$0xf]
      %v1508 = vld [vmem:[%s12 + $0x1c] sm:$0xf]
      %v1509 = vld [vmem:[%s12 + $0x20] sm:$0xf]
      %v1510 = vld [vmem:[%s12 + $0x24] sm:$0xf]
      %v1511 = vld [vmem:[%s12 + $0x28] sm:$0xf]
      %v1512 = vld [vmem:[%s12 + $0x2c] sm:$0xf]
      %v1513 = vld [vmem:[%s12 + $0x30] sm:$0xf]
      %v1514 = vld [vmem:[%s12 + $0x34] sm:$0xf]
      %v1515 = vld [vmem:[%s12 + $0x38] sm:$0xf]
      %v1516 = vld [vmem:[%s12 + $0x3c] sm:$0xf]
      %v1517 = vld [vmem:[%s12 + $0x40] sm:$0xf]
      %v1518 = vld [vmem:[%s12 + $0x44] sm:$0xf]
      %v1519 = vld [vmem:[%s12 + $0x48] sm:$0xf]
      %v1520 = vld [vmem:[%s12 + $0x4c] sm:$0xf]
      %v1521 = vld [vmem:[%s12 + $0x50] sm:$0xf]
      %v1522 = vld [vmem:[%s12 + $0x54] sm:$0xf]
      %v1523 = vld [vmem:[%s12 + $0x58] sm:$0xf]
      %v1524 = vld [vmem:[%s12 + $0x5c] sm:$0xf]
      %v1525 = vld [vmem:[%s12 + $0x60] sm:$0xf]
      %v1526 = vld [vmem:[%s12 + $0x64] sm:$0xf]
      %v1527 = vld [vmem:[%s12 + $0x68] sm:$0xf]
      %v1528 = vld [vmem:[%s12 + $0x6c] sm:$0xf]
      %v1529 = vld [vmem:[%s12 + $0x70] sm:$0xf]
      %v1530 = vld [vmem:[%s12 + $0x74] sm:$0xf]
      %v1531 = vld [vmem:[%s12 + $0x78] sm:$0xf]
      %v1532 = vld [vmem:[%s12 + $0x7c] sm:$0xf]
      %v1533 = vpack.c.bf16 %v1499, %v1497
      %v1534 = vpack.c.bf16 %v1500, %v1498
      %v1567 = vunpack.c.l.b16 %v1501
      %v1568 = vunpack.c.l.b16 %v1502
      %v1569 = vunpack.c.l.b16 %v1503
      %v1570 = vunpack.c.l.b16 %v1504
      %v1571 = vunpack.c.l.b16 %v1505
      %v1572 = vunpack.c.l.b16 %v1506
      %v1573 = vunpack.c.l.b16 %v1507
      %v1574 = vunpack.c.l.b16 %v1508
      %v1575 = vunpack.c.l.b16 %v1509
      %v1576 = vunpack.c.l.b16 %v1510
      %v1577 = vunpack.c.l.b16 %v1511
      %v1578 = vunpack.c.l.b16 %v1512
      %v1579 = vunpack.c.l.b16 %v1513
      %v1580 = vunpack.c.l.b16 %v1514
      %v1581 = vunpack.c.l.b16 %v1515
      %v1582 = vunpack.c.l.b16 %v1516
      %v1583 = vunpack.c.l.b16 %v1517
      %v1584 = vunpack.c.l.b16 %v1518
      %v1585 = vunpack.c.l.b16 %v1519
      %v1586 = vunpack.c.l.b16 %v1520
      %v1587 = vunpack.c.l.b16 %v1521
      %v1588 = vunpack.c.l.b16 %v1522
      %v1589 = vunpack.c.l.b16 %v1523
      %v1590 = vunpack.c.l.b16 %v1524
      %v1591 = vunpack.c.l.b16 %v1525
      %v1592 = vunpack.c.l.b16 %v1526
      %v1593 = vunpack.c.l.b16 %v1527
      %v1594 = vunpack.c.l.b16 %v1528
      %v1595 = vunpack.c.l.b16 %v1529
      %v1596 = vunpack.c.l.b16 %v1530
      %v1597 = vunpack.c.l.b16 %v1531
      %v1598 = vunpack.c.l.b16 %v1532
      %v1599 = vpack.c.b16 %v1568, %v1567
      %v1600 = vpack.c.b16 %v1570, %v1569
      %v1601 = vpack.c.b16 %v1572, %v1571
      %v1602 = vpack.c.b16 %v1574, %v1573
      %v1603 = vpack.c.b16 %v1576, %v1575
      %v1604 = vpack.c.b16 %v1578, %v1577
      %v1605 = vpack.c.b16 %v1580, %v1579
      %v1606 = vpack.c.b16 %v1582, %v1581
      %v1607 = vpack.c.b16 %v1584, %v1583
      %v1608 = vpack.c.b16 %v1586, %v1585
      %v1609 = vpack.c.b16 %v1588, %v1587
      %v1610 = vpack.c.b16 %v1590, %v1589
      %v1611 = vpack.c.b16 %v1592, %v1591
      %v1612 = vpack.c.b16 %v1594, %v1593
      %v1613 = vpack.c.b16 %v1596, %v1595
      %v1614 = vpack.c.b16 %v1598, %v1597
      %1631 = vmatprep.subr.bf16.mxu0 0
      %1632 = vmatpush1.bf16.msra.mxu0 %v1599
      %1633 = vmatprep.subr.bf16.mxu0 0
      %1634 = vmatpush1.bf16.msra.mxu0 %v1600
      %1635 = vmatprep.subr.bf16.mxu0 0
      %1636 = vmatpush1.bf16.msra.mxu0 %v1601
      %1637 = vmatprep.subr.bf16.mxu0 0
      %1638 = vmatpush1.bf16.msra.mxu0 %v1602
      %1639 = vmatprep.subr.bf16.mxu0 0
      %1640 = vmatpush1.bf16.msra.mxu0 %v1603
      %1641 = vmatprep.subr.bf16.mxu0 0
      %1642 = vmatpush1.bf16.msra.mxu0 %v1604
      %1643 = vmatprep.subr.bf16.mxu0 0
      %1644 = vmatpush1.bf16.msra.mxu0 %v1605
      %1645 = vmatprep.subr.bf16.mxu0 0
      %1646 = vmatpush1.bf16.msra.mxu0 %v1606
      %1647 = vmatprep.subr.bf16.mxu0 0
      %1648 = vmatpush1.bf16.msra.mxu0 %v1607
      %1649 = vmatprep.subr.bf16.mxu0 0
      %1650 = vmatpush1.bf16.msra.mxu0 %v1608
      %1651 = vmatprep.subr.bf16.mxu0 0
      %1652 = vmatpush1.bf16.msra.mxu0 %v1609
      %1653 = vmatprep.subr.bf16.mxu0 0
      %1654 = vmatpush1.bf16.msra.mxu0 %v1610
      %1655 = vmatprep.subr.bf16.mxu0 0
      %1656 = vmatpush1.bf16.msra.mxu0 %v1611
      %1657 = vmatprep.subr.bf16.mxu0 0
      %1658 = vmatpush1.bf16.msra.mxu0 %v1612
      %1659 = vmatprep.subr.bf16.mxu0 0
      %1660 = vmatpush1.bf16.msra.mxu0 %v1613
      %1661 = vmatprep.subr.bf16.mxu0 0
      %1662 = vmatpush1.bf16.msra.mxu0 %v1614
      %1663 = vmatprep.mubr.bf16.mxu0 %v1534
      %1664 = vmatmul.mubr.bf16.gmra.mrb[0].mxu0 %v1533
      %v1665 = vpop.f32.mrb[0].mxu0
      %v1666 = vadd.f32 0.0, %v1665
      %v1667 = vpop.f32.mrb[0].mxu0
      %v1668 = vpop.f32.mrb[0].mxu0
      %v1669 = vadd.f32 0.0, %v1668
      %v1670 = vpop.f32.mrb[0].mxu0
      %1671 = vdwg.mxu0
      %v1672 = vadd.f32 %v1240, %v1666
      %v1673 = vadd.f32 %v1241, %v1669
      %v1674 = vld [vmem:[%s13] sm:$0x1]
      %v1676 = vlaneseq
      %v1677 = vshrl.u32 %v1676, 7
      %v1678 = vsub.s32 0, %v1677
      %v1679 = vrot.slane %v1674, %v1678
      %v1681 = vadd.f32 %v1672, %v1679
      %v1682 = vadd.f32 %v1673, %v1679
      %1683 = vst.msk [vmem:[%s469] sm:$0xff] %vm476, %v1681
      %1684 = vst.msk [vmem:[%s469 + $0x8] sm:$0xff] %vm476, %v1682
      %s1685 = smul.u32 2, %s25
      %p1686 = scmp.lt.s32.totalorder %s1685, 3
      %s1687 = scalar_select %p1686, %s1685, 3
      %s1688 = smul.addr %s1687, 8
      %s1689 = scalar_lea.vmem %s14, %s1688
      // Predicated region
      $region77: #{swin_forward.13} parent=75 // pred_check
        %p1690 = pneg %p342
      $region78: #{swin_forward.13} parent=75 // pred_check_branch
        %1692 = sbr.rel (%p1690) target = $region80
      $region79: #{swin_forward.13} parent=75 // pred_region
        %s1693 = smul.u32 2, %s25
      $region80: #{swin_forward.13} parent=75 // pred_fallthru
        _
    $region76: #{swin_forward.13} parent=5 // pred_fallthru
      _
    %p1694 = scmp.le.s32.totalorder 2, %s20
    // Predicated region
    $region81: #{swin_forward.13} parent=5 // pred_check
      %p1695 = pneg %p1694
    $region82: #{swin_forward.13} parent=5 // pred_check_branch
      %1697 = sbr.rel (%p1695) target = $region84
    $region83: #{swin_forward.13} parent=5 // pred_region
      %s1698 = ssub.s32 %s20, 2
      // Predicated region
      $region85: #{swin_forward.13} parent=83 // pred_check
        %p1699 = pneg %p348
      $region86: #{swin_forward.13} parent=83 // pred_check_branch
        %1701 = sbr.rel (%p1699) target = $region88
      $region87: #{swin_forward.13} parent=83 // pred_region
        %s1702 = smul.u32 2, %s26
        %p1703 = scmp.lt.s32.totalorder %s1702, 3
        %s1704 = scalar_select %p1703, %s1702, 3
        %s1705 = smul.addr %s1704, 8
        %s1706 = scalar_lea.vmem %s14, %s1705
      $region88: #{swin_forward.13} parent=83 // pred_fallthru
        _
    $region84: #{swin_forward.13} parent=5 // pred_fallthru
      _
  $region6: #{swin_forward.13} parent=0 // loop_footer
    %s24 = sadd.s32 1, %s20
  $region7: #{swin_forward.13} parent=0 // loop_footer_branch
    %19 = sbr.rel target = $region3
  $region8: #{swin_forward.13} parent=0 // loop_exit
    _

</llo_original>
